<compile_context>
chip_gen: v7x
topology: tpu7x:2x2x1
jax: 0.10.0
libtpu: 0.0.40
codegen_flags: <defaults>
</compile_context>

<pallas_src>
import functools

import jax
import jax.numpy as jnp
from jax import lax
from jax.experimental import pallas as pl
from jax.experimental.pallas import tpu as pltpu

# Matrices here are tiny (<= 64x64), so multi-pass f32 MXU cost is negligible while it keeps
# the analytic Hessian + DxD solve tight against the autodiff reference.
jax.config.update("jax_default_matmul_precision", "highest")


def _softplus(x):
    # matches torch.nn.Softplus (beta=1, threshold=20)
    return jnp.where(x > 20.0, x, jnp.log(1.0 + jnp.exp(jnp.minimum(x, 20.0))))


def _dot(a, b):
    return jnp.dot(a, b, preferred_element_type=jnp.float32)


def _dot_t(a, b):
    # a^T @ b without materializing a transpose: contract dim 0 of both operands.
    return lax.dot_general(a, b, dimension_numbers=(((0,), (0,)), ((), ())),
                           preferred_element_type=jnp.float32)


def _lnn_dynamics_kernel(num_layers, q_dim, eps, z_ref, *refs):
    """One grid step == one tile of TILE_B samples living in the lane dimension.

    For L(z) = f(z) + eps*|v|^2 (f = Softplus MLP) computes, per lane:
        gq      = df/dq
        Hvv     = d2f/dv2            (column-restricted B-propagation)
        Hvq @ v = (d2f/dv dq) @ v    (Pearlmutter Hessian-vector product)
    and solves (Hvv + 2*eps*I) qdd = gq - Hvq @ v in-register (unrolled, lane-parallel
    Gaussian elimination with partial pivoting), emitting dz/dt = [v, qdd].
    """
    n_p = 2 * num_layers + 1
    param_refs = refs[:n_p]
    dz_ref = refs[n_p]

    Ws, bs = [], []
    for l in range(num_layers):
        Ws.append(param_refs[2 * l][...])        # (n_{l+1}, n_l)
        bs.append(param_refs[2 * l + 1][...])    # (n_{l+1}, 1)
    w_out = param_refs[2 * num_layers][...]      # (n_L, 1) output weight as a column

    Z = z_ref[...]                               # (2D, T) -- batch in lanes
    D = q_dim
    T = Z.shape[1]
    v = Z[D:, :]                                 # (D, T)  qdot

    # ---- forward through the softplus MLP (keep activation stats) ----
    A = Z
    sigs, secs = [], []
    for l in range(num_layers):
        S = _dot(Ws[l], A) + bs[l]
        sp = _softplus(S)
        sg = jnp.exp(S - sp)                     # sigmoid(S) = softplus'(S), no inf intermediates
        sigs.append(sg)
        secs.append(sg * (1.0 - sg))             # softplus''(S)
        A = sp

    # ---- reverse pass: c_l = df/da_l, delta_l = df/ds_l ; g = df/dz ----
    cs = [None] * num_layers
    cs[num_layers - 1] = w_out
    delta = sigs[num_layers - 1] * w_out
    for l in range(num_layers - 2, -1, -1):
        c = _dot_t(Ws[l + 1], delta)
        cs[l] = c
        delta = sigs[l] * c
    g = _dot_t(Ws[0], delta)                     # (2D, T) = df/dz

    r = [secs[l] * cs[l] for l in range(num_layers)]      # per-layer curvature weights

    # ---- Hessian-vector product H @ [v; 0]: bottom D rows give (d2f/dv dq) @ v ----
    U = jnp.concatenate([v, jnp.zeros_like(v)], axis=0)   # (2D, T)
    ps = [_dot(Ws[0], U)]
    for l in range(1, num_layers):
        ps.append(_dot(Ws[l], sigs[l - 1] * ps[l - 1]))
    acc = r[num_layers - 1] * ps[num_layers - 1]
    for l in range(num_layers - 2, -1, -1):
        acc = r[l] * ps[l] + sigs[l] * _dot_t(Ws[l + 1], acc)
    Hu = _dot_t(Ws[0], acc)                      # (2D, T)
    Hvq_v = Hu[D:, :]                            # (D, T)

    # ---- Hvv = d2f/dv2 via B-propagation restricted to the qdot columns ----
    # B_l[:, j] = d s_l / d v_j ; Hvv[j][k] = sum_l sum_n r_l[n] * B_l[n, j] * B_l[n, k]
    Bv = [Ws[0][:, D + j:D + j + 1] for j in range(D)]    # layer 0: (n_1, 1), lane-independent
    Hvv = [[None] * D for _ in range(D)]
    for j in range(D):
        for k in range(j, D):
            Hvv[j][k] = jnp.zeros((1, T), jnp.float32)
    for l in range(num_layers):
        rl = r[l]
        for j in range(D):
            for k in range(j, D):
                Hvv[j][k] = Hvv[j][k] + jnp.sum(rl * Bv[j] * Bv[k],
                                                axis=0, keepdims=True)
        if l + 1 < num_layers:
            # propagate all D directional columns with ONE matmul (lane-concat, 128-aligned split)
            stacked = jnp.concatenate([sigs[l] * Bv[j] for j in range(D)], axis=1)  # (n, D*T)
            prop = _dot(Ws[l + 1], stacked)                                         # (n', D*T)
            Bv = [prop[:, j * T:(j + 1) * T] for j in range(D)]
    for j in range(D):
        for k in range(j):
            Hvv[j][k] = Hvv[k][j]                # symmetric

    # ---- assemble augmented system: M = Hvv + 2*eps*I ,  rhs = gq - Hvq @ v ----
    two_eps = jnp.float32(2.0 * eps)
    rows = []
    for i in range(D):
        row = [(Hvv[i][j] + two_eps) if j == i else Hvv[i][j] for j in range(D)]
        row.append(g[i:i + 1, :] - Hvq_v[i:i + 1, :])      # rhs_i
        rows.append(row)

    # ---- lane-parallel D x D solve: Gaussian elimination with partial pivoting ----
    for k in range(D):
        for i in range(k + 1, D):                # conditional swaps -> max-|pivot| lands in row k
            cond = jnp.abs(rows[i][k]) > jnp.abs(rows[k][k])
            for j in range(k, D + 1):
                a_kj, a_ij = rows[k][j], rows[i][j]
                rows[k][j] = jnp.where(cond, a_ij, a_kj)
                rows[i][j] = jnp.where(cond, a_kj, a_ij)
        inv_p = 1.0 / rows[k][k]
        for i in range(k + 1, D):
            f = rows[i][k] * inv_p
            for j in range(k + 1, D + 1):
                rows[i][j] = rows[i][j] - f * rows[k][j]
    x = [None] * D
    for i in range(D - 1, -1, -1):
        s = rows[i][D]
        for j in range(i + 1, D):
            s = s - rows[i][j] * x[j]
        x[i] = s / rows[i][i]

    qdd = jnp.concatenate(x, axis=0)             # (D, T)
    dz_ref[...] = jnp.concatenate([v, qdd], axis=0)


def init_lnn_params(key, dof_ndim, num_layers, hidden_size):
    """Deterministic init mirroring mlp(sizes, Softplus, orthogonal_init=True)."""
    sizes = [2 * dof_ndim] + num_layers * [2 * hidden_size] + [1]
    ortho = jax.nn.initializers.orthogonal()
    params = []
    for j in range(len(sizes) - 1):
        key, kw, kb = jax.random.split(key, 3)
        W = ortho(kw, (sizes[j + 1], sizes[j]), jnp.float32)
        bound = 1.0 / float(sizes[j]) ** 0.5
        b = jax.random.uniform(kb, (sizes[j + 1],), jnp.float32, -bound, bound)
        params.append((W, b))
    return params


def lnn_forward(params, t, z, eps=0.1, tile_b=256):
    """Pallas version of LNN.forward(t, z): returns dz/dt of shape (N, 2*D)."""
    del t  # the Lagrangian is time-independent
    z = jnp.asarray(z, jnp.float32)
    N, n0 = z.shape
    D = n0 // 2
    num_layers = len(params) - 1

    # Lane tile: multiple of 128, capped at the 128-rounded batch so small batches
    # don't spend MXU/VPU work on padded junk lanes.
    tile_b = ((tile_b + 127) // 128) * 128
    tb = max(128, min(tile_b, ((N + 127) // 128) * 128))
    n_tiles = (N + tb - 1) // tb
    n_pad = n_tiles * tb
    # Batch goes into the lane dimension; zero-pad to a multiple of tb
    # (padded lanes produce junk that is sliced off before use).
    z_t = jnp.zeros((n0, n_pad), jnp.float32).at[:, :N].set(z.T)

    ins = [z_t]
    in_specs = [pl.BlockSpec((n0, tb), lambda i: (0, i))]
    for (W, b) in params[:-1]:
        Wf = jnp.asarray(W, jnp.float32)
        bc = jnp.asarray(b, jnp.float32).reshape(-1, 1)
        ins += [Wf, bc]
        in_specs += [pl.BlockSpec(Wf.shape, lambda i: (0, 0)),
                     pl.BlockSpec(bc.shape, lambda i: (0, 0))]
    w_out = jnp.asarray(params[-1][0], jnp.float32).T     # (2H, 1) output weight column
    ins.append(w_out)
    in_specs.append(pl.BlockSpec(w_out.shape, lambda i: (0, 0)))

    kernel = functools.partial(_lnn_dynamics_kernel, num_layers, D, float(eps))
    dz_pad = pl.pallas_call(
        kernel,
        grid=(n_tiles,),
        in_specs=in_specs,
        out_specs=pl.BlockSpec((n0, tb), lambda i: (0, i)),
        out_shape=jax.ShapeDtypeStruct((n0, n_pad), jnp.float32),
        compiler_params=pltpu.CompilerParams(
            dimension_semantics=("parallel",)),   # independent batch tiles (2 TCs on v7x)
    )(*ins)
    return dz_pad[:, :N].T


def _lnn_forward_ref(params, t, z, eps=0.1):
    """Pure-JAX autodiff reference (same math, no Pallas) for validation."""
    del t
    D = z.shape[-1] // 2

    def mlp_scalar(zs):
        a = zs
        for (W, b) in params[:-1]:
            a = _softplus(W @ a + b)
        W, b = params[-1]
        return (W @ a + b)[0]

    def lag(zs):
        return mlp_scalar(zs) + eps * jnp.sum(zs[D:] ** 2)

    def one(zs):
        g = jax.grad(lag)(zs)
        Hm = jax.jacfwd(jax.grad(lag))(zs)
        v = zs[D:]
        M = Hm[D:, D:]
        rhs = g[:D] - Hm[D:, :D] @ v
        qdd = jnp.linalg.solve(M, rhs)
        return jnp.concatenate([v, qdd])

    return jax.vmap(one)(z)


if __name__ == "__main__":
    dof_ndim, num_layers, hidden_size, batch = 4, 2, 32, 4

    key = jax.random.PRNGKey(0)
    kp, kz = jax.random.split(key)
    params = init_lnn_params(kp, dof_ndim, num_layers, hidden_size)
    z0 = 0.5 * jax.random.normal(kz, (batch, 2 * dof_ndim), jnp.float32)
    t = jnp.zeros(())

    out = jax.block_until_ready(lnn_forward(params, t, z0))
    ref = jax.block_until_ready(_lnn_forward_ref(params, t, z0))

    assert out.shape == (batch, 2 * dof_ndim)
    if not jnp.allclose(out, ref, rtol=2e-2, atol=2e-3):
        raise AssertionError(
            f"mismatch vs autodiff reference, max abs err = {jnp.max(jnp.abs(out - ref))}")
    print("KERNEL_OK")
</pallas_src>

<mosaic_0001>
module attributes {stable_mosaic.version = 11 : i64} {
  func.func @_lnn_dynamics_kernel(%arg0: i32, %arg1: memref<8x128xf32, #tpu.memory_space<vmem>>, %arg2: memref<64x8xf32, #tpu.memory_space<vmem>>, %arg3: memref<64x1xf32, #tpu.memory_space<vmem>>, %arg4: memref<64x64xf32, #tpu.memory_space<vmem>>, %arg5: memref<64x1xf32, #tpu.memory_space<vmem>>, %arg6: memref<64x1xf32, #tpu.memory_space<vmem>>, %arg7: memref<8x128xf32, #tpu.memory_space<vmem>>) attributes {dimension_semantics = [#tpu.dimension_semantics<parallel>], iteration_bounds = array<i64: 1>, scalar_prefetch = 0 : i64, scratch_operands = 0 : i64, tpu.core_type = #tpu.core_type<tc>, window_params = [{transform_indices = @transform_0, window_bounds = array<i64: 8, 128>}, {pipeline_mode = #tpu.pipeline_mode<synchronous>, transform_indices = @transform_1, window_bounds = array<i64: 64, 8>}, {pipeline_mode = #tpu.pipeline_mode<synchronous>, transform_indices = @transform_2, window_bounds = array<i64: 64, 1>}, {pipeline_mode = #tpu.pipeline_mode<synchronous>, transform_indices = @transform_3, window_bounds = array<i64: 64, 64>}, {pipeline_mode = #tpu.pipeline_mode<synchronous>, transform_indices = @transform_4, window_bounds = array<i64: 64, 1>}, {pipeline_mode = #tpu.pipeline_mode<synchronous>, transform_indices = @transform_5, window_bounds = array<i64: 64, 1>}, {transform_indices = @transform_6, window_bounds = array<i64: 8, 128>}]} {
    %c0 = arith.constant 0 : index
    %c0_0 = arith.constant 0 : index
    %0 = vector.load %arg2[%c0, %c0_0] : memref<64x8xf32, #tpu.memory_space<vmem>>, vector<64x8xf32>
    %c0_1 = arith.constant 0 : index
    %c0_2 = arith.constant 0 : index
    %1 = vector.load %arg3[%c0_1, %c0_2] : memref<64x1xf32, #tpu.memory_space<vmem>>, vector<64x1xf32>
    %c0_3 = arith.constant 0 : index
    %c0_4 = arith.constant 0 : index
    %2 = vector.load %arg4[%c0_3, %c0_4] : memref<64x64xf32, #tpu.memory_space<vmem>>, vector<64x64xf32>
    %c0_5 = arith.constant 0 : index
    %c0_6 = arith.constant 0 : index
    %3 = vector.load %arg5[%c0_5, %c0_6] : memref<64x1xf32, #tpu.memory_space<vmem>>, vector<64x1xf32>
    %c0_7 = arith.constant 0 : index
    %c0_8 = arith.constant 0 : index
    %4 = vector.load %arg6[%c0_7, %c0_8] : memref<64x1xf32, #tpu.memory_space<vmem>>, vector<64x1xf32>
    %c0_9 = arith.constant 0 : index
    %c0_10 = arith.constant 0 : index
    %5 = vector.load %arg1[%c0_9, %c0_10] : memref<8x128xf32, #tpu.memory_space<vmem>>, vector<8x128xf32>
    %6 = vector.extract_strided_slice %5 {offsets = [4, 0], sizes = [4, 128], strides = [1, 1]} : vector<8x128xf32> to vector<4x128xf32>
    %cst = arith.constant dense<0.000000e+00> : vector<64x128xf32>
    %7 = tpu.matmul %0, %5, %cst {dimension_numbers = #tpu.dot_dimension_numbers<[1], [0], [0], [1], [0, 0, 1, 1], [], []>, precision = #tpu.contract_precision<fp32>} : vector<64x8xf32>, vector<8x128xf32>, vector<64x128xf32> -> vector<64x128xf32>
    %8 = vector.broadcast %1 : vector<64x1xf32> to vector<64x128xf32>
    %9 = arith.addf %7, %8 : vector<64x128xf32>
    %cst_11 = arith.constant 2.000000e+01 : f32
    %10 = vector.broadcast %cst_11 : f32 to vector<64x128xf32>
    %11 = arith.cmpf ogt, %9, %10 : vector<64x128xf32>
    %cst_12 = arith.constant 2.000000e+01 : f32
    %12 = vector.broadcast %cst_12 : f32 to vector<64x128xf32>
    %13 = arith.minimumf %9, %12 : vector<64x128xf32>
    %14 = math.exp %13 : vector<64x128xf32>
    %cst_13 = arith.constant 1.000000e+00 : f32
    %15 = vector.broadcast %cst_13 : f32 to vector<64x128xf32>
    %16 = arith.addf %15, %14 : vector<64x128xf32>
    %17 = math.log %16 : vector<64x128xf32>
    %18 = arith.select %11, %9, %17 : vector<64x128xi1>, vector<64x128xf32>
    %19 = arith.subf %9, %18 : vector<64x128xf32>
    %20 = math.exp %19 : vector<64x128xf32>
    %cst_14 = arith.constant 1.000000e+00 : f32
    %21 = vector.broadcast %cst_14 : f32 to vector<64x128xf32>
    %22 = arith.subf %21, %20 : vector<64x128xf32>
    %23 = arith.mulf %20, %22 : vector<64x128xf32>
    %cst_15 = arith.constant dense<0.000000e+00> : vector<64x128xf32>
    %24 = tpu.matmul %2, %18, %cst_15 {dimension_numbers = #tpu.dot_dimension_numbers<[1], [0], [0], [1], [0, 0, 1, 1], [], []>, precision = #tpu.contract_precision<fp32>} : vector<64x64xf32>, vector<64x128xf32>, vector<64x128xf32> -> vector<64x128xf32>
    %25 = vector.broadcast %3 : vector<64x1xf32> to vector<64x128xf32>
    %26 = arith.addf %24, %25 : vector<64x128xf32>
    %cst_16 = arith.constant 2.000000e+01 : f32
    %27 = vector.broadcast %cst_16 : f32 to vector<64x128xf32>
    %28 = arith.cmpf ogt, %26, %27 : vector<64x128xf32>
    %cst_17 = arith.constant 2.000000e+01 : f32
    %29 = vector.broadcast %cst_17 : f32 to vector<64x128xf32>
    %30 = arith.minimumf %26, %29 : vector<64x128xf32>
    %31 = math.exp %30 : vector<64x128xf32>
    %cst_18 = arith.constant 1.000000e+00 : f32
    %32 = vector.broadcast %cst_18 : f32 to vector<64x128xf32>
    %33 = arith.addf %32, %31 : vector<64x128xf32>
    %34 = math.log %33 : vector<64x128xf32>
    %35 = arith.select %28, %26, %34 : vector<64x128xi1>, vector<64x128xf32>
    %36 = arith.subf %26, %35 : vector<64x128xf32>
    %37 = math.exp %36 : vector<64x128xf32>
    %cst_19 = arith.constant 1.000000e+00 : f32
    %38 = vector.broadcast %cst_19 : f32 to vector<64x128xf32>
    %39 = arith.subf %38, %37 : vector<64x128xf32>
    %40 = arith.mulf %37, %39 : vector<64x128xf32>
    %41 = vector.broadcast %4 : vector<64x1xf32> to vector<64x128xf32>
    %42 = arith.mulf %37, %41 : vector<64x128xf32>
    %cst_20 = arith.constant dense<0.000000e+00> : vector<64x128xf32>
    %43 = tpu.matmul %2, %42, %cst_20 {dimension_numbers = #tpu.dot_dimension_numbers<[0], [0], [1], [1], [0, 1, 1, 1], [], []>, precision = #tpu.contract_precision<fp32>} : vector<64x64xf32>, vector<64x128xf32>, vector<64x128xf32> -> vector<64x128xf32>
    %44 = arith.mulf %20, %43 : vector<64x128xf32>
    %cst_21 = arith.constant dense<0.000000e+00> : vector<8x128xf32>
    %45 = tpu.matmul %0, %44, %cst_21 {dimension_numbers = #tpu.dot_dimension_numbers<[0], [0], [1], [1], [0, 1, 1, 1], [], []>, precision = #tpu.contract_precision<fp32>} : vector<64x8xf32>, vector<64x128xf32>, vector<8x128xf32> -> vector<8x128xf32>
    %46 = arith.mulf %23, %43 : vector<64x128xf32>
    %47 = vector.broadcast %4 : vector<64x1xf32> to vector<64x128xf32>
    %48 = arith.mulf %40, %47 : vector<64x128xf32>
    %cst_22 = arith.constant 0.000000e+00 : f32
    %49 = vector.broadcast %cst_22 : f32 to vector<4x128xf32>
    %50 = tpu.concatenate %6, %49 in 0 : vector<4x128xf32>, vector<4x128xf32> -> vector<8x128xf32>
    %cst_23 = arith.constant dense<0.000000e+00> : vector<64x128xf32>
    %51 = tpu.matmul %0, %50, %cst_23 {dimension_numbers = #tpu.dot_dimension_numbers<[1], [0], [0], [1], [0, 0, 1, 1], [], []>, precision = #tpu.contract_precision<fp32>} : vector<64x8xf32>, vector<8x128xf32>, vector<64x128xf32> -> vector<64x128xf32>
    %52 = arith.mulf %20, %51 : vector<64x128xf32>
    %cst_24 = arith.constant dense<0.000000e+00> : vector<64x128xf32>
    %53 = tpu.matmul %2, %52, %cst_24 {dimension_numbers = #tpu.dot_dimension_numbers<[1], [0], [0], [1], [0, 0, 1, 1], [], []>, precision = #tpu.contract_precision<fp32>} : vector<64x64xf32>, vector<64x128xf32>, vector<64x128xf32> -> vector<64x128xf32>
    %54 = arith.mulf %48, %53 : vector<64x128xf32>
    %55 = arith.mulf %46, %51 : vector<64x128xf32>
    %cst_25 = arith.constant dense<0.000000e+00> : vector<64x128xf32>
    %56 = tpu.matmul %2, %54, %cst_25 {dimension_numbers = #tpu.dot_dimension_numbers<[0], [0], [1], [1], [0, 1, 1, 1], [], []>, precision = #tpu.contract_precision<fp32>} : vector<64x64xf32>, vector<64x128xf32>, vector<64x128xf32> -> vector<64x128xf32>
    %57 = arith.mulf %20, %56 : vector<64x128xf32>
    %58 = arith.addf %55, %57 : vector<64x128xf32>
    %cst_26 = arith.constant dense<0.000000e+00> : vector<8x128xf32>
    %59 = tpu.matmul %0, %58, %cst_26 {dimension_numbers = #tpu.dot_dimension_numbers<[0], [0], [1], [1], [0, 1, 1, 1], [], []>, precision = #tpu.contract_precision<fp32>} : vector<64x8xf32>, vector<64x128xf32>, vector<8x128xf32> -> vector<8x128xf32>
    %60 = vector.extract_strided_slice %59 {offsets = [4, 0], sizes = [4, 128], strides = [1, 1]} : vector<8x128xf32> to vector<4x128xf32>
    %61 = vector.extract_strided_slice %0 {offsets = [0, 4], sizes = [64, 1], strides = [1, 1]} : vector<64x8xf32> to vector<64x1xf32>
    %62 = vector.extract_strided_slice %0 {offsets = [0, 5], sizes = [64, 1], strides = [1, 1]} : vector<64x8xf32> to vector<64x1xf32>
    %63 = vector.extract_strided_slice %0 {offsets = [0, 6], sizes = [64, 1], strides = [1, 1]} : vector<64x8xf32> to vector<64x1xf32>
    %64 = vector.extract_strided_slice %0 {offsets = [0, 7], sizes = [64, 1], strides = [1, 1]} : vector<64x8xf32> to vector<64x1xf32>
    %cst_27 = arith.constant 0.000000e+00 : f32
    %65 = vector.broadcast %cst_27 : f32 to vector<1x128xf32>
    %cst_28 = arith.constant 0.000000e+00 : f32
    %66 = vector.broadcast %cst_28 : f32 to vector<1x128xf32>
    %cst_29 = arith.constant 0.000000e+00 : f32
    %67 = vector.broadcast %cst_29 : f32 to vector<1x128xf32>
    %cst_30 = arith.constant 0.000000e+00 : f32
    %68 = vector.broadcast %cst_30 : f32 to vector<1x128xf32>
    %cst_31 = arith.constant 0.000000e+00 : f32
    %69 = vector.broadcast %cst_31 : f32 to vector<1x128xf32>
    %cst_32 = arith.constant 0.000000e+00 : f32
    %70 = vector.broadcast %cst_32 : f32 to vector<1x128xf32>
    %cst_33 = arith.constant 0.000000e+00 : f32
    %71 = vector.broadcast %cst_33 : f32 to vector<1x128xf32>
    %cst_34 = arith.constant 0.000000e+00 : f32
    %72 = vector.broadcast %cst_34 : f32 to vector<1x128xf32>
    %cst_35 = arith.constant 0.000000e+00 : f32
    %73 = vector.broadcast %cst_35 : f32 to vector<1x128xf32>
    %cst_36 = arith.constant 0.000000e+00 : f32
    %74 = vector.broadcast %cst_36 : f32 to vector<1x128xf32>
    %75 = vector.broadcast %61 : vector<64x1xf32> to vector<64x128xf32>
    %76 = arith.mulf %46, %75 : vector<64x128xf32>
    %77 = vector.broadcast %61 : vector<64x1xf32> to vector<64x128xf32>
    %78 = arith.mulf %76, %77 : vector<64x128xf32>
    %cst_37 = arith.constant dense<0.000000e+00> : vector<128xf32>
    %79 = vector.multi_reduction <add>, %78, %cst_37 [0] : vector<64x128xf32> to vector<128xf32>
    %80 = vector.shape_cast %79 : vector<128xf32> to vector<1x128xf32>
    %81 = arith.addf %65, %80 : vector<1x128xf32>
    %82 = vector.broadcast %61 : vector<64x1xf32> to vector<64x128xf32>
    %83 = arith.mulf %46, %82 : vector<64x128xf32>
    %84 = vector.broadcast %62 : vector<64x1xf32> to vector<64x128xf32>
    %85 = arith.mulf %83, %84 : vector<64x128xf32>
    %cst_38 = arith.constant dense<0.000000e+00> : vector<128xf32>
    %86 = vector.multi_reduction <add>, %85, %cst_38 [0] : vector<64x128xf32> to vector<128xf32>
    %87 = vector.shape_cast %86 : vector<128xf32> to vector<1x128xf32>
    %88 = arith.addf %66, %87 : vector<1x128xf32>
    %89 = vector.broadcast %61 : vector<64x1xf32> to vector<64x128xf32>
    %90 = arith.mulf %46, %89 : vector<64x128xf32>
    %91 = vector.broadcast %63 : vector<64x1xf32> to vector<64x128xf32>
    %92 = arith.mulf %90, %91 : vector<64x128xf32>
    %cst_39 = arith.constant dense<0.000000e+00> : vector<128xf32>
    %93 = vector.multi_reduction <add>, %92, %cst_39 [0] : vector<64x128xf32> to vector<128xf32>
    %94 = vector.shape_cast %93 : vector<128xf32> to vector<1x128xf32>
    %95 = arith.addf %67, %94 : vector<1x128xf32>
    %96 = vector.broadcast %61 : vector<64x1xf32> to vector<64x128xf32>
    %97 = arith.mulf %46, %96 : vector<64x128xf32>
    %98 = vector.broadcast %64 : vector<64x1xf32> to vector<64x128xf32>
    %99 = arith.mulf %97, %98 : vector<64x128xf32>
    %cst_40 = arith.constant dense<0.000000e+00> : vector<128xf32>
    %100 = vector.multi_reduction <add>, %99, %cst_40 [0] : vector<64x128xf32> to vector<128xf32>
    %101 = vector.shape_cast %100 : vector<128xf32> to vector<1x128xf32>
    %102 = arith.addf %68, %101 : vector<1x128xf32>
    %103 = vector.broadcast %62 : vector<64x1xf32> to vector<64x128xf32>
    %104 = arith.mulf %46, %103 : vector<64x128xf32>
    %105 = vector.broadcast %62 : vector<64x1xf32> to vector<64x128xf32>
    %106 = arith.mulf %104, %105 : vector<64x128xf32>
    %cst_41 = arith.constant dense<0.000000e+00> : vector<128xf32>
    %107 = vector.multi_reduction <add>, %106, %cst_41 [0] : vector<64x128xf32> to vector<128xf32>
    %108 = vector.shape_cast %107 : vector<128xf32> to vector<1x128xf32>
    %109 = arith.addf %69, %108 : vector<1x128xf32>
    %110 = vector.broadcast %62 : vector<64x1xf32> to vector<64x128xf32>
    %111 = arith.mulf %46, %110 : vector<64x128xf32>
    %112 = vector.broadcast %63 : vector<64x1xf32> to vector<64x128xf32>
    %113 = arith.mulf %111, %112 : vector<64x128xf32>
    %cst_42 = arith.constant dense<0.000000e+00> : vector<128xf32>
    %114 = vector.multi_reduction <add>, %113, %cst_42 [0] : vector<64x128xf32> to vector<128xf32>
    %115 = vector.shape_cast %114 : vector<128xf32> to vector<1x128xf32>
    %116 = arith.addf %70, %115 : vector<1x128xf32>
    %117 = vector.broadcast %62 : vector<64x1xf32> to vector<64x128xf32>
    %118 = arith.mulf %46, %117 : vector<64x128xf32>
    %119 = vector.broadcast %64 : vector<64x1xf32> to vector<64x128xf32>
    %120 = arith.mulf %118, %119 : vector<64x128xf32>
    %cst_43 = arith.constant dense<0.000000e+00> : vector<128xf32>
    %121 = vector.multi_reduction <add>, %120, %cst_43 [0] : vector<64x128xf32> to vector<128xf32>
    %122 = vector.shape_cast %121 : vector<128xf32> to vector<1x128xf32>
    %123 = arith.addf %71, %122 : vector<1x128xf32>
    %124 = vector.broadcast %63 : vector<64x1xf32> to vector<64x128xf32>
    %125 = arith.mulf %46, %124 : vector<64x128xf32>
    %126 = vector.broadcast %63 : vector<64x1xf32> to vector<64x128xf32>
    %127 = arith.mulf %125, %126 : vector<64x128xf32>
    %cst_44 = arith.constant dense<0.000000e+00> : vector<128xf32>
    %128 = vector.multi_reduction <add>, %127, %cst_44 [0] : vector<64x128xf32> to vector<128xf32>
    %129 = vector.shape_cast %128 : vector<128xf32> to vector<1x128xf32>
    %130 = arith.addf %72, %129 : vector<1x128xf32>
    %131 = vector.broadcast %63 : vector<64x1xf32> to vector<64x128xf32>
    %132 = arith.mulf %46, %131 : vector<64x128xf32>
    %133 = vector.broadcast %64 : vector<64x1xf32> to vector<64x128xf32>
    %134 = arith.mulf %132, %133 : vector<64x128xf32>
    %cst_45 = arith.constant dense<0.000000e+00> : vector<128xf32>
    %135 = vector.multi_reduction <add>, %134, %cst_45 [0] : vector<64x128xf32> to vector<128xf32>
    %136 = vector.shape_cast %135 : vector<128xf32> to vector<1x128xf32>
    %137 = arith.addf %73, %136 : vector<1x128xf32>
    %138 = vector.broadcast %64 : vector<64x1xf32> to vector<64x128xf32>
    %139 = arith.mulf %46, %138 : vector<64x128xf32>
    %140 = vector.broadcast %64 : vector<64x1xf32> to vector<64x128xf32>
    %141 = arith.mulf %139, %140 : vector<64x128xf32>
    %cst_46 = arith.constant dense<0.000000e+00> : vector<128xf32>
    %142 = vector.multi_reduction <add>, %141, %cst_46 [0] : vector<64x128xf32> to vector<128xf32>
    %143 = vector.shape_cast %142 : vector<128xf32> to vector<1x128xf32>
    %144 = arith.addf %74, %143 : vector<1x128xf32>
    %145 = vector.broadcast %61 : vector<64x1xf32> to vector<64x128xf32>
    %146 = arith.mulf %20, %145 : vector<64x128xf32>
    %147 = vector.broadcast %62 : vector<64x1xf32> to vector<64x128xf32>
    %148 = arith.mulf %20, %147 : vector<64x128xf32>
    %149 = vector.broadcast %63 : vector<64x1xf32> to vector<64x128xf32>
    %150 = arith.mulf %20, %149 : vector<64x128xf32>
    %151 = vector.broadcast %64 : vector<64x1xf32> to vector<64x128xf32>
    %152 = arith.mulf %20, %151 : vector<64x128xf32>
    %153 = tpu.concatenate %146, %148, %150, %152 in 1 : vector<64x128xf32>, vector<64x128xf32>, vector<64x128xf32>, vector<64x128xf32> -> vector<64x512xf32>
    %cst_47 = arith.constant dense<0.000000e+00> : vector<64x512xf32>
    %154 = tpu.matmul %2, %153, %cst_47 {dimension_numbers = #tpu.dot_dimension_numbers<[1], [0], [0], [1], [0, 0, 1, 1], [], []>, precision = #tpu.contract_precision<fp32>} : vector<64x64xf32>, vector<64x512xf32>, vector<64x512xf32> -> vector<64x512xf32>
    %155 = vector.extract_strided_slice %154 {offsets = [0, 0], sizes = [64, 128], strides = [1, 1]} : vector<64x512xf32> to vector<64x128xf32>
    %156 = vector.extract_strided_slice %154 {offsets = [0, 128], sizes = [64, 128], strides = [1, 1]} : vector<64x512xf32> to vector<64x128xf32>
    %157 = vector.extract_strided_slice %154 {offsets = [0, 256], sizes = [64, 128], strides = [1, 1]} : vector<64x512xf32> to vector<64x128xf32>
    %158 = vector.extract_strided_slice %154 {offsets = [0, 384], sizes = [64, 128], strides = [1, 1]} : vector<64x512xf32> to vector<64x128xf32>
    %159 = arith.mulf %48, %155 : vector<64x128xf32>
    %160 = arith.mulf %159, %155 : vector<64x128xf32>
    %cst_48 = arith.constant dense<0.000000e+00> : vector<128xf32>
    %161 = vector.multi_reduction <add>, %160, %cst_48 [0] : vector<64x128xf32> to vector<128xf32>
    %162 = vector.shape_cast %161 : vector<128xf32> to vector<1x128xf32>
    %163 = arith.addf %81, %162 : vector<1x128xf32>
    %164 = arith.mulf %48, %155 : vector<64x128xf32>
    %165 = arith.mulf %164, %156 : vector<64x128xf32>
    %cst_49 = arith.constant dense<0.000000e+00> : vector<128xf32>
    %166 = vector.multi_reduction <add>, %165, %cst_49 [0] : vector<64x128xf32> to vector<128xf32>
    %167 = vector.shape_cast %166 : vector<128xf32> to vector<1x128xf32>
    %168 = arith.addf %88, %167 : vector<1x128xf32>
    %169 = arith.mulf %48, %155 : vector<64x128xf32>
    %170 = arith.mulf %169, %157 : vector<64x128xf32>
    %cst_50 = arith.constant dense<0.000000e+00> : vector<128xf32>
    %171 = vector.multi_reduction <add>, %170, %cst_50 [0] : vector<64x128xf32> to vector<128xf32>
    %172 = vector.shape_cast %171 : vector<128xf32> to vector<1x128xf32>
    %173 = arith.addf %95, %172 : vector<1x128xf32>
    %174 = arith.mulf %48, %155 : vector<64x128xf32>
    %175 = arith.mulf %174, %158 : vector<64x128xf32>
    %cst_51 = arith.constant dense<0.000000e+00> : vector<128xf32>
    %176 = vector.multi_reduction <add>, %175, %cst_51 [0] : vector<64x128xf32> to vector<128xf32>
    %177 = vector.shape_cast %176 : vector<128xf32> to vector<1x128xf32>
    %178 = arith.addf %102, %177 : vector<1x128xf32>
    %179 = arith.mulf %48, %156 : vector<64x128xf32>
    %180 = arith.mulf %179, %156 : vector<64x128xf32>
    %cst_52 = arith.constant dense<0.000000e+00> : vector<128xf32>
    %181 = vector.multi_reduction <add>, %180, %cst_52 [0] : vector<64x128xf32> to vector<128xf32>
    %182 = vector.shape_cast %181 : vector<128xf32> to vector<1x128xf32>
    %183 = arith.addf %109, %182 : vector<1x128xf32>
    %184 = arith.mulf %48, %156 : vector<64x128xf32>
    %185 = arith.mulf %184, %157 : vector<64x128xf32>
    %cst_53 = arith.constant dense<0.000000e+00> : vector<128xf32>
    %186 = vector.multi_reduction <add>, %185, %cst_53 [0] : vector<64x128xf32> to vector<128xf32>
    %187 = vector.shape_cast %186 : vector<128xf32> to vector<1x128xf32>
    %188 = arith.addf %116, %187 : vector<1x128xf32>
    %189 = arith.mulf %48, %156 : vector<64x128xf32>
    %190 = arith.mulf %189, %158 : vector<64x128xf32>
    %cst_54 = arith.constant dense<0.000000e+00> : vector<128xf32>
    %191 = vector.multi_reduction <add>, %190, %cst_54 [0] : vector<64x128xf32> to vector<128xf32>
    %192 = vector.shape_cast %191 : vector<128xf32> to vector<1x128xf32>
    %193 = arith.addf %123, %192 : vector<1x128xf32>
    %194 = arith.mulf %48, %157 : vector<64x128xf32>
    %195 = arith.mulf %194, %157 : vector<64x128xf32>
    %cst_55 = arith.constant dense<0.000000e+00> : vector<128xf32>
    %196 = vector.multi_reduction <add>, %195, %cst_55 [0] : vector<64x128xf32> to vector<128xf32>
    %197 = vector.shape_cast %196 : vector<128xf32> to vector<1x128xf32>
    %198 = arith.addf %130, %197 : vector<1x128xf32>
    %199 = arith.mulf %48, %157 : vector<64x128xf32>
    %200 = arith.mulf %199, %158 : vector<64x128xf32>
    %cst_56 = arith.constant dense<0.000000e+00> : vector<128xf32>
    %201 = vector.multi_reduction <add>, %200, %cst_56 [0] : vector<64x128xf32> to vector<128xf32>
    %202 = vector.shape_cast %201 : vector<128xf32> to vector<1x128xf32>
    %203 = arith.addf %137, %202 : vector<1x128xf32>
    %204 = arith.mulf %48, %158 : vector<64x128xf32>
    %205 = arith.mulf %204, %158 : vector<64x128xf32>
    %cst_57 = arith.constant dense<0.000000e+00> : vector<128xf32>
    %206 = vector.multi_reduction <add>, %205, %cst_57 [0] : vector<64x128xf32> to vector<128xf32>
    %207 = vector.shape_cast %206 : vector<128xf32> to vector<1x128xf32>
    %208 = arith.addf %144, %207 : vector<1x128xf32>
    %cst_58 = arith.constant 2.000000e-01 : f32
    %209 = vector.broadcast %cst_58 : f32 to vector<1x128xf32>
    %210 = arith.addf %163, %209 : vector<1x128xf32>
    %211 = vector.extract_strided_slice %45 {offsets = [0, 0], sizes = [1, 128], strides = [1, 1]} : vector<8x128xf32> to vector<1x128xf32>
    %212 = vector.extract_strided_slice %60 {offsets = [0, 0], sizes = [1, 128], strides = [1, 1]} : vector<4x128xf32> to vector<1x128xf32>
    %213 = arith.subf %211, %212 : vector<1x128xf32>
    %cst_59 = arith.constant 2.000000e-01 : f32
    %214 = vector.broadcast %cst_59 : f32 to vector<1x128xf32>
    %215 = arith.addf %183, %214 : vector<1x128xf32>
    %216 = vector.extract_strided_slice %45 {offsets = [1, 0], sizes = [1, 128], strides = [1, 1]} : vector<8x128xf32> to vector<1x128xf32>
    %217 = vector.extract_strided_slice %60 {offsets = [1, 0], sizes = [1, 128], strides = [1, 1]} : vector<4x128xf32> to vector<1x128xf32>
    %218 = arith.subf %216, %217 : vector<1x128xf32>
    %cst_60 = arith.constant 2.000000e-01 : f32
    %219 = vector.broadcast %cst_60 : f32 to vector<1x128xf32>
    %220 = arith.addf %198, %219 : vector<1x128xf32>
    %221 = vector.extract_strided_slice %45 {offsets = [2, 0], sizes = [1, 128], strides = [1, 1]} : vector<8x128xf32> to vector<1x128xf32>
    %222 = vector.extract_strided_slice %60 {offsets = [2, 0], sizes = [1, 128], strides = [1, 1]} : vector<4x128xf32> to vector<1x128xf32>
    %223 = arith.subf %221, %222 : vector<1x128xf32>
    %cst_61 = arith.constant 2.000000e-01 : f32
    %224 = vector.broadcast %cst_61 : f32 to vector<1x128xf32>
    %225 = arith.addf %208, %224 : vector<1x128xf32>
    %226 = vector.extract_strided_slice %45 {offsets = [3, 0], sizes = [1, 128], strides = [1, 1]} : vector<8x128xf32> to vector<1x128xf32>
    %227 = vector.extract_strided_slice %60 {offsets = [3, 0], sizes = [1, 128], strides = [1, 1]} : vector<4x128xf32> to vector<1x128xf32>
    %228 = arith.subf %226, %227 : vector<1x128xf32>
    %229 = math.absf %168 : vector<1x128xf32>
    %230 = math.absf %210 : vector<1x128xf32>
    %231 = arith.cmpf ogt, %229, %230 : vector<1x128xf32>
    %232 = arith.select %231, %168, %210 : vector<1x128xi1>, vector<1x128xf32>
    %233 = arith.select %231, %210, %168 : vector<1x128xi1>, vector<1x128xf32>
    %234 = arith.select %231, %215, %168 : vector<1x128xi1>, vector<1x128xf32>
    %235 = arith.select %231, %168, %215 : vector<1x128xi1>, vector<1x128xf32>
    %236 = arith.select %231, %188, %173 : vector<1x128xi1>, vector<1x128xf32>
    %237 = arith.select %231, %173, %188 : vector<1x128xi1>, vector<1x128xf32>
    %238 = arith.select %231, %193, %178 : vector<1x128xi1>, vector<1x128xf32>
    %239 = arith.select %231, %178, %193 : vector<1x128xi1>, vector<1x128xf32>
    %240 = arith.select %231, %218, %213 : vector<1x128xi1>, vector<1x128xf32>
    %241 = arith.select %231, %213, %218 : vector<1x128xi1>, vector<1x128xf32>
    %242 = math.absf %173 : vector<1x128xf32>
    %243 = math.absf %232 : vector<1x128xf32>
    %244 = arith.cmpf ogt, %242, %243 : vector<1x128xf32>
    %245 = arith.select %244, %173, %232 : vector<1x128xi1>, vector<1x128xf32>
    %246 = arith.select %244, %232, %173 : vector<1x128xi1>, vector<1x128xf32>
    %247 = arith.select %244, %188, %234 : vector<1x128xi1>, vector<1x128xf32>
    %248 = arith.select %244, %234, %188 : vector<1x128xi1>, vector<1x128xf32>
    %249 = arith.select %244, %220, %236 : vector<1x128xi1>, vector<1x128xf32>
    %250 = arith.select %244, %236, %220 : vector<1x128xi1>, vector<1x128xf32>
    %251 = arith.select %244, %203, %238 : vector<1x128xi1>, vector<1x128xf32>
    %252 = arith.select %244, %238, %203 : vector<1x128xi1>, vector<1x128xf32>
    %253 = arith.select %244, %223, %240 : vector<1x128xi1>, vector<1x128xf32>
    %254 = arith.select %244, %240, %223 : vector<1x128xi1>, vector<1x128xf32>
    %255 = math.absf %178 : vector<1x128xf32>
    %256 = math.absf %245 : vector<1x128xf32>
    %257 = arith.cmpf ogt, %255, %256 : vector<1x128xf32>
    %258 = arith.select %257, %178, %245 : vector<1x128xi1>, vector<1x128xf32>
    %259 = arith.select %257, %245, %178 : vector<1x128xi1>, vector<1x128xf32>
    %260 = arith.select %257, %193, %247 : vector<1x128xi1>, vector<1x128xf32>
    %261 = arith.select %257, %247, %193 : vector<1x128xi1>, vector<1x128xf32>
    %262 = arith.select %257, %203, %249 : vector<1x128xi1>, vector<1x128xf32>
    %263 = arith.select %257, %249, %203 : vector<1x128xi1>, vector<1x128xf32>
    %264 = arith.select %257, %225, %251 : vector<1x128xi1>, vector<1x128xf32>
    %265 = arith.select %257, %251, %225 : vector<1x128xi1>, vector<1x128xf32>
    %266 = arith.select %257, %228, %253 : vector<1x128xi1>, vector<1x128xf32>
    %267 = arith.select %257, %253, %228 : vector<1x128xi1>, vector<1x128xf32>
    %cst_62 = arith.constant 1.000000e+00 : f32
    %268 = vector.broadcast %cst_62 : f32 to vector<1x128xf32>
    %269 = arith.divf %268, %258 : vector<1x128xf32>
    %270 = arith.mulf %233, %269 : vector<1x128xf32>
    %271 = arith.mulf %270, %260 : vector<1x128xf32>
    %272 = arith.subf %235, %271 : vector<1x128xf32>
    %273 = arith.mulf %270, %262 : vector<1x128xf32>
    %274 = arith.subf %237, %273 : vector<1x128xf32>
    %275 = arith.mulf %270, %264 : vector<1x128xf32>
    %276 = arith.subf %239, %275 : vector<1x128xf32>
    %277 = arith.mulf %270, %266 : vector<1x128xf32>
    %278 = arith.subf %241, %277 : vector<1x128xf32>
    %279 = arith.mulf %246, %269 : vector<1x128xf32>
    %280 = arith.mulf %279, %260 : vector<1x128xf32>
    %281 = arith.subf %248, %280 : vector<1x128xf32>
    %282 = arith.mulf %279, %262 : vector<1x128xf32>
    %283 = arith.subf %250, %282 : vector<1x128xf32>
    %284 = arith.mulf %279, %264 : vector<1x128xf32>
    %285 = arith.subf %252, %284 : vector<1x128xf32>
    %286 = arith.mulf %279, %266 : vector<1x128xf32>
    %287 = arith.subf %254, %286 : vector<1x128xf32>
    %288 = arith.mulf %259, %269 : vector<1x128xf32>
    %289 = arith.mulf %288, %260 : vector<1x128xf32>
    %290 = arith.subf %261, %289 : vector<1x128xf32>
    %291 = arith.mulf %288, %262 : vector<1x128xf32>
    %292 = arith.subf %263, %291 : vector<1x128xf32>
    %293 = arith.mulf %288, %264 : vector<1x128xf32>
    %294 = arith.subf %265, %293 : vector<1x128xf32>
    %295 = arith.mulf %288, %266 : vector<1x128xf32>
    %296 = arith.subf %267, %295 : vector<1x128xf32>
    %297 = math.absf %281 : vector<1x128xf32>
    %298 = math.absf %272 : vector<1x128xf32>
    %299 = arith.cmpf ogt, %297, %298 : vector<1x128xf32>
    %300 = arith.select %299, %281, %272 : vector<1x128xi1>, vector<1x128xf32>
    %301 = arith.select %299, %272, %281 : vector<1x128xi1>, vector<1x128xf32>
    %302 = arith.select %299, %283, %274 : vector<1x128xi1>, vector<1x128xf32>
    %303 = arith.select %299, %274, %283 : vector<1x128xi1>, vector<1x128xf32>
    %304 = arith.select %299, %285, %276 : vector<1x128xi1>, vector<1x128xf32>
    %305 = arith.select %299, %276, %285 : vector<1x128xi1>, vector<1x128xf32>
    %306 = arith.select %299, %287, %278 : vector<1x128xi1>, vector<1x128xf32>
    %307 = arith.select %299, %278, %287 : vector<1x128xi1>, vector<1x128xf32>
    %308 = math.absf %290 : vector<1x128xf32>
    %309 = math.absf %300 : vector<1x128xf32>
    %310 = arith.cmpf ogt, %308, %309 : vector<1x128xf32>
    %311 = arith.select %310, %290, %300 : vector<1x128xi1>, vector<1x128xf32>
    %312 = arith.select %310, %300, %290 : vector<1x128xi1>, vector<1x128xf32>
    %313 = arith.select %310, %292, %302 : vector<1x128xi1>, vector<1x128xf32>
    %314 = arith.select %310, %302, %292 : vector<1x128xi1>, vector<1x128xf32>
    %315 = arith.select %310, %294, %304 : vector<1x128xi1>, vector<1x128xf32>
    %316 = arith.select %310, %304, %294 : vector<1x128xi1>, vector<1x128xf32>
    %317 = arith.select %310, %296, %306 : vector<1x128xi1>, vector<1x128xf32>
    %318 = arith.select %310, %306, %296 : vector<1x128xi1>, vector<1x128xf32>
    %cst_63 = arith.constant 1.000000e+00 : f32
    %319 = vector.broadcast %cst_63 : f32 to vector<1x128xf32>
    %320 = arith.divf %319, %311 : vector<1x128xf32>
    %321 = arith.mulf %301, %320 : vector<1x128xf32>
    %322 = arith.mulf %321, %313 : vector<1x128xf32>
    %323 = arith.subf %303, %322 : vector<1x128xf32>
    %324 = arith.mulf %321, %315 : vector<1x128xf32>
    %325 = arith.subf %305, %324 : vector<1x128xf32>
    %326 = arith.mulf %321, %317 : vector<1x128xf32>
    %327 = arith.subf %307, %326 : vector<1x128xf32>
    %328 = arith.mulf %312, %320 : vector<1x128xf32>
    %329 = arith.mulf %328, %313 : vector<1x128xf32>
    %330 = arith.subf %314, %329 : vector<1x128xf32>
    %331 = arith.mulf %328, %315 : vector<1x128xf32>
    %332 = arith.subf %316, %331 : vector<1x128xf32>
    %333 = arith.mulf %328, %317 : vector<1x128xf32>
    %334 = arith.subf %318, %333 : vector<1x128xf32>
    %335 = math.absf %330 : vector<1x128xf32>
    %336 = math.absf %323 : vector<1x128xf32>
    %337 = arith.cmpf ogt, %335, %336 : vector<1x128xf32>
    %338 = arith.select %337, %330, %323 : vector<1x128xi1>, vector<1x128xf32>
    %339 = arith.select %337, %323, %330 : vector<1x128xi1>, vector<1x128xf32>
    %340 = arith.select %337, %332, %325 : vector<1x128xi1>, vector<1x128xf32>
    %341 = arith.select %337, %325, %332 : vector<1x128xi1>, vector<1x128xf32>
    %342 = arith.select %337, %334, %327 : vector<1x128xi1>, vector<1x128xf32>
    %343 = arith.select %337, %327, %334 : vector<1x128xi1>, vector<1x128xf32>
    %cst_64 = arith.constant 1.000000e+00 : f32
    %344 = vector.broadcast %cst_64 : f32 to vector<1x128xf32>
    %345 = arith.divf %344, %338 : vector<1x128xf32>
    %346 = arith.mulf %339, %345 : vector<1x128xf32>
    %347 = arith.mulf %346, %340 : vector<1x128xf32>
    %348 = arith.subf %341, %347 : vector<1x128xf32>
    %349 = arith.mulf %346, %342 : vector<1x128xf32>
    %350 = arith.subf %343, %349 : vector<1x128xf32>
    %351 = arith.divf %350, %348 : vector<1x128xf32>
    %352 = arith.mulf %340, %351 : vector<1x128xf32>
    %353 = arith.subf %342, %352 : vector<1x128xf32>
    %354 = arith.divf %353, %338 : vector<1x128xf32>
    %355 = arith.mulf %313, %354 : vector<1x128xf32>
    %356 = arith.subf %317, %355 : vector<1x128xf32>
    %357 = arith.mulf %315, %351 : vector<1x128xf32>
    %358 = arith.subf %356, %357 : vector<1x128xf32>
    %359 = arith.divf %358, %311 : vector<1x128xf32>
    %360 = arith.mulf %260, %359 : vector<1x128xf32>
    %361 = arith.subf %266, %360 : vector<1x128xf32>
    %362 = arith.mulf %262, %354 : vector<1x128xf32>
    %363 = arith.subf %361, %362 : vector<1x128xf32>
    %364 = arith.mulf %264, %351 : vector<1x128xf32>
    %365 = arith.subf %363, %364 : vector<1x128xf32>
    %366 = arith.divf %365, %258 : vector<1x128xf32>
    %367 = tpu.concatenate %366, %359, %354, %351 in 0 : vector<1x128xf32>, vector<1x128xf32>, vector<1x128xf32>, vector<1x128xf32> -> vector<4x128xf32>
    %368 = tpu.concatenate %6, %367 in 0 : vector<4x128xf32>, vector<4x128xf32> -> vector<8x128xf32>
    %c0_65 = arith.constant 0 : index
    %c0_66 = arith.constant 0 : index
    %369 = vector.load %arg7[%c0_65, %c0_66] : memref<8x128xf32, #tpu.memory_space<vmem>>, vector<8x128xf32>
    tpu.vector_store %arg7[%c0_65, %c0_66], %368 {strides = array<i32>} : memref<8x128xf32, #tpu.memory_space<vmem>>, vector<8x128xf32>,
    return
  }
  func.func @transform_0(%arg0: i32) -> (i32, i32) {
    %c0_i32 = arith.constant 0 : i32
    %c0_i32_0 = arith.constant 0 : i32
    return %c0_i32, %arg0 : i32, i32
  }
  func.func @transform_1(%arg0: i32) -> (i32, i32) {
    %c0_i32 = arith.constant 0 : i32
    %c0_i32_0 = arith.constant 0 : i32
    %c0_i32_1 = arith.constant 0 : i32
    return %c0_i32, %c0_i32_0 : i32, i32
  }
  func.func @transform_2(%arg0: i32) -> (i32, i32) {
    %c0_i32 = arith.constant 0 : i32
    %c0_i32_0 = arith.constant 0 : i32
    %c0_i32_1 = arith.constant 0 : i32
    return %c0_i32, %c0_i32_0 : i32, i32
  }
  func.func @transform_3(%arg0: i32) -> (i32, i32) {
    %c0_i32 = arith.constant 0 : i32
    %c0_i32_0 = arith.constant 0 : i32
    %c0_i32_1 = arith.constant 0 : i32
    return %c0_i32, %c0_i32_0 : i32, i32
  }
  func.func @transform_4(%arg0: i32) -> (i32, i32) {
    %c0_i32 = arith.constant 0 : i32
    %c0_i32_0 = arith.constant 0 : i32
    %c0_i32_1 = arith.constant 0 : i32
    return %c0_i32, %c0_i32_0 : i32, i32
  }
  func.func @transform_5(%arg0: i32) -> (i32, i32) {
    %c0_i32 = arith.constant 0 : i32
    %c0_i32_0 = arith.constant 0 : i32
    %c0_i32_1 = arith.constant 0 : i32
    return %c0_i32, %c0_i32_0 : i32, i32
  }
  func.func @transform_6(%arg0: i32) -> (i32, i32) {
    %c0_i32 = arith.constant 0 : i32
    %c0_i32_0 = arith.constant 0 : i32
    return %c0_i32, %arg0 : i32, i32
  }
}

</mosaic_0001>

<llo_original>
// kernel: tpu_custom_call.1
$region0: #{tpu_custom_call.1}
  #allocation0 [shape = 'u32[]', space=smem, size = 0x4, offset = 0x4, fixed_abs, tag = 'smem constant byte address 0x4 - core index']
  #allocation1 [shape = 'u32[144,128]{1,0:T(1,128)}', space=vmem, size = 0x12000, scoped, tag = 'internal scratch']
  %s0 = inlined_call_operand.vmem [shape: f32[8,128], index: 0, kind: input, shape index: {}]
  %s1 = inlined_call_operand.vmem [shape: f32[64,8], index: 1, kind: input, shape index: {}]
  %s2 = inlined_call_operand.vmem [shape: f32[64,1], index: 2, kind: input, shape index: {}]
  %s3 = inlined_call_operand.vmem [shape: f32[64,64], index: 3, kind: input, shape index: {}]
  %s4 = inlined_call_operand.vmem [shape: f32[64,1], index: 4, kind: input, shape index: {}]
  %s5 = inlined_call_operand.vmem [shape: f32[64,1], index: 5, kind: input, shape index: {}]
  %s6 = inlined_call_operand.hbm [shape: f32[8,128], index: 6, kind: output, shape index: {}]
  %s7 = sld [smem:[#allocation0]]
  $region34: #{tpu_custom_call.1} parent=0
    _
  %s9 = ssub.s32 1, %s7
  %s10 = scalar_select 0, %s9, %s7
  $region1: #{tpu_custom_call.1} parent=0
    #allocation2 [shape = 'u8[4096]{0}', space=vmem, size = 0x1000, scoped, tag = 'output window, operand 0, single buffered']
    #allocation3 [shape = 's32[1]{0}', space=sflag, size = 0x4, scoped, tag = 'scoped memory for tpu_custom_call.1']
    %11 = vsyncpa [#allocation3], 0
    // Predicated region
    $region2: #{tpu_custom_call.1} parent=1 // pred_check
      _
    $region3: #{tpu_custom_call.1} parent=1 // pred_check_branch
      %13 = sbr.rel (0) target = $region5
    $region4: #{tpu_custom_call.1} parent=1 // pred_region
      _
    $region5: #{tpu_custom_call.1} parent=1 // pred_fallthru
      _
    // Predicated region
    $region6: #{tpu_custom_call.1} parent=1 // pred_check
      _
    $region7: #{tpu_custom_call.1} parent=1 // pred_check_branch
      %15 = sbr.rel (0) target = $region9
    $region8: #{tpu_custom_call.1} parent=1 // pred_region
      _
    $region9: #{tpu_custom_call.1} parent=1 // pred_fallthru
      _
    // Predicated region
    $region10: #{tpu_custom_call.1} parent=1 // pred_check
      _
    $region11: #{tpu_custom_call.1} parent=1 // pred_check_branch
      %17 = sbr.rel (0) target = $region13
    $region12: #{tpu_custom_call.1} parent=1 // pred_region
      _
    $region13: #{tpu_custom_call.1} parent=1 // pred_fallthru
      _
    // Predicated region
    $region14: #{tpu_custom_call.1} parent=1 // pred_check
      _
    $region15: #{tpu_custom_call.1} parent=1 // pred_check_branch
      %19 = sbr.rel (0) target = $region17
    $region16: #{tpu_custom_call.1} parent=1 // pred_region
      _
    $region17: #{tpu_custom_call.1} parent=1 // pred_fallthru
      _
    // Predicated region
    $region18: #{tpu_custom_call.1} parent=1 // pred_check
      _
    $region19: #{tpu_custom_call.1} parent=1 // pred_check_branch
      %21 = sbr.rel (0) target = $region21
    $region20: #{tpu_custom_call.1} parent=1 // pred_region
      _
    $region21: #{tpu_custom_call.1} parent=1 // pred_fallthru
      _
    // Predicated region
    $region22: #{tpu_custom_call.1} parent=1 // pred_check
      _
    $region23: #{tpu_custom_call.1} parent=1 // pred_check_branch
      %23 = sbr.rel (0) target = $region25
    $region24: #{tpu_custom_call.1} parent=1 // pred_region
      _
    $region25: #{tpu_custom_call.1} parent=1 // pred_fallthru
      _
    %v24 = vld [vmem:[%s1] sm:$0xff]
    %v25 = vld [vmem:[%s1 + $0x8] sm:$0xff]
    %v26 = vld [vmem:[%s1 + $0x10] sm:$0xff]
    %v27 = vld [vmem:[%s1 + $0x18] sm:$0xff]
    %v28 = vld [vmem:[%s1 + $0x20] sm:$0xff]
    %v29 = vld [vmem:[%s1 + $0x28] sm:$0xff]
    %v30 = vld [vmem:[%s1 + $0x30] sm:$0xff]
    %v31 = vld [vmem:[%s1 + $0x38] sm:$0xff]
    %v32 = vld [vmem:[%s2] sm:$0xff]
    %v33 = vld [vmem:[%s2 + $0x8] sm:$0xff]
    %v34 = vld [vmem:[%s2 + $0x10] sm:$0xff]
    %v35 = vld [vmem:[%s2 + $0x18] sm:$0xff]
    %v36 = vld [vmem:[%s2 + $0x20] sm:$0xff]
    %v37 = vld [vmem:[%s2 + $0x28] sm:$0xff]
    %v38 = vld [vmem:[%s2 + $0x30] sm:$0xff]
    %v39 = vld [vmem:[%s2 + $0x38] sm:$0xff]
    %v40 = vld [vmem:[%s3] sm:$0xff]
    %v41 = vld [vmem:[%s3 + $0x8] sm:$0xff]
    %v42 = vld [vmem:[%s3 + $0x10] sm:$0xff]
    %v43 = vld [vmem:[%s3 + $0x18] sm:$0xff]
    %v44 = vld [vmem:[%s3 + $0x20] sm:$0xff]
    %v45 = vld [vmem:[%s3 + $0x28] sm:$0xff]
    %v46 = vld [vmem:[%s3 + $0x30] sm:$0xff]
    %v47 = vld [vmem:[%s3 + $0x38] sm:$0xff]
    %v48 = vld [vmem:[%s4] sm:$0xff]
    %v49 = vld [vmem:[%s4 + $0x8] sm:$0xff]
    %v50 = vld [vmem:[%s4 + $0x10] sm:$0xff]
    %v51 = vld [vmem:[%s4 + $0x18] sm:$0xff]
    %v52 = vld [vmem:[%s4 + $0x20] sm:$0xff]
    %v53 = vld [vmem:[%s4 + $0x28] sm:$0xff]
    %v54 = vld [vmem:[%s4 + $0x30] sm:$0xff]
    %v55 = vld [vmem:[%s4 + $0x38] sm:$0xff]
    %v56 = vld [vmem:[%s5] sm:$0xff]
    %v57 = vld [vmem:[%s5 + $0x8] sm:$0xff]
    %v58 = vld [vmem:[%s5 + $0x10] sm:$0xff]
    %v59 = vld [vmem:[%s5 + $0x18] sm:$0xff]
    %v60 = vld [vmem:[%s5 + $0x20] sm:$0xff]
    %v61 = vld [vmem:[%s5 + $0x28] sm:$0xff]
    %v62 = vld [vmem:[%s5 + $0x30] sm:$0xff]
    %v63 = vld [vmem:[%s5 + $0x38] sm:$0xff]
    %v64 = vld [vmem:[%s0] sm:$0xff]
    %66 = vset.pattern.permute.xlu0 0
    %67 = vperm.xlu0 %66, %v32
    %v68 = vpop.permute.xlu0 %67
    %71 = vset.pattern.permute.xlu0 0
    %72 = vperm.xlu0 %71, %v33
    %v73 = vpop.permute.xlu0 %72
    %76 = vset.pattern.permute.xlu0 0
    %77 = vperm.xlu0 %76, %v34
    %v78 = vpop.permute.xlu0 %77
    %81 = vset.pattern.permute.xlu0 0
    %82 = vperm.xlu0 %81, %v35
    %v83 = vpop.permute.xlu0 %82
    %86 = vset.pattern.permute.xlu0 0
    %87 = vperm.xlu0 %86, %v36
    %v88 = vpop.permute.xlu0 %87
    %91 = vset.pattern.permute.xlu0 0
    %92 = vperm.xlu0 %91, %v37
    %v93 = vpop.permute.xlu0 %92
    %96 = vset.pattern.permute.xlu0 0
    %97 = vperm.xlu0 %96, %v38
    %v98 = vpop.permute.xlu0 %97
    %101 = vset.pattern.permute.xlu0 0
    %102 = vperm.xlu0 %101, %v39
    %v103 = vpop.permute.xlu0 %102
    %vm105 = vcmask 64512
    %v107 = vsel %vm105, %v24, 0
    %v110 = vsel %vm105, %v25, 0
    %v113 = vsel %vm105, %v26, 0
    %v116 = vsel %vm105, %v27, 0
    %v119 = vsel %vm105, %v28, 0
    %v122 = vsel %vm105, %v29, 0
    %v125 = vsel %vm105, %v30, 0
    %v128 = vsel %vm105, %v31, 0
    %130 = vmatprep.subr.mxu0 0.0
    %v131 = vand.u32 %v64, 4294901760
    %132 = vmatpush1.msra.mxu0 %v131
    %133 = vmatprep.subr.mxu0 0.0
    %134 = vmatpush1.msra.mxu0 0.0
    %135 = vmatprep.subr.mxu0 0.0
    %136 = vmatpush1.msra.mxu0 0.0
    %137 = vmatprep.subr.mxu0 0.0
    %138 = vmatpush1.msra.mxu0 0.0
    %139 = vmatprep.subr.mxu0 0.0
    %140 = vmatpush1.msra.mxu0 0.0
    %141 = vmatprep.subr.mxu0 0.0
    %142 = vmatpush1.msra.mxu0 0.0
    %143 = vmatprep.subr.mxu0 0.0
    %144 = vmatpush1.msra.mxu0 0.0
    %145 = vmatprep.subr.mxu0 0.0
    %146 = vmatpush1.msra.mxu0 0.0
    %147 = vmatprep.subr.mxu0 0.0
    %148 = vmatpush1.msra.mxu0 0.0
    %149 = vmatprep.subr.mxu0 0.0
    %150 = vmatpush1.msra.mxu0 0.0
    %151 = vmatprep.subr.mxu0 0.0
    %152 = vmatpush1.msra.mxu0 0.0
    %153 = vmatprep.subr.mxu0 0.0
    %154 = vmatpush1.msra.mxu0 0.0
    %155 = vmatprep.subr.mxu0 0.0
    %156 = vmatpush1.msra.mxu0 0.0
    %157 = vmatprep.subr.mxu0 0.0
    %158 = vmatpush1.msra.mxu0 0.0
    %159 = vmatprep.subr.mxu0 0.0
    %160 = vmatpush1.msra.mxu0 0.0
    %161 = vmatprep.subr.mxu0 0.0
    %162 = vmatpush1.msra.mxu0 0.0
    %163 = vmatprep.subr.mxu0 0.0
    %164 = vmatpush1.msra.mxu0 0.0
    %165 = vmatprep.subr.mxu0 0.0
    %166 = vmatpush1.msra.mxu0 0.0
    %167 = vmatprep.subr.mxu0 0.0
    %168 = vmatpush1.msra.mxu0 0.0
    %169 = vmatprep.subr.mxu0 0.0
    %170 = vmatpush1.msra.mxu0 0.0
    %171 = vmatprep.subr.mxu0 0.0
    %172 = vmatpush1.msra.mxu0 0.0
    %173 = vmatprep.subr.mxu0 0.0
    %174 = vmatpush1.msra.mxu0 0.0
    %175 = vmatprep.subr.mxu0 0.0
    %176 = vmatpush1.msra.mxu0 0.0
    %177 = vmatprep.subr.mxu0 0.0
    %178 = vmatpush1.msra.mxu0 0.0
    %179 = vmatprep.subr.mxu0 0.0
    %180 = vmatpush1.msra.mxu0 0.0
    %181 = vmatprep.subr.mxu0 0.0
    %182 = vmatpush1.msra.mxu0 0.0
    %183 = vmatprep.subr.mxu0 0.0
    %184 = vmatpush1.msra.mxu0 0.0
    %185 = vmatprep.subr.mxu0 0.0
    %186 = vmatpush1.msra.mxu0 0.0
    %187 = vmatprep.subr.mxu0 0.0
    %188 = vmatpush1.msra.mxu0 0.0
    %189 = vmatprep.subr.mxu0 0.0
    %190 = vmatpush1.msra.mxu0 0.0
    %191 = vmatprep.subr.mxu0 0.0
    %192 = vmatpush1.msra.mxu0 0.0
    %193 = vmatprep.subr.mxu0 0.0
    %194 = vmatpush1.msra.mxu0 0.0
    %195 = vmatprep.mubr.f32.mxu0 0.0
    %v196 = vand.u32 %v107, 4294901760
    %v197 = vsub.f32 %v107, %v196
    %v198 = vand.u32 %v197, 4294901760
    %v199 = vsub.f32 %v197, %v198
    %v200 = vand.u32 %v199, 4294901760
    %201 = vmatmul.mubr.f32.gmra.mrb[0].mxu0 %v200
    %v202 = vpop.f32.mrb[0].mxu0
    %v203 = vadd.f32 %v68, %v202
    %v204 = vpop.f32.mrb[0].mxu0
    %205 = vmatprep.mubr.f32.mxu0 0.0
    %v206 = vand.u32 %v110, 4294901760
    %v207 = vsub.f32 %v110, %v206
    %v208 = vand.u32 %v207, 4294901760
    %v209 = vsub.f32 %v207, %v208
    %v210 = vand.u32 %v209, 4294901760
    %211 = vmatmul.mubr.f32.gmra.mrb[0].mxu0 %v210
    %v212 = vpop.f32.mrb[0].mxu0
    %v213 = vadd.f32 %v73, %v212
    %v214 = vpop.f32.mrb[0].mxu0
    %215 = vmatprep.mubr.f32.mxu0 0.0
    %v216 = vand.u32 %v113, 4294901760
    %v217 = vsub.f32 %v113, %v216
    %v218 = vand.u32 %v217, 4294901760
    %v219 = vsub.f32 %v217, %v218
    %v220 = vand.u32 %v219, 4294901760
    %221 = vmatmul.mubr.f32.gmra.mrb[0].mxu0 %v220
    %v222 = vpop.f32.mrb[0].mxu0
    %v223 = vadd.f32 %v78, %v222
    %v224 = vpop.f32.mrb[0].mxu0
    %225 = vmatprep.mubr.f32.mxu0 0.0
    %v226 = vand.u32 %v116, 4294901760
    %v227 = vsub.f32 %v116, %v226
    %v228 = vand.u32 %v227, 4294901760
    %v229 = vsub.f32 %v227, %v228
    %v230 = vand.u32 %v229, 4294901760
    %231 = vmatmul.mubr.f32.gmra.mrb[0].mxu0 %v230
    %v232 = vpop.f32.mrb[0].mxu0
    %v233 = vadd.f32 %v83, %v232
    %v234 = vpop.f32.mrb[0].mxu0
    %235 = vmatprep.mubr.f32.mxu0 0.0
    %v236 = vand.u32 %v119, 4294901760
    %v237 = vsub.f32 %v119, %v236
    %v238 = vand.u32 %v237, 4294901760
    %v239 = vsub.f32 %v237, %v238
    %v240 = vand.u32 %v239, 4294901760
    %241 = vmatmul.mubr.f32.gmra.mrb[0].mxu0 %v240
    %v242 = vpop.f32.mrb[0].mxu0
    %v243 = vadd.f32 %v88, %v242
    %v244 = vpop.f32.mrb[0].mxu0
    %245 = vmatprep.mubr.f32.mxu0 0.0
    %v246 = vand.u32 %v122, 4294901760
    %v247 = vsub.f32 %v122, %v246
    %v248 = vand.u32 %v247, 4294901760
    %v249 = vsub.f32 %v247, %v248
    %v250 = vand.u32 %v249, 4294901760
    %251 = vmatmul.mubr.f32.gmra.mrb[0].mxu0 %v250
    %v252 = vpop.f32.mrb[0].mxu0
    %v253 = vadd.f32 %v93, %v252
    %v254 = vpop.f32.mrb[0].mxu0
    %255 = vmatprep.mubr.f32.mxu0 0.0
    %v256 = vand.u32 %v125, 4294901760
    %v257 = vsub.f32 %v125, %v256
    %v258 = vand.u32 %v257, 4294901760
    %v259 = vsub.f32 %v257, %v258
    %v260 = vand.u32 %v259, 4294901760
    %261 = vmatmul.mubr.f32.gmra.mrb[0].mxu0 %v260
    %v262 = vpop.f32.mrb[0].mxu0
    %v263 = vadd.f32 %v98, %v262
    %v264 = vpop.f32.mrb[0].mxu0
    %265 = vmatprep.mubr.f32.mxu0 0.0
    %v266 = vand.u32 %v128, 4294901760
    %v267 = vsub.f32 %v128, %v266
    %v268 = vand.u32 %v267, 4294901760
    %v269 = vsub.f32 %v267, %v268
    %v270 = vand.u32 %v269, 4294901760
    %271 = vmatmul.mubr.f32.gmra.mrb[0].mxu0 %v270
    %v272 = vpop.f32.mrb[0].mxu0
    %v273 = vadd.f32 %v103, %v272
    %v274 = vpop.f32.mrb[0].mxu0
    %275 = vdwg.mxu0
    %276 = vmatprep.subr.mxu0 0.0
    %v277 = vand.u32 %v64, 4294901760
    %v278 = vsub.f32 %v64, %v277
    %v279 = vand.u32 %v278, 4294901760
    %v280 = vsub.f32 %v278, %v279
    %v281 = vand.u32 %v280, 4294901760
    %282 = vmatpush1.msra.mxu0 %v281
    %283 = vmatprep.subr.mxu0 0.0
    %284 = vmatpush1.msra.mxu0 0.0
    %285 = vmatprep.subr.mxu0 0.0
    %286 = vmatpush1.msra.mxu0 0.0
    %287 = vmatprep.subr.mxu0 0.0
    %288 = vmatpush1.msra.mxu0 0.0
    %289 = vmatprep.subr.mxu0 0.0
    %290 = vmatpush1.msra.mxu0 0.0
    %291 = vmatprep.subr.mxu0 0.0
    %292 = vmatpush1.msra.mxu0 0.0
    %293 = vmatprep.subr.mxu0 0.0
    %294 = vmatpush1.msra.mxu0 0.0
    %295 = vmatprep.subr.mxu0 0.0
    %296 = vmatpush1.msra.mxu0 0.0
    %297 = vmatprep.subr.mxu0 0.0
    %298 = vmatpush1.msra.mxu0 0.0
    %299 = vmatprep.subr.mxu0 0.0
    %300 = vmatpush1.msra.mxu0 0.0
    %301 = vmatprep.subr.mxu0 0.0
    %302 = vmatpush1.msra.mxu0 0.0
    %303 = vmatprep.subr.mxu0 0.0
    %304 = vmatpush1.msra.mxu0 0.0
    %305 = vmatprep.subr.mxu0 0.0
    %306 = vmatpush1.msra.mxu0 0.0
    %307 = vmatprep.subr.mxu0 0.0
    %308 = vmatpush1.msra.mxu0 0.0
    %309 = vmatprep.subr.mxu0 0.0
    %310 = vmatpush1.msra.mxu0 0.0
    %311 = vmatprep.subr.mxu0 0.0
    %312 = vmatpush1.msra.mxu0 0.0
    %313 = vmatprep.subr.mxu0 0.0
    %314 = vmatpush1.msra.mxu0 0.0
    %315 = vmatprep.subr.mxu0 0.0
    %316 = vmatpush1.msra.mxu0 0.0
    %317 = vmatprep.subr.mxu0 0.0
    %318 = vmatpush1.msra.mxu0 0.0
    %319 = vmatprep.subr.mxu0 0.0
    %320 = vmatpush1.msra.mxu0 0.0
    %321 = vmatprep.subr.mxu0 0.0
    %322 = vmatpush1.msra.mxu0 0.0
    %323 = vmatprep.subr.mxu0 0.0
    %324 = vmatpush1.msra.mxu0 0.0
    %325 = vmatprep.subr.mxu0 0.0
    %326 = vmatpush1.msra.mxu0 0.0
    %327 = vmatprep.subr.mxu0 0.0
    %328 = vmatpush1.msra.mxu0 0.0
    %329 = vmatprep.subr.mxu0 0.0
    %330 = vmatpush1.msra.mxu0 0.0
    %331 = vmatprep.subr.mxu0 0.0
    %332 = vmatpush1.msra.mxu0 0.0
    %333 = vmatprep.subr.mxu0 0.0
    %334 = vmatpush1.msra.mxu0 0.0
    %335 = vmatprep.subr.mxu0 0.0
    %336 = vmatpush1.msra.mxu0 0.0
    %337 = vmatprep.subr.mxu0 0.0
    %338 = vmatpush1.msra.mxu0 0.0
    %339 = vmatprep.subr.mxu0 0.0
    %340 = vmatpush1.msra.mxu0 0.0
    %341 = vmatprep.subr.mxu0 0.0
    %342 = vmatpush1.msra.mxu0 0.0
    %343 = vmatprep.subr.mxu0 0.0
    %344 = vmatpush1.msra.mxu0 0.0
    %345 = vmatprep.mubr.f32.mxu0 0.0
    %v346 = vand.u32 %v107, 4294901760
    %347 = vmatmul.mubr.f32.gmra.mrb[0].mxu0 %v346
    %v348 = vpop.f32.mrb[0].mxu0
    %v349 = vadd.f32 %v203, %v348
    %v350 = vpop.f32.mrb[0].mxu0
    %351 = vmatprep.mubr.f32.mxu0 0.0
    %v352 = vand.u32 %v110, 4294901760
    %353 = vmatmul.mubr.f32.gmra.mrb[0].mxu0 %v352
    %v354 = vpop.f32.mrb[0].mxu0
    %v355 = vadd.f32 %v213, %v354
    %v356 = vpop.f32.mrb[0].mxu0
    %357 = vmatprep.mubr.f32.mxu0 0.0
    %v358 = vand.u32 %v113, 4294901760
    %359 = vmatmul.mubr.f32.gmra.mrb[0].mxu0 %v358
    %v360 = vpop.f32.mrb[0].mxu0
    %v361 = vadd.f32 %v223, %v360
    %v362 = vpop.f32.mrb[0].mxu0
    %363 = vmatprep.mubr.f32.mxu0 0.0
    %v364 = vand.u32 %v116, 4294901760
    %365 = vmatmul.mubr.f32.gmra.mrb[0].mxu0 %v364
    %v366 = vpop.f32.mrb[0].mxu0
    %v367 = vadd.f32 %v233, %v366
    %v368 = vpop.f32.mrb[0].mxu0
    %369 = vmatprep.mubr.f32.mxu0 0.0
    %v370 = vand.u32 %v119, 4294901760
    %371 = vmatmul.mubr.f32.gmra.mrb[0].mxu0 %v370
    %v372 = vpop.f32.mrb[0].mxu0
    %v373 = vadd.f32 %v243, %v372
    %v374 = vpop.f32.mrb[0].mxu0
    %375 = vmatprep.mubr.f32.mxu0 0.0
    %v376 = vand.u32 %v122, 4294901760
    %377 = vmatmul.mubr.f32.gmra.mrb[0].mxu0 %v376
    %v378 = vpop.f32.mrb[0].mxu0
    %v379 = vadd.f32 %v253, %v378
    %v380 = vpop.f32.mrb[0].mxu0
    %381 = vmatprep.mubr.f32.mxu0 0.0
    %v382 = vand.u32 %v125, 4294901760
    %383 = vmatmul.mubr.f32.gmra.mrb[0].mxu0 %v382
    %v384 = vpop.f32.mrb[0].mxu0
    %v385 = vadd.f32 %v263, %v384
    %v386 = vpop.f32.mrb[0].mxu0
    %387 = vmatprep.mubr.f32.mxu0 0.0
    %v388 = vand.u32 %v128, 4294901760
    %389 = vmatmul.mubr.f32.gmra.mrb[0].mxu0 %v388
    %v390 = vpop.f32.mrb[0].mxu0
    %v391 = vadd.f32 %v273, %v390
    %v392 = vpop.f32.mrb[0].mxu0
    %393 = vdwg.mxu0
    %394 = vmatprep.subr.mxu0 0.0
    %v395 = vand.u32 %v64, 4294901760
    %v396 = vsub.f32 %v64, %v395
    %397 = vmatpush1.msra.mxu0 %v396
    %398 = vmatprep.subr.mxu0 0.0
    %399 = vmatpush1.msra.mxu0 0.0
    %400 = vmatprep.subr.mxu0 0.0
    %401 = vmatpush1.msra.mxu0 0.0
    %402 = vmatprep.subr.mxu0 0.0
    %403 = vmatpush1.msra.mxu0 0.0
    %404 = vmatprep.subr.mxu0 0.0
    %405 = vmatpush1.msra.mxu0 0.0
    %406 = vmatprep.subr.mxu0 0.0
    %407 = vmatpush1.msra.mxu0 0.0
    %408 = vmatprep.subr.mxu0 0.0
    %409 = vmatpush1.msra.mxu0 0.0
    %410 = vmatprep.subr.mxu0 0.0
    %411 = vmatpush1.msra.mxu0 0.0
    %412 = vmatprep.subr.mxu0 0.0
    %413 = vmatpush1.msra.mxu0 0.0
    %414 = vmatprep.subr.mxu0 0.0
    %415 = vmatpush1.msra.mxu0 0.0
    %416 = vmatprep.subr.mxu0 0.0
    %417 = vmatpush1.msra.mxu0 0.0
    %418 = vmatprep.subr.mxu0 0.0
    %419 = vmatpush1.msra.mxu0 0.0
    %420 = vmatprep.subr.mxu0 0.0
    %421 = vmatpush1.msra.mxu0 0.0
    %422 = vmatprep.subr.mxu0 0.0
    %423 = vmatpush1.msra.mxu0 0.0
    %424 = vmatprep.subr.mxu0 0.0
    %425 = vmatpush1.msra.mxu0 0.0
    %426 = vmatprep.subr.mxu0 0.0
    %427 = vmatpush1.msra.mxu0 0.0
    %428 = vmatprep.subr.mxu0 0.0
    %429 = vmatpush1.msra.mxu0 0.0
    %430 = vmatprep.subr.mxu0 0.0
    %431 = vmatpush1.msra.mxu0 0.0
    %432 = vmatprep.subr.mxu0 0.0
    %433 = vmatpush1.msra.mxu0 0.0
    %434 = vmatprep.subr.mxu0 0.0
    %435 = vmatpush1.msra.mxu0 0.0
    %436 = vmatprep.subr.mxu0 0.0
    %437 = vmatpush1.msra.mxu0 0.0
    %438 = vmatprep.subr.mxu0 0.0
    %439 = vmatpush1.msra.mxu0 0.0
    %440 = vmatprep.subr.mxu0 0.0
    %441 = vmatpush1.msra.mxu0 0.0
    %442 = vmatprep.subr.mxu0 0.0
    %443 = vmatpush1.msra.mxu0 0.0
    %444 = vmatprep.subr.mxu0 0.0
    %445 = vmatpush1.msra.mxu0 0.0
    %446 = vmatprep.subr.mxu0 0.0
    %447 = vmatpush1.msra.mxu0 0.0
    %448 = vmatprep.subr.mxu0 0.0
    %449 = vmatpush1.msra.mxu0 0.0
    %450 = vmatprep.subr.mxu0 0.0
    %451 = vmatpush1.msra.mxu0 0.0
    %452 = vmatprep.subr.mxu0 0.0
    %453 = vmatpush1.msra.mxu0 0.0
    %454 = vmatprep.subr.mxu0 0.0
    %455 = vmatpush1.msra.mxu0 0.0
    %456 = vmatprep.subr.mxu0 0.0
    %457 = vmatpush1.msra.mxu0 0.0
    %458 = vmatprep.subr.mxu0 0.0
    %459 = vmatpush1.msra.mxu0 0.0
    %460 = vmatprep.mubr.f32.mxu0 0.0
    %v461 = vand.u32 %v107, 4294901760
    %v462 = vsub.f32 %v107, %v461
    %463 = vmatmul.mubr.f32.gmra.mrb[0].mxu0 %v462
    %v464 = vpop.f32.mrb[0].mxu0
    %v465 = vadd.f32 %v349, %v464
    %v466 = vpop.f32.mrb[0].mxu0
    %467 = vmatprep.mubr.f32.mxu0 0.0
    %v468 = vand.u32 %v110, 4294901760
    %v469 = vsub.f32 %v110, %v468
    %470 = vmatmul.mubr.f32.gmra.mrb[0].mxu0 %v469
    %v471 = vpop.f32.mrb[0].mxu0
    %v472 = vadd.f32 %v355, %v471
    %v473 = vpop.f32.mrb[0].mxu0
    %474 = vmatprep.mubr.f32.mxu0 0.0
    %v475 = vand.u32 %v113, 4294901760
    %v476 = vsub.f32 %v113, %v475
    %477 = vmatmul.mubr.f32.gmra.mrb[0].mxu0 %v476
    %v478 = vpop.f32.mrb[0].mxu0
    %v479 = vadd.f32 %v361, %v478
    %v480 = vpop.f32.mrb[0].mxu0
    %481 = vmatprep.mubr.f32.mxu0 0.0
    %v482 = vand.u32 %v116, 4294901760
    %v483 = vsub.f32 %v116, %v482
    %484 = vmatmul.mubr.f32.gmra.mrb[0].mxu0 %v483
    %v485 = vpop.f32.mrb[0].mxu0
    %v486 = vadd.f32 %v367, %v485
    %v487 = vpop.f32.mrb[0].mxu0
    %488 = vmatprep.mubr.f32.mxu0 0.0
    %v489 = vand.u32 %v119, 4294901760
    %v490 = vsub.f32 %v119, %v489
    %491 = vmatmul.mubr.f32.gmra.mrb[0].mxu0 %v490
    %v492 = vpop.f32.mrb[0].mxu0
    %v493 = vadd.f32 %v373, %v492
    %v494 = vpop.f32.mrb[0].mxu0
    %495 = vmatprep.mubr.f32.mxu0 0.0
    %v496 = vand.u32 %v122, 4294901760
    %v497 = vsub.f32 %v122, %v496
    %498 = vmatmul.mubr.f32.gmra.mrb[0].mxu0 %v497
    %v499 = vpop.f32.mrb[0].mxu0
    %v500 = vadd.f32 %v379, %v499
    %v501 = vpop.f32.mrb[0].mxu0
    %502 = vmatprep.mubr.f32.mxu0 0.0
    %v503 = vand.u32 %v125, 4294901760
    %v504 = vsub.f32 %v125, %v503
    %505 = vmatmul.mubr.f32.gmra.mrb[0].mxu0 %v504
    %v506 = vpop.f32.mrb[0].mxu0
    %v507 = vadd.f32 %v385, %v506
    %v508 = vpop.f32.mrb[0].mxu0
    %509 = vmatprep.mubr.f32.mxu0 0.0
    %v510 = vand.u32 %v128, 4294901760
    %v511 = vsub.f32 %v128, %v510
    %512 = vmatmul.mubr.f32.gmra.mrb[0].mxu0 %v511
    %v513 = vpop.f32.mrb[0].mxu0
    %v514 = vadd.f32 %v391, %v513
    %v515 = vpop.f32.mrb[0].mxu0
    %516 = vdwg.mxu0
    %517 = vmatprep.subr.mxu0 0.0
    %v518 = vand.u32 %v64, 4294901760
    %519 = vmatpush1.msra.mxu0 %v518
    %520 = vmatprep.subr.mxu0 0.0
    %521 = vmatpush1.msra.mxu0 0.0
    %522 = vmatprep.subr.mxu0 0.0
    %523 = vmatpush1.msra.mxu0 0.0
    %524 = vmatprep.subr.mxu0 0.0
    %525 = vmatpush1.msra.mxu0 0.0
    %526 = vmatprep.subr.mxu0 0.0
    %527 = vmatpush1.msra.mxu0 0.0
    %528 = vmatprep.subr.mxu0 0.0
    %529 = vmatpush1.msra.mxu0 0.0
    %530 = vmatprep.subr.mxu0 0.0
    %531 = vmatpush1.msra.mxu0 0.0
    %532 = vmatprep.subr.mxu0 0.0
    %533 = vmatpush1.msra.mxu0 0.0
    %534 = vmatprep.subr.mxu0 0.0
    %535 = vmatpush1.msra.mxu0 0.0
    %536 = vmatprep.subr.mxu0 0.0
    %537 = vmatpush1.msra.mxu0 0.0
    %538 = vmatprep.subr.mxu0 0.0
    %539 = vmatpush1.msra.mxu0 0.0
    %540 = vmatprep.subr.mxu0 0.0
    %541 = vmatpush1.msra.mxu0 0.0
    %542 = vmatprep.subr.mxu0 0.0
    %543 = vmatpush1.msra.mxu0 0.0
    %544 = vmatprep.subr.mxu0 0.0
    %545 = vmatpush1.msra.mxu0 0.0
    %546 = vmatprep.subr.mxu0 0.0
    %547 = vmatpush1.msra.mxu0 0.0
    %548 = vmatprep.subr.mxu0 0.0
    %549 = vmatpush1.msra.mxu0 0.0
    %550 = vmatprep.subr.mxu0 0.0
    %551 = vmatpush1.msra.mxu0 0.0
    %552 = vmatprep.subr.mxu0 0.0
    %553 = vmatpush1.msra.mxu0 0.0
    %554 = vmatprep.subr.mxu0 0.0
    %555 = vmatpush1.msra.mxu0 0.0
    %556 = vmatprep.subr.mxu0 0.0
    %557 = vmatpush1.msra.mxu0 0.0
    %558 = vmatprep.subr.mxu0 0.0
    %559 = vmatpush1.msra.mxu0 0.0
    %560 = vmatprep.subr.mxu0 0.0
    %561 = vmatpush1.msra.mxu0 0.0
    %562 = vmatprep.subr.mxu0 0.0
    %563 = vmatpush1.msra.mxu0 0.0
    %564 = vmatprep.subr.mxu0 0.0
    %565 = vmatpush1.msra.mxu0 0.0
    %566 = vmatprep.subr.mxu0 0.0
    %567 = vmatpush1.msra.mxu0 0.0
    %568 = vmatprep.subr.mxu0 0.0
    %569 = vmatpush1.msra.mxu0 0.0
    %570 = vmatprep.subr.mxu0 0.0
    %571 = vmatpush1.msra.mxu0 0.0
    %572 = vmatprep.subr.mxu0 0.0
    %573 = vmatpush1.msra.mxu0 0.0
    %574 = vmatprep.subr.mxu0 0.0
    %575 = vmatpush1.msra.mxu0 0.0
    %576 = vmatprep.subr.mxu0 0.0
    %577 = vmatpush1.msra.mxu0 0.0
    %578 = vmatprep.subr.mxu0 0.0
    %579 = vmatpush1.msra.mxu0 0.0
    %580 = vmatprep.subr.mxu0 0.0
    %581 = vmatpush1.msra.mxu0 0.0
    %582 = vmatprep.mubr.f32.mxu0 0.0
    %v583 = vand.u32 %v107, 4294901760
    %v584 = vsub.f32 %v107, %v583
    %v585 = vand.u32 %v584, 4294901760
    %586 = vmatmul.mubr.f32.gmra.mrb[0].mxu0 %v585
    %v587 = vpop.f32.mrb[0].mxu0
    %v588 = vadd.f32 %v465, %v587
    %v589 = vpop.f32.mrb[0].mxu0
    %590 = vmatprep.mubr.f32.mxu0 0.0
    %v591 = vand.u32 %v110, 4294901760
    %v592 = vsub.f32 %v110, %v591
    %v593 = vand.u32 %v592, 4294901760
    %594 = vmatmul.mubr.f32.gmra.mrb[0].mxu0 %v593
    %v595 = vpop.f32.mrb[0].mxu0
    %v596 = vadd.f32 %v472, %v595
    %v597 = vpop.f32.mrb[0].mxu0
    %598 = vmatprep.mubr.f32.mxu0 0.0
    %v599 = vand.u32 %v113, 4294901760
    %v600 = vsub.f32 %v113, %v599
    %v601 = vand.u32 %v600, 4294901760
    %602 = vmatmul.mubr.f32.gmra.mrb[0].mxu0 %v601
    %v603 = vpop.f32.mrb[0].mxu0
    %v604 = vadd.f32 %v479, %v603
    %v605 = vpop.f32.mrb[0].mxu0
    %606 = vmatprep.mubr.f32.mxu0 0.0
    %v607 = vand.u32 %v116, 4294901760
    %v608 = vsub.f32 %v116, %v607
    %v609 = vand.u32 %v608, 4294901760
    %610 = vmatmul.mubr.f32.gmra.mrb[0].mxu0 %v609
    %v611 = vpop.f32.mrb[0].mxu0
    %v612 = vadd.f32 %v486, %v611
    %v613 = vpop.f32.mrb[0].mxu0
    %614 = vmatprep.mubr.f32.mxu0 0.0
    %v615 = vand.u32 %v119, 4294901760
    %v616 = vsub.f32 %v119, %v615
    %v617 = vand.u32 %v616, 4294901760
    %618 = vmatmul.mubr.f32.gmra.mrb[0].mxu0 %v617
    %v619 = vpop.f32.mrb[0].mxu0
    %v620 = vadd.f32 %v493, %v619
    %v621 = vpop.f32.mrb[0].mxu0
    %622 = vmatprep.mubr.f32.mxu0 0.0
    %v623 = vand.u32 %v122, 4294901760
    %v624 = vsub.f32 %v122, %v623
    %v625 = vand.u32 %v624, 4294901760
    %626 = vmatmul.mubr.f32.gmra.mrb[0].mxu0 %v625
    %v627 = vpop.f32.mrb[0].mxu0
    %v628 = vadd.f32 %v500, %v627
    %v629 = vpop.f32.mrb[0].mxu0
    %630 = vmatprep.mubr.f32.mxu0 0.0
    %v631 = vand.u32 %v125, 4294901760
    %v632 = vsub.f32 %v125, %v631
    %v633 = vand.u32 %v632, 4294901760
    %634 = vmatmul.mubr.f32.gmra.mrb[0].mxu0 %v633
    %v635 = vpop.f32.mrb[0].mxu0
    %v636 = vadd.f32 %v507, %v635
    %v637 = vpop.f32.mrb[0].mxu0
    %638 = vmatprep.mubr.f32.mxu0 0.0
    %v639 = vand.u32 %v128, 4294901760
    %v640 = vsub.f32 %v128, %v639
    %v641 = vand.u32 %v640, 4294901760
    %642 = vmatmul.mubr.f32.gmra.mrb[0].mxu0 %v641
    %v643 = vpop.f32.mrb[0].mxu0
    %v644 = vadd.f32 %v514, %v643
    %v645 = vpop.f32.mrb[0].mxu0
    %646 = vdwg.mxu0
    %647 = vmatprep.subr.mxu0 0.0
    %v648 = vand.u32 %v64, 4294901760
    %v649 = vsub.f32 %v64, %v648
    %v650 = vand.u32 %v649, 4294901760
    %651 = vmatpush1.msra.mxu0 %v650
    %652 = vmatprep.subr.mxu0 0.0
    %653 = vmatpush1.msra.mxu0 0.0
    %654 = vmatprep.subr.mxu0 0.0
    %655 = vmatpush1.msra.mxu0 0.0
    %656 = vmatprep.subr.mxu0 0.0
    %657 = vmatpush1.msra.mxu0 0.0
    %658 = vmatprep.subr.mxu0 0.0
    %659 = vmatpush1.msra.mxu0 0.0
    %660 = vmatprep.subr.mxu0 0.0
    %661 = vmatpush1.msra.mxu0 0.0
    %662 = vmatprep.subr.mxu0 0.0
    %663 = vmatpush1.msra.mxu0 0.0
    %664 = vmatprep.subr.mxu0 0.0
    %665 = vmatpush1.msra.mxu0 0.0
    %666 = vmatprep.subr.mxu0 0.0
    %667 = vmatpush1.msra.mxu0 0.0
    %668 = vmatprep.subr.mxu0 0.0
    %669 = vmatpush1.msra.mxu0 0.0
    %670 = vmatprep.subr.mxu0 0.0
    %671 = vmatpush1.msra.mxu0 0.0
    %672 = vmatprep.subr.mxu0 0.0
    %673 = vmatpush1.msra.mxu0 0.0
    %674 = vmatprep.subr.mxu0 0.0
    %675 = vmatpush1.msra.mxu0 0.0
    %676 = vmatprep.subr.mxu0 0.0
    %677 = vmatpush1.msra.mxu0 0.0
    %678 = vmatprep.subr.mxu0 0.0
    %679 = vmatpush1.msra.mxu0 0.0
    %680 = vmatprep.subr.mxu0 0.0
    %681 = vmatpush1.msra.mxu0 0.0
    %682 = vmatprep.subr.mxu0 0.0
    %683 = vmatpush1.msra.mxu0 0.0
    %684 = vmatprep.subr.mxu0 0.0
    %685 = vmatpush1.msra.mxu0 0.0
    %686 = vmatprep.subr.mxu0 0.0
    %687 = vmatpush1.msra.mxu0 0.0
    %688 = vmatprep.subr.mxu0 0.0
    %689 = vmatpush1.msra.mxu0 0.0
    %690 = vmatprep.subr.mxu0 0.0
    %691 = vmatpush1.msra.mxu0 0.0
    %692 = vmatprep.subr.mxu0 0.0
    %693 = vmatpush1.msra.mxu0 0.0
    %694 = vmatprep.subr.mxu0 0.0
    %695 = vmatpush1.msra.mxu0 0.0
    %696 = vmatprep.subr.mxu0 0.0
    %697 = vmatpush1.msra.mxu0 0.0
    %698 = vmatprep.subr.mxu0 0.0
    %699 = vmatpush1.msra.mxu0 0.0
    %700 = vmatprep.subr.mxu0 0.0
    %701 = vmatpush1.msra.mxu0 0.0
    %702 = vmatprep.subr.mxu0 0.0
    %703 = vmatpush1.msra.mxu0 0.0
    %704 = vmatprep.subr.mxu0 0.0
    %705 = vmatpush1.msra.mxu0 0.0
    %706 = vmatprep.subr.mxu0 0.0
    %707 = vmatpush1.msra.mxu0 0.0
    %708 = vmatprep.subr.mxu0 0.0
    %709 = vmatpush1.msra.mxu0 0.0
    %710 = vmatprep.subr.mxu0 0.0
    %711 = vmatpush1.msra.mxu0 0.0
    %712 = vmatprep.subr.mxu0 0.0
    %713 = vmatpush1.msra.mxu0 0.0
    %714 = vmatprep.mubr.f32.mxu0 0.0
    %v715 = vand.u32 %v107, 4294901760
    %716 = vmatmul.mubr.f32.gmra.mrb[0].mxu0 %v715
    %v717 = vpop.f32.mrb[0].mxu0
    %v718 = vadd.f32 %v588, %v717
    %v719 = vpop.f32.mrb[0].mxu0
    %720 = vmatprep.mubr.f32.mxu0 0.0
    %v721 = vand.u32 %v110, 4294901760
    %722 = vmatmul.mubr.f32.gmra.mrb[0].mxu0 %v721
    %v723 = vpop.f32.mrb[0].mxu0
    %v724 = vadd.f32 %v596, %v723
    %v725 = vpop.f32.mrb[0].mxu0
    %726 = vmatprep.mubr.f32.mxu0 0.0
    %v727 = vand.u32 %v113, 4294901760
    %728 = vmatmul.mubr.f32.gmra.mrb[0].mxu0 %v727
    %v729 = vpop.f32.mrb[0].mxu0
    %v730 = vadd.f32 %v604, %v729
    %v731 = vpop.f32.mrb[0].mxu0
    %732 = vmatprep.mubr.f32.mxu0 0.0
    %v733 = vand.u32 %v116, 4294901760
    %734 = vmatmul.mubr.f32.gmra.mrb[0].mxu0 %v733
    %v735 = vpop.f32.mrb[0].mxu0
    %v736 = vadd.f32 %v612, %v735
    %v737 = vpop.f32.mrb[0].mxu0
    %738 = vmatprep.mubr.f32.mxu0 0.0
    %v739 = vand.u32 %v119, 4294901760
    %740 = vmatmul.mubr.f32.gmra.mrb[0].mxu0 %v739
    %v741 = vpop.f32.mrb[0].mxu0
    %v742 = vadd.f32 %v620, %v741
    %v743 = vpop.f32.mrb[0].mxu0
    %744 = vmatprep.mubr.f32.mxu0 0.0
    %v745 = vand.u32 %v122, 4294901760
    %746 = vmatmul.mubr.f32.gmra.mrb[0].mxu0 %v745
    %v747 = vpop.f32.mrb[0].mxu0
    %v748 = vadd.f32 %v628, %v747
    %v749 = vpop.f32.mrb[0].mxu0
    %750 = vmatprep.mubr.f32.mxu0 0.0
    %v751 = vand.u32 %v125, 4294901760
    %752 = vmatmul.mubr.f32.gmra.mrb[0].mxu0 %v751
    %v753 = vpop.f32.mrb[0].mxu0
    %v754 = vadd.f32 %v636, %v753
    %v755 = vpop.f32.mrb[0].mxu0
    %756 = vmatprep.mubr.f32.mxu0 0.0
    %v757 = vand.u32 %v128, 4294901760
    %758 = vmatmul.mubr.f32.gmra.mrb[0].mxu0 %v757
    %v759 = vpop.f32.mrb[0].mxu0
    %v760 = vadd.f32 %v644, %v759
    %v761 = vpop.f32.mrb[0].mxu0
    %762 = vdwg.mxu0
    %763 = vmatprep.subr.mxu0 0.0
    %v764 = vand.u32 %v64, 4294901760
    %765 = vmatpush1.msra.mxu0 %v764
    %766 = vmatprep.subr.mxu0 0.0
    %767 = vmatpush1.msra.mxu0 0.0
    %768 = vmatprep.subr.mxu0 0.0
    %769 = vmatpush1.msra.mxu0 0.0
    %770 = vmatprep.subr.mxu0 0.0
    %771 = vmatpush1.msra.mxu0 0.0
    %772 = vmatprep.subr.mxu0 0.0
    %773 = vmatpush1.msra.mxu0 0.0
    %774 = vmatprep.subr.mxu0 0.0
    %775 = vmatpush1.msra.mxu0 0.0
    %776 = vmatprep.subr.mxu0 0.0
    %777 = vmatpush1.msra.mxu0 0.0
    %778 = vmatprep.subr.mxu0 0.0
    %779 = vmatpush1.msra.mxu0 0.0
    %780 = vmatprep.subr.mxu0 0.0
    %781 = vmatpush1.msra.mxu0 0.0
    %782 = vmatprep.subr.mxu0 0.0
    %783 = vmatpush1.msra.mxu0 0.0
    %784 = vmatprep.subr.mxu0 0.0
    %785 = vmatpush1.msra.mxu0 0.0
    %786 = vmatprep.subr.mxu0 0.0
    %787 = vmatpush1.msra.mxu0 0.0
    %788 = vmatprep.subr.mxu0 0.0
    %789 = vmatpush1.msra.mxu0 0.0
    %790 = vmatprep.subr.mxu0 0.0
    %791 = vmatpush1.msra.mxu0 0.0
    %792 = vmatprep.subr.mxu0 0.0
    %793 = vmatpush1.msra.mxu0 0.0
    %794 = vmatprep.subr.mxu0 0.0
    %795 = vmatpush1.msra.mxu0 0.0
    %796 = vmatprep.subr.mxu0 0.0
    %797 = vmatpush1.msra.mxu0 0.0
    %798 = vmatprep.subr.mxu0 0.0
    %799 = vmatpush1.msra.mxu0 0.0
    %800 = vmatprep.subr.mxu0 0.0
    %801 = vmatpush1.msra.mxu0 0.0
    %802 = vmatprep.subr.mxu0 0.0
    %803 = vmatpush1.msra.mxu0 0.0
    %804 = vmatprep.subr.mxu0 0.0
    %805 = vmatpush1.msra.mxu0 0.0
    %806 = vmatprep.subr.mxu0 0.0
    %807 = vmatpush1.msra.mxu0 0.0
    %808 = vmatprep.subr.mxu0 0.0
    %809 = vmatpush1.msra.mxu0 0.0
    %810 = vmatprep.subr.mxu0 0.0
    %811 = vmatpush1.msra.mxu0 0.0
    %812 = vmatprep.subr.mxu0 0.0
    %813 = vmatpush1.msra.mxu0 0.0
    %814 = vmatprep.subr.mxu0 0.0
    %815 = vmatpush1.msra.mxu0 0.0
    %816 = vmatprep.subr.mxu0 0.0
    %817 = vmatpush1.msra.mxu0 0.0
    %818 = vmatprep.subr.mxu0 0.0
    %819 = vmatpush1.msra.mxu0 0.0
    %820 = vmatprep.subr.mxu0 0.0
    %821 = vmatpush1.msra.mxu0 0.0
    %822 = vmatprep.subr.mxu0 0.0
    %823 = vmatpush1.msra.mxu0 0.0
    %824 = vmatprep.subr.mxu0 0.0
    %825 = vmatpush1.msra.mxu0 0.0
    %826 = vmatprep.subr.mxu0 0.0
    %827 = vmatpush1.msra.mxu0 0.0
    %828 = vmatprep.mubr.f32.mxu0 0.0
    %v829 = vand.u32 %v107, 4294901760
    %830 = vmatmul.mubr.f32.gmra.mrb[0].mxu0 %v829
    %v831 = vpop.f32.mrb[0].mxu0
    %v832 = vadd.f32 %v718, %v831
    %v833 = vpop.f32.mrb[0].mxu0
    %834 = vmatprep.mubr.f32.mxu0 0.0
    %v835 = vand.u32 %v110, 4294901760
    %836 = vmatmul.mubr.f32.gmra.mrb[0].mxu0 %v835
    %v837 = vpop.f32.mrb[0].mxu0
    %v838 = vadd.f32 %v724, %v837
    %v839 = vpop.f32.mrb[0].mxu0
    %840 = vmatprep.mubr.f32.mxu0 0.0
    %v841 = vand.u32 %v113, 4294901760
    %842 = vmatmul.mubr.f32.gmra.mrb[0].mxu0 %v841
    %v843 = vpop.f32.mrb[0].mxu0
    %v844 = vadd.f32 %v730, %v843
    %v845 = vpop.f32.mrb[0].mxu0
    %846 = vmatprep.mubr.f32.mxu0 0.0
    %v847 = vand.u32 %v116, 4294901760
    %848 = vmatmul.mubr.f32.gmra.mrb[0].mxu0 %v847
    %v849 = vpop.f32.mrb[0].mxu0
    %v850 = vadd.f32 %v736, %v849
    %v851 = vpop.f32.mrb[0].mxu0
    %852 = vmatprep.mubr.f32.mxu0 0.0
    %v853 = vand.u32 %v119, 4294901760
    %854 = vmatmul.mubr.f32.gmra.mrb[0].mxu0 %v853
    %v855 = vpop.f32.mrb[0].mxu0
    %v856 = vadd.f32 %v742, %v855
    %v857 = vpop.f32.mrb[0].mxu0
    %858 = vmatprep.mubr.f32.mxu0 0.0
    %v859 = vand.u32 %v122, 4294901760
    %860 = vmatmul.mubr.f32.gmra.mrb[0].mxu0 %v859
    %v861 = vpop.f32.mrb[0].mxu0
    %v862 = vadd.f32 %v748, %v861
    %v863 = vpop.f32.mrb[0].mxu0
    %864 = vmatprep.mubr.f32.mxu0 0.0
    %v865 = vand.u32 %v125, 4294901760
    %866 = vmatmul.mubr.f32.gmra.mrb[0].mxu0 %v865
    %v867 = vpop.f32.mrb[0].mxu0
    %v868 = vadd.f32 %v754, %v867
    %v869 = vpop.f32.mrb[0].mxu0
    %870 = vmatprep.mubr.f32.mxu0 0.0
    %v871 = vand.u32 %v128, 4294901760
    %872 = vmatmul.mubr.f32.gmra.mrb[0].mxu0 %v871
    %v873 = vpop.f32.mrb[0].mxu0
    %v874 = vadd.f32 %v760, %v873
    %v875 = vpop.f32.mrb[0].mxu0
    %876 = vdwg.mxu0
    %vm877 = vcmp.gt.f32.partialorder %v832, 20.0
    %vm878 = vcmp.gt.f32.partialorder %v838, 20.0
    %vm879 = vcmp.gt.f32.partialorder %v844, 20.0
    %vm880 = vcmp.gt.f32.partialorder %v850, 20.0
    %vm881 = vcmp.gt.f32.partialorder %v856, 20.0
    %vm882 = vcmp.gt.f32.partialorder %v862, 20.0
    %vm883 = vcmp.gt.f32.partialorder %v868, 20.0
    %vm884 = vcmp.gt.f32.partialorder %v874, 20.0
    %v885 = vmin.f32 %v832, 20.0
    %v886 = vmin.f32 %v838, 20.0
    %v887 = vmin.f32 %v844, 20.0
    %v888 = vmin.f32 %v850, 20.0
    %v889 = vmin.f32 %v856, 20.0
    %v890 = vmin.f32 %v862, 20.0
    %v891 = vmin.f32 %v868, 20.0
    %v892 = vmin.f32 %v874, 20.0
    %v893 = vmul.f32 %v885, 1.442695
    %v894 = vpow.pop %v893
    %v895 = vmul.f32 %v886, 1.442695
    %v896 = vpow.pop %v895
    %v897 = vmul.f32 %v887, 1.442695
    %v898 = vpow.pop %v897
    %v899 = vmul.f32 %v888, 1.442695
    %v900 = vpow.pop %v899
    %v901 = vmul.f32 %v889, 1.442695
    %v902 = vpow.pop %v901
    %v903 = vmul.f32 %v890, 1.442695
    %v904 = vpow.pop %v903
    %v905 = vmul.f32 %v891, 1.442695
    %v906 = vpow.pop %v905
    %v907 = vmul.f32 %v892, 1.442695
    %v908 = vpow.pop %v907
    %v909 = vadd.f32 %v894, 1.0
    %v910 = vadd.f32 %v896, 1.0
    %v911 = vadd.f32 %v898, 1.0
    %v912 = vadd.f32 %v900, 1.0
    %v913 = vadd.f32 %v902, 1.0
    %v914 = vadd.f32 %v904, 1.0
    %v915 = vadd.f32 %v906, 1.0
    %v916 = vadd.f32 %v908, 1.0
    %v917 = vlog2.pop %v909
    %v918 = vmul.f32 %v917, 0.6931472
    %v919 = vlog2.pop %v910
    %v920 = vmul.f32 %v919, 0.6931472
    %v921 = vlog2.pop %v911
    %v922 = vmul.f32 %v921, 0.6931472
    %v923 = vlog2.pop %v912
    %v924 = vmul.f32 %v923, 0.6931472
    %v925 = vlog2.pop %v913
    %v926 = vmul.f32 %v925, 0.6931472
    %v927 = vlog2.pop %v914
    %v928 = vmul.f32 %v927, 0.6931472
    %v929 = vlog2.pop %v915
    %v930 = vmul.f32 %v929, 0.6931472
    %v931 = vlog2.pop %v916
    %v932 = vmul.f32 %v931, 0.6931472
    %v933 = vsel %vm877, %v832, %v918
    %v934 = vsel %vm878, %v838, %v920
    %v935 = vsel %vm879, %v844, %v922
    %v936 = vsel %vm880, %v850, %v924
    %v937 = vsel %vm881, %v856, %v926
    %v938 = vsel %vm882, %v862, %v928
    %v939 = vsel %vm883, %v868, %v930
    %v940 = vsel %vm884, %v874, %v932
    %v941 = vsub.f32 %v832, %v933
    %v942 = vsub.f32 %v838, %v934
    %v943 = vsub.f32 %v844, %v935
    %v944 = vsub.f32 %v850, %v936
    %v945 = vsub.f32 %v856, %v937
    %v946 = vsub.f32 %v862, %v938
    %v947 = vsub.f32 %v868, %v939
    %v948 = vsub.f32 %v874, %v940
    %v949 = vmul.f32 %v941, 1.442695
    %v950 = vpow.pop %v949
    %v951 = vmul.f32 %v942, 1.442695
    %v952 = vpow.pop %v951
    %v953 = vmul.f32 %v943, 1.442695
    %v954 = vpow.pop %v953
    %v955 = vmul.f32 %v944, 1.442695
    %v956 = vpow.pop %v955
    %v957 = vmul.f32 %v945, 1.442695
    %v958 = vpow.pop %v957
    %v959 = vmul.f32 %v946, 1.442695
    %v960 = vpow.pop %v959
    %v961 = vmul.f32 %v947, 1.442695
    %v962 = vpow.pop %v961
    %v963 = vmul.f32 %v948, 1.442695
    %v964 = vpow.pop %v963
    %v965 = vsub.f32 1.0, %v950
    %v966 = vsub.f32 1.0, %v952
    %v967 = vsub.f32 1.0, %v954
    %v968 = vsub.f32 1.0, %v956
    %v969 = vsub.f32 1.0, %v958
    %v970 = vsub.f32 1.0, %v960
    %v971 = vsub.f32 1.0, %v962
    %v972 = vsub.f32 1.0, %v964
    %v973 = vmul.f32 %v950, %v965
    %v974 = vmul.f32 %v952, %v966
    %v975 = vmul.f32 %v954, %v967
    %v976 = vmul.f32 %v956, %v968
    %v977 = vmul.f32 %v958, %v969
    %v978 = vmul.f32 %v960, %v970
    %v979 = vmul.f32 %v962, %v971
    %v980 = vmul.f32 %v964, %v972
    %982 = vset.pattern.permute.xlu0 0
    %983 = vperm.xlu0 %982, %v48
    %v984 = vpop.permute.xlu0 %983
    %987 = vset.pattern.permute.xlu0 0
    %988 = vperm.xlu0 %987, %v49
    %v989 = vpop.permute.xlu0 %988
    %992 = vset.pattern.permute.xlu0 0
    %993 = vperm.xlu0 %992, %v50
    %v994 = vpop.permute.xlu0 %993
    %997 = vset.pattern.permute.xlu0 0
    %998 = vperm.xlu0 %997, %v51
    %v999 = vpop.permute.xlu0 %998
    %1002 = vset.pattern.permute.xlu0 0
    %1003 = vperm.xlu0 %1002, %v52
    %v1004 = vpop.permute.xlu0 %1003
    %1007 = vset.pattern.permute.xlu0 0
    %1008 = vperm.xlu0 %1007, %v53
    %v1009 = vpop.permute.xlu0 %1008
    %1012 = vset.pattern.permute.xlu0 0
    %1013 = vperm.xlu0 %1012, %v54
    %v1014 = vpop.permute.xlu0 %1013
    %1017 = vset.pattern.permute.xlu0 0
    %1018 = vperm.xlu0 %1017, %v55
    %v1019 = vpop.permute.xlu0 %1018
    %vm1021 = vcmask 523264
    %v1023 = vsel %vm1021, %v40, 0
    %v1026 = vsel %vm1021, %v41, 0
    %v1029 = vsel %vm1021, %v42, 0
    %v1032 = vsel %vm1021, %v43, 0
    %v1035 = vsel %vm1021, %v44, 0
    %v1038 = vsel %vm1021, %v45, 0
    %v1041 = vsel %vm1021, %v46, 0
    %v1044 = vsel %vm1021, %v47, 0
    %1046 = vmatprep.subr.mxu0 0.0
    %v1047 = vand.u32 %v933, 4294901760
    %1048 = vmatpush1.msra.mxu0 %v1047
    %1049 = vmatprep.subr.mxu0 0.0
    %v1050 = vand.u32 %v934, 4294901760
    %1051 = vmatpush1.msra.mxu0 %v1050
    %1052 = vmatprep.subr.mxu0 0.0
    %v1053 = vand.u32 %v935, 4294901760
    %1054 = vmatpush1.msra.mxu0 %v1053
    %1055 = vmatprep.subr.mxu0 0.0
    %v1056 = vand.u32 %v936, 4294901760
    %1057 = vmatpush1.msra.mxu0 %v1056
    %1058 = vmatprep.subr.mxu0 0.0
    %v1059 = vand.u32 %v937, 4294901760
    %1060 = vmatpush1.msra.mxu0 %v1059
    %1061 = vmatprep.subr.mxu0 0.0
    %v1062 = vand.u32 %v938, 4294901760
    %1063 = vmatpush1.msra.mxu0 %v1062
    %1064 = vmatprep.subr.mxu0 0.0
    %v1065 = vand.u32 %v939, 4294901760
    %1066 = vmatpush1.msra.mxu0 %v1065
    %1067 = vmatprep.subr.mxu0 0.0
    %v1068 = vand.u32 %v940, 4294901760
    %1069 = vmatpush1.msra.mxu0 %v1068
    %1070 = vmatprep.subr.mxu0 0.0
    %1071 = vmatpush1.msra.mxu0 0.0
    %1072 = vmatprep.subr.mxu0 0.0
    %1073 = vmatpush1.msra.mxu0 0.0
    %1074 = vmatprep.subr.mxu0 0.0
    %1075 = vmatpush1.msra.mxu0 0.0
    %1076 = vmatprep.subr.mxu0 0.0
    %1077 = vmatpush1.msra.mxu0 0.0
    %1078 = vmatprep.subr.mxu0 0.0
    %1079 = vmatpush1.msra.mxu0 0.0
    %1080 = vmatprep.subr.mxu0 0.0
    %1081 = vmatpush1.msra.mxu0 0.0
    %1082 = vmatprep.subr.mxu0 0.0
    %1083 = vmatpush1.msra.mxu0 0.0
    %1084 = vmatprep.subr.mxu0 0.0
    %1085 = vmatpush1.msra.mxu0 0.0
    %1086 = vmatprep.subr.mxu0 0.0
    %1087 = vmatpush1.msra.mxu0 0.0
    %1088 = vmatprep.subr.mxu0 0.0
    %1089 = vmatpush1.msra.mxu0 0.0
    %1090 = vmatprep.subr.mxu0 0.0
    %1091 = vmatpush1.msra.mxu0 0.0
    %1092 = vmatprep.subr.mxu0 0.0
    %1093 = vmatpush1.msra.mxu0 0.0
    %1094 = vmatprep.subr.mxu0 0.0
    %1095 = vmatpush1.msra.mxu0 0.0
    %1096 = vmatprep.subr.mxu0 0.0
    %1097 = vmatpush1.msra.mxu0 0.0
    %1098 = vmatprep.subr.mxu0 0.0
    %1099 = vmatpush1.msra.mxu0 0.0
    %1100 = vmatprep.subr.mxu0 0.0
    %1101 = vmatpush1.msra.mxu0 0.0
    %1102 = vmatprep.subr.mxu0 0.0
    %1103 = vmatpush1.msra.mxu0 0.0
    %1104 = vmatprep.subr.mxu0 0.0
    %1105 = vmatpush1.msra.mxu0 0.0
    %1106 = vmatprep.subr.mxu0 0.0
    %1107 = vmatpush1.msra.mxu0 0.0
    %1108 = vmatprep.subr.mxu0 0.0
    %1109 = vmatpush1.msra.mxu0 0.0
    %1110 = vmatprep.subr.mxu0 0.0
    %1111 = vmatpush1.msra.mxu0 0.0
    %1112 = vmatprep.subr.mxu0 0.0
    %1113 = vmatpush1.msra.mxu0 0.0
    %1114 = vmatprep.subr.mxu0 0.0
    %1115 = vmatpush1.msra.mxu0 0.0
    %1116 = vmatprep.subr.mxu0 0.0
    %1117 = vmatpush1.msra.mxu0 0.0
    %1118 = vmatprep.mubr.f32.mxu0 0.0
    %v1119 = vand.u32 %v1023, 4294901760
    %v1120 = vsub.f32 %v1023, %v1119
    %v1121 = vand.u32 %v1120, 4294901760
    %v1122 = vsub.f32 %v1120, %v1121
    %v1123 = vand.u32 %v1122, 4294901760
    %1124 = vmatmul.mubr.f32.gmra.mrb[0].mxu0 %v1123
    %v1125 = vpop.f32.mrb[0].mxu0
    %v1126 = vadd.f32 %v984, %v1125
    %v1127 = vpop.f32.mrb[0].mxu0
    %1128 = vmatprep.mubr.f32.mxu0 0.0
    %v1129 = vand.u32 %v1026, 4294901760
    %v1130 = vsub.f32 %v1026, %v1129
    %v1131 = vand.u32 %v1130, 4294901760
    %v1132 = vsub.f32 %v1130, %v1131
    %v1133 = vand.u32 %v1132, 4294901760
    %1134 = vmatmul.mubr.f32.gmra.mrb[0].mxu0 %v1133
    %v1135 = vpop.f32.mrb[0].mxu0
    %v1136 = vadd.f32 %v989, %v1135
    %v1137 = vpop.f32.mrb[0].mxu0
    %1138 = vmatprep.mubr.f32.mxu0 0.0
    %v1139 = vand.u32 %v1029, 4294901760
    %v1140 = vsub.f32 %v1029, %v1139
    %v1141 = vand.u32 %v1140, 4294901760
    %v1142 = vsub.f32 %v1140, %v1141
    %v1143 = vand.u32 %v1142, 4294901760
    %1144 = vmatmul.mubr.f32.gmra.mrb[0].mxu0 %v1143
    %v1145 = vpop.f32.mrb[0].mxu0
    %v1146 = vadd.f32 %v994, %v1145
    %v1147 = vpop.f32.mrb[0].mxu0
    %1148 = vmatprep.mubr.f32.mxu0 0.0
    %v1149 = vand.u32 %v1032, 4294901760
    %v1150 = vsub.f32 %v1032, %v1149
    %v1151 = vand.u32 %v1150, 4294901760
    %v1152 = vsub.f32 %v1150, %v1151
    %v1153 = vand.u32 %v1152, 4294901760
    %1154 = vmatmul.mubr.f32.gmra.mrb[0].mxu0 %v1153
    %v1155 = vpop.f32.mrb[0].mxu0
    %v1156 = vadd.f32 %v999, %v1155
    %v1157 = vpop.f32.mrb[0].mxu0
    %1158 = vmatprep.mubr.f32.mxu0 0.0
    %v1159 = vand.u32 %v1035, 4294901760
    %v1160 = vsub.f32 %v1035, %v1159
    %v1161 = vand.u32 %v1160, 4294901760
    %v1162 = vsub.f32 %v1160, %v1161
    %v1163 = vand.u32 %v1162, 4294901760
    %1164 = vmatmul.mubr.f32.gmra.mrb[0].mxu0 %v1163
    %v1165 = vpop.f32.mrb[0].mxu0
    %v1166 = vadd.f32 %v1004, %v1165
    %v1167 = vpop.f32.mrb[0].mxu0
    %1168 = vmatprep.mubr.f32.mxu0 0.0
    %v1169 = vand.u32 %v1038, 4294901760
    %v1170 = vsub.f32 %v1038, %v1169
    %v1171 = vand.u32 %v1170, 4294901760
    %v1172 = vsub.f32 %v1170, %v1171
    %v1173 = vand.u32 %v1172, 4294901760
    %1174 = vmatmul.mubr.f32.gmra.mrb[0].mxu0 %v1173
    %v1175 = vpop.f32.mrb[0].mxu0
    %v1176 = vadd.f32 %v1009, %v1175
    %v1177 = vpop.f32.mrb[0].mxu0
    %1178 = vmatprep.mubr.f32.mxu0 0.0
    %v1179 = vand.u32 %v1041, 4294901760
    %v1180 = vsub.f32 %v1041, %v1179
    %v1181 = vand.u32 %v1180, 4294901760
    %v1182 = vsub.f32 %v1180, %v1181
    %v1183 = vand.u32 %v1182, 4294901760
    %1184 = vmatmul.mubr.f32.gmra.mrb[0].mxu0 %v1183
    %v1185 = vpop.f32.mrb[0].mxu0
    %v1186 = vadd.f32 %v1014, %v1185
    %v1187 = vpop.f32.mrb[0].mxu0
    %1188 = vmatprep.mubr.f32.mxu0 0.0
    %v1189 = vand.u32 %v1044, 4294901760
    %v1190 = vsub.f32 %v1044, %v1189
    %v1191 = vand.u32 %v1190, 4294901760
    %v1192 = vsub.f32 %v1190, %v1191
    %v1193 = vand.u32 %v1192, 4294901760
    %1194 = vmatmul.mubr.f32.gmra.mrb[0].mxu0 %v1193
    %v1195 = vpop.f32.mrb[0].mxu0
    %v1196 = vadd.f32 %v1019, %v1195
    %v1197 = vpop.f32.mrb[0].mxu0
    %1198 = vdwg.mxu0
    %1199 = vmatprep.subr.mxu0 0.0
    %v1200 = vand.u32 %v933, 4294901760
    %v1201 = vsub.f32 %v933, %v1200
    %v1202 = vand.u32 %v1201, 4294901760
    %v1203 = vsub.f32 %v1201, %v1202
    %v1204 = vand.u32 %v1203, 4294901760
    %1205 = vmatpush1.msra.mxu0 %v1204
    %1206 = vmatprep.subr.mxu0 0.0
    %v1207 = vand.u32 %v934, 4294901760
    %v1208 = vsub.f32 %v934, %v1207
    %v1209 = vand.u32 %v1208, 4294901760
    %v1210 = vsub.f32 %v1208, %v1209
    %v1211 = vand.u32 %v1210, 4294901760
    %1212 = vmatpush1.msra.mxu0 %v1211
    %1213 = vmatprep.subr.mxu0 0.0
    %v1214 = vand.u32 %v935, 4294901760
    %v1215 = vsub.f32 %v935, %v1214
    %v1216 = vand.u32 %v1215, 4294901760
    %v1217 = vsub.f32 %v1215, %v1216
    %v1218 = vand.u32 %v1217, 4294901760
    %1219 = vmatpush1.msra.mxu0 %v1218
    %1220 = vmatprep.subr.mxu0 0.0
    %v1221 = vand.u32 %v936, 4294901760
    %v1222 = vsub.f32 %v936, %v1221
    %v1223 = vand.u32 %v1222, 4294901760
    %v1224 = vsub.f32 %v1222, %v1223
    %v1225 = vand.u32 %v1224, 4294901760
    %1226 = vmatpush1.msra.mxu0 %v1225
    %1227 = vmatprep.subr.mxu0 0.0
    %v1228 = vand.u32 %v937, 4294901760
    %v1229 = vsub.f32 %v937, %v1228
    %v1230 = vand.u32 %v1229, 4294901760
    %v1231 = vsub.f32 %v1229, %v1230
    %v1232 = vand.u32 %v1231, 4294901760
    %1233 = vmatpush1.msra.mxu0 %v1232
    %1234 = vmatprep.subr.mxu0 0.0
    %v1235 = vand.u32 %v938, 4294901760
    %v1236 = vsub.f32 %v938, %v1235
    %v1237 = vand.u32 %v1236, 4294901760
    %v1238 = vsub.f32 %v1236, %v1237
    %v1239 = vand.u32 %v1238, 4294901760
    %1240 = vmatpush1.msra.mxu0 %v1239
    %1241 = vmatprep.subr.mxu0 0.0
    %v1242 = vand.u32 %v939, 4294901760
    %v1243 = vsub.f32 %v939, %v1242
    %v1244 = vand.u32 %v1243, 4294901760
    %v1245 = vsub.f32 %v1243, %v1244
    %v1246 = vand.u32 %v1245, 4294901760
    %1247 = vmatpush1.msra.mxu0 %v1246
    %1248 = vmatprep.subr.mxu0 0.0
    %v1249 = vand.u32 %v940, 4294901760
    %v1250 = vsub.f32 %v940, %v1249
    %v1251 = vand.u32 %v1250, 4294901760
    %v1252 = vsub.f32 %v1250, %v1251
    %v1253 = vand.u32 %v1252, 4294901760
    %1254 = vmatpush1.msra.mxu0 %v1253
    %1255 = vmatprep.subr.mxu0 0.0
    %1256 = vmatpush1.msra.mxu0 0.0
    %1257 = vmatprep.subr.mxu0 0.0
    %1258 = vmatpush1.msra.mxu0 0.0
    %1259 = vmatprep.subr.mxu0 0.0
    %1260 = vmatpush1.msra.mxu0 0.0
    %1261 = vmatprep.subr.mxu0 0.0
    %1262 = vmatpush1.msra.mxu0 0.0
    %1263 = vmatprep.subr.mxu0 0.0
    %1264 = vmatpush1.msra.mxu0 0.0
    %1265 = vmatprep.subr.mxu0 0.0
    %1266 = vmatpush1.msra.mxu0 0.0
    %1267 = vmatprep.subr.mxu0 0.0
    %1268 = vmatpush1.msra.mxu0 0.0
    %1269 = vmatprep.subr.mxu0 0.0
    %1270 = vmatpush1.msra.mxu0 0.0
    %1271 = vmatprep.subr.mxu0 0.0
    %1272 = vmatpush1.msra.mxu0 0.0
    %1273 = vmatprep.subr.mxu0 0.0
    %1274 = vmatpush1.msra.mxu0 0.0
    %1275 = vmatprep.subr.mxu0 0.0
    %1276 = vmatpush1.msra.mxu0 0.0
    %1277 = vmatprep.subr.mxu0 0.0
    %1278 = vmatpush1.msra.mxu0 0.0
    %1279 = vmatprep.subr.mxu0 0.0
    %1280 = vmatpush1.msra.mxu0 0.0
    %1281 = vmatprep.subr.mxu0 0.0
    %1282 = vmatpush1.msra.mxu0 0.0
    %1283 = vmatprep.subr.mxu0 0.0
    %1284 = vmatpush1.msra.mxu0 0.0
    %1285 = vmatprep.subr.mxu0 0.0
    %1286 = vmatpush1.msra.mxu0 0.0
    %1287 = vmatprep.subr.mxu0 0.0
    %1288 = vmatpush1.msra.mxu0 0.0
    %1289 = vmatprep.subr.mxu0 0.0
    %1290 = vmatpush1.msra.mxu0 0.0
    %1291 = vmatprep.subr.mxu0 0.0
    %1292 = vmatpush1.msra.mxu0 0.0
    %1293 = vmatprep.subr.mxu0 0.0
    %1294 = vmatpush1.msra.mxu0 0.0
    %1295 = vmatprep.subr.mxu0 0.0
    %1296 = vmatpush1.msra.mxu0 0.0
    %1297 = vmatprep.subr.mxu0 0.0
    %1298 = vmatpush1.msra.mxu0 0.0
    %1299 = vmatprep.subr.mxu0 0.0
    %1300 = vmatpush1.msra.mxu0 0.0
    %1301 = vmatprep.subr.mxu0 0.0
    %1302 = vmatpush1.msra.mxu0 0.0
    %1303 = vmatprep.mubr.f32.mxu0 0.0
    %v1304 = vand.u32 %v1023, 4294901760
    %1305 = vmatmul.mubr.f32.gmra.mrb[0].mxu0 %v1304
    %v1306 = vpop.f32.mrb[0].mxu0
    %v1307 = vadd.f32 %v1126, %v1306
    %v1308 = vpop.f32.mrb[0].mxu0
    %1309 = vmatprep.mubr.f32.mxu0 0.0
    %v1310 = vand.u32 %v1026, 4294901760
    %1311 = vmatmul.mubr.f32.gmra.mrb[0].mxu0 %v1310
    %v1312 = vpop.f32.mrb[0].mxu0
    %v1313 = vadd.f32 %v1136, %v1312
    %v1314 = vpop.f32.mrb[0].mxu0
    %1315 = vmatprep.mubr.f32.mxu0 0.0
    %v1316 = vand.u32 %v1029, 4294901760
    %1317 = vmatmul.mubr.f32.gmra.mrb[0].mxu0 %v1316
    %v1318 = vpop.f32.mrb[0].mxu0
    %v1319 = vadd.f32 %v1146, %v1318
    %v1320 = vpop.f32.mrb[0].mxu0
    %1321 = vmatprep.mubr.f32.mxu0 0.0
    %v1322 = vand.u32 %v1032, 4294901760
    %1323 = vmatmul.mubr.f32.gmra.mrb[0].mxu0 %v1322
    %v1324 = vpop.f32.mrb[0].mxu0
    %v1325 = vadd.f32 %v1156, %v1324
    %v1326 = vpop.f32.mrb[0].mxu0
    %1327 = vmatprep.mubr.f32.mxu0 0.0
    %v1328 = vand.u32 %v1035, 4294901760
    %1329 = vmatmul.mubr.f32.gmra.mrb[0].mxu0 %v1328
    %v1330 = vpop.f32.mrb[0].mxu0
    %v1331 = vadd.f32 %v1166, %v1330
    %v1332 = vpop.f32.mrb[0].mxu0
    %1333 = vmatprep.mubr.f32.mxu0 0.0
    %v1334 = vand.u32 %v1038, 4294901760
    %1335 = vmatmul.mubr.f32.gmra.mrb[0].mxu0 %v1334
    %v1336 = vpop.f32.mrb[0].mxu0
    %v1337 = vadd.f32 %v1176, %v1336
    %v1338 = vpop.f32.mrb[0].mxu0
    %1339 = vmatprep.mubr.f32.mxu0 0.0
    %v1340 = vand.u32 %v1041, 4294901760
    %1341 = vmatmul.mubr.f32.gmra.mrb[0].mxu0 %v1340
    %v1342 = vpop.f32.mrb[0].mxu0
    %v1343 = vadd.f32 %v1186, %v1342
    %v1344 = vpop.f32.mrb[0].mxu0
    %1345 = vmatprep.mubr.f32.mxu0 0.0
    %v1346 = vand.u32 %v1044, 4294901760
    %1347 = vmatmul.mubr.f32.gmra.mrb[0].mxu0 %v1346
    %v1348 = vpop.f32.mrb[0].mxu0
    %v1349 = vadd.f32 %v1196, %v1348
    %v1350 = vpop.f32.mrb[0].mxu0
    %1351 = vdwg.mxu0
    %1352 = vmatprep.subr.mxu0 0.0
    %v1353 = vand.u32 %v933, 4294901760
    %v1354 = vsub.f32 %v933, %v1353
    %1355 = vmatpush1.msra.mxu0 %v1354
    %1356 = vmatprep.subr.mxu0 0.0
    %v1357 = vand.u32 %v934, 4294901760
    %v1358 = vsub.f32 %v934, %v1357
    %1359 = vmatpush1.msra.mxu0 %v1358
    %1360 = vmatprep.subr.mxu0 0.0
    %v1361 = vand.u32 %v935, 4294901760
    %v1362 = vsub.f32 %v935, %v1361
    %1363 = vmatpush1.msra.mxu0 %v1362
    %1364 = vmatprep.subr.mxu0 0.0
    %v1365 = vand.u32 %v936, 4294901760
    %v1366 = vsub.f32 %v936, %v1365
    %1367 = vmatpush1.msra.mxu0 %v1366
    %1368 = vmatprep.subr.mxu0 0.0
    %v1369 = vand.u32 %v937, 4294901760
    %v1370 = vsub.f32 %v937, %v1369
    %1371 = vmatpush1.msra.mxu0 %v1370
    %1372 = vmatprep.subr.mxu0 0.0
    %v1373 = vand.u32 %v938, 4294901760
    %v1374 = vsub.f32 %v938, %v1373
    %1375 = vmatpush1.msra.mxu0 %v1374
    %1376 = vmatprep.subr.mxu0 0.0
    %v1377 = vand.u32 %v939, 4294901760
    %v1378 = vsub.f32 %v939, %v1377
    %1379 = vmatpush1.msra.mxu0 %v1378
    %1380 = vmatprep.subr.mxu0 0.0
    %v1381 = vand.u32 %v940, 4294901760
    %v1382 = vsub.f32 %v940, %v1381
    %1383 = vmatpush1.msra.mxu0 %v1382
    %1384 = vmatprep.subr.mxu0 0.0
    %1385 = vmatpush1.msra.mxu0 0.0
    %1386 = vmatprep.subr.mxu0 0.0
    %1387 = vmatpush1.msra.mxu0 0.0
    %1388 = vmatprep.subr.mxu0 0.0
    %1389 = vmatpush1.msra.mxu0 0.0
    %1390 = vmatprep.subr.mxu0 0.0
    %1391 = vmatpush1.msra.mxu0 0.0
    %1392 = vmatprep.subr.mxu0 0.0
    %1393 = vmatpush1.msra.mxu0 0.0
    %1394 = vmatprep.subr.mxu0 0.0
    %1395 = vmatpush1.msra.mxu0 0.0
    %1396 = vmatprep.subr.mxu0 0.0
    %1397 = vmatpush1.msra.mxu0 0.0
    %1398 = vmatprep.subr.mxu0 0.0
    %1399 = vmatpush1.msra.mxu0 0.0
    %1400 = vmatprep.subr.mxu0 0.0
    %1401 = vmatpush1.msra.mxu0 0.0
    %1402 = vmatprep.subr.mxu0 0.0
    %1403 = vmatpush1.msra.mxu0 0.0
    %1404 = vmatprep.subr.mxu0 0.0
    %1405 = vmatpush1.msra.mxu0 0.0
    %1406 = vmatprep.subr.mxu0 0.0
    %1407 = vmatpush1.msra.mxu0 0.0
    %1408 = vmatprep.subr.mxu0 0.0
    %1409 = vmatpush1.msra.mxu0 0.0
    %1410 = vmatprep.subr.mxu0 0.0
    %1411 = vmatpush1.msra.mxu0 0.0
    %1412 = vmatprep.subr.mxu0 0.0
    %1413 = vmatpush1.msra.mxu0 0.0
    %1414 = vmatprep.subr.mxu0 0.0
    %1415 = vmatpush1.msra.mxu0 0.0
    %1416 = vmatprep.subr.mxu0 0.0
    %1417 = vmatpush1.msra.mxu0 0.0
    %1418 = vmatprep.subr.mxu0 0.0
    %1419 = vmatpush1.msra.mxu0 0.0
    %1420 = vmatprep.subr.mxu0 0.0
    %1421 = vmatpush1.msra.mxu0 0.0
    %1422 = vmatprep.subr.mxu0 0.0
    %1423 = vmatpush1.msra.mxu0 0.0
    %1424 = vmatprep.subr.mxu0 0.0
    %1425 = vmatpush1.msra.mxu0 0.0
    %1426 = vmatprep.subr.mxu0 0.0
    %1427 = vmatpush1.msra.mxu0 0.0
    %1428 = vmatprep.subr.mxu0 0.0
    %1429 = vmatpush1.msra.mxu0 0.0
    %1430 = vmatprep.subr.mxu0 0.0
    %1431 = vmatpush1.msra.mxu0 0.0
    %1432 = vmatprep.mubr.f32.mxu0 0.0
    %v1433 = vand.u32 %v1023, 4294901760
    %v1434 = vsub.f32 %v1023, %v1433
    %1435 = vmatmul.mubr.f32.gmra.mrb[0].mxu0 %v1434
    %v1436 = vpop.f32.mrb[0].mxu0
    %v1437 = vadd.f32 %v1307, %v1436
    %v1438 = vpop.f32.mrb[0].mxu0
    %1439 = vmatprep.mubr.f32.mxu0 0.0
    %v1440 = vand.u32 %v1026, 4294901760
    %v1441 = vsub.f32 %v1026, %v1440
    %1442 = vmatmul.mubr.f32.gmra.mrb[0].mxu0 %v1441
    %v1443 = vpop.f32.mrb[0].mxu0
    %v1444 = vadd.f32 %v1313, %v1443
    %v1445 = vpop.f32.mrb[0].mxu0
    %1446 = vmatprep.mubr.f32.mxu0 0.0
    %v1447 = vand.u32 %v1029, 4294901760
    %v1448 = vsub.f32 %v1029, %v1447
    %1449 = vmatmul.mubr.f32.gmra.mrb[0].mxu0 %v1448
    %v1450 = vpop.f32.mrb[0].mxu0
    %v1451 = vadd.f32 %v1319, %v1450
    %v1452 = vpop.f32.mrb[0].mxu0
    %1453 = vmatprep.mubr.f32.mxu0 0.0
    %v1454 = vand.u32 %v1032, 4294901760
    %v1455 = vsub.f32 %v1032, %v1454
    %1456 = vmatmul.mubr.f32.gmra.mrb[0].mxu0 %v1455
    %v1457 = vpop.f32.mrb[0].mxu0
    %v1458 = vadd.f32 %v1325, %v1457
    %v1459 = vpop.f32.mrb[0].mxu0
    %1460 = vmatprep.mubr.f32.mxu0 0.0
    %v1461 = vand.u32 %v1035, 4294901760
    %v1462 = vsub.f32 %v1035, %v1461
    %1463 = vmatmul.mubr.f32.gmra.mrb[0].mxu0 %v1462
    %v1464 = vpop.f32.mrb[0].mxu0
    %v1465 = vadd.f32 %v1331, %v1464
    %v1466 = vpop.f32.mrb[0].mxu0
    %1467 = vmatprep.mubr.f32.mxu0 0.0
    %v1468 = vand.u32 %v1038, 4294901760
    %v1469 = vsub.f32 %v1038, %v1468
    %1470 = vmatmul.mubr.f32.gmra.mrb[0].mxu0 %v1469
    %v1471 = vpop.f32.mrb[0].mxu0
    %v1472 = vadd.f32 %v1337, %v1471
    %v1473 = vpop.f32.mrb[0].mxu0
    %1474 = vmatprep.mubr.f32.mxu0 0.0
    %v1475 = vand.u32 %v1041, 4294901760
    %v1476 = vsub.f32 %v1041, %v1475
    %1477 = vmatmul.mubr.f32.gmra.mrb[0].mxu0 %v1476
    %v1478 = vpop.f32.mrb[0].mxu0
    %v1479 = vadd.f32 %v1343, %v1478
    %v1480 = vpop.f32.mrb[0].mxu0
    %1481 = vmatprep.mubr.f32.mxu0 0.0
    %v1482 = vand.u32 %v1044, 4294901760
    %v1483 = vsub.f32 %v1044, %v1482
    %1484 = vmatmul.mubr.f32.gmra.mrb[0].mxu0 %v1483
    %v1485 = vpop.f32.mrb[0].mxu0
    %v1486 = vadd.f32 %v1349, %v1485
    %v1487 = vpop.f32.mrb[0].mxu0
    %1488 = vdwg.mxu0
    %1489 = vmatprep.subr.mxu0 0.0
    %v1490 = vand.u32 %v933, 4294901760
    %1491 = vmatpush1.msra.mxu0 %v1490
    %1492 = vmatprep.subr.mxu0 0.0
    %v1493 = vand.u32 %v934, 4294901760
    %1494 = vmatpush1.msra.mxu0 %v1493
    %1495 = vmatprep.subr.mxu0 0.0
    %v1496 = vand.u32 %v935, 4294901760
    %1497 = vmatpush1.msra.mxu0 %v1496
    %1498 = vmatprep.subr.mxu0 0.0
    %v1499 = vand.u32 %v936, 4294901760
    %1500 = vmatpush1.msra.mxu0 %v1499
    %1501 = vmatprep.subr.mxu0 0.0
    %v1502 = vand.u32 %v937, 4294901760
    %1503 = vmatpush1.msra.mxu0 %v1502
    %1504 = vmatprep.subr.mxu0 0.0
    %v1505 = vand.u32 %v938, 4294901760
    %1506 = vmatpush1.msra.mxu0 %v1505
    %1507 = vmatprep.subr.mxu0 0.0
    %v1508 = vand.u32 %v939, 4294901760
    %1509 = vmatpush1.msra.mxu0 %v1508
    %1510 = vmatprep.subr.mxu0 0.0
    %v1511 = vand.u32 %v940, 4294901760
    %1512 = vmatpush1.msra.mxu0 %v1511
    %1513 = vmatprep.subr.mxu0 0.0
    %1514 = vmatpush1.msra.mxu0 0.0
    %1515 = vmatprep.subr.mxu0 0.0
    %1516 = vmatpush1.msra.mxu0 0.0
    %1517 = vmatprep.subr.mxu0 0.0
    %1518 = vmatpush1.msra.mxu0 0.0
    %1519 = vmatprep.subr.mxu0 0.0
    %1520 = vmatpush1.msra.mxu0 0.0
    %1521 = vmatprep.subr.mxu0 0.0
    %1522 = vmatpush1.msra.mxu0 0.0
    %1523 = vmatprep.subr.mxu0 0.0
    %1524 = vmatpush1.msra.mxu0 0.0
    %1525 = vmatprep.subr.mxu0 0.0
    %1526 = vmatpush1.msra.mxu0 0.0
    %1527 = vmatprep.subr.mxu0 0.0
    %1528 = vmatpush1.msra.mxu0 0.0
    %1529 = vmatprep.subr.mxu0 0.0
    %1530 = vmatpush1.msra.mxu0 0.0
    %1531 = vmatprep.subr.mxu0 0.0
    %1532 = vmatpush1.msra.mxu0 0.0
    %1533 = vmatprep.subr.mxu0 0.0
    %1534 = vmatpush1.msra.mxu0 0.0
    %1535 = vmatprep.subr.mxu0 0.0
    %1536 = vmatpush1.msra.mxu0 0.0
    %1537 = vmatprep.subr.mxu0 0.0
    %1538 = vmatpush1.msra.mxu0 0.0
    %1539 = vmatprep.subr.mxu0 0.0
    %1540 = vmatpush1.msra.mxu0 0.0
    %1541 = vmatprep.subr.mxu0 0.0
    %1542 = vmatpush1.msra.mxu0 0.0
    %1543 = vmatprep.subr.mxu0 0.0
    %1544 = vmatpush1.msra.mxu0 0.0
    %1545 = vmatprep.subr.mxu0 0.0
    %1546 = vmatpush1.msra.mxu0 0.0
    %1547 = vmatprep.subr.mxu0 0.0
    %1548 = vmatpush1.msra.mxu0 0.0
    %1549 = vmatprep.subr.mxu0 0.0
    %1550 = vmatpush1.msra.mxu0 0.0
    %1551 = vmatprep.subr.mxu0 0.0
    %1552 = vmatpush1.msra.mxu0 0.0
    %1553 = vmatprep.subr.mxu0 0.0
    %1554 = vmatpush1.msra.mxu0 0.0
    %1555 = vmatprep.subr.mxu0 0.0
    %1556 = vmatpush1.msra.mxu0 0.0
    %1557 = vmatprep.subr.mxu0 0.0
    %1558 = vmatpush1.msra.mxu0 0.0
    %1559 = vmatprep.subr.mxu0 0.0
    %1560 = vmatpush1.msra.mxu0 0.0
    %1561 = vmatprep.mubr.f32.mxu0 0.0
    %v1562 = vand.u32 %v1023, 4294901760
    %v1563 = vsub.f32 %v1023, %v1562
    %v1564 = vand.u32 %v1563, 4294901760
    %1565 = vmatmul.mubr.f32.gmra.mrb[0].mxu0 %v1564
    %v1566 = vpop.f32.mrb[0].mxu0
    %v1567 = vadd.f32 %v1437, %v1566
    %v1568 = vpop.f32.mrb[0].mxu0
    %1569 = vmatprep.mubr.f32.mxu0 0.0
    %v1570 = vand.u32 %v1026, 4294901760
    %v1571 = vsub.f32 %v1026, %v1570
    %v1572 = vand.u32 %v1571, 4294901760
    %1573 = vmatmul.mubr.f32.gmra.mrb[0].mxu0 %v1572
    %v1574 = vpop.f32.mrb[0].mxu0
    %v1575 = vadd.f32 %v1444, %v1574
    %v1576 = vpop.f32.mrb[0].mxu0
    %1577 = vmatprep.mubr.f32.mxu0 0.0
    %v1578 = vand.u32 %v1029, 4294901760
    %v1579 = vsub.f32 %v1029, %v1578
    %v1580 = vand.u32 %v1579, 4294901760
    %1581 = vmatmul.mubr.f32.gmra.mrb[0].mxu0 %v1580
    %v1582 = vpop.f32.mrb[0].mxu0
    %v1583 = vadd.f32 %v1451, %v1582
    %v1584 = vpop.f32.mrb[0].mxu0
    %1585 = vmatprep.mubr.f32.mxu0 0.0
    %v1586 = vand.u32 %v1032, 4294901760
    %v1587 = vsub.f32 %v1032, %v1586
    %v1588 = vand.u32 %v1587, 4294901760
    %1589 = vmatmul.mubr.f32.gmra.mrb[0].mxu0 %v1588
    %v1590 = vpop.f32.mrb[0].mxu0
    %v1591 = vadd.f32 %v1458, %v1590
    %v1592 = vpop.f32.mrb[0].mxu0
    %1593 = vmatprep.mubr.f32.mxu0 0.0
    %v1594 = vand.u32 %v1035, 4294901760
    %v1595 = vsub.f32 %v1035, %v1594
    %v1596 = vand.u32 %v1595, 4294901760
    %1597 = vmatmul.mubr.f32.gmra.mrb[0].mxu0 %v1596
    %v1598 = vpop.f32.mrb[0].mxu0
    %v1599 = vadd.f32 %v1465, %v1598
    %v1600 = vpop.f32.mrb[0].mxu0
    %1601 = vmatprep.mubr.f32.mxu0 0.0
    %v1602 = vand.u32 %v1038, 4294901760
    %v1603 = vsub.f32 %v1038, %v1602
    %v1604 = vand.u32 %v1603, 4294901760
    %1605 = vmatmul.mubr.f32.gmra.mrb[0].mxu0 %v1604
    %v1606 = vpop.f32.mrb[0].mxu0
    %v1607 = vadd.f32 %v1472, %v1606
    %v1608 = vpop.f32.mrb[0].mxu0
    %1609 = vmatprep.mubr.f32.mxu0 0.0
    %v1610 = vand.u32 %v1041, 4294901760
    %v1611 = vsub.f32 %v1041, %v1610
    %v1612 = vand.u32 %v1611, 4294901760
    %1613 = vmatmul.mubr.f32.gmra.mrb[0].mxu0 %v1612
    %v1614 = vpop.f32.mrb[0].mxu0
    %v1615 = vadd.f32 %v1479, %v1614
    %v1616 = vpop.f32.mrb[0].mxu0
    %1617 = vmatprep.mubr.f32.mxu0 0.0
    %v1618 = vand.u32 %v1044, 4294901760
    %v1619 = vsub.f32 %v1044, %v1618
    %v1620 = vand.u32 %v1619, 4294901760
    %1621 = vmatmul.mubr.f32.gmra.mrb[0].mxu0 %v1620
    %v1622 = vpop.f32.mrb[0].mxu0
    %v1623 = vadd.f32 %v1486, %v1622
    %v1624 = vpop.f32.mrb[0].mxu0
    %1625 = vdwg.mxu0
    %1626 = vmatprep.subr.mxu0 0.0
    %v1627 = vand.u32 %v933, 4294901760
    %v1628 = vsub.f32 %v933, %v1627
    %v1629 = vand.u32 %v1628, 4294901760
    %1630 = vmatpush1.msra.mxu0 %v1629
    %1631 = vmatprep.subr.mxu0 0.0
    %v1632 = vand.u32 %v934, 4294901760
    %v1633 = vsub.f32 %v934, %v1632
    %v1634 = vand.u32 %v1633, 4294901760
    %1635 = vmatpush1.msra.mxu0 %v1634
    %1636 = vmatprep.subr.mxu0 0.0
    %v1637 = vand.u32 %v935, 4294901760
    %v1638 = vsub.f32 %v935, %v1637
    %v1639 = vand.u32 %v1638, 4294901760
    %1640 = vmatpush1.msra.mxu0 %v1639
    %1641 = vmatprep.subr.mxu0 0.0
    %v1642 = vand.u32 %v936, 4294901760
    %v1643 = vsub.f32 %v936, %v1642
    %v1644 = vand.u32 %v1643, 4294901760
    %1645 = vmatpush1.msra.mxu0 %v1644
    %1646 = vmatprep.subr.mxu0 0.0
    %v1647 = vand.u32 %v937, 4294901760
    %v1648 = vsub.f32 %v937, %v1647
    %v1649 = vand.u32 %v1648, 4294901760
    %1650 = vmatpush1.msra.mxu0 %v1649
    %1651 = vmatprep.subr.mxu0 0.0
    %v1652 = vand.u32 %v938, 4294901760
    %v1653 = vsub.f32 %v938, %v1652
    %v1654 = vand.u32 %v1653, 4294901760
    %1655 = vmatpush1.msra.mxu0 %v1654
    %1656 = vmatprep.subr.mxu0 0.0
    %v1657 = vand.u32 %v939, 4294901760
    %v1658 = vsub.f32 %v939, %v1657
    %v1659 = vand.u32 %v1658, 4294901760
    %1660 = vmatpush1.msra.mxu0 %v1659
    %1661 = vmatprep.subr.mxu0 0.0
    %v1662 = vand.u32 %v940, 4294901760
    %v1663 = vsub.f32 %v940, %v1662
    %v1664 = vand.u32 %v1663, 4294901760
    %1665 = vmatpush1.msra.mxu0 %v1664
    %1666 = vmatprep.subr.mxu0 0.0
    %1667 = vmatpush1.msra.mxu0 0.0
    %1668 = vmatprep.subr.mxu0 0.0
    %1669 = vmatpush1.msra.mxu0 0.0
    %1670 = vmatprep.subr.mxu0 0.0
    %1671 = vmatpush1.msra.mxu0 0.0
    %1672 = vmatprep.subr.mxu0 0.0
    %1673 = vmatpush1.msra.mxu0 0.0
    %1674 = vmatprep.subr.mxu0 0.0
    %1675 = vmatpush1.msra.mxu0 0.0
    %1676 = vmatprep.subr.mxu0 0.0
    %1677 = vmatpush1.msra.mxu0 0.0
    %1678 = vmatprep.subr.mxu0 0.0
    %1679 = vmatpush1.msra.mxu0 0.0
    %1680 = vmatprep.subr.mxu0 0.0
    %1681 = vmatpush1.msra.mxu0 0.0
    %1682 = vmatprep.subr.mxu0 0.0
    %1683 = vmatpush1.msra.mxu0 0.0
    %1684 = vmatprep.subr.mxu0 0.0
    %1685 = vmatpush1.msra.mxu0 0.0
    %1686 = vmatprep.subr.mxu0 0.0
    %1687 = vmatpush1.msra.mxu0 0.0
    %1688 = vmatprep.subr.mxu0 0.0
    %1689 = vmatpush1.msra.mxu0 0.0
    %1690 = vmatprep.subr.mxu0 0.0
    %1691 = vmatpush1.msra.mxu0 0.0
    %1692 = vmatprep.subr.mxu0 0.0
    %1693 = vmatpush1.msra.mxu0 0.0
    %1694 = vmatprep.subr.mxu0 0.0
    %1695 = vmatpush1.msra.mxu0 0.0
    %1696 = vmatprep.subr.mxu0 0.0
    %1697 = vmatpush1.msra.mxu0 0.0
    %1698 = vmatprep.subr.mxu0 0.0
    %1699 = vmatpush1.msra.mxu0 0.0
    %1700 = vmatprep.subr.mxu0 0.0
    %1701 = vmatpush1.msra.mxu0 0.0
    %1702 = vmatprep.subr.mxu0 0.0
    %1703 = vmatpush1.msra.mxu0 0.0
    %1704 = vmatprep.subr.mxu0 0.0
    %1705 = vmatpush1.msra.mxu0 0.0
    %1706 = vmatprep.subr.mxu0 0.0
    %1707 = vmatpush1.msra.mxu0 0.0
    %1708 = vmatprep.subr.mxu0 0.0
    %1709 = vmatpush1.msra.mxu0 0.0
    %1710 = vmatprep.subr.mxu0 0.0
    %1711 = vmatpush1.msra.mxu0 0.0
    %1712 = vmatprep.subr.mxu0 0.0
    %1713 = vmatpush1.msra.mxu0 0.0
    %1714 = vmatprep.mubr.f32.mxu0 0.0
    %v1715 = vand.u32 %v1023, 4294901760
    %1716 = vmatmul.mubr.f32.gmra.mrb[0].mxu0 %v1715
    %v1717 = vpop.f32.mrb[0].mxu0
    %v1718 = vadd.f32 %v1567, %v1717
    %v1719 = vpop.f32.mrb[0].mxu0
    %1720 = vmatprep.mubr.f32.mxu0 0.0
    %v1721 = vand.u32 %v1026, 4294901760
    %1722 = vmatmul.mubr.f32.gmra.mrb[0].mxu0 %v1721
    %v1723 = vpop.f32.mrb[0].mxu0
    %v1724 = vadd.f32 %v1575, %v1723
    %v1725 = vpop.f32.mrb[0].mxu0
    %1726 = vmatprep.mubr.f32.mxu0 0.0
    %v1727 = vand.u32 %v1029, 4294901760
    %1728 = vmatmul.mubr.f32.gmra.mrb[0].mxu0 %v1727
    %v1729 = vpop.f32.mrb[0].mxu0
    %v1730 = vadd.f32 %v1583, %v1729
    %v1731 = vpop.f32.mrb[0].mxu0
    %1732 = vmatprep.mubr.f32.mxu0 0.0
    %v1733 = vand.u32 %v1032, 4294901760
    %1734 = vmatmul.mubr.f32.gmra.mrb[0].mxu0 %v1733
    %v1735 = vpop.f32.mrb[0].mxu0
    %v1736 = vadd.f32 %v1591, %v1735
    %v1737 = vpop.f32.mrb[0].mxu0
    %1738 = vmatprep.mubr.f32.mxu0 0.0
    %v1739 = vand.u32 %v1035, 4294901760
    %1740 = vmatmul.mubr.f32.gmra.mrb[0].mxu0 %v1739
    %v1741 = vpop.f32.mrb[0].mxu0
    %v1742 = vadd.f32 %v1599, %v1741
    %v1743 = vpop.f32.mrb[0].mxu0
    %1744 = vmatprep.mubr.f32.mxu0 0.0
    %v1745 = vand.u32 %v1038, 4294901760
    %1746 = vmatmul.mubr.f32.gmra.mrb[0].mxu0 %v1745
    %v1747 = vpop.f32.mrb[0].mxu0
    %v1748 = vadd.f32 %v1607, %v1747
    %v1749 = vpop.f32.mrb[0].mxu0
    %1750 = vmatprep.mubr.f32.mxu0 0.0
    %v1751 = vand.u32 %v1041, 4294901760
    %1752 = vmatmul.mubr.f32.gmra.mrb[0].mxu0 %v1751
    %v1753 = vpop.f32.mrb[0].mxu0
    %v1754 = vadd.f32 %v1615, %v1753
    %v1755 = vpop.f32.mrb[0].mxu0
    %1756 = vmatprep.mubr.f32.mxu0 0.0
    %v1757 = vand.u32 %v1044, 4294901760
    %1758 = vmatmul.mubr.f32.gmra.mrb[0].mxu0 %v1757
    %v1759 = vpop.f32.mrb[0].mxu0
    %v1760 = vadd.f32 %v1623, %v1759
    %v1761 = vpop.f32.mrb[0].mxu0
    %1762 = vdwg.mxu0
    %1763 = vmatprep.subr.mxu0 0.0
    %v1764 = vand.u32 %v933, 4294901760
    %1765 = vmatpush1.msra.mxu0 %v1764
    %1766 = vmatprep.subr.mxu0 0.0
    %v1767 = vand.u32 %v934, 4294901760
    %1768 = vmatpush1.msra.mxu0 %v1767
    %1769 = vmatprep.subr.mxu0 0.0
    %v1770 = vand.u32 %v935, 4294901760
    %1771 = vmatpush1.msra.mxu0 %v1770
    %1772 = vmatprep.subr.mxu0 0.0
    %v1773 = vand.u32 %v936, 4294901760
    %1774 = vmatpush1.msra.mxu0 %v1773
    %1775 = vmatprep.subr.mxu0 0.0
    %v1776 = vand.u32 %v937, 4294901760
    %1777 = vmatpush1.msra.mxu0 %v1776
    %1778 = vmatprep.subr.mxu0 0.0
    %v1779 = vand.u32 %v938, 4294901760
    %1780 = vmatpush1.msra.mxu0 %v1779
    %1781 = vmatprep.subr.mxu0 0.0
    %v1782 = vand.u32 %v939, 4294901760
    %1783 = vmatpush1.msra.mxu0 %v1782
    %1784 = vmatprep.subr.mxu0 0.0
    %v1785 = vand.u32 %v940, 4294901760
    %1786 = vmatpush1.msra.mxu0 %v1785
    %1787 = vmatprep.subr.mxu0 0.0
    %1788 = vmatpush1.msra.mxu0 0.0
    %1789 = vmatprep.subr.mxu0 0.0
    %1790 = vmatpush1.msra.mxu0 0.0
    %1791 = vmatprep.subr.mxu0 0.0
    %1792 = vmatpush1.msra.mxu0 0.0
    %1793 = vmatprep.subr.mxu0 0.0
    %1794 = vmatpush1.msra.mxu0 0.0
    %1795 = vmatprep.subr.mxu0 0.0
    %1796 = vmatpush1.msra.mxu0 0.0
    %1797 = vmatprep.subr.mxu0 0.0
    %1798 = vmatpush1.msra.mxu0 0.0
    %1799 = vmatprep.subr.mxu0 0.0
    %1800 = vmatpush1.msra.mxu0 0.0
    %1801 = vmatprep.subr.mxu0 0.0
    %1802 = vmatpush1.msra.mxu0 0.0
    %1803 = vmatprep.subr.mxu0 0.0
    %1804 = vmatpush1.msra.mxu0 0.0
    %1805 = vmatprep.subr.mxu0 0.0
    %1806 = vmatpush1.msra.mxu0 0.0
    %1807 = vmatprep.subr.mxu0 0.0
    %1808 = vmatpush1.msra.mxu0 0.0
    %1809 = vmatprep.subr.mxu0 0.0
    %1810 = vmatpush1.msra.mxu0 0.0
    %1811 = vmatprep.subr.mxu0 0.0
    %1812 = vmatpush1.msra.mxu0 0.0
    %1813 = vmatprep.subr.mxu0 0.0
    %1814 = vmatpush1.msra.mxu0 0.0
    %1815 = vmatprep.subr.mxu0 0.0
    %1816 = vmatpush1.msra.mxu0 0.0
    %1817 = vmatprep.subr.mxu0 0.0
    %1818 = vmatpush1.msra.mxu0 0.0
    %1819 = vmatprep.subr.mxu0 0.0
    %1820 = vmatpush1.msra.mxu0 0.0
    %1821 = vmatprep.subr.mxu0 0.0
    %1822 = vmatpush1.msra.mxu0 0.0
    %1823 = vmatprep.subr.mxu0 0.0
    %1824 = vmatpush1.msra.mxu0 0.0
    %1825 = vmatprep.subr.mxu0 0.0
    %1826 = vmatpush1.msra.mxu0 0.0
    %1827 = vmatprep.subr.mxu0 0.0
    %1828 = vmatpush1.msra.mxu0 0.0
    %1829 = vmatprep.subr.mxu0 0.0
    %1830 = vmatpush1.msra.mxu0 0.0
    %1831 = vmatprep.subr.mxu0 0.0
    %1832 = vmatpush1.msra.mxu0 0.0
    %1833 = vmatprep.subr.mxu0 0.0
    %1834 = vmatpush1.msra.mxu0 0.0
    %1835 = vmatprep.mubr.f32.mxu0 0.0
    %v1836 = vand.u32 %v1023, 4294901760
    %1837 = vmatmul.mubr.f32.gmra.mrb[0].mxu0 %v1836
    %v1838 = vpop.f32.mrb[0].mxu0
    %v1839 = vadd.f32 %v1718, %v1838
    %v1840 = vpop.f32.mrb[0].mxu0
    %1841 = vmatprep.mubr.f32.mxu0 0.0
    %v1842 = vand.u32 %v1026, 4294901760
    %1843 = vmatmul.mubr.f32.gmra.mrb[0].mxu0 %v1842
    %v1844 = vpop.f32.mrb[0].mxu0
    %v1845 = vadd.f32 %v1724, %v1844
    %v1846 = vpop.f32.mrb[0].mxu0
    %1847 = vmatprep.mubr.f32.mxu0 0.0
    %v1848 = vand.u32 %v1029, 4294901760
    %1849 = vmatmul.mubr.f32.gmra.mrb[0].mxu0 %v1848
    %v1850 = vpop.f32.mrb[0].mxu0
    %v1851 = vadd.f32 %v1730, %v1850
    %v1852 = vpop.f32.mrb[0].mxu0
    %1853 = vmatprep.mubr.f32.mxu0 0.0
    %v1854 = vand.u32 %v1032, 4294901760
    %1855 = vmatmul.mubr.f32.gmra.mrb[0].mxu0 %v1854
    %v1856 = vpop.f32.mrb[0].mxu0
    %v1857 = vadd.f32 %v1736, %v1856
    %v1858 = vpop.f32.mrb[0].mxu0
    %1859 = vmatprep.mubr.f32.mxu0 0.0
    %v1860 = vand.u32 %v1035, 4294901760
    %1861 = vmatmul.mubr.f32.gmra.mrb[0].mxu0 %v1860
    %v1862 = vpop.f32.mrb[0].mxu0
    %v1863 = vadd.f32 %v1742, %v1862
    %v1864 = vpop.f32.mrb[0].mxu0
    %1865 = vmatprep.mubr.f32.mxu0 0.0
    %v1866 = vand.u32 %v1038, 4294901760
    %1867 = vmatmul.mubr.f32.gmra.mrb[0].mxu0 %v1866
    %v1868 = vpop.f32.mrb[0].mxu0
    %v1869 = vadd.f32 %v1748, %v1868
    %v1870 = vpop.f32.mrb[0].mxu0
    %1871 = vmatprep.mubr.f32.mxu0 0.0
    %v1872 = vand.u32 %v1041, 4294901760
    %1873 = vmatmul.mubr.f32.gmra.mrb[0].mxu0 %v1872
    %v1874 = vpop.f32.mrb[0].mxu0
    %v1875 = vadd.f32 %v1754, %v1874
    %v1876 = vpop.f32.mrb[0].mxu0
    %1877 = vmatprep.mubr.f32.mxu0 0.0
    %v1878 = vand.u32 %v1044, 4294901760
    %1879 = vmatmul.mubr.f32.gmra.mrb[0].mxu0 %v1878
    %v1880 = vpop.f32.mrb[0].mxu0
    %v1881 = vadd.f32 %v1760, %v1880
    %v1882 = vpop.f32.mrb[0].mxu0
    %1883 = vdwg.mxu0
    %vm1884 = vcmp.gt.f32.partialorder %v1839, 20.0
    %vm1885 = vcmp.gt.f32.partialorder %v1845, 20.0
    %vm1886 = vcmp.gt.f32.partialorder %v1851, 20.0
    %vm1887 = vcmp.gt.f32.partialorder %v1857, 20.0
    %vm1888 = vcmp.gt.f32.partialorder %v1863, 20.0
    %vm1889 = vcmp.gt.f32.partialorder %v1869, 20.0
    %vm1890 = vcmp.gt.f32.partialorder %v1875, 20.0
    %vm1891 = vcmp.gt.f32.partialorder %v1881, 20.0
    %v1892 = vmin.f32 %v1839, 20.0
    %v1893 = vmin.f32 %v1845, 20.0
    %v1894 = vmin.f32 %v1851, 20.0
    %v1895 = vmin.f32 %v1857, 20.0
    %v1896 = vmin.f32 %v1863, 20.0
    %v1897 = vmin.f32 %v1869, 20.0
    %v1898 = vmin.f32 %v1875, 20.0
    %v1899 = vmin.f32 %v1881, 20.0
    %v1900 = vmul.f32 %v1892, 1.442695
    %v1901 = vpow.pop %v1900
    %v1902 = vmul.f32 %v1893, 1.442695
    %v1903 = vpow.pop %v1902
    %v1904 = vmul.f32 %v1894, 1.442695
    %v1905 = vpow.pop %v1904
    %v1906 = vmul.f32 %v1895, 1.442695
    %v1907 = vpow.pop %v1906
    %v1908 = vmul.f32 %v1896, 1.442695
    %v1909 = vpow.pop %v1908
    %v1910 = vmul.f32 %v1897, 1.442695
    %v1911 = vpow.pop %v1910
    %v1912 = vmul.f32 %v1898, 1.442695
    %v1913 = vpow.pop %v1912
    %v1914 = vmul.f32 %v1899, 1.442695
    %v1915 = vpow.pop %v1914
    %v1916 = vadd.f32 %v1901, 1.0
    %v1917 = vadd.f32 %v1903, 1.0
    %v1918 = vadd.f32 %v1905, 1.0
    %v1919 = vadd.f32 %v1907, 1.0
    %v1920 = vadd.f32 %v1909, 1.0
    %v1921 = vadd.f32 %v1911, 1.0
    %v1922 = vadd.f32 %v1913, 1.0
    %v1923 = vadd.f32 %v1915, 1.0
    %v1924 = vlog2.pop %v1916
    %v1925 = vmul.f32 %v1924, 0.6931472
    %v1926 = vlog2.pop %v1917
    %v1927 = vmul.f32 %v1926, 0.6931472
    %v1928 = vlog2.pop %v1918
    %v1929 = vmul.f32 %v1928, 0.6931472
    %v1930 = vlog2.pop %v1919
    %v1931 = vmul.f32 %v1930, 0.6931472
    %v1932 = vlog2.pop %v1920
    %v1933 = vmul.f32 %v1932, 0.6931472
    %v1934 = vlog2.pop %v1921
    %v1935 = vmul.f32 %v1934, 0.6931472
    %v1936 = vlog2.pop %v1922
    %v1937 = vmul.f32 %v1936, 0.6931472
    %v1938 = vlog2.pop %v1923
    %v1939 = vmul.f32 %v1938, 0.6931472
    %v1940 = vsel %vm1884, %v1839, %v1925
    %v1941 = vsel %vm1885, %v1845, %v1927
    %v1942 = vsel %vm1886, %v1851, %v1929
    %v1943 = vsel %vm1887, %v1857, %v1931
    %v1944 = vsel %vm1888, %v1863, %v1933
    %v1945 = vsel %vm1889, %v1869, %v1935
    %v1946 = vsel %vm1890, %v1875, %v1937
    %v1947 = vsel %vm1891, %v1881, %v1939
    %v1948 = vsub.f32 %v1839, %v1940
    %v1949 = vsub.f32 %v1845, %v1941
    %v1950 = vsub.f32 %v1851, %v1942
    %v1951 = vsub.f32 %v1857, %v1943
    %v1952 = vsub.f32 %v1863, %v1944
    %v1953 = vsub.f32 %v1869, %v1945
    %v1954 = vsub.f32 %v1875, %v1946
    %v1955 = vsub.f32 %v1881, %v1947
    %v1956 = vmul.f32 %v1948, 1.442695
    %v1957 = vpow.pop %v1956
    %v1958 = vmul.f32 %v1949, 1.442695
    %v1959 = vpow.pop %v1958
    %v1960 = vmul.f32 %v1950, 1.442695
    %v1961 = vpow.pop %v1960
    %v1962 = vmul.f32 %v1951, 1.442695
    %v1963 = vpow.pop %v1962
    %v1964 = vmul.f32 %v1952, 1.442695
    %v1965 = vpow.pop %v1964
    %v1966 = vmul.f32 %v1953, 1.442695
    %v1967 = vpow.pop %v1966
    %v1968 = vmul.f32 %v1954, 1.442695
    %v1969 = vpow.pop %v1968
    %v1970 = vmul.f32 %v1955, 1.442695
    %v1971 = vpow.pop %v1970
    %v1972 = vsub.f32 1.0, %v1957
    %v1973 = vsub.f32 1.0, %v1959
    %v1974 = vsub.f32 1.0, %v1961
    %v1975 = vsub.f32 1.0, %v1963
    %v1976 = vsub.f32 1.0, %v1965
    %v1977 = vsub.f32 1.0, %v1967
    %v1978 = vsub.f32 1.0, %v1969
    %v1979 = vsub.f32 1.0, %v1971
    %v1980 = vmul.f32 %v1957, %v1972
    %v1981 = vmul.f32 %v1959, %v1973
    %v1982 = vmul.f32 %v1961, %v1974
    %v1983 = vmul.f32 %v1963, %v1975
    %v1984 = vmul.f32 %v1965, %v1976
    %v1985 = vmul.f32 %v1967, %v1977
    %v1986 = vmul.f32 %v1969, %v1978
    %v1987 = vmul.f32 %v1971, %v1979
    %1989 = vset.pattern.permute.xlu0 0
    %1990 = vperm.xlu0 %1989, %v56
    %v1991 = vpop.permute.xlu0 %1990
    %1994 = vset.pattern.permute.xlu0 0
    %1995 = vperm.xlu0 %1994, %v57
    %v1996 = vpop.permute.xlu0 %1995
    %1999 = vset.pattern.permute.xlu0 0
    %2000 = vperm.xlu0 %1999, %v58
    %v2001 = vpop.permute.xlu0 %2000
    %2004 = vset.pattern.permute.xlu0 0
    %2005 = vperm.xlu0 %2004, %v59
    %v2006 = vpop.permute.xlu0 %2005
    %2009 = vset.pattern.permute.xlu0 0
    %2010 = vperm.xlu0 %2009, %v60
    %v2011 = vpop.permute.xlu0 %2010
    %2014 = vset.pattern.permute.xlu0 0
    %2015 = vperm.xlu0 %2014, %v61
    %v2016 = vpop.permute.xlu0 %2015
    %2019 = vset.pattern.permute.xlu0 0
    %2020 = vperm.xlu0 %2019, %v62
    %v2021 = vpop.permute.xlu0 %2020
    %2024 = vset.pattern.permute.xlu0 0
    %2025 = vperm.xlu0 %2024, %v63
    %v2026 = vpop.permute.xlu0 %2025
    %v2028 = vmul.f32 %v1957, %v1991
    %v2029 = vmul.f32 %v1959, %v1996
    %v2030 = vmul.f32 %v1961, %v2001
    %v2031 = vmul.f32 %v1963, %v2006
    %v2032 = vmul.f32 %v1965, %v2011
    %v2033 = vmul.f32 %v1967, %v2016
    %v2034 = vmul.f32 %v1969, %v2021
    %v2035 = vmul.f32 %v1971, %v2026
    %2036 = vxpose.xlu0.b32.start [1/16] %v40, 128
    %2037 = vxpose.xlu0.b32.cont [2/16] %v41, 128
    %2038 = vxpose.xlu0.b32.cont [3/16] %v42, 128
    %2039 = vxpose.xlu0.b32.cont [4/16] %v43, 128
    %2040 = vxpose.xlu0.b32.cont [5/16] %v44, 128
    %2041 = vxpose.xlu0.b32.cont [6/16] %v45, 128
    %2042 = vxpose.xlu0.b32.cont [7/16] %v46, 128
    %2043 = vxpose.xlu0.b32.cont [8/16] %v47, 128
    %2044 = vxpose.xlu0.b32.cont [9/16] 0.0, 128
    %2045 = vxpose.xlu0.b32.cont [10/16] 0.0, 128
    %2046 = vxpose.xlu0.b32.cont [11/16] 0.0, 128
    %2047 = vxpose.xlu0.b32.cont [12/16] 0.0, 128
    %2048 = vxpose.xlu0.b32.cont [13/16] 0.0, 128
    %2049 = vxpose.xlu0.b32.cont [14/16] 0.0, 128
    %2050 = vxpose.xlu0.b32.cont [15/16] 0.0, 128
    %2051 = vxpose.xlu0.b32.end [16/16] 0.0, 128
    %v2052 = vpop.trf.xlu0
    %v2053 = vpop.trf.xlu0
    %v2054 = vpop.trf.xlu0
    %v2055 = vpop.trf.xlu0
    %v2056 = vpop.trf.xlu0
    %v2057 = vpop.trf.xlu0
    %v2058 = vpop.trf.xlu0
    %v2059 = vpop.trf.xlu0
    %v2060 = vpop.trf.xlu0
    %v2061 = vpop.trf.xlu0
    %v2062 = vpop.trf.xlu0
    %v2063 = vpop.trf.xlu0
    %v2064 = vpop.trf.xlu0
    %v2065 = vpop.trf.xlu0
    %v2066 = vpop.trf.xlu0
    %v2067 = vpop.trf.xlu0
    %v2069 = vsel %vm1021, %v2052, 0
    %v2072 = vsel %vm1021, %v2053, 0
    %v2075 = vsel %vm1021, %v2054, 0
    %v2078 = vsel %vm1021, %v2055, 0
    %v2081 = vsel %vm1021, %v2056, 0
    %v2084 = vsel %vm1021, %v2057, 0
    %v2087 = vsel %vm1021, %v2058, 0
    %v2090 = vsel %vm1021, %v2059, 0
    %2092 = vmatprep.subr.mxu0 0.0
    %v2093 = vand.u32 %v2028, 4294901760
    %2094 = vmatpush1.msra.mxu0 %v2093
    %2095 = vmatprep.subr.mxu0 0.0
    %v2096 = vand.u32 %v2029, 4294901760
    %2097 = vmatpush1.msra.mxu0 %v2096
    %2098 = vmatprep.subr.mxu0 0.0
    %v2099 = vand.u32 %v2030, 4294901760
    %2100 = vmatpush1.msra.mxu0 %v2099
    %2101 = vmatprep.subr.mxu0 0.0
    %v2102 = vand.u32 %v2031, 4294901760
    %2103 = vmatpush1.msra.mxu0 %v2102
    %2104 = vmatprep.subr.mxu0 0.0
    %v2105 = vand.u32 %v2032, 4294901760
    %2106 = vmatpush1.msra.mxu0 %v2105
    %2107 = vmatprep.subr.mxu0 0.0
    %v2108 = vand.u32 %v2033, 4294901760
    %2109 = vmatpush1.msra.mxu0 %v2108
    %2110 = vmatprep.subr.mxu0 0.0
    %v2111 = vand.u32 %v2034, 4294901760
    %2112 = vmatpush1.msra.mxu0 %v2111
    %2113 = vmatprep.subr.mxu0 0.0
    %v2114 = vand.u32 %v2035, 4294901760
    %2115 = vmatpush1.msra.mxu0 %v2114
    %2116 = vmatprep.subr.mxu0 0.0
    %2117 = vmatpush1.msra.mxu0 0.0
    %2118 = vmatprep.subr.mxu0 0.0
    %2119 = vmatpush1.msra.mxu0 0.0
    %2120 = vmatprep.subr.mxu0 0.0
    %2121 = vmatpush1.msra.mxu0 0.0
    %2122 = vmatprep.subr.mxu0 0.0
    %2123 = vmatpush1.msra.mxu0 0.0
    %2124 = vmatprep.subr.mxu0 0.0
    %2125 = vmatpush1.msra.mxu0 0.0
    %2126 = vmatprep.subr.mxu0 0.0
    %2127 = vmatpush1.msra.mxu0 0.0
    %2128 = vmatprep.subr.mxu0 0.0
    %2129 = vmatpush1.msra.mxu0 0.0
    %2130 = vmatprep.subr.mxu0 0.0
    %2131 = vmatpush1.msra.mxu0 0.0
    %2132 = vmatprep.subr.mxu0 0.0
    %2133 = vmatpush1.msra.mxu0 0.0
    %2134 = vmatprep.subr.mxu0 0.0
    %2135 = vmatpush1.msra.mxu0 0.0
    %2136 = vmatprep.subr.mxu0 0.0
    %2137 = vmatpush1.msra.mxu0 0.0
    %2138 = vmatprep.subr.mxu0 0.0
    %2139 = vmatpush1.msra.mxu0 0.0
    %2140 = vmatprep.subr.mxu0 0.0
    %2141 = vmatpush1.msra.mxu0 0.0
    %2142 = vmatprep.subr.mxu0 0.0
    %2143 = vmatpush1.msra.mxu0 0.0
    %2144 = vmatprep.subr.mxu0 0.0
    %2145 = vmatpush1.msra.mxu0 0.0
    %2146 = vmatprep.subr.mxu0 0.0
    %2147 = vmatpush1.msra.mxu0 0.0
    %2148 = vmatprep.subr.mxu0 0.0
    %2149 = vmatpush1.msra.mxu0 0.0
    %2150 = vmatprep.subr.mxu0 0.0
    %2151 = vmatpush1.msra.mxu0 0.0
    %2152 = vmatprep.subr.mxu0 0.0
    %2153 = vmatpush1.msra.mxu0 0.0
    %2154 = vmatprep.subr.mxu0 0.0
    %2155 = vmatpush1.msra.mxu0 0.0
    %2156 = vmatprep.subr.mxu0 0.0
    %2157 = vmatpush1.msra.mxu0 0.0
    %2158 = vmatprep.subr.mxu0 0.0
    %2159 = vmatpush1.msra.mxu0 0.0
    %2160 = vmatprep.subr.mxu0 0.0
    %2161 = vmatpush1.msra.mxu0 0.0
    %2162 = vmatprep.subr.mxu0 0.0
    %2163 = vmatpush1.msra.mxu0 0.0
    %2164 = vmatprep.mubr.f32.mxu0 0.0
    %v2165 = vand.u32 %v2069, 4294901760
    %v2166 = vsub.f32 %v2069, %v2165
    %v2167 = vand.u32 %v2166, 4294901760
    %v2168 = vsub.f32 %v2166, %v2167
    %v2169 = vand.u32 %v2168, 4294901760
    %2170 = vmatmul.mubr.f32.gmra.mrb[0].mxu0 %v2169
    %v2171 = vpop.f32.mrb[0].mxu0
    %v2172 = vadd.f32 0.0, %v2171
    %v2173 = vpop.f32.mrb[0].mxu0
    %2174 = vmatprep.mubr.f32.mxu0 0.0
    %v2175 = vand.u32 %v2072, 4294901760
    %v2176 = vsub.f32 %v2072, %v2175
    %v2177 = vand.u32 %v2176, 4294901760
    %v2178 = vsub.f32 %v2176, %v2177
    %v2179 = vand.u32 %v2178, 4294901760
    %2180 = vmatmul.mubr.f32.gmra.mrb[0].mxu0 %v2179
    %v2181 = vpop.f32.mrb[0].mxu0
    %v2182 = vadd.f32 0.0, %v2181
    %v2183 = vpop.f32.mrb[0].mxu0
    %2184 = vmatprep.mubr.f32.mxu0 0.0
    %v2185 = vand.u32 %v2075, 4294901760
    %v2186 = vsub.f32 %v2075, %v2185
    %v2187 = vand.u32 %v2186, 4294901760
    %v2188 = vsub.f32 %v2186, %v2187
    %v2189 = vand.u32 %v2188, 4294901760
    %2190 = vmatmul.mubr.f32.gmra.mrb[0].mxu0 %v2189
    %v2191 = vpop.f32.mrb[0].mxu0
    %v2192 = vadd.f32 0.0, %v2191
    %v2193 = vpop.f32.mrb[0].mxu0
    %2194 = vmatprep.mubr.f32.mxu0 0.0
    %v2195 = vand.u32 %v2078, 4294901760
    %v2196 = vsub.f32 %v2078, %v2195
    %v2197 = vand.u32 %v2196, 4294901760
    %v2198 = vsub.f32 %v2196, %v2197
    %v2199 = vand.u32 %v2198, 4294901760
    %2200 = vmatmul.mubr.f32.gmra.mrb[0].mxu0 %v2199
    %v2201 = vpop.f32.mrb[0].mxu0
    %v2202 = vadd.f32 0.0, %v2201
    %v2203 = vpop.f32.mrb[0].mxu0
    %2204 = vmatprep.mubr.f32.mxu0 0.0
    %v2205 = vand.u32 %v2081, 4294901760
    %v2206 = vsub.f32 %v2081, %v2205
    %v2207 = vand.u32 %v2206, 4294901760
    %v2208 = vsub.f32 %v2206, %v2207
    %v2209 = vand.u32 %v2208, 4294901760
    %2210 = vmatmul.mubr.f32.gmra.mrb[0].mxu0 %v2209
    %v2211 = vpop.f32.mrb[0].mxu0
    %v2212 = vadd.f32 0.0, %v2211
    %v2213 = vpop.f32.mrb[0].mxu0
    %2214 = vmatprep.mubr.f32.mxu0 0.0
    %v2215 = vand.u32 %v2084, 4294901760
    %v2216 = vsub.f32 %v2084, %v2215
    %v2217 = vand.u32 %v2216, 4294901760
    %v2218 = vsub.f32 %v2216, %v2217
    %v2219 = vand.u32 %v2218, 4294901760
    %2220 = vmatmul.mubr.f32.gmra.mrb[0].mxu0 %v2219
    %v2221 = vpop.f32.mrb[0].mxu0
    %v2222 = vadd.f32 0.0, %v2221
    %v2223 = vpop.f32.mrb[0].mxu0
    %2224 = vmatprep.mubr.f32.mxu0 0.0
    %v2225 = vand.u32 %v2087, 4294901760
    %v2226 = vsub.f32 %v2087, %v2225
    %v2227 = vand.u32 %v2226, 4294901760
    %v2228 = vsub.f32 %v2226, %v2227
    %v2229 = vand.u32 %v2228, 4294901760
    %2230 = vmatmul.mubr.f32.gmra.mrb[0].mxu0 %v2229
    %v2231 = vpop.f32.mrb[0].mxu0
    %v2232 = vadd.f32 0.0, %v2231
    %v2233 = vpop.f32.mrb[0].mxu0
    %2234 = vmatprep.mubr.f32.mxu0 0.0
    %v2235 = vand.u32 %v2090, 4294901760
    %v2236 = vsub.f32 %v2090, %v2235
    %v2237 = vand.u32 %v2236, 4294901760
    %v2238 = vsub.f32 %v2236, %v2237
    %v2239 = vand.u32 %v2238, 4294901760
    %2240 = vmatmul.mubr.f32.gmra.mrb[0].mxu0 %v2239
    %v2241 = vpop.f32.mrb[0].mxu0
    %v2242 = vadd.f32 0.0, %v2241
    %v2243 = vpop.f32.mrb[0].mxu0
    %2244 = vdwg.mxu0
    %2245 = vmatprep.subr.mxu0 0.0
    %v2246 = vand.u32 %v2028, 4294901760
    %v2247 = vsub.f32 %v2028, %v2246
    %v2248 = vand.u32 %v2247, 4294901760
    %v2249 = vsub.f32 %v2247, %v2248
    %v2250 = vand.u32 %v2249, 4294901760
    %2251 = vmatpush1.msra.mxu0 %v2250
    %2252 = vmatprep.subr.mxu0 0.0
    %v2253 = vand.u32 %v2029, 4294901760
    %v2254 = vsub.f32 %v2029, %v2253
    %v2255 = vand.u32 %v2254, 4294901760
    %v2256 = vsub.f32 %v2254, %v2255
    %v2257 = vand.u32 %v2256, 4294901760
    %2258 = vmatpush1.msra.mxu0 %v2257
    %2259 = vmatprep.subr.mxu0 0.0
    %v2260 = vand.u32 %v2030, 4294901760
    %v2261 = vsub.f32 %v2030, %v2260
    %v2262 = vand.u32 %v2261, 4294901760
    %v2263 = vsub.f32 %v2261, %v2262
    %v2264 = vand.u32 %v2263, 4294901760
    %2265 = vmatpush1.msra.mxu0 %v2264
    %2266 = vmatprep.subr.mxu0 0.0
    %v2267 = vand.u32 %v2031, 4294901760
    %v2268 = vsub.f32 %v2031, %v2267
    %v2269 = vand.u32 %v2268, 4294901760
    %v2270 = vsub.f32 %v2268, %v2269
    %v2271 = vand.u32 %v2270, 4294901760
    %2272 = vmatpush1.msra.mxu0 %v2271
    %2273 = vmatprep.subr.mxu0 0.0
    %v2274 = vand.u32 %v2032, 4294901760
    %v2275 = vsub.f32 %v2032, %v2274
    %v2276 = vand.u32 %v2275, 4294901760
    %v2277 = vsub.f32 %v2275, %v2276
    %v2278 = vand.u32 %v2277, 4294901760
    %2279 = vmatpush1.msra.mxu0 %v2278
    %2280 = vmatprep.subr.mxu0 0.0
    %v2281 = vand.u32 %v2033, 4294901760
    %v2282 = vsub.f32 %v2033, %v2281
    %v2283 = vand.u32 %v2282, 4294901760
    %v2284 = vsub.f32 %v2282, %v2283
    %v2285 = vand.u32 %v2284, 4294901760
    %2286 = vmatpush1.msra.mxu0 %v2285
    %2287 = vmatprep.subr.mxu0 0.0
    %v2288 = vand.u32 %v2034, 4294901760
    %v2289 = vsub.f32 %v2034, %v2288
    %v2290 = vand.u32 %v2289, 4294901760
    %v2291 = vsub.f32 %v2289, %v2290
    %v2292 = vand.u32 %v2291, 4294901760
    %2293 = vmatpush1.msra.mxu0 %v2292
    %2294 = vmatprep.subr.mxu0 0.0
    %v2295 = vand.u32 %v2035, 4294901760
    %v2296 = vsub.f32 %v2035, %v2295
    %v2297 = vand.u32 %v2296, 4294901760
    %v2298 = vsub.f32 %v2296, %v2297
    %v2299 = vand.u32 %v2298, 4294901760
    %2300 = vmatpush1.msra.mxu0 %v2299
    %2301 = vmatprep.subr.mxu0 0.0
    %2302 = vmatpush1.msra.mxu0 0.0
    %2303 = vmatprep.subr.mxu0 0.0
    %2304 = vmatpush1.msra.mxu0 0.0
    %2305 = vmatprep.subr.mxu0 0.0
    %2306 = vmatpush1.msra.mxu0 0.0
    %2307 = vmatprep.subr.mxu0 0.0
    %2308 = vmatpush1.msra.mxu0 0.0
    %2309 = vmatprep.subr.mxu0 0.0
    %2310 = vmatpush1.msra.mxu0 0.0
    %2311 = vmatprep.subr.mxu0 0.0
    %2312 = vmatpush1.msra.mxu0 0.0
    %2313 = vmatprep.subr.mxu0 0.0
    %2314 = vmatpush1.msra.mxu0 0.0
    %2315 = vmatprep.subr.mxu0 0.0
    %2316 = vmatpush1.msra.mxu0 0.0
    %2317 = vmatprep.subr.mxu0 0.0
    %2318 = vmatpush1.msra.mxu0 0.0
    %2319 = vmatprep.subr.mxu0 0.0
    %2320 = vmatpush1.msra.mxu0 0.0
    %2321 = vmatprep.subr.mxu0 0.0
    %2322 = vmatpush1.msra.mxu0 0.0
    %2323 = vmatprep.subr.mxu0 0.0
    %2324 = vmatpush1.msra.mxu0 0.0
    %2325 = vmatprep.subr.mxu0 0.0
    %2326 = vmatpush1.msra.mxu0 0.0
    %2327 = vmatprep.subr.mxu0 0.0
    %2328 = vmatpush1.msra.mxu0 0.0
    %2329 = vmatprep.subr.mxu0 0.0
    %2330 = vmatpush1.msra.mxu0 0.0
    %2331 = vmatprep.subr.mxu0 0.0
    %2332 = vmatpush1.msra.mxu0 0.0
    %2333 = vmatprep.subr.mxu0 0.0
    %2334 = vmatpush1.msra.mxu0 0.0
    %2335 = vmatprep.subr.mxu0 0.0
    %2336 = vmatpush1.msra.mxu0 0.0
    %2337 = vmatprep.subr.mxu0 0.0
    %2338 = vmatpush1.msra.mxu0 0.0
    %2339 = vmatprep.subr.mxu0 0.0
    %2340 = vmatpush1.msra.mxu0 0.0
    %2341 = vmatprep.subr.mxu0 0.0
    %2342 = vmatpush1.msra.mxu0 0.0
    %2343 = vmatprep.subr.mxu0 0.0
    %2344 = vmatpush1.msra.mxu0 0.0
    %2345 = vmatprep.subr.mxu0 0.0
    %2346 = vmatpush1.msra.mxu0 0.0
    %2347 = vmatprep.subr.mxu0 0.0
    %2348 = vmatpush1.msra.mxu0 0.0
    %2349 = vmatprep.mubr.f32.mxu0 0.0
    %v2350 = vand.u32 %v2069, 4294901760
    %2351 = vmatmul.mubr.f32.gmra.mrb[0].mxu0 %v2350
    %v2352 = vpop.f32.mrb[0].mxu0
    %v2353 = vadd.f32 %v2172, %v2352
    %v2354 = vpop.f32.mrb[0].mxu0
    %2355 = vmatprep.mubr.f32.mxu0 0.0
    %v2356 = vand.u32 %v2072, 4294901760
    %2357 = vmatmul.mubr.f32.gmra.mrb[0].mxu0 %v2356
    %v2358 = vpop.f32.mrb[0].mxu0
    %v2359 = vadd.f32 %v2182, %v2358
    %v2360 = vpop.f32.mrb[0].mxu0
    %2361 = vmatprep.mubr.f32.mxu0 0.0
    %v2362 = vand.u32 %v2075, 4294901760
    %2363 = vmatmul.mubr.f32.gmra.mrb[0].mxu0 %v2362
    %v2364 = vpop.f32.mrb[0].mxu0
    %v2365 = vadd.f32 %v2192, %v2364
    %v2366 = vpop.f32.mrb[0].mxu0
    %2367 = vmatprep.mubr.f32.mxu0 0.0
    %v2368 = vand.u32 %v2078, 4294901760
    %2369 = vmatmul.mubr.f32.gmra.mrb[0].mxu0 %v2368
    %v2370 = vpop.f32.mrb[0].mxu0
    %v2371 = vadd.f32 %v2202, %v2370
    %v2372 = vpop.f32.mrb[0].mxu0
    %2373 = vmatprep.mubr.f32.mxu0 0.0
    %v2374 = vand.u32 %v2081, 4294901760
    %2375 = vmatmul.mubr.f32.gmra.mrb[0].mxu0 %v2374
    %v2376 = vpop.f32.mrb[0].mxu0
    %v2377 = vadd.f32 %v2212, %v2376
    %v2378 = vpop.f32.mrb[0].mxu0
    %2379 = vmatprep.mubr.f32.mxu0 0.0
    %v2380 = vand.u32 %v2084, 4294901760
    %2381 = vmatmul.mubr.f32.gmra.mrb[0].mxu0 %v2380
    %v2382 = vpop.f32.mrb[0].mxu0
    %v2383 = vadd.f32 %v2222, %v2382
    %v2384 = vpop.f32.mrb[0].mxu0
    %2385 = vmatprep.mubr.f32.mxu0 0.0
    %v2386 = vand.u32 %v2087, 4294901760
    %2387 = vmatmul.mubr.f32.gmra.mrb[0].mxu0 %v2386
    %v2388 = vpop.f32.mrb[0].mxu0
    %v2389 = vadd.f32 %v2232, %v2388
    %v2390 = vpop.f32.mrb[0].mxu0
    %2391 = vmatprep.mubr.f32.mxu0 0.0
    %v2392 = vand.u32 %v2090, 4294901760
    %2393 = vmatmul.mubr.f32.gmra.mrb[0].mxu0 %v2392
    %v2394 = vpop.f32.mrb[0].mxu0
    %v2395 = vadd.f32 %v2242, %v2394
    %v2396 = vpop.f32.mrb[0].mxu0
    %2397 = vdwg.mxu0
    %2398 = vmatprep.subr.mxu0 0.0
    %v2399 = vand.u32 %v2028, 4294901760
    %v2400 = vsub.f32 %v2028, %v2399
    %2401 = vmatpush1.msra.mxu0 %v2400
    %2402 = vmatprep.subr.mxu0 0.0
    %v2403 = vand.u32 %v2029, 4294901760
    %v2404 = vsub.f32 %v2029, %v2403
    %2405 = vmatpush1.msra.mxu0 %v2404
    %2406 = vmatprep.subr.mxu0 0.0
    %v2407 = vand.u32 %v2030, 4294901760
    %v2408 = vsub.f32 %v2030, %v2407
    %2409 = vmatpush1.msra.mxu0 %v2408
    %2410 = vmatprep.subr.mxu0 0.0
    %v2411 = vand.u32 %v2031, 4294901760
    %v2412 = vsub.f32 %v2031, %v2411
    %2413 = vmatpush1.msra.mxu0 %v2412
    %2414 = vmatprep.subr.mxu0 0.0
    %v2415 = vand.u32 %v2032, 4294901760
    %v2416 = vsub.f32 %v2032, %v2415
    %2417 = vmatpush1.msra.mxu0 %v2416
    %2418 = vmatprep.subr.mxu0 0.0
    %v2419 = vand.u32 %v2033, 4294901760
    %v2420 = vsub.f32 %v2033, %v2419
    %2421 = vmatpush1.msra.mxu0 %v2420
    %2422 = vmatprep.subr.mxu0 0.0
    %v2423 = vand.u32 %v2034, 4294901760
    %v2424 = vsub.f32 %v2034, %v2423
    %2425 = vmatpush1.msra.mxu0 %v2424
    %2426 = vmatprep.subr.mxu0 0.0
    %v2427 = vand.u32 %v2035, 4294901760
    %v2428 = vsub.f32 %v2035, %v2427
    %2429 = vmatpush1.msra.mxu0 %v2428
    %2430 = vmatprep.subr.mxu0 0.0
    %2431 = vmatpush1.msra.mxu0 0.0
    %2432 = vmatprep.subr.mxu0 0.0
    %2433 = vmatpush1.msra.mxu0 0.0
    %2434 = vmatprep.subr.mxu0 0.0
    %2435 = vmatpush1.msra.mxu0 0.0
    %2436 = vmatprep.subr.mxu0 0.0
    %2437 = vmatpush1.msra.mxu0 0.0
    %2438 = vmatprep.subr.mxu0 0.0
    %2439 = vmatpush1.msra.mxu0 0.0
    %2440 = vmatprep.subr.mxu0 0.0
    %2441 = vmatpush1.msra.mxu0 0.0
    %2442 = vmatprep.subr.mxu0 0.0
    %2443 = vmatpush1.msra.mxu0 0.0
    %2444 = vmatprep.subr.mxu0 0.0
    %2445 = vmatpush1.msra.mxu0 0.0
    %2446 = vmatprep.subr.mxu0 0.0
    %2447 = vmatpush1.msra.mxu0 0.0
    %2448 = vmatprep.subr.mxu0 0.0
    %2449 = vmatpush1.msra.mxu0 0.0
    %2450 = vmatprep.subr.mxu0 0.0
    %2451 = vmatpush1.msra.mxu0 0.0
    %2452 = vmatprep.subr.mxu0 0.0
    %2453 = vmatpush1.msra.mxu0 0.0
    %2454 = vmatprep.subr.mxu0 0.0
    %2455 = vmatpush1.msra.mxu0 0.0
    %2456 = vmatprep.subr.mxu0 0.0
    %2457 = vmatpush1.msra.mxu0 0.0
    %2458 = vmatprep.subr.mxu0 0.0
    %2459 = vmatpush1.msra.mxu0 0.0
    %2460 = vmatprep.subr.mxu0 0.0
    %2461 = vmatpush1.msra.mxu0 0.0
    %2462 = vmatprep.subr.mxu0 0.0
    %2463 = vmatpush1.msra.mxu0 0.0
    %2464 = vmatprep.subr.mxu0 0.0
    %2465 = vmatpush1.msra.mxu0 0.0
    %2466 = vmatprep.subr.mxu0 0.0
    %2467 = vmatpush1.msra.mxu0 0.0
    %2468 = vmatprep.subr.mxu0 0.0
    %2469 = vmatpush1.msra.mxu0 0.0
    %2470 = vmatprep.subr.mxu0 0.0
    %2471 = vmatpush1.msra.mxu0 0.0
    %2472 = vmatprep.subr.mxu0 0.0
    %2473 = vmatpush1.msra.mxu0 0.0
    %2474 = vmatprep.subr.mxu0 0.0
    %2475 = vmatpush1.msra.mxu0 0.0
    %2476 = vmatprep.subr.mxu0 0.0
    %2477 = vmatpush1.msra.mxu0 0.0
    %2478 = vmatprep.mubr.f32.mxu0 0.0
    %v2479 = vand.u32 %v2069, 4294901760
    %v2480 = vsub.f32 %v2069, %v2479
    %2481 = vmatmul.mubr.f32.gmra.mrb[0].mxu0 %v2480
    %v2482 = vpop.f32.mrb[0].mxu0
    %v2483 = vadd.f32 %v2353, %v2482
    %v2484 = vpop.f32.mrb[0].mxu0
    %2485 = vmatprep.mubr.f32.mxu0 0.0
    %v2486 = vand.u32 %v2072, 4294901760
    %v2487 = vsub.f32 %v2072, %v2486
    %2488 = vmatmul.mubr.f32.gmra.mrb[0].mxu0 %v2487
    %v2489 = vpop.f32.mrb[0].mxu0
    %v2490 = vadd.f32 %v2359, %v2489
    %v2491 = vpop.f32.mrb[0].mxu0
    %2492 = vmatprep.mubr.f32.mxu0 0.0
    %v2493 = vand.u32 %v2075, 4294901760
    %v2494 = vsub.f32 %v2075, %v2493
    %2495 = vmatmul.mubr.f32.gmra.mrb[0].mxu0 %v2494
    %v2496 = vpop.f32.mrb[0].mxu0
    %v2497 = vadd.f32 %v2365, %v2496
    %v2498 = vpop.f32.mrb[0].mxu0
    %2499 = vmatprep.mubr.f32.mxu0 0.0
    %v2500 = vand.u32 %v2078, 4294901760
    %v2501 = vsub.f32 %v2078, %v2500
    %2502 = vmatmul.mubr.f32.gmra.mrb[0].mxu0 %v2501
    %v2503 = vpop.f32.mrb[0].mxu0
    %v2504 = vadd.f32 %v2371, %v2503
    %v2505 = vpop.f32.mrb[0].mxu0
    %2506 = vmatprep.mubr.f32.mxu0 0.0
    %v2507 = vand.u32 %v2081, 4294901760
    %v2508 = vsub.f32 %v2081, %v2507
    %2509 = vmatmul.mubr.f32.gmra.mrb[0].mxu0 %v2508
    %v2510 = vpop.f32.mrb[0].mxu0
    %v2511 = vadd.f32 %v2377, %v2510
    %v2512 = vpop.f32.mrb[0].mxu0
    %2513 = vmatprep.mubr.f32.mxu0 0.0
    %v2514 = vand.u32 %v2084, 4294901760
    %v2515 = vsub.f32 %v2084, %v2514
    %2516 = vmatmul.mubr.f32.gmra.mrb[0].mxu0 %v2515
    %v2517 = vpop.f32.mrb[0].mxu0
    %v2518 = vadd.f32 %v2383, %v2517
    %v2519 = vpop.f32.mrb[0].mxu0
    %2520 = vmatprep.mubr.f32.mxu0 0.0
    %v2521 = vand.u32 %v2087, 4294901760
    %v2522 = vsub.f32 %v2087, %v2521
    %2523 = vmatmul.mubr.f32.gmra.mrb[0].mxu0 %v2522
    %v2524 = vpop.f32.mrb[0].mxu0
    %v2525 = vadd.f32 %v2389, %v2524
    %v2526 = vpop.f32.mrb[0].mxu0
    %2527 = vmatprep.mubr.f32.mxu0 0.0
    %v2528 = vand.u32 %v2090, 4294901760
    %v2529 = vsub.f32 %v2090, %v2528
    %2530 = vmatmul.mubr.f32.gmra.mrb[0].mxu0 %v2529
    %v2531 = vpop.f32.mrb[0].mxu0
    %v2532 = vadd.f32 %v2395, %v2531
    %v2533 = vpop.f32.mrb[0].mxu0
    %2534 = vdwg.mxu0
    %2535 = vmatprep.subr.mxu0 0.0
    %v2536 = vand.u32 %v2028, 4294901760
    %2537 = vmatpush1.msra.mxu0 %v2536
    %2538 = vmatprep.subr.mxu0 0.0
    %v2539 = vand.u32 %v2029, 4294901760
    %2540 = vmatpush1.msra.mxu0 %v2539
    %2541 = vmatprep.subr.mxu0 0.0
    %v2542 = vand.u32 %v2030, 4294901760
    %2543 = vmatpush1.msra.mxu0 %v2542
    %2544 = vmatprep.subr.mxu0 0.0
    %v2545 = vand.u32 %v2031, 4294901760
    %2546 = vmatpush1.msra.mxu0 %v2545
    %2547 = vmatprep.subr.mxu0 0.0
    %v2548 = vand.u32 %v2032, 4294901760
    %2549 = vmatpush1.msra.mxu0 %v2548
    %2550 = vmatprep.subr.mxu0 0.0
    %v2551 = vand.u32 %v2033, 4294901760
    %2552 = vmatpush1.msra.mxu0 %v2551
    %2553 = vmatprep.subr.mxu0 0.0
    %v2554 = vand.u32 %v2034, 4294901760
    %2555 = vmatpush1.msra.mxu0 %v2554
    %2556 = vmatprep.subr.mxu0 0.0
    %v2557 = vand.u32 %v2035, 4294901760
    %2558 = vmatpush1.msra.mxu0 %v2557
    %2559 = vmatprep.subr.mxu0 0.0
    %2560 = vmatpush1.msra.mxu0 0.0
    %2561 = vmatprep.subr.mxu0 0.0
    %2562 = vmatpush1.msra.mxu0 0.0
    %2563 = vmatprep.subr.mxu0 0.0
    %2564 = vmatpush1.msra.mxu0 0.0
    %2565 = vmatprep.subr.mxu0 0.0
    %2566 = vmatpush1.msra.mxu0 0.0
    %2567 = vmatprep.subr.mxu0 0.0
    %2568 = vmatpush1.msra.mxu0 0.0
    %2569 = vmatprep.subr.mxu0 0.0
    %2570 = vmatpush1.msra.mxu0 0.0
    %2571 = vmatprep.subr.mxu0 0.0
    %2572 = vmatpush1.msra.mxu0 0.0
    %2573 = vmatprep.subr.mxu0 0.0
    %2574 = vmatpush1.msra.mxu0 0.0
    %2575 = vmatprep.subr.mxu0 0.0
    %2576 = vmatpush1.msra.mxu0 0.0
    %2577 = vmatprep.subr.mxu0 0.0
    %2578 = vmatpush1.msra.mxu0 0.0
    %2579 = vmatprep.subr.mxu0 0.0
    %2580 = vmatpush1.msra.mxu0 0.0
    %2581 = vmatprep.subr.mxu0 0.0
    %2582 = vmatpush1.msra.mxu0 0.0
    %2583 = vmatprep.subr.mxu0 0.0
    %2584 = vmatpush1.msra.mxu0 0.0
    %2585 = vmatprep.subr.mxu0 0.0
    %2586 = vmatpush1.msra.mxu0 0.0
    %2587 = vmatprep.subr.mxu0 0.0
    %2588 = vmatpush1.msra.mxu0 0.0
    %2589 = vmatprep.subr.mxu0 0.0
    %2590 = vmatpush1.msra.mxu0 0.0
    %2591 = vmatprep.subr.mxu0 0.0
    %2592 = vmatpush1.msra.mxu0 0.0
    %2593 = vmatprep.subr.mxu0 0.0
    %2594 = vmatpush1.msra.mxu0 0.0
    %2595 = vmatprep.subr.mxu0 0.0
    %2596 = vmatpush1.msra.mxu0 0.0
    %2597 = vmatprep.subr.mxu0 0.0
    %2598 = vmatpush1.msra.mxu0 0.0
    %2599 = vmatprep.subr.mxu0 0.0
    %2600 = vmatpush1.msra.mxu0 0.0
    %2601 = vmatprep.subr.mxu0 0.0
    %2602 = vmatpush1.msra.mxu0 0.0
    %2603 = vmatprep.subr.mxu0 0.0
    %2604 = vmatpush1.msra.mxu0 0.0
    %2605 = vmatprep.subr.mxu0 0.0
    %2606 = vmatpush1.msra.mxu0 0.0
    %2607 = vmatprep.mubr.f32.mxu0 0.0
    %v2608 = vand.u32 %v2069, 4294901760
    %v2609 = vsub.f32 %v2069, %v2608
    %v2610 = vand.u32 %v2609, 4294901760
    %2611 = vmatmul.mubr.f32.gmra.mrb[0].mxu0 %v2610
    %v2612 = vpop.f32.mrb[0].mxu0
    %v2613 = vadd.f32 %v2483, %v2612
    %v2614 = vpop.f32.mrb[0].mxu0
    %2615 = vmatprep.mubr.f32.mxu0 0.0
    %v2616 = vand.u32 %v2072, 4294901760
    %v2617 = vsub.f32 %v2072, %v2616
    %v2618 = vand.u32 %v2617, 4294901760
    %2619 = vmatmul.mubr.f32.gmra.mrb[0].mxu0 %v2618
    %v2620 = vpop.f32.mrb[0].mxu0
    %v2621 = vadd.f32 %v2490, %v2620
    %v2622 = vpop.f32.mrb[0].mxu0
    %2623 = vmatprep.mubr.f32.mxu0 0.0
    %v2624 = vand.u32 %v2075, 4294901760
    %v2625 = vsub.f32 %v2075, %v2624
    %v2626 = vand.u32 %v2625, 4294901760
    %2627 = vmatmul.mubr.f32.gmra.mrb[0].mxu0 %v2626
    %v2628 = vpop.f32.mrb[0].mxu0
    %v2629 = vadd.f32 %v2497, %v2628
    %v2630 = vpop.f32.mrb[0].mxu0
    %2631 = vmatprep.mubr.f32.mxu0 0.0
    %v2632 = vand.u32 %v2078, 4294901760
    %v2633 = vsub.f32 %v2078, %v2632
    %v2634 = vand.u32 %v2633, 4294901760
    %2635 = vmatmul.mubr.f32.gmra.mrb[0].mxu0 %v2634
    %v2636 = vpop.f32.mrb[0].mxu0
    %v2637 = vadd.f32 %v2504, %v2636
    %v2638 = vpop.f32.mrb[0].mxu0
    %2639 = vmatprep.mubr.f32.mxu0 0.0
    %v2640 = vand.u32 %v2081, 4294901760
    %v2641 = vsub.f32 %v2081, %v2640
    %v2642 = vand.u32 %v2641, 4294901760
    %2643 = vmatmul.mubr.f32.gmra.mrb[0].mxu0 %v2642
    %v2644 = vpop.f32.mrb[0].mxu0
    %v2645 = vadd.f32 %v2511, %v2644
    %v2646 = vpop.f32.mrb[0].mxu0
    %2647 = vmatprep.mubr.f32.mxu0 0.0
    %v2648 = vand.u32 %v2084, 4294901760
    %v2649 = vsub.f32 %v2084, %v2648
    %v2650 = vand.u32 %v2649, 4294901760
    %2651 = vmatmul.mubr.f32.gmra.mrb[0].mxu0 %v2650
    %v2652 = vpop.f32.mrb[0].mxu0
    %v2653 = vadd.f32 %v2518, %v2652
    %v2654 = vpop.f32.mrb[0].mxu0
    %2655 = vmatprep.mubr.f32.mxu0 0.0
    %v2656 = vand.u32 %v2087, 4294901760
    %v2657 = vsub.f32 %v2087, %v2656
    %v2658 = vand.u32 %v2657, 4294901760
    %2659 = vmatmul.mubr.f32.gmra.mrb[0].mxu0 %v2658
    %v2660 = vpop.f32.mrb[0].mxu0
    %v2661 = vadd.f32 %v2525, %v2660
    %v2662 = vpop.f32.mrb[0].mxu0
    %2663 = vmatprep.mubr.f32.mxu0 0.0
    %v2664 = vand.u32 %v2090, 4294901760
    %v2665 = vsub.f32 %v2090, %v2664
    %v2666 = vand.u32 %v2665, 4294901760
    %2667 = vmatmul.mubr.f32.gmra.mrb[0].mxu0 %v2666
    %v2668 = vpop.f32.mrb[0].mxu0
    %v2669 = vadd.f32 %v2532, %v2668
    %v2670 = vpop.f32.mrb[0].mxu0
    %2671 = vdwg.mxu0
    %2672 = vmatprep.subr.mxu0 0.0
    %v2673 = vand.u32 %v2028, 4294901760
    %v2674 = vsub.f32 %v2028, %v2673
    %v2675 = vand.u32 %v2674, 4294901760
    %2676 = vmatpush1.msra.mxu0 %v2675
    %2677 = vmatprep.subr.mxu0 0.0
    %v2678 = vand.u32 %v2029, 4294901760
    %v2679 = vsub.f32 %v2029, %v2678
    %v2680 = vand.u32 %v2679, 4294901760
    %2681 = vmatpush1.msra.mxu0 %v2680
    %2682 = vmatprep.subr.mxu0 0.0
    %v2683 = vand.u32 %v2030, 4294901760
    %v2684 = vsub.f32 %v2030, %v2683
    %v2685 = vand.u32 %v2684, 4294901760
    %2686 = vmatpush1.msra.mxu0 %v2685
    %2687 = vmatprep.subr.mxu0 0.0
    %v2688 = vand.u32 %v2031, 4294901760
    %v2689 = vsub.f32 %v2031, %v2688
    %v2690 = vand.u32 %v2689, 4294901760
    %2691 = vmatpush1.msra.mxu0 %v2690
    %2692 = vmatprep.subr.mxu0 0.0
    %v2693 = vand.u32 %v2032, 4294901760
    %v2694 = vsub.f32 %v2032, %v2693
    %v2695 = vand.u32 %v2694, 4294901760
    %2696 = vmatpush1.msra.mxu0 %v2695
    %2697 = vmatprep.subr.mxu0 0.0
    %v2698 = vand.u32 %v2033, 4294901760
    %v2699 = vsub.f32 %v2033, %v2698
    %v2700 = vand.u32 %v2699, 4294901760
    %2701 = vmatpush1.msra.mxu0 %v2700
    %2702 = vmatprep.subr.mxu0 0.0
    %v2703 = vand.u32 %v2034, 4294901760
    %v2704 = vsub.f32 %v2034, %v2703
    %v2705 = vand.u32 %v2704, 4294901760
    %2706 = vmatpush1.msra.mxu0 %v2705
    %2707 = vmatprep.subr.mxu0 0.0
    %v2708 = vand.u32 %v2035, 4294901760
    %v2709 = vsub.f32 %v2035, %v2708
    %v2710 = vand.u32 %v2709, 4294901760
    %2711 = vmatpush1.msra.mxu0 %v2710
    %2712 = vmatprep.subr.mxu0 0.0
    %2713 = vmatpush1.msra.mxu0 0.0
    %2714 = vmatprep.subr.mxu0 0.0
    %2715 = vmatpush1.msra.mxu0 0.0
    %2716 = vmatprep.subr.mxu0 0.0
    %2717 = vmatpush1.msra.mxu0 0.0
    %2718 = vmatprep.subr.mxu0 0.0
    %2719 = vmatpush1.msra.mxu0 0.0
    %2720 = vmatprep.subr.mxu0 0.0
    %2721 = vmatpush1.msra.mxu0 0.0
    %2722 = vmatprep.subr.mxu0 0.0
    %2723 = vmatpush1.msra.mxu0 0.0
    %2724 = vmatprep.subr.mxu0 0.0
    %2725 = vmatpush1.msra.mxu0 0.0
    %2726 = vmatprep.subr.mxu0 0.0
    %2727 = vmatpush1.msra.mxu0 0.0
    %2728 = vmatprep.subr.mxu0 0.0
    %2729 = vmatpush1.msra.mxu0 0.0
    %2730 = vmatprep.subr.mxu0 0.0
    %2731 = vmatpush1.msra.mxu0 0.0
    %2732 = vmatprep.subr.mxu0 0.0
    %2733 = vmatpush1.msra.mxu0 0.0
    %2734 = vmatprep.subr.mxu0 0.0
    %2735 = vmatpush1.msra.mxu0 0.0
    %2736 = vmatprep.subr.mxu0 0.0
    %2737 = vmatpush1.msra.mxu0 0.0
    %2738 = vmatprep.subr.mxu0 0.0
    %2739 = vmatpush1.msra.mxu0 0.0
    %2740 = vmatprep.subr.mxu0 0.0
    %2741 = vmatpush1.msra.mxu0 0.0
    %2742 = vmatprep.subr.mxu0 0.0
    %2743 = vmatpush1.msra.mxu0 0.0
    %2744 = vmatprep.subr.mxu0 0.0
    %2745 = vmatpush1.msra.mxu0 0.0
    %2746 = vmatprep.subr.mxu0 0.0
    %2747 = vmatpush1.msra.mxu0 0.0
    %2748 = vmatprep.subr.mxu0 0.0
    %2749 = vmatpush1.msra.mxu0 0.0
    %2750 = vmatprep.subr.mxu0 0.0
    %2751 = vmatpush1.msra.mxu0 0.0
    %2752 = vmatprep.subr.mxu0 0.0
    %2753 = vmatpush1.msra.mxu0 0.0
    %2754 = vmatprep.subr.mxu0 0.0
    %2755 = vmatpush1.msra.mxu0 0.0
    %2756 = vmatprep.subr.mxu0 0.0
    %2757 = vmatpush1.msra.mxu0 0.0
    %2758 = vmatprep.subr.mxu0 0.0
    %2759 = vmatpush1.msra.mxu0 0.0
    %2760 = vmatprep.mubr.f32.mxu0 0.0
    %v2761 = vand.u32 %v2069, 4294901760
    %2762 = vmatmul.mubr.f32.gmra.mrb[0].mxu0 %v2761
    %v2763 = vpop.f32.mrb[0].mxu0
    %v2764 = vadd.f32 %v2613, %v2763
    %v2765 = vpop.f32.mrb[0].mxu0
    %2766 = vmatprep.mubr.f32.mxu0 0.0
    %v2767 = vand.u32 %v2072, 4294901760
    %2768 = vmatmul.mubr.f32.gmra.mrb[0].mxu0 %v2767
    %v2769 = vpop.f32.mrb[0].mxu0
    %v2770 = vadd.f32 %v2621, %v2769
    %v2771 = vpop.f32.mrb[0].mxu0
    %2772 = vmatprep.mubr.f32.mxu0 0.0
    %v2773 = vand.u32 %v2075, 4294901760
    %2774 = vmatmul.mubr.f32.gmra.mrb[0].mxu0 %v2773
    %v2775 = vpop.f32.mrb[0].mxu0
    %v2776 = vadd.f32 %v2629, %v2775
    %v2777 = vpop.f32.mrb[0].mxu0
    %2778 = vmatprep.mubr.f32.mxu0 0.0
    %v2779 = vand.u32 %v2078, 4294901760
    %2780 = vmatmul.mubr.f32.gmra.mrb[0].mxu0 %v2779
    %v2781 = vpop.f32.mrb[0].mxu0
    %v2782 = vadd.f32 %v2637, %v2781
    %v2783 = vpop.f32.mrb[0].mxu0
    %2784 = vmatprep.mubr.f32.mxu0 0.0
    %v2785 = vand.u32 %v2081, 4294901760
    %2786 = vmatmul.mubr.f32.gmra.mrb[0].mxu0 %v2785
    %v2787 = vpop.f32.mrb[0].mxu0
    %v2788 = vadd.f32 %v2645, %v2787
    %v2789 = vpop.f32.mrb[0].mxu0
    %2790 = vmatprep.mubr.f32.mxu0 0.0
    %v2791 = vand.u32 %v2084, 4294901760
    %2792 = vmatmul.mubr.f32.gmra.mrb[0].mxu0 %v2791
    %v2793 = vpop.f32.mrb[0].mxu0
    %v2794 = vadd.f32 %v2653, %v2793
    %v2795 = vpop.f32.mrb[0].mxu0
    %2796 = vmatprep.mubr.f32.mxu0 0.0
    %v2797 = vand.u32 %v2087, 4294901760
    %2798 = vmatmul.mubr.f32.gmra.mrb[0].mxu0 %v2797
    %v2799 = vpop.f32.mrb[0].mxu0
    %v2800 = vadd.f32 %v2661, %v2799
    %v2801 = vpop.f32.mrb[0].mxu0
    %2802 = vmatprep.mubr.f32.mxu0 0.0
    %v2803 = vand.u32 %v2090, 4294901760
    %2804 = vmatmul.mubr.f32.gmra.mrb[0].mxu0 %v2803
    %v2805 = vpop.f32.mrb[0].mxu0
    %v2806 = vadd.f32 %v2669, %v2805
    %v2807 = vpop.f32.mrb[0].mxu0
    %2808 = vdwg.mxu0
    %2809 = vmatprep.subr.mxu0 0.0
    %v2810 = vand.u32 %v2028, 4294901760
    %2811 = vmatpush1.msra.mxu0 %v2810
    %2812 = vmatprep.subr.mxu0 0.0
    %v2813 = vand.u32 %v2029, 4294901760
    %2814 = vmatpush1.msra.mxu0 %v2813
    %2815 = vmatprep.subr.mxu0 0.0
    %v2816 = vand.u32 %v2030, 4294901760
    %2817 = vmatpush1.msra.mxu0 %v2816
    %2818 = vmatprep.subr.mxu0 0.0
    %v2819 = vand.u32 %v2031, 4294901760
    %2820 = vmatpush1.msra.mxu0 %v2819
    %2821 = vmatprep.subr.mxu0 0.0
    %v2822 = vand.u32 %v2032, 4294901760
    %2823 = vmatpush1.msra.mxu0 %v2822
    %2824 = vmatprep.subr.mxu0 0.0
    %v2825 = vand.u32 %v2033, 4294901760
    %2826 = vmatpush1.msra.mxu0 %v2825
    %2827 = vmatprep.subr.mxu0 0.0
    %v2828 = vand.u32 %v2034, 4294901760
    %2829 = vmatpush1.msra.mxu0 %v2828
    %2830 = vmatprep.subr.mxu0 0.0
    %v2831 = vand.u32 %v2035, 4294901760
    %2832 = vmatpush1.msra.mxu0 %v2831
    %2833 = vmatprep.subr.mxu0 0.0
    %2834 = vmatpush1.msra.mxu0 0.0
    %2835 = vmatprep.subr.mxu0 0.0
    %2836 = vmatpush1.msra.mxu0 0.0
    %2837 = vmatprep.subr.mxu0 0.0
    %2838 = vmatpush1.msra.mxu0 0.0
    %2839 = vmatprep.subr.mxu0 0.0
    %2840 = vmatpush1.msra.mxu0 0.0
    %2841 = vmatprep.subr.mxu0 0.0
    %2842 = vmatpush1.msra.mxu0 0.0
    %2843 = vmatprep.subr.mxu0 0.0
    %2844 = vmatpush1.msra.mxu0 0.0
    %2845 = vmatprep.subr.mxu0 0.0
    %2846 = vmatpush1.msra.mxu0 0.0
    %2847 = vmatprep.subr.mxu0 0.0
    %2848 = vmatpush1.msra.mxu0 0.0
    %2849 = vmatprep.subr.mxu0 0.0
    %2850 = vmatpush1.msra.mxu0 0.0
    %2851 = vmatprep.subr.mxu0 0.0
    %2852 = vmatpush1.msra.mxu0 0.0
    %2853 = vmatprep.subr.mxu0 0.0
    %2854 = vmatpush1.msra.mxu0 0.0
    %2855 = vmatprep.subr.mxu0 0.0
    %2856 = vmatpush1.msra.mxu0 0.0
    %2857 = vmatprep.subr.mxu0 0.0
    %2858 = vmatpush1.msra.mxu0 0.0
    %2859 = vmatprep.subr.mxu0 0.0
    %2860 = vmatpush1.msra.mxu0 0.0
    %2861 = vmatprep.subr.mxu0 0.0
    %2862 = vmatpush1.msra.mxu0 0.0
    %2863 = vmatprep.subr.mxu0 0.0
    %2864 = vmatpush1.msra.mxu0 0.0
    %2865 = vmatprep.subr.mxu0 0.0
    %2866 = vmatpush1.msra.mxu0 0.0
    %2867 = vmatprep.subr.mxu0 0.0
    %2868 = vmatpush1.msra.mxu0 0.0
    %2869 = vmatprep.subr.mxu0 0.0
    %2870 = vmatpush1.msra.mxu0 0.0
    %2871 = vmatprep.subr.mxu0 0.0
    %2872 = vmatpush1.msra.mxu0 0.0
    %2873 = vmatprep.subr.mxu0 0.0
    %2874 = vmatpush1.msra.mxu0 0.0
    %2875 = vmatprep.subr.mxu0 0.0
    %2876 = vmatpush1.msra.mxu0 0.0
    %2877 = vmatprep.subr.mxu0 0.0
    %2878 = vmatpush1.msra.mxu0 0.0
    %2879 = vmatprep.subr.mxu0 0.0
    %2880 = vmatpush1.msra.mxu0 0.0
    %2881 = vmatprep.mubr.f32.mxu0 0.0
    %v2882 = vand.u32 %v2069, 4294901760
    %2883 = vmatmul.mubr.f32.gmra.mrb[0].mxu0 %v2882
    %v2884 = vpop.f32.mrb[0].mxu0
    %v2885 = vadd.f32 %v2764, %v2884
    %v2886 = vpop.f32.mrb[0].mxu0
    %2887 = vmatprep.mubr.f32.mxu0 0.0
    %v2888 = vand.u32 %v2072, 4294901760
    %2889 = vmatmul.mubr.f32.gmra.mrb[0].mxu0 %v2888
    %v2890 = vpop.f32.mrb[0].mxu0
    %v2891 = vadd.f32 %v2770, %v2890
    %v2892 = vpop.f32.mrb[0].mxu0
    %2893 = vmatprep.mubr.f32.mxu0 0.0
    %v2894 = vand.u32 %v2075, 4294901760
    %2895 = vmatmul.mubr.f32.gmra.mrb[0].mxu0 %v2894
    %v2896 = vpop.f32.mrb[0].mxu0
    %v2897 = vadd.f32 %v2776, %v2896
    %v2898 = vpop.f32.mrb[0].mxu0
    %2899 = vmatprep.mubr.f32.mxu0 0.0
    %v2900 = vand.u32 %v2078, 4294901760
    %2901 = vmatmul.mubr.f32.gmra.mrb[0].mxu0 %v2900
    %v2902 = vpop.f32.mrb[0].mxu0
    %v2903 = vadd.f32 %v2782, %v2902
    %v2904 = vpop.f32.mrb[0].mxu0
    %2905 = vmatprep.mubr.f32.mxu0 0.0
    %v2906 = vand.u32 %v2081, 4294901760
    %2907 = vmatmul.mubr.f32.gmra.mrb[0].mxu0 %v2906
    %v2908 = vpop.f32.mrb[0].mxu0
    %v2909 = vadd.f32 %v2788, %v2908
    %v2910 = vpop.f32.mrb[0].mxu0
    %2911 = vmatprep.mubr.f32.mxu0 0.0
    %v2912 = vand.u32 %v2084, 4294901760
    %2913 = vmatmul.mubr.f32.gmra.mrb[0].mxu0 %v2912
    %v2914 = vpop.f32.mrb[0].mxu0
    %v2915 = vadd.f32 %v2794, %v2914
    %v2916 = vpop.f32.mrb[0].mxu0
    %2917 = vmatprep.mubr.f32.mxu0 0.0
    %v2918 = vand.u32 %v2087, 4294901760
    %2919 = vmatmul.mubr.f32.gmra.mrb[0].mxu0 %v2918
    %v2920 = vpop.f32.mrb[0].mxu0
    %v2921 = vadd.f32 %v2800, %v2920
    %v2922 = vpop.f32.mrb[0].mxu0
    %2923 = vmatprep.mubr.f32.mxu0 0.0
    %v2924 = vand.u32 %v2090, 4294901760
    %2925 = vmatmul.mubr.f32.gmra.mrb[0].mxu0 %v2924
    %v2926 = vpop.f32.mrb[0].mxu0
    %v2927 = vadd.f32 %v2806, %v2926
    %v2928 = vpop.f32.mrb[0].mxu0
    %2929 = vdwg.mxu0
    %v2930 = vmul.f32 %v950, %v2885
    %v2931 = vmul.f32 %v952, %v2891
    %v2932 = vmul.f32 %v954, %v2897
    %v2933 = vmul.f32 %v956, %v2903
    %v2934 = vmul.f32 %v958, %v2909
    %v2935 = vmul.f32 %v960, %v2915
    %v2936 = vmul.f32 %v962, %v2921
    %v2937 = vmul.f32 %v964, %v2927
    %2938 = vxpose.xlu0.b32.start [1/16] %v24, 128
    %2939 = vxpose.xlu0.b32.cont [2/16] %v25, 128
    %2940 = vxpose.xlu0.b32.cont [3/16] %v26, 128
    %2941 = vxpose.xlu0.b32.cont [4/16] %v27, 128
    %2942 = vxpose.xlu0.b32.cont [5/16] %v28, 128
    %2943 = vxpose.xlu0.b32.cont [6/16] %v29, 128
    %2944 = vxpose.xlu0.b32.cont [7/16] %v30, 128
    %2945 = vxpose.xlu0.b32.cont [8/16] %v31, 128
    %2946 = vxpose.xlu0.b32.cont [9/16] 0.0, 128
    %2947 = vxpose.xlu0.b32.cont [10/16] 0.0, 128
    %2948 = vxpose.xlu0.b32.cont [11/16] 0.0, 128
    %2949 = vxpose.xlu0.b32.cont [12/16] 0.0, 128
    %2950 = vxpose.xlu0.b32.cont [13/16] 0.0, 128
    %2951 = vxpose.xlu0.b32.cont [14/16] 0.0, 128
    %2952 = vxpose.xlu0.b32.cont [15/16] 0.0, 128
    %2953 = vxpose.xlu0.b32.end [16/16] 0.0, 128
    %v2954 = vpop.trf.xlu0
    %v2955 = vpop.trf.xlu0
    %v2956 = vpop.trf.xlu0
    %v2957 = vpop.trf.xlu0
    %v2958 = vpop.trf.xlu0
    %v2959 = vpop.trf.xlu0
    %v2960 = vpop.trf.xlu0
    %v2961 = vpop.trf.xlu0
    %v2962 = vpop.trf.xlu0
    %v2963 = vpop.trf.xlu0
    %v2964 = vpop.trf.xlu0
    %v2965 = vpop.trf.xlu0
    %v2966 = vpop.trf.xlu0
    %v2967 = vpop.trf.xlu0
    %v2968 = vpop.trf.xlu0
    %v2969 = vpop.trf.xlu0
    %v2971 = vsel %vm1021, %v2954, 0
    %2973 = vmatprep.subr.mxu0 0.0
    %v2974 = vand.u32 %v2930, 4294901760
    %2975 = vmatpush1.msra.mxu0 %v2974
    %2976 = vmatprep.subr.mxu0 0.0
    %v2977 = vand.u32 %v2931, 4294901760
    %2978 = vmatpush1.msra.mxu0 %v2977
    %2979 = vmatprep.subr.mxu0 0.0
    %v2980 = vand.u32 %v2932, 4294901760
    %2981 = vmatpush1.msra.mxu0 %v2980
    %2982 = vmatprep.subr.mxu0 0.0
    %v2983 = vand.u32 %v2933, 4294901760
    %2984 = vmatpush1.msra.mxu0 %v2983
    %2985 = vmatprep.subr.mxu0 0.0
    %v2986 = vand.u32 %v2934, 4294901760
    %2987 = vmatpush1.msra.mxu0 %v2986
    %2988 = vmatprep.subr.mxu0 0.0
    %v2989 = vand.u32 %v2935, 4294901760
    %2990 = vmatpush1.msra.mxu0 %v2989
    %2991 = vmatprep.subr.mxu0 0.0
    %v2992 = vand.u32 %v2936, 4294901760
    %2993 = vmatpush1.msra.mxu0 %v2992
    %2994 = vmatprep.subr.mxu0 0.0
    %v2995 = vand.u32 %v2937, 4294901760
    %2996 = vmatpush1.msra.mxu0 %v2995
    %2997 = vmatprep.subr.mxu0 0.0
    %2998 = vmatpush1.msra.mxu0 0.0
    %2999 = vmatprep.subr.mxu0 0.0
    %3000 = vmatpush1.msra.mxu0 0.0
    %3001 = vmatprep.subr.mxu0 0.0
    %3002 = vmatpush1.msra.mxu0 0.0
    %3003 = vmatprep.subr.mxu0 0.0
    %3004 = vmatpush1.msra.mxu0 0.0
    %3005 = vmatprep.subr.mxu0 0.0
    %3006 = vmatpush1.msra.mxu0 0.0
    %3007 = vmatprep.subr.mxu0 0.0
    %3008 = vmatpush1.msra.mxu0 0.0
    %3009 = vmatprep.subr.mxu0 0.0
    %3010 = vmatpush1.msra.mxu0 0.0
    %3011 = vmatprep.subr.mxu0 0.0
    %3012 = vmatpush1.msra.mxu0 0.0
    %3013 = vmatprep.subr.mxu0 0.0
    %3014 = vmatpush1.msra.mxu0 0.0
    %3015 = vmatprep.subr.mxu0 0.0
    %3016 = vmatpush1.msra.mxu0 0.0
    %3017 = vmatprep.subr.mxu0 0.0
    %3018 = vmatpush1.msra.mxu0 0.0
    %3019 = vmatprep.subr.mxu0 0.0
    %3020 = vmatpush1.msra.mxu0 0.0
    %3021 = vmatprep.subr.mxu0 0.0
    %3022 = vmatpush1.msra.mxu0 0.0
    %3023 = vmatprep.subr.mxu0 0.0
    %3024 = vmatpush1.msra.mxu0 0.0
    %3025 = vmatprep.subr.mxu0 0.0
    %3026 = vmatpush1.msra.mxu0 0.0
    %3027 = vmatprep.subr.mxu0 0.0
    %3028 = vmatpush1.msra.mxu0 0.0
    %3029 = vmatprep.subr.mxu0 0.0
    %3030 = vmatpush1.msra.mxu0 0.0
    %3031 = vmatprep.subr.mxu0 0.0
    %3032 = vmatpush1.msra.mxu0 0.0
    %3033 = vmatprep.subr.mxu0 0.0
    %3034 = vmatpush1.msra.mxu0 0.0
    %3035 = vmatprep.subr.mxu0 0.0
    %3036 = vmatpush1.msra.mxu0 0.0
    %3037 = vmatprep.subr.mxu0 0.0
    %3038 = vmatpush1.msra.mxu0 0.0
    %3039 = vmatprep.subr.mxu0 0.0
    %3040 = vmatpush1.msra.mxu0 0.0
    %3041 = vmatprep.subr.mxu0 0.0
    %3042 = vmatpush1.msra.mxu0 0.0
    %3043 = vmatprep.subr.mxu0 0.0
    %3044 = vmatpush1.msra.mxu0 0.0
    %3045 = vmatprep.mubr.f32.mxu0 0.0
    %v3046 = vand.u32 %v2971, 4294901760
    %v3047 = vsub.f32 %v2971, %v3046
    %v3048 = vand.u32 %v3047, 4294901760
    %v3049 = vsub.f32 %v3047, %v3048
    %v3050 = vand.u32 %v3049, 4294901760
    %3051 = vmatmul.mubr.f32.gmra.mrb[0].mxu0 %v3050
    %v3052 = vpop.f32.mrb[0].mxu0
    %v3053 = vadd.f32 0.0, %v3052
    %v3054 = vpop.f32.mrb[0].mxu0
    %3055 = vdwg.mxu0
    %3056 = vmatprep.subr.mxu0 0.0
    %v3057 = vand.u32 %v2930, 4294901760
    %v3058 = vsub.f32 %v2930, %v3057
    %v3059 = vand.u32 %v3058, 4294901760
    %v3060 = vsub.f32 %v3058, %v3059
    %v3061 = vand.u32 %v3060, 4294901760
    %3062 = vmatpush1.msra.mxu0 %v3061
    %3063 = vmatprep.subr.mxu0 0.0
    %v3064 = vand.u32 %v2931, 4294901760
    %v3065 = vsub.f32 %v2931, %v3064
    %v3066 = vand.u32 %v3065, 4294901760
    %v3067 = vsub.f32 %v3065, %v3066
    %v3068 = vand.u32 %v3067, 4294901760
    %3069 = vmatpush1.msra.mxu0 %v3068
    %3070 = vmatprep.subr.mxu0 0.0
    %v3071 = vand.u32 %v2932, 4294901760
    %v3072 = vsub.f32 %v2932, %v3071
    %v3073 = vand.u32 %v3072, 4294901760
    %v3074 = vsub.f32 %v3072, %v3073
    %v3075 = vand.u32 %v3074, 4294901760
    %3076 = vmatpush1.msra.mxu0 %v3075
    %3077 = vmatprep.subr.mxu0 0.0
    %v3078 = vand.u32 %v2933, 4294901760
    %v3079 = vsub.f32 %v2933, %v3078
    %v3080 = vand.u32 %v3079, 4294901760
    %v3081 = vsub.f32 %v3079, %v3080
    %v3082 = vand.u32 %v3081, 4294901760
    %3083 = vmatpush1.msra.mxu0 %v3082
    %3084 = vmatprep.subr.mxu0 0.0
    %v3085 = vand.u32 %v2934, 4294901760
    %v3086 = vsub.f32 %v2934, %v3085
    %v3087 = vand.u32 %v3086, 4294901760
    %v3088 = vsub.f32 %v3086, %v3087
    %v3089 = vand.u32 %v3088, 4294901760
    %3090 = vmatpush1.msra.mxu0 %v3089
    %3091 = vmatprep.subr.mxu0 0.0
    %v3092 = vand.u32 %v2935, 4294901760
    %v3093 = vsub.f32 %v2935, %v3092
    %v3094 = vand.u32 %v3093, 4294901760
    %v3095 = vsub.f32 %v3093, %v3094
    %v3096 = vand.u32 %v3095, 4294901760
    %3097 = vmatpush1.msra.mxu0 %v3096
    %3098 = vmatprep.subr.mxu0 0.0
    %v3099 = vand.u32 %v2936, 4294901760
    %v3100 = vsub.f32 %v2936, %v3099
    %v3101 = vand.u32 %v3100, 4294901760
    %v3102 = vsub.f32 %v3100, %v3101
    %v3103 = vand.u32 %v3102, 4294901760
    %3104 = vmatpush1.msra.mxu0 %v3103
    %3105 = vmatprep.subr.mxu0 0.0
    %v3106 = vand.u32 %v2937, 4294901760
    %v3107 = vsub.f32 %v2937, %v3106
    %v3108 = vand.u32 %v3107, 4294901760
    %v3109 = vsub.f32 %v3107, %v3108
    %v3110 = vand.u32 %v3109, 4294901760
    %3111 = vmatpush1.msra.mxu0 %v3110
    %3112 = vmatprep.subr.mxu0 0.0
    %3113 = vmatpush1.msra.mxu0 0.0
    %3114 = vmatprep.subr.mxu0 0.0
    %3115 = vmatpush1.msra.mxu0 0.0
    %3116 = vmatprep.subr.mxu0 0.0
    %3117 = vmatpush1.msra.mxu0 0.0
    %3118 = vmatprep.subr.mxu0 0.0
    %3119 = vmatpush1.msra.mxu0 0.0
    %3120 = vmatprep.subr.mxu0 0.0
    %3121 = vmatpush1.msra.mxu0 0.0
    %3122 = vmatprep.subr.mxu0 0.0
    %3123 = vmatpush1.msra.mxu0 0.0
    %3124 = vmatprep.subr.mxu0 0.0
    %3125 = vmatpush1.msra.mxu0 0.0
    %3126 = vmatprep.subr.mxu0 0.0
    %3127 = vmatpush1.msra.mxu0 0.0
    %3128 = vmatprep.subr.mxu0 0.0
    %3129 = vmatpush1.msra.mxu0 0.0
    %3130 = vmatprep.subr.mxu0 0.0
    %3131 = vmatpush1.msra.mxu0 0.0
    %3132 = vmatprep.subr.mxu0 0.0
    %3133 = vmatpush1.msra.mxu0 0.0
    %3134 = vmatprep.subr.mxu0 0.0
    %3135 = vmatpush1.msra.mxu0 0.0
    %3136 = vmatprep.subr.mxu0 0.0
    %3137 = vmatpush1.msra.mxu0 0.0
    %3138 = vmatprep.subr.mxu0 0.0
    %3139 = vmatpush1.msra.mxu0 0.0
    %3140 = vmatprep.subr.mxu0 0.0
    %3141 = vmatpush1.msra.mxu0 0.0
    %3142 = vmatprep.subr.mxu0 0.0
    %3143 = vmatpush1.msra.mxu0 0.0
    %3144 = vmatprep.subr.mxu0 0.0
    %3145 = vmatpush1.msra.mxu0 0.0
    %3146 = vmatprep.subr.mxu0 0.0
    %3147 = vmatpush1.msra.mxu0 0.0
    %3148 = vmatprep.subr.mxu0 0.0
    %3149 = vmatpush1.msra.mxu0 0.0
    %3150 = vmatprep.subr.mxu0 0.0
    %3151 = vmatpush1.msra.mxu0 0.0
    %3152 = vmatprep.subr.mxu0 0.0
    %3153 = vmatpush1.msra.mxu0 0.0
    %3154 = vmatprep.subr.mxu0 0.0
    %3155 = vmatpush1.msra.mxu0 0.0
    %3156 = vmatprep.subr.mxu0 0.0
    %3157 = vmatpush1.msra.mxu0 0.0
    %3158 = vmatprep.subr.mxu0 0.0
    %3159 = vmatpush1.msra.mxu0 0.0
    %3160 = vmatprep.mubr.f32.mxu0 0.0
    %v3161 = vand.u32 %v2971, 4294901760
    %3162 = vmatmul.mubr.f32.gmra.mrb[0].mxu0 %v3161
    %v3163 = vpop.f32.mrb[0].mxu0
    %v3164 = vadd.f32 %v3053, %v3163
    %v3165 = vpop.f32.mrb[0].mxu0
    %3166 = vdwg.mxu0
    %3167 = vmatprep.subr.mxu0 0.0
    %v3168 = vand.u32 %v2930, 4294901760
    %v3169 = vsub.f32 %v2930, %v3168
    %3170 = vmatpush1.msra.mxu0 %v3169
    %3171 = vmatprep.subr.mxu0 0.0
    %v3172 = vand.u32 %v2931, 4294901760
    %v3173 = vsub.f32 %v2931, %v3172
    %3174 = vmatpush1.msra.mxu0 %v3173
    %3175 = vmatprep.subr.mxu0 0.0
    %v3176 = vand.u32 %v2932, 4294901760
    %v3177 = vsub.f32 %v2932, %v3176
    %3178 = vmatpush1.msra.mxu0 %v3177
    %3179 = vmatprep.subr.mxu0 0.0
    %v3180 = vand.u32 %v2933, 4294901760
    %v3181 = vsub.f32 %v2933, %v3180
    %3182 = vmatpush1.msra.mxu0 %v3181
    %3183 = vmatprep.subr.mxu0 0.0
    %v3184 = vand.u32 %v2934, 4294901760
    %v3185 = vsub.f32 %v2934, %v3184
    %3186 = vmatpush1.msra.mxu0 %v3185
    %3187 = vmatprep.subr.mxu0 0.0
    %v3188 = vand.u32 %v2935, 4294901760
    %v3189 = vsub.f32 %v2935, %v3188
    %3190 = vmatpush1.msra.mxu0 %v3189
    %3191 = vmatprep.subr.mxu0 0.0
    %v3192 = vand.u32 %v2936, 4294901760
    %v3193 = vsub.f32 %v2936, %v3192
    %3194 = vmatpush1.msra.mxu0 %v3193
    %3195 = vmatprep.subr.mxu0 0.0
    %v3196 = vand.u32 %v2937, 4294901760
    %v3197 = vsub.f32 %v2937, %v3196
    %3198 = vmatpush1.msra.mxu0 %v3197
    %3199 = vmatprep.subr.mxu0 0.0
    %3200 = vmatpush1.msra.mxu0 0.0
    %3201 = vmatprep.subr.mxu0 0.0
    %3202 = vmatpush1.msra.mxu0 0.0
    %3203 = vmatprep.subr.mxu0 0.0
    %3204 = vmatpush1.msra.mxu0 0.0
    %3205 = vmatprep.subr.mxu0 0.0
    %3206 = vmatpush1.msra.mxu0 0.0
    %3207 = vmatprep.subr.mxu0 0.0
    %3208 = vmatpush1.msra.mxu0 0.0
    %3209 = vmatprep.subr.mxu0 0.0
    %3210 = vmatpush1.msra.mxu0 0.0
    %3211 = vmatprep.subr.mxu0 0.0
    %3212 = vmatpush1.msra.mxu0 0.0
    %3213 = vmatprep.subr.mxu0 0.0
    %3214 = vmatpush1.msra.mxu0 0.0
    %3215 = vmatprep.subr.mxu0 0.0
    %3216 = vmatpush1.msra.mxu0 0.0
    %3217 = vmatprep.subr.mxu0 0.0
    %3218 = vmatpush1.msra.mxu0 0.0
    %3219 = vmatprep.subr.mxu0 0.0
    %3220 = vmatpush1.msra.mxu0 0.0
    %3221 = vmatprep.subr.mxu0 0.0
    %3222 = vmatpush1.msra.mxu0 0.0
    %3223 = vmatprep.subr.mxu0 0.0
    %3224 = vmatpush1.msra.mxu0 0.0
    %3225 = vmatprep.subr.mxu0 0.0
    %3226 = vmatpush1.msra.mxu0 0.0
    %3227 = vmatprep.subr.mxu0 0.0
    %3228 = vmatpush1.msra.mxu0 0.0
    %3229 = vmatprep.subr.mxu0 0.0
    %3230 = vmatpush1.msra.mxu0 0.0
    %3231 = vmatprep.subr.mxu0 0.0
    %3232 = vmatpush1.msra.mxu0 0.0
    %3233 = vmatprep.subr.mxu0 0.0
    %3234 = vmatpush1.msra.mxu0 0.0
    %3235 = vmatprep.subr.mxu0 0.0
    %3236 = vmatpush1.msra.mxu0 0.0
    %3237 = vmatprep.subr.mxu0 0.0
    %3238 = vmatpush1.msra.mxu0 0.0
    %3239 = vmatprep.subr.mxu0 0.0
    %3240 = vmatpush1.msra.mxu0 0.0
    %3241 = vmatprep.subr.mxu0 0.0
    %3242 = vmatpush1.msra.mxu0 0.0
    %3243 = vmatprep.subr.mxu0 0.0
    %3244 = vmatpush1.msra.mxu0 0.0
    %3245 = vmatprep.subr.mxu0 0.0
    %3246 = vmatpush1.msra.mxu0 0.0
    %3247 = vmatprep.mubr.f32.mxu0 0.0
    %v3248 = vand.u32 %v2971, 4294901760
    %v3249 = vsub.f32 %v2971, %v3248
    %3250 = vmatmul.mubr.f32.gmra.mrb[0].mxu0 %v3249
    %v3251 = vpop.f32.mrb[0].mxu0
    %v3252 = vadd.f32 %v3164, %v3251
    %v3253 = vpop.f32.mrb[0].mxu0
    %3254 = vdwg.mxu0
    %3255 = vmatprep.subr.mxu0 0.0
    %v3256 = vand.u32 %v2930, 4294901760
    %3257 = vmatpush1.msra.mxu0 %v3256
    %3258 = vmatprep.subr.mxu0 0.0
    %v3259 = vand.u32 %v2931, 4294901760
    %3260 = vmatpush1.msra.mxu0 %v3259
    %3261 = vmatprep.subr.mxu0 0.0
    %v3262 = vand.u32 %v2932, 4294901760
    %3263 = vmatpush1.msra.mxu0 %v3262
    %3264 = vmatprep.subr.mxu0 0.0
    %v3265 = vand.u32 %v2933, 4294901760
    %3266 = vmatpush1.msra.mxu0 %v3265
    %3267 = vmatprep.subr.mxu0 0.0
    %v3268 = vand.u32 %v2934, 4294901760
    %3269 = vmatpush1.msra.mxu0 %v3268
    %3270 = vmatprep.subr.mxu0 0.0
    %v3271 = vand.u32 %v2935, 4294901760
    %3272 = vmatpush1.msra.mxu0 %v3271
    %3273 = vmatprep.subr.mxu0 0.0
    %v3274 = vand.u32 %v2936, 4294901760
    %3275 = vmatpush1.msra.mxu0 %v3274
    %3276 = vmatprep.subr.mxu0 0.0
    %v3277 = vand.u32 %v2937, 4294901760
    %3278 = vmatpush1.msra.mxu0 %v3277
    %3279 = vmatprep.subr.mxu0 0.0
    %3280 = vmatpush1.msra.mxu0 0.0
    %3281 = vmatprep.subr.mxu0 0.0
    %3282 = vmatpush1.msra.mxu0 0.0
    %3283 = vmatprep.subr.mxu0 0.0
    %3284 = vmatpush1.msra.mxu0 0.0
    %3285 = vmatprep.subr.mxu0 0.0
    %3286 = vmatpush1.msra.mxu0 0.0
    %3287 = vmatprep.subr.mxu0 0.0
    %3288 = vmatpush1.msra.mxu0 0.0
    %3289 = vmatprep.subr.mxu0 0.0
    %3290 = vmatpush1.msra.mxu0 0.0
    %3291 = vmatprep.subr.mxu0 0.0
    %3292 = vmatpush1.msra.mxu0 0.0
    %3293 = vmatprep.subr.mxu0 0.0
    %3294 = vmatpush1.msra.mxu0 0.0
    %3295 = vmatprep.subr.mxu0 0.0
    %3296 = vmatpush1.msra.mxu0 0.0
    %3297 = vmatprep.subr.mxu0 0.0
    %3298 = vmatpush1.msra.mxu0 0.0
    %3299 = vmatprep.subr.mxu0 0.0
    %3300 = vmatpush1.msra.mxu0 0.0
    %3301 = vmatprep.subr.mxu0 0.0
    %3302 = vmatpush1.msra.mxu0 0.0
    %3303 = vmatprep.subr.mxu0 0.0
    %3304 = vmatpush1.msra.mxu0 0.0
    %3305 = vmatprep.subr.mxu0 0.0
    %3306 = vmatpush1.msra.mxu0 0.0
    %3307 = vmatprep.subr.mxu0 0.0
    %3308 = vmatpush1.msra.mxu0 0.0
    %3309 = vmatprep.subr.mxu0 0.0
    %3310 = vmatpush1.msra.mxu0 0.0
    %3311 = vmatprep.subr.mxu0 0.0
    %3312 = vmatpush1.msra.mxu0 0.0
    %3313 = vmatprep.subr.mxu0 0.0
    %3314 = vmatpush1.msra.mxu0 0.0
    %3315 = vmatprep.subr.mxu0 0.0
    %3316 = vmatpush1.msra.mxu0 0.0
    %3317 = vmatprep.subr.mxu0 0.0
    %3318 = vmatpush1.msra.mxu0 0.0
    %3319 = vmatprep.subr.mxu0 0.0
    %3320 = vmatpush1.msra.mxu0 0.0
    %3321 = vmatprep.subr.mxu0 0.0
    %3322 = vmatpush1.msra.mxu0 0.0
    %3323 = vmatprep.subr.mxu0 0.0
    %3324 = vmatpush1.msra.mxu0 0.0
    %3325 = vmatprep.subr.mxu0 0.0
    %3326 = vmatpush1.msra.mxu0 0.0
    %3327 = vmatprep.mubr.f32.mxu0 0.0
    %v3328 = vand.u32 %v2971, 4294901760
    %v3329 = vsub.f32 %v2971, %v3328
    %v3330 = vand.u32 %v3329, 4294901760
    %3331 = vmatmul.mubr.f32.gmra.mrb[0].mxu0 %v3330
    %v3332 = vpop.f32.mrb[0].mxu0
    %v3333 = vadd.f32 %v3252, %v3332
    %v3334 = vpop.f32.mrb[0].mxu0
    %3335 = vdwg.mxu0
    %3336 = vmatprep.subr.mxu0 0.0
    %v3337 = vand.u32 %v2930, 4294901760
    %v3338 = vsub.f32 %v2930, %v3337
    %v3339 = vand.u32 %v3338, 4294901760
    %3340 = vmatpush1.msra.mxu0 %v3339
    %3341 = vmatprep.subr.mxu0 0.0
    %v3342 = vand.u32 %v2931, 4294901760
    %v3343 = vsub.f32 %v2931, %v3342
    %v3344 = vand.u32 %v3343, 4294901760
    %3345 = vmatpush1.msra.mxu0 %v3344
    %3346 = vmatprep.subr.mxu0 0.0
    %v3347 = vand.u32 %v2932, 4294901760
    %v3348 = vsub.f32 %v2932, %v3347
    %v3349 = vand.u32 %v3348, 4294901760
    %3350 = vmatpush1.msra.mxu0 %v3349
    %3351 = vmatprep.subr.mxu0 0.0
    %v3352 = vand.u32 %v2933, 4294901760
    %v3353 = vsub.f32 %v2933, %v3352
    %v3354 = vand.u32 %v3353, 4294901760
    %3355 = vmatpush1.msra.mxu0 %v3354
    %3356 = vmatprep.subr.mxu0 0.0
    %v3357 = vand.u32 %v2934, 4294901760
    %v3358 = vsub.f32 %v2934, %v3357
    %v3359 = vand.u32 %v3358, 4294901760
    %3360 = vmatpush1.msra.mxu0 %v3359
    %3361 = vmatprep.subr.mxu0 0.0
    %v3362 = vand.u32 %v2935, 4294901760
    %v3363 = vsub.f32 %v2935, %v3362
    %v3364 = vand.u32 %v3363, 4294901760
    %3365 = vmatpush1.msra.mxu0 %v3364
    %3366 = vmatprep.subr.mxu0 0.0
    %v3367 = vand.u32 %v2936, 4294901760
    %v3368 = vsub.f32 %v2936, %v3367
    %v3369 = vand.u32 %v3368, 4294901760
    %3370 = vmatpush1.msra.mxu0 %v3369
    %3371 = vmatprep.subr.mxu0 0.0
    %v3372 = vand.u32 %v2937, 4294901760
    %v3373 = vsub.f32 %v2937, %v3372
    %v3374 = vand.u32 %v3373, 4294901760
    %3375 = vmatpush1.msra.mxu0 %v3374
    %3376 = vmatprep.subr.mxu0 0.0
    %3377 = vmatpush1.msra.mxu0 0.0
    %3378 = vmatprep.subr.mxu0 0.0
    %3379 = vmatpush1.msra.mxu0 0.0
    %3380 = vmatprep.subr.mxu0 0.0
    %3381 = vmatpush1.msra.mxu0 0.0
    %3382 = vmatprep.subr.mxu0 0.0
    %3383 = vmatpush1.msra.mxu0 0.0
    %3384 = vmatprep.subr.mxu0 0.0
    %3385 = vmatpush1.msra.mxu0 0.0
    %3386 = vmatprep.subr.mxu0 0.0
    %3387 = vmatpush1.msra.mxu0 0.0
    %3388 = vmatprep.subr.mxu0 0.0
    %3389 = vmatpush1.msra.mxu0 0.0
    %3390 = vmatprep.subr.mxu0 0.0
    %3391 = vmatpush1.msra.mxu0 0.0
    %3392 = vmatprep.subr.mxu0 0.0
    %3393 = vmatpush1.msra.mxu0 0.0
    %3394 = vmatprep.subr.mxu0 0.0
    %3395 = vmatpush1.msra.mxu0 0.0
    %3396 = vmatprep.subr.mxu0 0.0
    %3397 = vmatpush1.msra.mxu0 0.0
    %3398 = vmatprep.subr.mxu0 0.0
    %3399 = vmatpush1.msra.mxu0 0.0
    %3400 = vmatprep.subr.mxu0 0.0
    %3401 = vmatpush1.msra.mxu0 0.0
    %3402 = vmatprep.subr.mxu0 0.0
    %3403 = vmatpush1.msra.mxu0 0.0
    %3404 = vmatprep.subr.mxu0 0.0
    %3405 = vmatpush1.msra.mxu0 0.0
    %3406 = vmatprep.subr.mxu0 0.0
    %3407 = vmatpush1.msra.mxu0 0.0
    %3408 = vmatprep.subr.mxu0 0.0
    %3409 = vmatpush1.msra.mxu0 0.0
    %3410 = vmatprep.subr.mxu0 0.0
    %3411 = vmatpush1.msra.mxu0 0.0
    %3412 = vmatprep.subr.mxu0 0.0
    %3413 = vmatpush1.msra.mxu0 0.0
    %3414 = vmatprep.subr.mxu0 0.0
    %3415 = vmatpush1.msra.mxu0 0.0
    %3416 = vmatprep.subr.mxu0 0.0
    %3417 = vmatpush1.msra.mxu0 0.0
    %3418 = vmatprep.subr.mxu0 0.0
    %3419 = vmatpush1.msra.mxu0 0.0
    %3420 = vmatprep.subr.mxu0 0.0
    %3421 = vmatpush1.msra.mxu0 0.0
    %3422 = vmatprep.subr.mxu0 0.0
    %3423 = vmatpush1.msra.mxu0 0.0
    %3424 = vmatprep.mubr.f32.mxu0 0.0
    %v3425 = vand.u32 %v2971, 4294901760
    %3426 = vmatmul.mubr.f32.gmra.mrb[0].mxu0 %v3425
    %v3427 = vpop.f32.mrb[0].mxu0
    %v3428 = vadd.f32 %v3333, %v3427
    %v3429 = vpop.f32.mrb[0].mxu0
    %3430 = vdwg.mxu0
    %3431 = vmatprep.subr.mxu0 0.0
    %v3432 = vand.u32 %v2930, 4294901760
    %3433 = vmatpush1.msra.mxu0 %v3432
    %3434 = vmatprep.subr.mxu0 0.0
    %v3435 = vand.u32 %v2931, 4294901760
    %3436 = vmatpush1.msra.mxu0 %v3435
    %3437 = vmatprep.subr.mxu0 0.0
    %v3438 = vand.u32 %v2932, 4294901760
    %3439 = vmatpush1.msra.mxu0 %v3438
    %3440 = vmatprep.subr.mxu0 0.0
    %v3441 = vand.u32 %v2933, 4294901760
    %3442 = vmatpush1.msra.mxu0 %v3441
    %3443 = vmatprep.subr.mxu0 0.0
    %v3444 = vand.u32 %v2934, 4294901760
    %3445 = vmatpush1.msra.mxu0 %v3444
    %3446 = vmatprep.subr.mxu0 0.0
    %v3447 = vand.u32 %v2935, 4294901760
    %3448 = vmatpush1.msra.mxu0 %v3447
    %3449 = vmatprep.subr.mxu0 0.0
    %v3450 = vand.u32 %v2936, 4294901760
    %3451 = vmatpush1.msra.mxu0 %v3450
    %3452 = vmatprep.subr.mxu0 0.0
    %v3453 = vand.u32 %v2937, 4294901760
    %3454 = vmatpush1.msra.mxu0 %v3453
    %3455 = vmatprep.subr.mxu0 0.0
    %3456 = vmatpush1.msra.mxu0 0.0
    %3457 = vmatprep.subr.mxu0 0.0
    %3458 = vmatpush1.msra.mxu0 0.0
    %3459 = vmatprep.subr.mxu0 0.0
    %3460 = vmatpush1.msra.mxu0 0.0
    %3461 = vmatprep.subr.mxu0 0.0
    %3462 = vmatpush1.msra.mxu0 0.0
    %3463 = vmatprep.subr.mxu0 0.0
    %3464 = vmatpush1.msra.mxu0 0.0
    %3465 = vmatprep.subr.mxu0 0.0
    %3466 = vmatpush1.msra.mxu0 0.0
    %3467 = vmatprep.subr.mxu0 0.0
    %3468 = vmatpush1.msra.mxu0 0.0
    %3469 = vmatprep.subr.mxu0 0.0
    %3470 = vmatpush1.msra.mxu0 0.0
    %3471 = vmatprep.subr.mxu0 0.0
    %3472 = vmatpush1.msra.mxu0 0.0
    %3473 = vmatprep.subr.mxu0 0.0
    %3474 = vmatpush1.msra.mxu0 0.0
    %3475 = vmatprep.subr.mxu0 0.0
    %3476 = vmatpush1.msra.mxu0 0.0
    %3477 = vmatprep.subr.mxu0 0.0
    %3478 = vmatpush1.msra.mxu0 0.0
    %3479 = vmatprep.subr.mxu0 0.0
    %3480 = vmatpush1.msra.mxu0 0.0
    %3481 = vmatprep.subr.mxu0 0.0
    %3482 = vmatpush1.msra.mxu0 0.0
    %3483 = vmatprep.subr.mxu0 0.0
    %3484 = vmatpush1.msra.mxu0 0.0
    %3485 = vmatprep.subr.mxu0 0.0
    %3486 = vmatpush1.msra.mxu0 0.0
    %3487 = vmatprep.subr.mxu0 0.0
    %3488 = vmatpush1.msra.mxu0 0.0
    %3489 = vmatprep.subr.mxu0 0.0
    %3490 = vmatpush1.msra.mxu0 0.0
    %3491 = vmatprep.subr.mxu0 0.0
    %3492 = vmatpush1.msra.mxu0 0.0
    %3493 = vmatprep.subr.mxu0 0.0
    %3494 = vmatpush1.msra.mxu0 0.0
    %3495 = vmatprep.subr.mxu0 0.0
    %3496 = vmatpush1.msra.mxu0 0.0
    %3497 = vmatprep.subr.mxu0 0.0
    %3498 = vmatpush1.msra.mxu0 0.0
    %3499 = vmatprep.subr.mxu0 0.0
    %3500 = vmatpush1.msra.mxu0 0.0
    %3501 = vmatprep.subr.mxu0 0.0
    %3502 = vmatpush1.msra.mxu0 0.0
    %3503 = vmatprep.mubr.f32.mxu0 0.0
    %v3504 = vand.u32 %v2971, 4294901760
    %3505 = vmatmul.mubr.f32.gmra.mrb[0].mxu0 %v3504
    %v3506 = vpop.f32.mrb[0].mxu0
    %v3507 = vadd.f32 %v3428, %v3506
    %v3508 = vpop.f32.mrb[0].mxu0
    %3509 = vdwg.mxu0
    %v3510 = vmul.f32 %v973, %v2885
    %v3511 = vmul.f32 %v974, %v2891
    %v3512 = vmul.f32 %v975, %v2897
    %v3513 = vmul.f32 %v976, %v2903
    %v3514 = vmul.f32 %v977, %v2909
    %v3515 = vmul.f32 %v978, %v2915
    %v3516 = vmul.f32 %v979, %v2921
    %v3517 = vmul.f32 %v980, %v2927
    %v3518 = vmul.f32 %v1980, %v1991
    %v3519 = vmul.f32 %v1981, %v1996
    %v3520 = vmul.f32 %v1982, %v2001
    %v3521 = vmul.f32 %v1983, %v2006
    %v3522 = vmul.f32 %v1984, %v2011
    %v3523 = vmul.f32 %v1985, %v2016
    %v3524 = vmul.f32 %v1986, %v2021
    %v3525 = vmul.f32 %v1987, %v2026
    %v3527 = vrot.slane %v64, 4
    %vm3529 = vcmask 1043456
    %v3530 = vsel %vm3529, %v3527, 0.0
    %3531 = vmatprep.subr.mxu0 0.0
    %v3532 = vand.u32 %v3530, 4294901760
    %3533 = vmatpush1.msra.mxu0 %v3532
    %3534 = vmatprep.subr.mxu0 0.0
    %3535 = vmatpush1.msra.mxu0 0.0
    %3536 = vmatprep.subr.mxu0 0.0
    %3537 = vmatpush1.msra.mxu0 0.0
    %3538 = vmatprep.subr.mxu0 0.0
    %3539 = vmatpush1.msra.mxu0 0.0
    %3540 = vmatprep.subr.mxu0 0.0
    %3541 = vmatpush1.msra.mxu0 0.0
    %3542 = vmatprep.subr.mxu0 0.0
    %3543 = vmatpush1.msra.mxu0 0.0
    %3544 = vmatprep.subr.mxu0 0.0
    %3545 = vmatpush1.msra.mxu0 0.0
    %3546 = vmatprep.subr.mxu0 0.0
    %3547 = vmatpush1.msra.mxu0 0.0
    %3548 = vmatprep.subr.mxu0 0.0
    %3549 = vmatpush1.msra.mxu0 0.0
    %3550 = vmatprep.subr.mxu0 0.0
    %3551 = vmatpush1.msra.mxu0 0.0
    %3552 = vmatprep.subr.mxu0 0.0
    %3553 = vmatpush1.msra.mxu0 0.0
    %3554 = vmatprep.subr.mxu0 0.0
    %3555 = vmatpush1.msra.mxu0 0.0
    %3556 = vmatprep.subr.mxu0 0.0
    %3557 = vmatpush1.msra.mxu0 0.0
    %3558 = vmatprep.subr.mxu0 0.0
    %3559 = vmatpush1.msra.mxu0 0.0
    %3560 = vmatprep.subr.mxu0 0.0
    %3561 = vmatpush1.msra.mxu0 0.0
    %3562 = vmatprep.subr.mxu0 0.0
    %3563 = vmatpush1.msra.mxu0 0.0
    %3564 = vmatprep.subr.mxu0 0.0
    %3565 = vmatpush1.msra.mxu0 0.0
    %3566 = vmatprep.subr.mxu0 0.0
    %3567 = vmatpush1.msra.mxu0 0.0
    %3568 = vmatprep.subr.mxu0 0.0
    %3569 = vmatpush1.msra.mxu0 0.0
    %3570 = vmatprep.subr.mxu0 0.0
    %3571 = vmatpush1.msra.mxu0 0.0
    %3572 = vmatprep.subr.mxu0 0.0
    %3573 = vmatpush1.msra.mxu0 0.0
    %3574 = vmatprep.subr.mxu0 0.0
    %3575 = vmatpush1.msra.mxu0 0.0
    %3576 = vmatprep.subr.mxu0 0.0
    %3577 = vmatpush1.msra.mxu0 0.0
    %3578 = vmatprep.subr.mxu0 0.0
    %3579 = vmatpush1.msra.mxu0 0.0
    %3580 = vmatprep.subr.mxu0 0.0
    %3581 = vmatpush1.msra.mxu0 0.0
    %3582 = vmatprep.subr.mxu0 0.0
    %3583 = vmatpush1.msra.mxu0 0.0
    %3584 = vmatprep.subr.mxu0 0.0
    %3585 = vmatpush1.msra.mxu0 0.0
    %3586 = vmatprep.subr.mxu0 0.0
    %3587 = vmatpush1.msra.mxu0 0.0
    %3588 = vmatprep.subr.mxu0 0.0
    %3589 = vmatpush1.msra.mxu0 0.0
    %3590 = vmatprep.subr.mxu0 0.0
    %3591 = vmatpush1.msra.mxu0 0.0
    %3592 = vmatprep.subr.mxu0 0.0
    %3593 = vmatpush1.msra.mxu0 0.0
    %3594 = vmatprep.subr.mxu0 0.0
    %3595 = vmatpush1.msra.mxu0 0.0
    %3596 = vmatprep.mubr.f32.mxu0 0.0
    %v3597 = vand.u32 %v107, 4294901760
    %v3598 = vsub.f32 %v107, %v3597
    %v3599 = vand.u32 %v3598, 4294901760
    %v3600 = vsub.f32 %v3598, %v3599
    %v3601 = vand.u32 %v3600, 4294901760
    %3602 = vmatmul.mubr.f32.gmra.mrb[0].mxu0 %v3601
    %v3603 = vpop.f32.mrb[0].mxu0
    %v3604 = vadd.f32 0.0, %v3603
    %v3605 = vpop.f32.mrb[0].mxu0
    %3606 = vmatprep.mubr.f32.mxu0 0.0
    %v3607 = vand.u32 %v110, 4294901760
    %v3608 = vsub.f32 %v110, %v3607
    %v3609 = vand.u32 %v3608, 4294901760
    %v3610 = vsub.f32 %v3608, %v3609
    %v3611 = vand.u32 %v3610, 4294901760
    %3612 = vmatmul.mubr.f32.gmra.mrb[0].mxu0 %v3611
    %v3613 = vpop.f32.mrb[0].mxu0
    %v3614 = vadd.f32 0.0, %v3613
    %v3615 = vpop.f32.mrb[0].mxu0
    %3616 = vmatprep.mubr.f32.mxu0 0.0
    %v3617 = vand.u32 %v113, 4294901760
    %v3618 = vsub.f32 %v113, %v3617
    %v3619 = vand.u32 %v3618, 4294901760
    %v3620 = vsub.f32 %v3618, %v3619
    %v3621 = vand.u32 %v3620, 4294901760
    %3622 = vmatmul.mubr.f32.gmra.mrb[0].mxu0 %v3621
    %v3623 = vpop.f32.mrb[0].mxu0
    %v3624 = vadd.f32 0.0, %v3623
    %v3625 = vpop.f32.mrb[0].mxu0
    %3626 = vmatprep.mubr.f32.mxu0 0.0
    %v3627 = vand.u32 %v116, 4294901760
    %v3628 = vsub.f32 %v116, %v3627
    %v3629 = vand.u32 %v3628, 4294901760
    %v3630 = vsub.f32 %v3628, %v3629
    %v3631 = vand.u32 %v3630, 4294901760
    %3632 = vmatmul.mubr.f32.gmra.mrb[0].mxu0 %v3631
    %v3633 = vpop.f32.mrb[0].mxu0
    %v3634 = vadd.f32 0.0, %v3633
    %v3635 = vpop.f32.mrb[0].mxu0
    %3636 = vmatprep.mubr.f32.mxu0 0.0
    %v3637 = vand.u32 %v119, 4294901760
    %v3638 = vsub.f32 %v119, %v3637
    %v3639 = vand.u32 %v3638, 4294901760
    %v3640 = vsub.f32 %v3638, %v3639
    %v3641 = vand.u32 %v3640, 4294901760
    %3642 = vmatmul.mubr.f32.gmra.mrb[0].mxu0 %v3641
    %v3643 = vpop.f32.mrb[0].mxu0
    %v3644 = vadd.f32 0.0, %v3643
    %v3645 = vpop.f32.mrb[0].mxu0
    %3646 = vmatprep.mubr.f32.mxu0 0.0
    %v3647 = vand.u32 %v122, 4294901760
    %v3648 = vsub.f32 %v122, %v3647
    %v3649 = vand.u32 %v3648, 4294901760
    %v3650 = vsub.f32 %v3648, %v3649
    %v3651 = vand.u32 %v3650, 4294901760
    %3652 = vmatmul.mubr.f32.gmra.mrb[0].mxu0 %v3651
    %v3653 = vpop.f32.mrb[0].mxu0
    %v3654 = vadd.f32 0.0, %v3653
    %v3655 = vpop.f32.mrb[0].mxu0
    %3656 = vmatprep.mubr.f32.mxu0 0.0
    %v3657 = vand.u32 %v125, 4294901760
    %v3658 = vsub.f32 %v125, %v3657
    %v3659 = vand.u32 %v3658, 4294901760
    %v3660 = vsub.f32 %v3658, %v3659
    %v3661 = vand.u32 %v3660, 4294901760
    %3662 = vmatmul.mubr.f32.gmra.mrb[0].mxu0 %v3661
    %v3663 = vpop.f32.mrb[0].mxu0
    %v3664 = vadd.f32 0.0, %v3663
    %v3665 = vpop.f32.mrb[0].mxu0
    %3666 = vmatprep.mubr.f32.mxu0 0.0
    %v3667 = vand.u32 %v128, 4294901760
    %v3668 = vsub.f32 %v128, %v3667
    %v3669 = vand.u32 %v3668, 4294901760
    %v3670 = vsub.f32 %v3668, %v3669
    %v3671 = vand.u32 %v3670, 4294901760
    %3672 = vmatmul.mubr.f32.gmra.mrb[0].mxu0 %v3671
    %v3673 = vpop.f32.mrb[0].mxu0
    %v3674 = vadd.f32 0.0, %v3673
    %v3675 = vpop.f32.mrb[0].mxu0
    %3676 = vdwg.mxu0
    %3677 = vmatprep.subr.mxu0 0.0
    %v3678 = vand.u32 %v3530, 4294901760
    %v3679 = vsub.f32 %v3530, %v3678
    %v3680 = vand.u32 %v3679, 4294901760
    %v3681 = vsub.f32 %v3679, %v3680
    %v3682 = vand.u32 %v3681, 4294901760
    %3683 = vmatpush1.msra.mxu0 %v3682
    %3684 = vmatprep.subr.mxu0 0.0
    %3685 = vmatpush1.msra.mxu0 0.0
    %3686 = vmatprep.subr.mxu0 0.0
    %3687 = vmatpush1.msra.mxu0 0.0
    %3688 = vmatprep.subr.mxu0 0.0
    %3689 = vmatpush1.msra.mxu0 0.0
    %3690 = vmatprep.subr.mxu0 0.0
    %3691 = vmatpush1.msra.mxu0 0.0
    %3692 = vmatprep.subr.mxu0 0.0
    %3693 = vmatpush1.msra.mxu0 0.0
    %3694 = vmatprep.subr.mxu0 0.0
    %3695 = vmatpush1.msra.mxu0 0.0
    %3696 = vmatprep.subr.mxu0 0.0
    %3697 = vmatpush1.msra.mxu0 0.0
    %3698 = vmatprep.subr.mxu0 0.0
    %3699 = vmatpush1.msra.mxu0 0.0
    %3700 = vmatprep.subr.mxu0 0.0
    %3701 = vmatpush1.msra.mxu0 0.0
    %3702 = vmatprep.subr.mxu0 0.0
    %3703 = vmatpush1.msra.mxu0 0.0
    %3704 = vmatprep.subr.mxu0 0.0
    %3705 = vmatpush1.msra.mxu0 0.0
    %3706 = vmatprep.subr.mxu0 0.0
    %3707 = vmatpush1.msra.mxu0 0.0
    %3708 = vmatprep.subr.mxu0 0.0
    %3709 = vmatpush1.msra.mxu0 0.0
    %3710 = vmatprep.subr.mxu0 0.0
    %3711 = vmatpush1.msra.mxu0 0.0
    %3712 = vmatprep.subr.mxu0 0.0
    %3713 = vmatpush1.msra.mxu0 0.0
    %3714 = vmatprep.subr.mxu0 0.0
    %3715 = vmatpush1.msra.mxu0 0.0
    %3716 = vmatprep.subr.mxu0 0.0
    %3717 = vmatpush1.msra.mxu0 0.0
    %3718 = vmatprep.subr.mxu0 0.0
    %3719 = vmatpush1.msra.mxu0 0.0
    %3720 = vmatprep.subr.mxu0 0.0
    %3721 = vmatpush1.msra.mxu0 0.0
    %3722 = vmatprep.subr.mxu0 0.0
    %3723 = vmatpush1.msra.mxu0 0.0
    %3724 = vmatprep.subr.mxu0 0.0
    %3725 = vmatpush1.msra.mxu0 0.0
    %3726 = vmatprep.subr.mxu0 0.0
    %3727 = vmatpush1.msra.mxu0 0.0
    %3728 = vmatprep.subr.mxu0 0.0
    %3729 = vmatpush1.msra.mxu0 0.0
    %3730 = vmatprep.subr.mxu0 0.0
    %3731 = vmatpush1.msra.mxu0 0.0
    %3732 = vmatprep.subr.mxu0 0.0
    %3733 = vmatpush1.msra.mxu0 0.0
    %3734 = vmatprep.subr.mxu0 0.0
    %3735 = vmatpush1.msra.mxu0 0.0
    %3736 = vmatprep.subr.mxu0 0.0
    %3737 = vmatpush1.msra.mxu0 0.0
    %3738 = vmatprep.subr.mxu0 0.0
    %3739 = vmatpush1.msra.mxu0 0.0
    %3740 = vmatprep.subr.mxu0 0.0
    %3741 = vmatpush1.msra.mxu0 0.0
    %3742 = vmatprep.subr.mxu0 0.0
    %3743 = vmatpush1.msra.mxu0 0.0
    %3744 = vmatprep.subr.mxu0 0.0
    %3745 = vmatpush1.msra.mxu0 0.0
    %3746 = vmatprep.mubr.f32.mxu0 0.0
    %v3747 = vand.u32 %v107, 4294901760
    %3748 = vmatmul.mubr.f32.gmra.mrb[0].mxu0 %v3747
    %v3749 = vpop.f32.mrb[0].mxu0
    %v3750 = vadd.f32 %v3604, %v3749
    %v3751 = vpop.f32.mrb[0].mxu0
    %3752 = vmatprep.mubr.f32.mxu0 0.0
    %v3753 = vand.u32 %v110, 4294901760
    %3754 = vmatmul.mubr.f32.gmra.mrb[0].mxu0 %v3753
    %v3755 = vpop.f32.mrb[0].mxu0
    %v3756 = vadd.f32 %v3614, %v3755
    %v3757 = vpop.f32.mrb[0].mxu0
    %3758 = vmatprep.mubr.f32.mxu0 0.0
    %v3759 = vand.u32 %v113, 4294901760
    %3760 = vmatmul.mubr.f32.gmra.mrb[0].mxu0 %v3759
    %v3761 = vpop.f32.mrb[0].mxu0
    %v3762 = vadd.f32 %v3624, %v3761
    %v3763 = vpop.f32.mrb[0].mxu0
    %3764 = vmatprep.mubr.f32.mxu0 0.0
    %v3765 = vand.u32 %v116, 4294901760
    %3766 = vmatmul.mubr.f32.gmra.mrb[0].mxu0 %v3765
    %v3767 = vpop.f32.mrb[0].mxu0
    %v3768 = vadd.f32 %v3634, %v3767
    %v3769 = vpop.f32.mrb[0].mxu0
    %3770 = vmatprep.mubr.f32.mxu0 0.0
    %v3771 = vand.u32 %v119, 4294901760
    %3772 = vmatmul.mubr.f32.gmra.mrb[0].mxu0 %v3771
    %v3773 = vpop.f32.mrb[0].mxu0
    %v3774 = vadd.f32 %v3644, %v3773
    %v3775 = vpop.f32.mrb[0].mxu0
    %3776 = vmatprep.mubr.f32.mxu0 0.0
    %v3777 = vand.u32 %v122, 4294901760
    %3778 = vmatmul.mubr.f32.gmra.mrb[0].mxu0 %v3777
    %v3779 = vpop.f32.mrb[0].mxu0
    %v3780 = vadd.f32 %v3654, %v3779
    %v3781 = vpop.f32.mrb[0].mxu0
    %3782 = vmatprep.mubr.f32.mxu0 0.0
    %v3783 = vand.u32 %v125, 4294901760
    %3784 = vmatmul.mubr.f32.gmra.mrb[0].mxu0 %v3783
    %v3785 = vpop.f32.mrb[0].mxu0
    %v3786 = vadd.f32 %v3664, %v3785
    %v3787 = vpop.f32.mrb[0].mxu0
    %3788 = vmatprep.mubr.f32.mxu0 0.0
    %v3789 = vand.u32 %v128, 4294901760
    %3790 = vmatmul.mubr.f32.gmra.mrb[0].mxu0 %v3789
    %v3791 = vpop.f32.mrb[0].mxu0
    %v3792 = vadd.f32 %v3674, %v3791
    %v3793 = vpop.f32.mrb[0].mxu0
    %3794 = vdwg.mxu0
    %3795 = vmatprep.subr.mxu0 0.0
    %v3796 = vand.u32 %v3530, 4294901760
    %v3797 = vsub.f32 %v3530, %v3796
    %3798 = vmatpush1.msra.mxu0 %v3797
    %3799 = vmatprep.subr.mxu0 0.0
    %3800 = vmatpush1.msra.mxu0 0.0
    %3801 = vmatprep.subr.mxu0 0.0
    %3802 = vmatpush1.msra.mxu0 0.0
    %3803 = vmatprep.subr.mxu0 0.0
    %3804 = vmatpush1.msra.mxu0 0.0
    %3805 = vmatprep.subr.mxu0 0.0
    %3806 = vmatpush1.msra.mxu0 0.0
    %3807 = vmatprep.subr.mxu0 0.0
    %3808 = vmatpush1.msra.mxu0 0.0
    %3809 = vmatprep.subr.mxu0 0.0
    %3810 = vmatpush1.msra.mxu0 0.0
    %3811 = vmatprep.subr.mxu0 0.0
    %3812 = vmatpush1.msra.mxu0 0.0
    %3813 = vmatprep.subr.mxu0 0.0
    %3814 = vmatpush1.msra.mxu0 0.0
    %3815 = vmatprep.subr.mxu0 0.0
    %3816 = vmatpush1.msra.mxu0 0.0
    %3817 = vmatprep.subr.mxu0 0.0
    %3818 = vmatpush1.msra.mxu0 0.0
    %3819 = vmatprep.subr.mxu0 0.0
    %3820 = vmatpush1.msra.mxu0 0.0
    %3821 = vmatprep.subr.mxu0 0.0
    %3822 = vmatpush1.msra.mxu0 0.0
    %3823 = vmatprep.subr.mxu0 0.0
    %3824 = vmatpush1.msra.mxu0 0.0
    %3825 = vmatprep.subr.mxu0 0.0
    %3826 = vmatpush1.msra.mxu0 0.0
    %3827 = vmatprep.subr.mxu0 0.0
    %3828 = vmatpush1.msra.mxu0 0.0
    %3829 = vmatprep.subr.mxu0 0.0
    %3830 = vmatpush1.msra.mxu0 0.0
    %3831 = vmatprep.subr.mxu0 0.0
    %3832 = vmatpush1.msra.mxu0 0.0
    %3833 = vmatprep.subr.mxu0 0.0
    %3834 = vmatpush1.msra.mxu0 0.0
    %3835 = vmatprep.subr.mxu0 0.0
    %3836 = vmatpush1.msra.mxu0 0.0
    %3837 = vmatprep.subr.mxu0 0.0
    %3838 = vmatpush1.msra.mxu0 0.0
    %3839 = vmatprep.subr.mxu0 0.0
    %3840 = vmatpush1.msra.mxu0 0.0
    %3841 = vmatprep.subr.mxu0 0.0
    %3842 = vmatpush1.msra.mxu0 0.0
    %3843 = vmatprep.subr.mxu0 0.0
    %3844 = vmatpush1.msra.mxu0 0.0
    %3845 = vmatprep.subr.mxu0 0.0
    %3846 = vmatpush1.msra.mxu0 0.0
    %3847 = vmatprep.subr.mxu0 0.0
    %3848 = vmatpush1.msra.mxu0 0.0
    %3849 = vmatprep.subr.mxu0 0.0
    %3850 = vmatpush1.msra.mxu0 0.0
    %3851 = vmatprep.subr.mxu0 0.0
    %3852 = vmatpush1.msra.mxu0 0.0
    %3853 = vmatprep.subr.mxu0 0.0
    %3854 = vmatpush1.msra.mxu0 0.0
    %3855 = vmatprep.subr.mxu0 0.0
    %3856 = vmatpush1.msra.mxu0 0.0
    %3857 = vmatprep.subr.mxu0 0.0
    %3858 = vmatpush1.msra.mxu0 0.0
    %3859 = vmatprep.subr.mxu0 0.0
    %3860 = vmatpush1.msra.mxu0 0.0
    %3861 = vmatprep.mubr.f32.mxu0 0.0
    %v3862 = vand.u32 %v107, 4294901760
    %v3863 = vsub.f32 %v107, %v3862
    %3864 = vmatmul.mubr.f32.gmra.mrb[0].mxu0 %v3863
    %v3865 = vpop.f32.mrb[0].mxu0
    %v3866 = vadd.f32 %v3750, %v3865
    %v3867 = vpop.f32.mrb[0].mxu0
    %3868 = vmatprep.mubr.f32.mxu0 0.0
    %v3869 = vand.u32 %v110, 4294901760
    %v3870 = vsub.f32 %v110, %v3869
    %3871 = vmatmul.mubr.f32.gmra.mrb[0].mxu0 %v3870
    %v3872 = vpop.f32.mrb[0].mxu0
    %v3873 = vadd.f32 %v3756, %v3872
    %v3874 = vpop.f32.mrb[0].mxu0
    %3875 = vmatprep.mubr.f32.mxu0 0.0
    %v3876 = vand.u32 %v113, 4294901760
    %v3877 = vsub.f32 %v113, %v3876
    %3878 = vmatmul.mubr.f32.gmra.mrb[0].mxu0 %v3877
    %v3879 = vpop.f32.mrb[0].mxu0
    %v3880 = vadd.f32 %v3762, %v3879
    %v3881 = vpop.f32.mrb[0].mxu0
    %3882 = vmatprep.mubr.f32.mxu0 0.0
    %v3883 = vand.u32 %v116, 4294901760
    %v3884 = vsub.f32 %v116, %v3883
    %3885 = vmatmul.mubr.f32.gmra.mrb[0].mxu0 %v3884
    %v3886 = vpop.f32.mrb[0].mxu0
    %v3887 = vadd.f32 %v3768, %v3886
    %v3888 = vpop.f32.mrb[0].mxu0
    %3889 = vmatprep.mubr.f32.mxu0 0.0
    %v3890 = vand.u32 %v119, 4294901760
    %v3891 = vsub.f32 %v119, %v3890
    %3892 = vmatmul.mubr.f32.gmra.mrb[0].mxu0 %v3891
    %v3893 = vpop.f32.mrb[0].mxu0
    %v3894 = vadd.f32 %v3774, %v3893
    %v3895 = vpop.f32.mrb[0].mxu0
    %3896 = vmatprep.mubr.f32.mxu0 0.0
    %v3897 = vand.u32 %v122, 4294901760
    %v3898 = vsub.f32 %v122, %v3897
    %3899 = vmatmul.mubr.f32.gmra.mrb[0].mxu0 %v3898
    %v3900 = vpop.f32.mrb[0].mxu0
    %v3901 = vadd.f32 %v3780, %v3900
    %v3902 = vpop.f32.mrb[0].mxu0
    %3903 = vmatprep.mubr.f32.mxu0 0.0
    %v3904 = vand.u32 %v125, 4294901760
    %v3905 = vsub.f32 %v125, %v3904
    %3906 = vmatmul.mubr.f32.gmra.mrb[0].mxu0 %v3905
    %v3907 = vpop.f32.mrb[0].mxu0
    %v3908 = vadd.f32 %v3786, %v3907
    %v3909 = vpop.f32.mrb[0].mxu0
    %3910 = vmatprep.mubr.f32.mxu0 0.0
    %v3911 = vand.u32 %v128, 4294901760
    %v3912 = vsub.f32 %v128, %v3911
    %3913 = vmatmul.mubr.f32.gmra.mrb[0].mxu0 %v3912
    %v3914 = vpop.f32.mrb[0].mxu0
    %v3915 = vadd.f32 %v3792, %v3914
    %v3916 = vpop.f32.mrb[0].mxu0
    %3917 = vdwg.mxu0
    %3918 = vmatprep.subr.mxu0 0.0
    %v3919 = vand.u32 %v3530, 4294901760
    %3920 = vmatpush1.msra.mxu0 %v3919
    %3921 = vmatprep.subr.mxu0 0.0
    %3922 = vmatpush1.msra.mxu0 0.0
    %3923 = vmatprep.subr.mxu0 0.0
    %3924 = vmatpush1.msra.mxu0 0.0
    %3925 = vmatprep.subr.mxu0 0.0
    %3926 = vmatpush1.msra.mxu0 0.0
    %3927 = vmatprep.subr.mxu0 0.0
    %3928 = vmatpush1.msra.mxu0 0.0
    %3929 = vmatprep.subr.mxu0 0.0
    %3930 = vmatpush1.msra.mxu0 0.0
    %3931 = vmatprep.subr.mxu0 0.0
    %3932 = vmatpush1.msra.mxu0 0.0
    %3933 = vmatprep.subr.mxu0 0.0
    %3934 = vmatpush1.msra.mxu0 0.0
    %3935 = vmatprep.subr.mxu0 0.0
    %3936 = vmatpush1.msra.mxu0 0.0
    %3937 = vmatprep.subr.mxu0 0.0
    %3938 = vmatpush1.msra.mxu0 0.0
    %3939 = vmatprep.subr.mxu0 0.0
    %3940 = vmatpush1.msra.mxu0 0.0
    %3941 = vmatprep.subr.mxu0 0.0
    %3942 = vmatpush1.msra.mxu0 0.0
    %3943 = vmatprep.subr.mxu0 0.0
    %3944 = vmatpush1.msra.mxu0 0.0
    %3945 = vmatprep.subr.mxu0 0.0
    %3946 = vmatpush1.msra.mxu0 0.0
    %3947 = vmatprep.subr.mxu0 0.0
    %3948 = vmatpush1.msra.mxu0 0.0
    %3949 = vmatprep.subr.mxu0 0.0
    %3950 = vmatpush1.msra.mxu0 0.0
    %3951 = vmatprep.subr.mxu0 0.0
    %3952 = vmatpush1.msra.mxu0 0.0
    %3953 = vmatprep.subr.mxu0 0.0
    %3954 = vmatpush1.msra.mxu0 0.0
    %3955 = vmatprep.subr.mxu0 0.0
    %3956 = vmatpush1.msra.mxu0 0.0
    %3957 = vmatprep.subr.mxu0 0.0
    %3958 = vmatpush1.msra.mxu0 0.0
    %3959 = vmatprep.subr.mxu0 0.0
    %3960 = vmatpush1.msra.mxu0 0.0
    %3961 = vmatprep.subr.mxu0 0.0
    %3962 = vmatpush1.msra.mxu0 0.0
    %3963 = vmatprep.subr.mxu0 0.0
    %3964 = vmatpush1.msra.mxu0 0.0
    %3965 = vmatprep.subr.mxu0 0.0
    %3966 = vmatpush1.msra.mxu0 0.0
    %3967 = vmatprep.subr.mxu0 0.0
    %3968 = vmatpush1.msra.mxu0 0.0
    %3969 = vmatprep.subr.mxu0 0.0
    %3970 = vmatpush1.msra.mxu0 0.0
    %3971 = vmatprep.subr.mxu0 0.0
    %3972 = vmatpush1.msra.mxu0 0.0
    %3973 = vmatprep.subr.mxu0 0.0
    %3974 = vmatpush1.msra.mxu0 0.0
    %3975 = vmatprep.subr.mxu0 0.0
    %3976 = vmatpush1.msra.mxu0 0.0
    %3977 = vmatprep.subr.mxu0 0.0
    %3978 = vmatpush1.msra.mxu0 0.0
    %3979 = vmatprep.subr.mxu0 0.0
    %3980 = vmatpush1.msra.mxu0 0.0
    %3981 = vmatprep.subr.mxu0 0.0
    %3982 = vmatpush1.msra.mxu0 0.0
    %3983 = vmatprep.mubr.f32.mxu0 0.0
    %v3984 = vand.u32 %v107, 4294901760
    %v3985 = vsub.f32 %v107, %v3984
    %v3986 = vand.u32 %v3985, 4294901760
    %3987 = vmatmul.mubr.f32.gmra.mrb[0].mxu0 %v3986
    %v3988 = vpop.f32.mrb[0].mxu0
    %v3989 = vadd.f32 %v3866, %v3988
    %v3990 = vpop.f32.mrb[0].mxu0
    %3991 = vmatprep.mubr.f32.mxu0 0.0
    %v3992 = vand.u32 %v110, 4294901760
    %v3993 = vsub.f32 %v110, %v3992
    %v3994 = vand.u32 %v3993, 4294901760
    %3995 = vmatmul.mubr.f32.gmra.mrb[0].mxu0 %v3994
    %v3996 = vpop.f32.mrb[0].mxu0
    %v3997 = vadd.f32 %v3873, %v3996
    %v3998 = vpop.f32.mrb[0].mxu0
    %3999 = vmatprep.mubr.f32.mxu0 0.0
    %v4000 = vand.u32 %v113, 4294901760
    %v4001 = vsub.f32 %v113, %v4000
    %v4002 = vand.u32 %v4001, 4294901760
    %4003 = vmatmul.mubr.f32.gmra.mrb[0].mxu0 %v4002
    %v4004 = vpop.f32.mrb[0].mxu0
    %v4005 = vadd.f32 %v3880, %v4004
    %v4006 = vpop.f32.mrb[0].mxu0
    %4007 = vmatprep.mubr.f32.mxu0 0.0
    %v4008 = vand.u32 %v116, 4294901760
    %v4009 = vsub.f32 %v116, %v4008
    %v4010 = vand.u32 %v4009, 4294901760
    %4011 = vmatmul.mubr.f32.gmra.mrb[0].mxu0 %v4010
    %v4012 = vpop.f32.mrb[0].mxu0
    %v4013 = vadd.f32 %v3887, %v4012
    %v4014 = vpop.f32.mrb[0].mxu0
    %4015 = vmatprep.mubr.f32.mxu0 0.0
    %v4016 = vand.u32 %v119, 4294901760
    %v4017 = vsub.f32 %v119, %v4016
    %v4018 = vand.u32 %v4017, 4294901760
    %4019 = vmatmul.mubr.f32.gmra.mrb[0].mxu0 %v4018
    %v4020 = vpop.f32.mrb[0].mxu0
    %v4021 = vadd.f32 %v3894, %v4020
    %v4022 = vpop.f32.mrb[0].mxu0
    %4023 = vmatprep.mubr.f32.mxu0 0.0
    %v4024 = vand.u32 %v122, 4294901760
    %v4025 = vsub.f32 %v122, %v4024
    %v4026 = vand.u32 %v4025, 4294901760
    %4027 = vmatmul.mubr.f32.gmra.mrb[0].mxu0 %v4026
    %v4028 = vpop.f32.mrb[0].mxu0
    %v4029 = vadd.f32 %v3901, %v4028
    %v4030 = vpop.f32.mrb[0].mxu0
    %4031 = vmatprep.mubr.f32.mxu0 0.0
    %v4032 = vand.u32 %v125, 4294901760
    %v4033 = vsub.f32 %v125, %v4032
    %v4034 = vand.u32 %v4033, 4294901760
    %4035 = vmatmul.mubr.f32.gmra.mrb[0].mxu0 %v4034
    %v4036 = vpop.f32.mrb[0].mxu0
    %v4037 = vadd.f32 %v3908, %v4036
    %v4038 = vpop.f32.mrb[0].mxu0
    %4039 = vmatprep.mubr.f32.mxu0 0.0
    %v4040 = vand.u32 %v128, 4294901760
    %v4041 = vsub.f32 %v128, %v4040
    %v4042 = vand.u32 %v4041, 4294901760
    %4043 = vmatmul.mubr.f32.gmra.mrb[0].mxu0 %v4042
    %v4044 = vpop.f32.mrb[0].mxu0
    %v4045 = vadd.f32 %v3915, %v4044
    %v4046 = vpop.f32.mrb[0].mxu0
    %4047 = vdwg.mxu0
    %4048 = vmatprep.subr.mxu0 0.0
    %v4049 = vand.u32 %v3530, 4294901760
    %v4050 = vsub.f32 %v3530, %v4049
    %v4051 = vand.u32 %v4050, 4294901760
    %4052 = vmatpush1.msra.mxu0 %v4051
    %4053 = vmatprep.subr.mxu0 0.0
    %4054 = vmatpush1.msra.mxu0 0.0
    %4055 = vmatprep.subr.mxu0 0.0
    %4056 = vmatpush1.msra.mxu0 0.0
    %4057 = vmatprep.subr.mxu0 0.0
    %4058 = vmatpush1.msra.mxu0 0.0
    %4059 = vmatprep.subr.mxu0 0.0
    %4060 = vmatpush1.msra.mxu0 0.0
    %4061 = vmatprep.subr.mxu0 0.0
    %4062 = vmatpush1.msra.mxu0 0.0
    %4063 = vmatprep.subr.mxu0 0.0
    %4064 = vmatpush1.msra.mxu0 0.0
    %4065 = vmatprep.subr.mxu0 0.0
    %4066 = vmatpush1.msra.mxu0 0.0
    %4067 = vmatprep.subr.mxu0 0.0
    %4068 = vmatpush1.msra.mxu0 0.0
    %4069 = vmatprep.subr.mxu0 0.0
    %4070 = vmatpush1.msra.mxu0 0.0
    %4071 = vmatprep.subr.mxu0 0.0
    %4072 = vmatpush1.msra.mxu0 0.0
    %4073 = vmatprep.subr.mxu0 0.0
    %4074 = vmatpush1.msra.mxu0 0.0
    %4075 = vmatprep.subr.mxu0 0.0
    %4076 = vmatpush1.msra.mxu0 0.0
    %4077 = vmatprep.subr.mxu0 0.0
    %4078 = vmatpush1.msra.mxu0 0.0
    %4079 = vmatprep.subr.mxu0 0.0
    %4080 = vmatpush1.msra.mxu0 0.0
    %4081 = vmatprep.subr.mxu0 0.0
    %4082 = vmatpush1.msra.mxu0 0.0
    %4083 = vmatprep.subr.mxu0 0.0
    %4084 = vmatpush1.msra.mxu0 0.0
    %4085 = vmatprep.subr.mxu0 0.0
    %4086 = vmatpush1.msra.mxu0 0.0
    %4087 = vmatprep.subr.mxu0 0.0
    %4088 = vmatpush1.msra.mxu0 0.0
    %4089 = vmatprep.subr.mxu0 0.0
    %4090 = vmatpush1.msra.mxu0 0.0
    %4091 = vmatprep.subr.mxu0 0.0
    %4092 = vmatpush1.msra.mxu0 0.0
    %4093 = vmatprep.subr.mxu0 0.0
    %4094 = vmatpush1.msra.mxu0 0.0
    %4095 = vmatprep.subr.mxu0 0.0
    %4096 = vmatpush1.msra.mxu0 0.0
    %4097 = vmatprep.subr.mxu0 0.0
    %4098 = vmatpush1.msra.mxu0 0.0
    %4099 = vmatprep.subr.mxu0 0.0
    %4100 = vmatpush1.msra.mxu0 0.0
    %4101 = vmatprep.subr.mxu0 0.0
    %4102 = vmatpush1.msra.mxu0 0.0
    %4103 = vmatprep.subr.mxu0 0.0
    %4104 = vmatpush1.msra.mxu0 0.0
    %4105 = vmatprep.subr.mxu0 0.0
    %4106 = vmatpush1.msra.mxu0 0.0
    %4107 = vmatprep.subr.mxu0 0.0
    %4108 = vmatpush1.msra.mxu0 0.0
    %4109 = vmatprep.subr.mxu0 0.0
    %4110 = vmatpush1.msra.mxu0 0.0
    %4111 = vmatprep.subr.mxu0 0.0
    %4112 = vmatpush1.msra.mxu0 0.0
    %4113 = vmatprep.subr.mxu0 0.0
    %4114 = vmatpush1.msra.mxu0 0.0
    %4115 = vmatprep.mubr.f32.mxu0 0.0
    %v4116 = vand.u32 %v107, 4294901760
    %4117 = vmatmul.mubr.f32.gmra.mrb[0].mxu0 %v4116
    %v4118 = vpop.f32.mrb[0].mxu0
    %v4119 = vadd.f32 %v3989, %v4118
    %v4120 = vpop.f32.mrb[0].mxu0
    %4121 = vmatprep.mubr.f32.mxu0 0.0
    %v4122 = vand.u32 %v110, 4294901760
    %4123 = vmatmul.mubr.f32.gmra.mrb[0].mxu0 %v4122
    %v4124 = vpop.f32.mrb[0].mxu0
    %v4125 = vadd.f32 %v3997, %v4124
    %v4126 = vpop.f32.mrb[0].mxu0
    %4127 = vmatprep.mubr.f32.mxu0 0.0
    %v4128 = vand.u32 %v113, 4294901760
    %4129 = vmatmul.mubr.f32.gmra.mrb[0].mxu0 %v4128
    %v4130 = vpop.f32.mrb[0].mxu0
    %v4131 = vadd.f32 %v4005, %v4130
    %v4132 = vpop.f32.mrb[0].mxu0
    %4133 = vmatprep.mubr.f32.mxu0 0.0
    %v4134 = vand.u32 %v116, 4294901760
    %4135 = vmatmul.mubr.f32.gmra.mrb[0].mxu0 %v4134
    %v4136 = vpop.f32.mrb[0].mxu0
    %v4137 = vadd.f32 %v4013, %v4136
    %v4138 = vpop.f32.mrb[0].mxu0
    %4139 = vmatprep.mubr.f32.mxu0 0.0
    %v4140 = vand.u32 %v119, 4294901760
    %4141 = vmatmul.mubr.f32.gmra.mrb[0].mxu0 %v4140
    %v4142 = vpop.f32.mrb[0].mxu0
    %v4143 = vadd.f32 %v4021, %v4142
    %v4144 = vpop.f32.mrb[0].mxu0
    %4145 = vmatprep.mubr.f32.mxu0 0.0
    %v4146 = vand.u32 %v122, 4294901760
    %4147 = vmatmul.mubr.f32.gmra.mrb[0].mxu0 %v4146
    %v4148 = vpop.f32.mrb[0].mxu0
    %v4149 = vadd.f32 %v4029, %v4148
    %v4150 = vpop.f32.mrb[0].mxu0
    %4151 = vmatprep.mubr.f32.mxu0 0.0
    %v4152 = vand.u32 %v125, 4294901760
    %4153 = vmatmul.mubr.f32.gmra.mrb[0].mxu0 %v4152
    %v4154 = vpop.f32.mrb[0].mxu0
    %v4155 = vadd.f32 %v4037, %v4154
    %v4156 = vpop.f32.mrb[0].mxu0
    %4157 = vmatprep.mubr.f32.mxu0 0.0
    %v4158 = vand.u32 %v128, 4294901760
    %4159 = vmatmul.mubr.f32.gmra.mrb[0].mxu0 %v4158
    %v4160 = vpop.f32.mrb[0].mxu0
    %v4161 = vadd.f32 %v4045, %v4160
    %v4162 = vpop.f32.mrb[0].mxu0
    %4163 = vdwg.mxu0
    %4164 = vmatprep.subr.mxu0 0.0
    %v4165 = vand.u32 %v3530, 4294901760
    %4166 = vmatpush1.msra.mxu0 %v4165
    %4167 = vmatprep.subr.mxu0 0.0
    %4168 = vmatpush1.msra.mxu0 0.0
    %4169 = vmatprep.subr.mxu0 0.0
    %4170 = vmatpush1.msra.mxu0 0.0
    %4171 = vmatprep.subr.mxu0 0.0
    %4172 = vmatpush1.msra.mxu0 0.0
    %4173 = vmatprep.subr.mxu0 0.0
    %4174 = vmatpush1.msra.mxu0 0.0
    %4175 = vmatprep.subr.mxu0 0.0
    %4176 = vmatpush1.msra.mxu0 0.0
    %4177 = vmatprep.subr.mxu0 0.0
    %4178 = vmatpush1.msra.mxu0 0.0
    %4179 = vmatprep.subr.mxu0 0.0
    %4180 = vmatpush1.msra.mxu0 0.0
    %4181 = vmatprep.subr.mxu0 0.0
    %4182 = vmatpush1.msra.mxu0 0.0
    %4183 = vmatprep.subr.mxu0 0.0
    %4184 = vmatpush1.msra.mxu0 0.0
    %4185 = vmatprep.subr.mxu0 0.0
    %4186 = vmatpush1.msra.mxu0 0.0
    %4187 = vmatprep.subr.mxu0 0.0
    %4188 = vmatpush1.msra.mxu0 0.0
    %4189 = vmatprep.subr.mxu0 0.0
    %4190 = vmatpush1.msra.mxu0 0.0
    %4191 = vmatprep.subr.mxu0 0.0
    %4192 = vmatpush1.msra.mxu0 0.0
    %4193 = vmatprep.subr.mxu0 0.0
    %4194 = vmatpush1.msra.mxu0 0.0
    %4195 = vmatprep.subr.mxu0 0.0
    %4196 = vmatpush1.msra.mxu0 0.0
    %4197 = vmatprep.subr.mxu0 0.0
    %4198 = vmatpush1.msra.mxu0 0.0
    %4199 = vmatprep.subr.mxu0 0.0
    %4200 = vmatpush1.msra.mxu0 0.0
    %4201 = vmatprep.subr.mxu0 0.0
    %4202 = vmatpush1.msra.mxu0 0.0
    %4203 = vmatprep.subr.mxu0 0.0
    %4204 = vmatpush1.msra.mxu0 0.0
    %4205 = vmatprep.subr.mxu0 0.0
    %4206 = vmatpush1.msra.mxu0 0.0
    %4207 = vmatprep.subr.mxu0 0.0
    %4208 = vmatpush1.msra.mxu0 0.0
    %4209 = vmatprep.subr.mxu0 0.0
    %4210 = vmatpush1.msra.mxu0 0.0
    %4211 = vmatprep.subr.mxu0 0.0
    %4212 = vmatpush1.msra.mxu0 0.0
    %4213 = vmatprep.subr.mxu0 0.0
    %4214 = vmatpush1.msra.mxu0 0.0
    %4215 = vmatprep.subr.mxu0 0.0
    %4216 = vmatpush1.msra.mxu0 0.0
    %4217 = vmatprep.subr.mxu0 0.0
    %4218 = vmatpush1.msra.mxu0 0.0
    %4219 = vmatprep.subr.mxu0 0.0
    %4220 = vmatpush1.msra.mxu0 0.0
    %4221 = vmatprep.subr.mxu0 0.0
    %4222 = vmatpush1.msra.mxu0 0.0
    %4223 = vmatprep.subr.mxu0 0.0
    %4224 = vmatpush1.msra.mxu0 0.0
    %4225 = vmatprep.subr.mxu0 0.0
    %4226 = vmatpush1.msra.mxu0 0.0
    %4227 = vmatprep.subr.mxu0 0.0
    %4228 = vmatpush1.msra.mxu0 0.0
    %4229 = vmatprep.mubr.f32.mxu0 0.0
    %v4230 = vand.u32 %v107, 4294901760
    %4231 = vmatmul.mubr.f32.gmra.mrb[0].mxu0 %v4230
    %v4232 = vpop.f32.mrb[0].mxu0
    %v4233 = vadd.f32 %v4119, %v4232
    %v4234 = vpop.f32.mrb[0].mxu0
    %4235 = vmatprep.mubr.f32.mxu0 0.0
    %v4236 = vand.u32 %v110, 4294901760
    %4237 = vmatmul.mubr.f32.gmra.mrb[0].mxu0 %v4236
    %v4238 = vpop.f32.mrb[0].mxu0
    %v4239 = vadd.f32 %v4125, %v4238
    %v4240 = vpop.f32.mrb[0].mxu0
    %4241 = vmatprep.mubr.f32.mxu0 0.0
    %v4242 = vand.u32 %v113, 4294901760
    %4243 = vmatmul.mubr.f32.gmra.mrb[0].mxu0 %v4242
    %v4244 = vpop.f32.mrb[0].mxu0
    %v4245 = vadd.f32 %v4131, %v4244
    %v4246 = vpop.f32.mrb[0].mxu0
    %4247 = vmatprep.mubr.f32.mxu0 0.0
    %v4248 = vand.u32 %v116, 4294901760
    %4249 = vmatmul.mubr.f32.gmra.mrb[0].mxu0 %v4248
    %v4250 = vpop.f32.mrb[0].mxu0
    %v4251 = vadd.f32 %v4137, %v4250
    %v4252 = vpop.f32.mrb[0].mxu0
    %4253 = vmatprep.mubr.f32.mxu0 0.0
    %v4254 = vand.u32 %v119, 4294901760
    %4255 = vmatmul.mubr.f32.gmra.mrb[0].mxu0 %v4254
    %v4256 = vpop.f32.mrb[0].mxu0
    %v4257 = vadd.f32 %v4143, %v4256
    %v4258 = vpop.f32.mrb[0].mxu0
    %4259 = vmatprep.mubr.f32.mxu0 0.0
    %v4260 = vand.u32 %v122, 4294901760
    %4261 = vmatmul.mubr.f32.gmra.mrb[0].mxu0 %v4260
    %v4262 = vpop.f32.mrb[0].mxu0
    %v4263 = vadd.f32 %v4149, %v4262
    %v4264 = vpop.f32.mrb[0].mxu0
    %4265 = vmatprep.mubr.f32.mxu0 0.0
    %v4266 = vand.u32 %v125, 4294901760
    %4267 = vmatmul.mubr.f32.gmra.mrb[0].mxu0 %v4266
    %v4268 = vpop.f32.mrb[0].mxu0
    %v4269 = vadd.f32 %v4155, %v4268
    %v4270 = vpop.f32.mrb[0].mxu0
    %4271 = vmatprep.mubr.f32.mxu0 0.0
    %v4272 = vand.u32 %v128, 4294901760
    %4273 = vmatmul.mubr.f32.gmra.mrb[0].mxu0 %v4272
    %v4274 = vpop.f32.mrb[0].mxu0
    %v4275 = vadd.f32 %v4161, %v4274
    %v4276 = vpop.f32.mrb[0].mxu0
    %4277 = vdwg.mxu0
    %v4278 = vmul.f32 %v950, %v4233
    %v4279 = vmul.f32 %v952, %v4239
    %v4280 = vmul.f32 %v954, %v4245
    %v4281 = vmul.f32 %v956, %v4251
    %v4282 = vmul.f32 %v958, %v4257
    %v4283 = vmul.f32 %v960, %v4263
    %v4284 = vmul.f32 %v962, %v4269
    %v4285 = vmul.f32 %v964, %v4275
    %4286 = vmatprep.subr.mxu0 0.0
    %v4287 = vand.u32 %v4278, 4294901760
    %4288 = vmatpush1.msra.mxu0 %v4287
    %4289 = vmatprep.subr.mxu0 0.0
    %v4290 = vand.u32 %v4279, 4294901760
    %4291 = vmatpush1.msra.mxu0 %v4290
    %4292 = vmatprep.subr.mxu0 0.0
    %v4293 = vand.u32 %v4280, 4294901760
    %4294 = vmatpush1.msra.mxu0 %v4293
    %4295 = vmatprep.subr.mxu0 0.0
    %v4296 = vand.u32 %v4281, 4294901760
    %4297 = vmatpush1.msra.mxu0 %v4296
    %4298 = vmatprep.subr.mxu0 0.0
    %v4299 = vand.u32 %v4282, 4294901760
    %4300 = vmatpush1.msra.mxu0 %v4299
    %4301 = vmatprep.subr.mxu0 0.0
    %v4302 = vand.u32 %v4283, 4294901760
    %4303 = vmatpush1.msra.mxu0 %v4302
    %4304 = vmatprep.subr.mxu0 0.0
    %v4305 = vand.u32 %v4284, 4294901760
    %4306 = vmatpush1.msra.mxu0 %v4305
    %4307 = vmatprep.subr.mxu0 0.0
    %v4308 = vand.u32 %v4285, 4294901760
    %4309 = vmatpush1.msra.mxu0 %v4308
    %4310 = vmatprep.subr.mxu0 0.0
    %4311 = vmatpush1.msra.mxu0 0.0
    %4312 = vmatprep.subr.mxu0 0.0
    %4313 = vmatpush1.msra.mxu0 0.0
    %4314 = vmatprep.subr.mxu0 0.0
    %4315 = vmatpush1.msra.mxu0 0.0
    %4316 = vmatprep.subr.mxu0 0.0
    %4317 = vmatpush1.msra.mxu0 0.0
    %4318 = vmatprep.subr.mxu0 0.0
    %4319 = vmatpush1.msra.mxu0 0.0
    %4320 = vmatprep.subr.mxu0 0.0
    %4321 = vmatpush1.msra.mxu0 0.0
    %4322 = vmatprep.subr.mxu0 0.0
    %4323 = vmatpush1.msra.mxu0 0.0
    %4324 = vmatprep.subr.mxu0 0.0
    %4325 = vmatpush1.msra.mxu0 0.0
    %4326 = vmatprep.subr.mxu0 0.0
    %4327 = vmatpush1.msra.mxu0 0.0
    %4328 = vmatprep.subr.mxu0 0.0
    %4329 = vmatpush1.msra.mxu0 0.0
    %4330 = vmatprep.subr.mxu0 0.0
    %4331 = vmatpush1.msra.mxu0 0.0
    %4332 = vmatprep.subr.mxu0 0.0
    %4333 = vmatpush1.msra.mxu0 0.0
    %4334 = vmatprep.subr.mxu0 0.0
    %4335 = vmatpush1.msra.mxu0 0.0
    %4336 = vmatprep.subr.mxu0 0.0
    %4337 = vmatpush1.msra.mxu0 0.0
    %4338 = vmatprep.subr.mxu0 0.0
    %4339 = vmatpush1.msra.mxu0 0.0
    %4340 = vmatprep.subr.mxu0 0.0
    %4341 = vmatpush1.msra.mxu0 0.0
    %4342 = vmatprep.subr.mxu0 0.0
    %4343 = vmatpush1.msra.mxu0 0.0
    %4344 = vmatprep.subr.mxu0 0.0
    %4345 = vmatpush1.msra.mxu0 0.0
    %4346 = vmatprep.subr.mxu0 0.0
    %4347 = vmatpush1.msra.mxu0 0.0
    %4348 = vmatprep.subr.mxu0 0.0
    %4349 = vmatpush1.msra.mxu0 0.0
    %4350 = vmatprep.subr.mxu0 0.0
    %4351 = vmatpush1.msra.mxu0 0.0
    %4352 = vmatprep.subr.mxu0 0.0
    %4353 = vmatpush1.msra.mxu0 0.0
    %4354 = vmatprep.subr.mxu0 0.0
    %4355 = vmatpush1.msra.mxu0 0.0
    %4356 = vmatprep.subr.mxu0 0.0
    %4357 = vmatpush1.msra.mxu0 0.0
    %4358 = vmatprep.mubr.f32.mxu0 0.0
    %v4359 = vand.u32 %v1023, 4294901760
    %v4360 = vsub.f32 %v1023, %v4359
    %v4361 = vand.u32 %v4360, 4294901760
    %v4362 = vsub.f32 %v4360, %v4361
    %v4363 = vand.u32 %v4362, 4294901760
    %4364 = vmatmul.mubr.f32.gmra.mrb[0].mxu0 %v4363
    %v4365 = vpop.f32.mrb[0].mxu0
    %v4366 = vadd.f32 0.0, %v4365
    %v4367 = vpop.f32.mrb[0].mxu0
    %4368 = vmatprep.mubr.f32.mxu0 0.0
    %v4369 = vand.u32 %v1026, 4294901760
    %v4370 = vsub.f32 %v1026, %v4369
    %v4371 = vand.u32 %v4370, 4294901760
    %v4372 = vsub.f32 %v4370, %v4371
    %v4373 = vand.u32 %v4372, 4294901760
    %4374 = vmatmul.mubr.f32.gmra.mrb[0].mxu0 %v4373
    %v4375 = vpop.f32.mrb[0].mxu0
    %v4376 = vadd.f32 0.0, %v4375
    %v4377 = vpop.f32.mrb[0].mxu0
    %4378 = vmatprep.mubr.f32.mxu0 0.0
    %v4379 = vand.u32 %v1029, 4294901760
    %v4380 = vsub.f32 %v1029, %v4379
    %v4381 = vand.u32 %v4380, 4294901760
    %v4382 = vsub.f32 %v4380, %v4381
    %v4383 = vand.u32 %v4382, 4294901760
    %4384 = vmatmul.mubr.f32.gmra.mrb[0].mxu0 %v4383
    %v4385 = vpop.f32.mrb[0].mxu0
    %v4386 = vadd.f32 0.0, %v4385
    %v4387 = vpop.f32.mrb[0].mxu0
    %4388 = vmatprep.mubr.f32.mxu0 0.0
    %v4389 = vand.u32 %v1032, 4294901760
    %v4390 = vsub.f32 %v1032, %v4389
    %v4391 = vand.u32 %v4390, 4294901760
    %v4392 = vsub.f32 %v4390, %v4391
    %v4393 = vand.u32 %v4392, 4294901760
    %4394 = vmatmul.mubr.f32.gmra.mrb[0].mxu0 %v4393
    %v4395 = vpop.f32.mrb[0].mxu0
    %v4396 = vadd.f32 0.0, %v4395
    %v4397 = vpop.f32.mrb[0].mxu0
    %4398 = vmatprep.mubr.f32.mxu0 0.0
    %v4399 = vand.u32 %v1035, 4294901760
    %v4400 = vsub.f32 %v1035, %v4399
    %v4401 = vand.u32 %v4400, 4294901760
    %v4402 = vsub.f32 %v4400, %v4401
    %v4403 = vand.u32 %v4402, 4294901760
    %4404 = vmatmul.mubr.f32.gmra.mrb[0].mxu0 %v4403
    %v4405 = vpop.f32.mrb[0].mxu0
    %v4406 = vadd.f32 0.0, %v4405
    %v4407 = vpop.f32.mrb[0].mxu0
    %4408 = vmatprep.mubr.f32.mxu0 0.0
    %v4409 = vand.u32 %v1038, 4294901760
    %v4410 = vsub.f32 %v1038, %v4409
    %v4411 = vand.u32 %v4410, 4294901760
    %v4412 = vsub.f32 %v4410, %v4411
    %v4413 = vand.u32 %v4412, 4294901760
    %4414 = vmatmul.mubr.f32.gmra.mrb[0].mxu0 %v4413
    %v4415 = vpop.f32.mrb[0].mxu0
    %v4416 = vadd.f32 0.0, %v4415
    %v4417 = vpop.f32.mrb[0].mxu0
    %4418 = vmatprep.mubr.f32.mxu0 0.0
    %v4419 = vand.u32 %v1041, 4294901760
    %v4420 = vsub.f32 %v1041, %v4419
    %v4421 = vand.u32 %v4420, 4294901760
    %v4422 = vsub.f32 %v4420, %v4421
    %v4423 = vand.u32 %v4422, 4294901760
    %4424 = vmatmul.mubr.f32.gmra.mrb[0].mxu0 %v4423
    %v4425 = vpop.f32.mrb[0].mxu0
    %v4426 = vadd.f32 0.0, %v4425
    %v4427 = vpop.f32.mrb[0].mxu0
    %4428 = vmatprep.mubr.f32.mxu0 0.0
    %v4429 = vand.u32 %v1044, 4294901760
    %v4430 = vsub.f32 %v1044, %v4429
    %v4431 = vand.u32 %v4430, 4294901760
    %v4432 = vsub.f32 %v4430, %v4431
    %v4433 = vand.u32 %v4432, 4294901760
    %4434 = vmatmul.mubr.f32.gmra.mrb[0].mxu0 %v4433
    %v4435 = vpop.f32.mrb[0].mxu0
    %v4436 = vadd.f32 0.0, %v4435
    %v4437 = vpop.f32.mrb[0].mxu0
    %4438 = vdwg.mxu0
    %4439 = vmatprep.subr.mxu0 0.0
    %v4440 = vand.u32 %v4278, 4294901760
    %v4441 = vsub.f32 %v4278, %v4440
    %v4442 = vand.u32 %v4441, 4294901760
    %v4443 = vsub.f32 %v4441, %v4442
    %v4444 = vand.u32 %v4443, 4294901760
    %4445 = vmatpush1.msra.mxu0 %v4444
    %4446 = vmatprep.subr.mxu0 0.0
    %v4447 = vand.u32 %v4279, 4294901760
    %v4448 = vsub.f32 %v4279, %v4447
    %v4449 = vand.u32 %v4448, 4294901760
    %v4450 = vsub.f32 %v4448, %v4449
    %v4451 = vand.u32 %v4450, 4294901760
    %4452 = vmatpush1.msra.mxu0 %v4451
    %4453 = vmatprep.subr.mxu0 0.0
    %v4454 = vand.u32 %v4280, 4294901760
    %v4455 = vsub.f32 %v4280, %v4454
    %v4456 = vand.u32 %v4455, 4294901760
    %v4457 = vsub.f32 %v4455, %v4456
    %v4458 = vand.u32 %v4457, 4294901760
    %4459 = vmatpush1.msra.mxu0 %v4458
    %4460 = vmatprep.subr.mxu0 0.0
    %v4461 = vand.u32 %v4281, 4294901760
    %v4462 = vsub.f32 %v4281, %v4461
    %v4463 = vand.u32 %v4462, 4294901760
    %v4464 = vsub.f32 %v4462, %v4463
    %v4465 = vand.u32 %v4464, 4294901760
    %4466 = vmatpush1.msra.mxu0 %v4465
    %4467 = vmatprep.subr.mxu0 0.0
    %v4468 = vand.u32 %v4282, 4294901760
    %v4469 = vsub.f32 %v4282, %v4468
    %v4470 = vand.u32 %v4469, 4294901760
    %v4471 = vsub.f32 %v4469, %v4470
    %v4472 = vand.u32 %v4471, 4294901760
    %4473 = vmatpush1.msra.mxu0 %v4472
    %4474 = vmatprep.subr.mxu0 0.0
    %v4475 = vand.u32 %v4283, 4294901760
    %v4476 = vsub.f32 %v4283, %v4475
    %v4477 = vand.u32 %v4476, 4294901760
    %v4478 = vsub.f32 %v4476, %v4477
    %v4479 = vand.u32 %v4478, 4294901760
    %4480 = vmatpush1.msra.mxu0 %v4479
    %4481 = vmatprep.subr.mxu0 0.0
    %v4482 = vand.u32 %v4284, 4294901760
    %v4483 = vsub.f32 %v4284, %v4482
    %v4484 = vand.u32 %v4483, 4294901760
    %v4485 = vsub.f32 %v4483, %v4484
    %v4486 = vand.u32 %v4485, 4294901760
    %4487 = vmatpush1.msra.mxu0 %v4486
    %4488 = vmatprep.subr.mxu0 0.0
    %v4489 = vand.u32 %v4285, 4294901760
    %v4490 = vsub.f32 %v4285, %v4489
    %v4491 = vand.u32 %v4490, 4294901760
    %v4492 = vsub.f32 %v4490, %v4491
    %v4493 = vand.u32 %v4492, 4294901760
    %4494 = vmatpush1.msra.mxu0 %v4493
    %4495 = vmatprep.subr.mxu0 0.0
    %4496 = vmatpush1.msra.mxu0 0.0
    %4497 = vmatprep.subr.mxu0 0.0
    %4498 = vmatpush1.msra.mxu0 0.0
    %4499 = vmatprep.subr.mxu0 0.0
    %4500 = vmatpush1.msra.mxu0 0.0
    %4501 = vmatprep.subr.mxu0 0.0
    %4502 = vmatpush1.msra.mxu0 0.0
    %4503 = vmatprep.subr.mxu0 0.0
    %4504 = vmatpush1.msra.mxu0 0.0
    %4505 = vmatprep.subr.mxu0 0.0
    %4506 = vmatpush1.msra.mxu0 0.0
    %4507 = vmatprep.subr.mxu0 0.0
    %4508 = vmatpush1.msra.mxu0 0.0
    %4509 = vmatprep.subr.mxu0 0.0
    %4510 = vmatpush1.msra.mxu0 0.0
    %4511 = vmatprep.subr.mxu0 0.0
    %4512 = vmatpush1.msra.mxu0 0.0
    %4513 = vmatprep.subr.mxu0 0.0
    %4514 = vmatpush1.msra.mxu0 0.0
    %4515 = vmatprep.subr.mxu0 0.0
    %4516 = vmatpush1.msra.mxu0 0.0
    %4517 = vmatprep.subr.mxu0 0.0
    %4518 = vmatpush1.msra.mxu0 0.0
    %4519 = vmatprep.subr.mxu0 0.0
    %4520 = vmatpush1.msra.mxu0 0.0
    %4521 = vmatprep.subr.mxu0 0.0
    %4522 = vmatpush1.msra.mxu0 0.0
    %4523 = vmatprep.subr.mxu0 0.0
    %4524 = vmatpush1.msra.mxu0 0.0
    %4525 = vmatprep.subr.mxu0 0.0
    %4526 = vmatpush1.msra.mxu0 0.0
    %4527 = vmatprep.subr.mxu0 0.0
    %4528 = vmatpush1.msra.mxu0 0.0
    %4529 = vmatprep.subr.mxu0 0.0
    %4530 = vmatpush1.msra.mxu0 0.0
    %4531 = vmatprep.subr.mxu0 0.0
    %4532 = vmatpush1.msra.mxu0 0.0
    %4533 = vmatprep.subr.mxu0 0.0
    %4534 = vmatpush1.msra.mxu0 0.0
    %4535 = vmatprep.subr.mxu0 0.0
    %4536 = vmatpush1.msra.mxu0 0.0
    %4537 = vmatprep.subr.mxu0 0.0
    %4538 = vmatpush1.msra.mxu0 0.0
    %4539 = vmatprep.subr.mxu0 0.0
    %4540 = vmatpush1.msra.mxu0 0.0
    %4541 = vmatprep.subr.mxu0 0.0
    %4542 = vmatpush1.msra.mxu0 0.0
    %4543 = vmatprep.mubr.f32.mxu0 0.0
    %v4544 = vand.u32 %v1023, 4294901760
    %4545 = vmatmul.mubr.f32.gmra.mrb[0].mxu0 %v4544
    %v4546 = vpop.f32.mrb[0].mxu0
    %v4547 = vadd.f32 %v4366, %v4546
    %v4548 = vpop.f32.mrb[0].mxu0
    %4549 = vmatprep.mubr.f32.mxu0 0.0
    %v4550 = vand.u32 %v1026, 4294901760
    %4551 = vmatmul.mubr.f32.gmra.mrb[0].mxu0 %v4550
    %v4552 = vpop.f32.mrb[0].mxu0
    %v4553 = vadd.f32 %v4376, %v4552
    %v4554 = vpop.f32.mrb[0].mxu0
    %4555 = vmatprep.mubr.f32.mxu0 0.0
    %v4556 = vand.u32 %v1029, 4294901760
    %4557 = vmatmul.mubr.f32.gmra.mrb[0].mxu0 %v4556
    %v4558 = vpop.f32.mrb[0].mxu0
    %v4559 = vadd.f32 %v4386, %v4558
    %v4560 = vpop.f32.mrb[0].mxu0
    %4561 = vmatprep.mubr.f32.mxu0 0.0
    %v4562 = vand.u32 %v1032, 4294901760
    %4563 = vmatmul.mubr.f32.gmra.mrb[0].mxu0 %v4562
    %v4564 = vpop.f32.mrb[0].mxu0
    %v4565 = vadd.f32 %v4396, %v4564
    %v4566 = vpop.f32.mrb[0].mxu0
    %4567 = vmatprep.mubr.f32.mxu0 0.0
    %v4568 = vand.u32 %v1035, 4294901760
    %4569 = vmatmul.mubr.f32.gmra.mrb[0].mxu0 %v4568
    %v4570 = vpop.f32.mrb[0].mxu0
    %v4571 = vadd.f32 %v4406, %v4570
    %v4572 = vpop.f32.mrb[0].mxu0
    %4573 = vmatprep.mubr.f32.mxu0 0.0
    %v4574 = vand.u32 %v1038, 4294901760
    %4575 = vmatmul.mubr.f32.gmra.mrb[0].mxu0 %v4574
    %v4576 = vpop.f32.mrb[0].mxu0
    %v4577 = vadd.f32 %v4416, %v4576
    %v4578 = vpop.f32.mrb[0].mxu0
    %4579 = vmatprep.mubr.f32.mxu0 0.0
    %v4580 = vand.u32 %v1041, 4294901760
    %4581 = vmatmul.mubr.f32.gmra.mrb[0].mxu0 %v4580
    %v4582 = vpop.f32.mrb[0].mxu0
    %v4583 = vadd.f32 %v4426, %v4582
    %v4584 = vpop.f32.mrb[0].mxu0
    %4585 = vmatprep.mubr.f32.mxu0 0.0
    %v4586 = vand.u32 %v1044, 4294901760
    %4587 = vmatmul.mubr.f32.gmra.mrb[0].mxu0 %v4586
    %v4588 = vpop.f32.mrb[0].mxu0
    %v4589 = vadd.f32 %v4436, %v4588
    %v4590 = vpop.f32.mrb[0].mxu0
    %4591 = vdwg.mxu0
    %4592 = vmatprep.subr.mxu0 0.0
    %v4593 = vand.u32 %v4278, 4294901760
    %v4594 = vsub.f32 %v4278, %v4593
    %4595 = vmatpush1.msra.mxu0 %v4594
    %4596 = vmatprep.subr.mxu0 0.0
    %v4597 = vand.u32 %v4279, 4294901760
    %v4598 = vsub.f32 %v4279, %v4597
    %4599 = vmatpush1.msra.mxu0 %v4598
    %4600 = vmatprep.subr.mxu0 0.0
    %v4601 = vand.u32 %v4280, 4294901760
    %v4602 = vsub.f32 %v4280, %v4601
    %4603 = vmatpush1.msra.mxu0 %v4602
    %4604 = vmatprep.subr.mxu0 0.0
    %v4605 = vand.u32 %v4281, 4294901760
    %v4606 = vsub.f32 %v4281, %v4605
    %4607 = vmatpush1.msra.mxu0 %v4606
    %4608 = vmatprep.subr.mxu0 0.0
    %v4609 = vand.u32 %v4282, 4294901760
    %v4610 = vsub.f32 %v4282, %v4609
    %4611 = vmatpush1.msra.mxu0 %v4610
    %4612 = vmatprep.subr.mxu0 0.0
    %v4613 = vand.u32 %v4283, 4294901760
    %v4614 = vsub.f32 %v4283, %v4613
    %4615 = vmatpush1.msra.mxu0 %v4614
    %4616 = vmatprep.subr.mxu0 0.0
    %v4617 = vand.u32 %v4284, 4294901760
    %v4618 = vsub.f32 %v4284, %v4617
    %4619 = vmatpush1.msra.mxu0 %v4618
    %4620 = vmatprep.subr.mxu0 0.0
    %v4621 = vand.u32 %v4285, 4294901760
    %v4622 = vsub.f32 %v4285, %v4621
    %4623 = vmatpush1.msra.mxu0 %v4622
    %4624 = vmatprep.subr.mxu0 0.0
    %4625 = vmatpush1.msra.mxu0 0.0
    %4626 = vmatprep.subr.mxu0 0.0
    %4627 = vmatpush1.msra.mxu0 0.0
    %4628 = vmatprep.subr.mxu0 0.0
    %4629 = vmatpush1.msra.mxu0 0.0
    %4630 = vmatprep.subr.mxu0 0.0
    %4631 = vmatpush1.msra.mxu0 0.0
    %4632 = vmatprep.subr.mxu0 0.0
    %4633 = vmatpush1.msra.mxu0 0.0
    %4634 = vmatprep.subr.mxu0 0.0
    %4635 = vmatpush1.msra.mxu0 0.0
    %4636 = vmatprep.subr.mxu0 0.0
    %4637 = vmatpush1.msra.mxu0 0.0
    %4638 = vmatprep.subr.mxu0 0.0
    %4639 = vmatpush1.msra.mxu0 0.0
    %4640 = vmatprep.subr.mxu0 0.0
    %4641 = vmatpush1.msra.mxu0 0.0
    %4642 = vmatprep.subr.mxu0 0.0
    %4643 = vmatpush1.msra.mxu0 0.0
    %4644 = vmatprep.subr.mxu0 0.0
    %4645 = vmatpush1.msra.mxu0 0.0
    %4646 = vmatprep.subr.mxu0 0.0
    %4647 = vmatpush1.msra.mxu0 0.0
    %4648 = vmatprep.subr.mxu0 0.0
    %4649 = vmatpush1.msra.mxu0 0.0
    %4650 = vmatprep.subr.mxu0 0.0
    %4651 = vmatpush1.msra.mxu0 0.0
    %4652 = vmatprep.subr.mxu0 0.0
    %4653 = vmatpush1.msra.mxu0 0.0
    %4654 = vmatprep.subr.mxu0 0.0
    %4655 = vmatpush1.msra.mxu0 0.0
    %4656 = vmatprep.subr.mxu0 0.0
    %4657 = vmatpush1.msra.mxu0 0.0
    %4658 = vmatprep.subr.mxu0 0.0
    %4659 = vmatpush1.msra.mxu0 0.0
    %4660 = vmatprep.subr.mxu0 0.0
    %4661 = vmatpush1.msra.mxu0 0.0
    %4662 = vmatprep.subr.mxu0 0.0
    %4663 = vmatpush1.msra.mxu0 0.0
    %4664 = vmatprep.subr.mxu0 0.0
    %4665 = vmatpush1.msra.mxu0 0.0
    %4666 = vmatprep.subr.mxu0 0.0
    %4667 = vmatpush1.msra.mxu0 0.0
    %4668 = vmatprep.subr.mxu0 0.0
    %4669 = vmatpush1.msra.mxu0 0.0
    %4670 = vmatprep.subr.mxu0 0.0
    %4671 = vmatpush1.msra.mxu0 0.0
    %4672 = vmatprep.mubr.f32.mxu0 0.0
    %v4673 = vand.u32 %v1023, 4294901760
    %v4674 = vsub.f32 %v1023, %v4673
    %4675 = vmatmul.mubr.f32.gmra.mrb[0].mxu0 %v4674
    %v4676 = vpop.f32.mrb[0].mxu0
    %v4677 = vadd.f32 %v4547, %v4676
    %v4678 = vpop.f32.mrb[0].mxu0
    %4679 = vmatprep.mubr.f32.mxu0 0.0
    %v4680 = vand.u32 %v1026, 4294901760
    %v4681 = vsub.f32 %v1026, %v4680
    %4682 = vmatmul.mubr.f32.gmra.mrb[0].mxu0 %v4681
    %v4683 = vpop.f32.mrb[0].mxu0
    %v4684 = vadd.f32 %v4553, %v4683
    %v4685 = vpop.f32.mrb[0].mxu0
    %4686 = vmatprep.mubr.f32.mxu0 0.0
    %v4687 = vand.u32 %v1029, 4294901760
    %v4688 = vsub.f32 %v1029, %v4687
    %4689 = vmatmul.mubr.f32.gmra.mrb[0].mxu0 %v4688
    %v4690 = vpop.f32.mrb[0].mxu0
    %v4691 = vadd.f32 %v4559, %v4690
    %v4692 = vpop.f32.mrb[0].mxu0
    %4693 = vmatprep.mubr.f32.mxu0 0.0
    %v4694 = vand.u32 %v1032, 4294901760
    %v4695 = vsub.f32 %v1032, %v4694
    %4696 = vmatmul.mubr.f32.gmra.mrb[0].mxu0 %v4695
    %v4697 = vpop.f32.mrb[0].mxu0
    %v4698 = vadd.f32 %v4565, %v4697
    %v4699 = vpop.f32.mrb[0].mxu0
    %4700 = vmatprep.mubr.f32.mxu0 0.0
    %v4701 = vand.u32 %v1035, 4294901760
    %v4702 = vsub.f32 %v1035, %v4701
    %4703 = vmatmul.mubr.f32.gmra.mrb[0].mxu0 %v4702
    %v4704 = vpop.f32.mrb[0].mxu0
    %v4705 = vadd.f32 %v4571, %v4704
    %v4706 = vpop.f32.mrb[0].mxu0
    %4707 = vmatprep.mubr.f32.mxu0 0.0
    %v4708 = vand.u32 %v1038, 4294901760
    %v4709 = vsub.f32 %v1038, %v4708
    %4710 = vmatmul.mubr.f32.gmra.mrb[0].mxu0 %v4709
    %v4711 = vpop.f32.mrb[0].mxu0
    %v4712 = vadd.f32 %v4577, %v4711
    %v4713 = vpop.f32.mrb[0].mxu0
    %4714 = vmatprep.mubr.f32.mxu0 0.0
    %v4715 = vand.u32 %v1041, 4294901760
    %v4716 = vsub.f32 %v1041, %v4715
    %4717 = vmatmul.mubr.f32.gmra.mrb[0].mxu0 %v4716
    %v4718 = vpop.f32.mrb[0].mxu0
    %v4719 = vadd.f32 %v4583, %v4718
    %v4720 = vpop.f32.mrb[0].mxu0
    %4721 = vmatprep.mubr.f32.mxu0 0.0
    %v4722 = vand.u32 %v1044, 4294901760
    %v4723 = vsub.f32 %v1044, %v4722
    %4724 = vmatmul.mubr.f32.gmra.mrb[0].mxu0 %v4723
    %v4725 = vpop.f32.mrb[0].mxu0
    %v4726 = vadd.f32 %v4589, %v4725
    %v4727 = vpop.f32.mrb[0].mxu0
    %4728 = vdwg.mxu0
    %4729 = vmatprep.subr.mxu0 0.0
    %v4730 = vand.u32 %v4278, 4294901760
    %4731 = vmatpush1.msra.mxu0 %v4730
    %4732 = vmatprep.subr.mxu0 0.0
    %v4733 = vand.u32 %v4279, 4294901760
    %4734 = vmatpush1.msra.mxu0 %v4733
    %4735 = vmatprep.subr.mxu0 0.0
    %v4736 = vand.u32 %v4280, 4294901760
    %4737 = vmatpush1.msra.mxu0 %v4736
    %4738 = vmatprep.subr.mxu0 0.0
    %v4739 = vand.u32 %v4281, 4294901760
    %4740 = vmatpush1.msra.mxu0 %v4739
    %4741 = vmatprep.subr.mxu0 0.0
    %v4742 = vand.u32 %v4282, 4294901760
    %4743 = vmatpush1.msra.mxu0 %v4742
    %4744 = vmatprep.subr.mxu0 0.0
    %v4745 = vand.u32 %v4283, 4294901760
    %4746 = vmatpush1.msra.mxu0 %v4745
    %4747 = vmatprep.subr.mxu0 0.0
    %v4748 = vand.u32 %v4284, 4294901760
    %4749 = vmatpush1.msra.mxu0 %v4748
    %4750 = vmatprep.subr.mxu0 0.0
    %v4751 = vand.u32 %v4285, 4294901760
    %4752 = vmatpush1.msra.mxu0 %v4751
    %4753 = vmatprep.subr.mxu0 0.0
    %4754 = vmatpush1.msra.mxu0 0.0
    %4755 = vmatprep.subr.mxu0 0.0
    %4756 = vmatpush1.msra.mxu0 0.0
    %4757 = vmatprep.subr.mxu0 0.0
    %4758 = vmatpush1.msra.mxu0 0.0
    %4759 = vmatprep.subr.mxu0 0.0
    %4760 = vmatpush1.msra.mxu0 0.0
    %4761 = vmatprep.subr.mxu0 0.0
    %4762 = vmatpush1.msra.mxu0 0.0
    %4763 = vmatprep.subr.mxu0 0.0
    %4764 = vmatpush1.msra.mxu0 0.0
    %4765 = vmatprep.subr.mxu0 0.0
    %4766 = vmatpush1.msra.mxu0 0.0
    %4767 = vmatprep.subr.mxu0 0.0
    %4768 = vmatpush1.msra.mxu0 0.0
    %4769 = vmatprep.subr.mxu0 0.0
    %4770 = vmatpush1.msra.mxu0 0.0
    %4771 = vmatprep.subr.mxu0 0.0
    %4772 = vmatpush1.msra.mxu0 0.0
    %4773 = vmatprep.subr.mxu0 0.0
    %4774 = vmatpush1.msra.mxu0 0.0
    %4775 = vmatprep.subr.mxu0 0.0
    %4776 = vmatpush1.msra.mxu0 0.0
    %4777 = vmatprep.subr.mxu0 0.0
    %4778 = vmatpush1.msra.mxu0 0.0
    %4779 = vmatprep.subr.mxu0 0.0
    %4780 = vmatpush1.msra.mxu0 0.0
    %4781 = vmatprep.subr.mxu0 0.0
    %4782 = vmatpush1.msra.mxu0 0.0
    %4783 = vmatprep.subr.mxu0 0.0
    %4784 = vmatpush1.msra.mxu0 0.0
    %4785 = vmatprep.subr.mxu0 0.0
    %4786 = vmatpush1.msra.mxu0 0.0
    %4787 = vmatprep.subr.mxu0 0.0
    %4788 = vmatpush1.msra.mxu0 0.0
    %4789 = vmatprep.subr.mxu0 0.0
    %4790 = vmatpush1.msra.mxu0 0.0
    %4791 = vmatprep.subr.mxu0 0.0
    %4792 = vmatpush1.msra.mxu0 0.0
    %4793 = vmatprep.subr.mxu0 0.0
    %4794 = vmatpush1.msra.mxu0 0.0
    %4795 = vmatprep.subr.mxu0 0.0
    %4796 = vmatpush1.msra.mxu0 0.0
    %4797 = vmatprep.subr.mxu0 0.0
    %4798 = vmatpush1.msra.mxu0 0.0
    %4799 = vmatprep.subr.mxu0 0.0
    %4800 = vmatpush1.msra.mxu0 0.0
    %4801 = vmatprep.mubr.f32.mxu0 0.0
    %v4802 = vand.u32 %v1023, 4294901760
    %v4803 = vsub.f32 %v1023, %v4802
    %v4804 = vand.u32 %v4803, 4294901760
    %4805 = vmatmul.mubr.f32.gmra.mrb[0].mxu0 %v4804
    %v4806 = vpop.f32.mrb[0].mxu0
    %v4807 = vadd.f32 %v4677, %v4806
    %v4808 = vpop.f32.mrb[0].mxu0
    %4809 = vmatprep.mubr.f32.mxu0 0.0
    %v4810 = vand.u32 %v1026, 4294901760
    %v4811 = vsub.f32 %v1026, %v4810
    %v4812 = vand.u32 %v4811, 4294901760
    %4813 = vmatmul.mubr.f32.gmra.mrb[0].mxu0 %v4812
    %v4814 = vpop.f32.mrb[0].mxu0
    %v4815 = vadd.f32 %v4684, %v4814
    %v4816 = vpop.f32.mrb[0].mxu0
    %4817 = vmatprep.mubr.f32.mxu0 0.0
    %v4818 = vand.u32 %v1029, 4294901760
    %v4819 = vsub.f32 %v1029, %v4818
    %v4820 = vand.u32 %v4819, 4294901760
    %4821 = vmatmul.mubr.f32.gmra.mrb[0].mxu0 %v4820
    %v4822 = vpop.f32.mrb[0].mxu0
    %v4823 = vadd.f32 %v4691, %v4822
    %v4824 = vpop.f32.mrb[0].mxu0
    %4825 = vmatprep.mubr.f32.mxu0 0.0
    %v4826 = vand.u32 %v1032, 4294901760
    %v4827 = vsub.f32 %v1032, %v4826
    %v4828 = vand.u32 %v4827, 4294901760
    %4829 = vmatmul.mubr.f32.gmra.mrb[0].mxu0 %v4828
    %v4830 = vpop.f32.mrb[0].mxu0
    %v4831 = vadd.f32 %v4698, %v4830
    %v4832 = vpop.f32.mrb[0].mxu0
    %4833 = vmatprep.mubr.f32.mxu0 0.0
    %v4834 = vand.u32 %v1035, 4294901760
    %v4835 = vsub.f32 %v1035, %v4834
    %v4836 = vand.u32 %v4835, 4294901760
    %4837 = vmatmul.mubr.f32.gmra.mrb[0].mxu0 %v4836
    %v4838 = vpop.f32.mrb[0].mxu0
    %v4839 = vadd.f32 %v4705, %v4838
    %v4840 = vpop.f32.mrb[0].mxu0
    %4841 = vmatprep.mubr.f32.mxu0 0.0
    %v4842 = vand.u32 %v1038, 4294901760
    %v4843 = vsub.f32 %v1038, %v4842
    %v4844 = vand.u32 %v4843, 4294901760
    %4845 = vmatmul.mubr.f32.gmra.mrb[0].mxu0 %v4844
    %v4846 = vpop.f32.mrb[0].mxu0
    %v4847 = vadd.f32 %v4712, %v4846
    %v4848 = vpop.f32.mrb[0].mxu0
    %4849 = vmatprep.mubr.f32.mxu0 0.0
    %v4850 = vand.u32 %v1041, 4294901760
    %v4851 = vsub.f32 %v1041, %v4850
    %v4852 = vand.u32 %v4851, 4294901760
    %4853 = vmatmul.mubr.f32.gmra.mrb[0].mxu0 %v4852
    %v4854 = vpop.f32.mrb[0].mxu0
    %v4855 = vadd.f32 %v4719, %v4854
    %v4856 = vpop.f32.mrb[0].mxu0
    %4857 = vmatprep.mubr.f32.mxu0 0.0
    %v4858 = vand.u32 %v1044, 4294901760
    %v4859 = vsub.f32 %v1044, %v4858
    %v4860 = vand.u32 %v4859, 4294901760
    %4861 = vmatmul.mubr.f32.gmra.mrb[0].mxu0 %v4860
    %v4862 = vpop.f32.mrb[0].mxu0
    %v4863 = vadd.f32 %v4726, %v4862
    %v4864 = vpop.f32.mrb[0].mxu0
    %4865 = vdwg.mxu0
    %4866 = vmatprep.subr.mxu0 0.0
    %v4867 = vand.u32 %v4278, 4294901760
    %v4868 = vsub.f32 %v4278, %v4867
    %v4869 = vand.u32 %v4868, 4294901760
    %4870 = vmatpush1.msra.mxu0 %v4869
    %4871 = vmatprep.subr.mxu0 0.0
    %v4872 = vand.u32 %v4279, 4294901760
    %v4873 = vsub.f32 %v4279, %v4872
    %v4874 = vand.u32 %v4873, 4294901760
    %4875 = vmatpush1.msra.mxu0 %v4874
    %4876 = vmatprep.subr.mxu0 0.0
    %v4877 = vand.u32 %v4280, 4294901760
    %v4878 = vsub.f32 %v4280, %v4877
    %v4879 = vand.u32 %v4878, 4294901760
    %4880 = vmatpush1.msra.mxu0 %v4879
    %4881 = vmatprep.subr.mxu0 0.0
    %v4882 = vand.u32 %v4281, 4294901760
    %v4883 = vsub.f32 %v4281, %v4882
    %v4884 = vand.u32 %v4883, 4294901760
    %4885 = vmatpush1.msra.mxu0 %v4884
    %4886 = vmatprep.subr.mxu0 0.0
    %v4887 = vand.u32 %v4282, 4294901760
    %v4888 = vsub.f32 %v4282, %v4887
    %v4889 = vand.u32 %v4888, 4294901760
    %4890 = vmatpush1.msra.mxu0 %v4889
    %4891 = vmatprep.subr.mxu0 0.0
    %v4892 = vand.u32 %v4283, 4294901760
    %v4893 = vsub.f32 %v4283, %v4892
    %v4894 = vand.u32 %v4893, 4294901760
    %4895 = vmatpush1.msra.mxu0 %v4894
    %4896 = vmatprep.subr.mxu0 0.0
    %v4897 = vand.u32 %v4284, 4294901760
    %v4898 = vsub.f32 %v4284, %v4897
    %v4899 = vand.u32 %v4898, 4294901760
    %4900 = vmatpush1.msra.mxu0 %v4899
    %4901 = vmatprep.subr.mxu0 0.0
    %v4902 = vand.u32 %v4285, 4294901760
    %v4903 = vsub.f32 %v4285, %v4902
    %v4904 = vand.u32 %v4903, 4294901760
    %4905 = vmatpush1.msra.mxu0 %v4904
    %4906 = vmatprep.subr.mxu0 0.0
    %4907 = vmatpush1.msra.mxu0 0.0
    %4908 = vmatprep.subr.mxu0 0.0
    %4909 = vmatpush1.msra.mxu0 0.0
    %4910 = vmatprep.subr.mxu0 0.0
    %4911 = vmatpush1.msra.mxu0 0.0
    %4912 = vmatprep.subr.mxu0 0.0
    %4913 = vmatpush1.msra.mxu0 0.0
    %4914 = vmatprep.subr.mxu0 0.0
    %4915 = vmatpush1.msra.mxu0 0.0
    %4916 = vmatprep.subr.mxu0 0.0
    %4917 = vmatpush1.msra.mxu0 0.0
    %4918 = vmatprep.subr.mxu0 0.0
    %4919 = vmatpush1.msra.mxu0 0.0
    %4920 = vmatprep.subr.mxu0 0.0
    %4921 = vmatpush1.msra.mxu0 0.0
    %4922 = vmatprep.subr.mxu0 0.0
    %4923 = vmatpush1.msra.mxu0 0.0
    %4924 = vmatprep.subr.mxu0 0.0
    %4925 = vmatpush1.msra.mxu0 0.0
    %4926 = vmatprep.subr.mxu0 0.0
    %4927 = vmatpush1.msra.mxu0 0.0
    %4928 = vmatprep.subr.mxu0 0.0
    %4929 = vmatpush1.msra.mxu0 0.0
    %4930 = vmatprep.subr.mxu0 0.0
    %4931 = vmatpush1.msra.mxu0 0.0
    %4932 = vmatprep.subr.mxu0 0.0
    %4933 = vmatpush1.msra.mxu0 0.0
    %4934 = vmatprep.subr.mxu0 0.0
    %4935 = vmatpush1.msra.mxu0 0.0
    %4936 = vmatprep.subr.mxu0 0.0
    %4937 = vmatpush1.msra.mxu0 0.0
    %4938 = vmatprep.subr.mxu0 0.0
    %4939 = vmatpush1.msra.mxu0 0.0
    %4940 = vmatprep.subr.mxu0 0.0
    %4941 = vmatpush1.msra.mxu0 0.0
    %4942 = vmatprep.subr.mxu0 0.0
    %4943 = vmatpush1.msra.mxu0 0.0
    %4944 = vmatprep.subr.mxu0 0.0
    %4945 = vmatpush1.msra.mxu0 0.0
    %4946 = vmatprep.subr.mxu0 0.0
    %4947 = vmatpush1.msra.mxu0 0.0
    %4948 = vmatprep.subr.mxu0 0.0
    %4949 = vmatpush1.msra.mxu0 0.0
    %4950 = vmatprep.subr.mxu0 0.0
    %4951 = vmatpush1.msra.mxu0 0.0
    %4952 = vmatprep.subr.mxu0 0.0
    %4953 = vmatpush1.msra.mxu0 0.0
    %4954 = vmatprep.mubr.f32.mxu0 0.0
    %v4955 = vand.u32 %v1023, 4294901760
    %4956 = vmatmul.mubr.f32.gmra.mrb[0].mxu0 %v4955
    %v4957 = vpop.f32.mrb[0].mxu0
    %v4958 = vadd.f32 %v4807, %v4957
    %v4959 = vpop.f32.mrb[0].mxu0
    %4960 = vmatprep.mubr.f32.mxu0 0.0
    %v4961 = vand.u32 %v1026, 4294901760
    %4962 = vmatmul.mubr.f32.gmra.mrb[0].mxu0 %v4961
    %v4963 = vpop.f32.mrb[0].mxu0
    %v4964 = vadd.f32 %v4815, %v4963
    %v4965 = vpop.f32.mrb[0].mxu0
    %4966 = vmatprep.mubr.f32.mxu0 0.0
    %v4967 = vand.u32 %v1029, 4294901760
    %4968 = vmatmul.mubr.f32.gmra.mrb[0].mxu0 %v4967
    %v4969 = vpop.f32.mrb[0].mxu0
    %v4970 = vadd.f32 %v4823, %v4969
    %v4971 = vpop.f32.mrb[0].mxu0
    %4972 = vmatprep.mubr.f32.mxu0 0.0
    %v4973 = vand.u32 %v1032, 4294901760
    %4974 = vmatmul.mubr.f32.gmra.mrb[0].mxu0 %v4973
    %v4975 = vpop.f32.mrb[0].mxu0
    %v4976 = vadd.f32 %v4831, %v4975
    %v4977 = vpop.f32.mrb[0].mxu0
    %4978 = vmatprep.mubr.f32.mxu0 0.0
    %v4979 = vand.u32 %v1035, 4294901760
    %4980 = vmatmul.mubr.f32.gmra.mrb[0].mxu0 %v4979
    %v4981 = vpop.f32.mrb[0].mxu0
    %v4982 = vadd.f32 %v4839, %v4981
    %v4983 = vpop.f32.mrb[0].mxu0
    %4984 = vmatprep.mubr.f32.mxu0 0.0
    %v4985 = vand.u32 %v1038, 4294901760
    %4986 = vmatmul.mubr.f32.gmra.mrb[0].mxu0 %v4985
    %v4987 = vpop.f32.mrb[0].mxu0
    %v4988 = vadd.f32 %v4847, %v4987
    %v4989 = vpop.f32.mrb[0].mxu0
    %4990 = vmatprep.mubr.f32.mxu0 0.0
    %v4991 = vand.u32 %v1041, 4294901760
    %4992 = vmatmul.mubr.f32.gmra.mrb[0].mxu0 %v4991
    %v4993 = vpop.f32.mrb[0].mxu0
    %v4994 = vadd.f32 %v4855, %v4993
    %v4995 = vpop.f32.mrb[0].mxu0
    %4996 = vmatprep.mubr.f32.mxu0 0.0
    %v4997 = vand.u32 %v1044, 4294901760
    %4998 = vmatmul.mubr.f32.gmra.mrb[0].mxu0 %v4997
    %v4999 = vpop.f32.mrb[0].mxu0
    %v5000 = vadd.f32 %v4863, %v4999
    %v5001 = vpop.f32.mrb[0].mxu0
    %5002 = vdwg.mxu0
    %5003 = vmatprep.subr.mxu0 0.0
    %v5004 = vand.u32 %v4278, 4294901760
    %5005 = vmatpush1.msra.mxu0 %v5004
    %5006 = vmatprep.subr.mxu0 0.0
    %v5007 = vand.u32 %v4279, 4294901760
    %5008 = vmatpush1.msra.mxu0 %v5007
    %5009 = vmatprep.subr.mxu0 0.0
    %v5010 = vand.u32 %v4280, 4294901760
    %5011 = vmatpush1.msra.mxu0 %v5010
    %5012 = vmatprep.subr.mxu0 0.0
    %v5013 = vand.u32 %v4281, 4294901760
    %5014 = vmatpush1.msra.mxu0 %v5013
    %5015 = vmatprep.subr.mxu0 0.0
    %v5016 = vand.u32 %v4282, 4294901760
    %5017 = vmatpush1.msra.mxu0 %v5016
    %5018 = vmatprep.subr.mxu0 0.0
    %v5019 = vand.u32 %v4283, 4294901760
    %5020 = vmatpush1.msra.mxu0 %v5019
    %5021 = vmatprep.subr.mxu0 0.0
    %v5022 = vand.u32 %v4284, 4294901760
    %5023 = vmatpush1.msra.mxu0 %v5022
    %5024 = vmatprep.subr.mxu0 0.0
    %v5025 = vand.u32 %v4285, 4294901760
    %5026 = vmatpush1.msra.mxu0 %v5025
    %5027 = vmatprep.subr.mxu0 0.0
    %5028 = vmatpush1.msra.mxu0 0.0
    %5029 = vmatprep.subr.mxu0 0.0
    %5030 = vmatpush1.msra.mxu0 0.0
    %5031 = vmatprep.subr.mxu0 0.0
    %5032 = vmatpush1.msra.mxu0 0.0
    %5033 = vmatprep.subr.mxu0 0.0
    %5034 = vmatpush1.msra.mxu0 0.0
    %5035 = vmatprep.subr.mxu0 0.0
    %5036 = vmatpush1.msra.mxu0 0.0
    %5037 = vmatprep.subr.mxu0 0.0
    %5038 = vmatpush1.msra.mxu0 0.0
    %5039 = vmatprep.subr.mxu0 0.0
    %5040 = vmatpush1.msra.mxu0 0.0
    %5041 = vmatprep.subr.mxu0 0.0
    %5042 = vmatpush1.msra.mxu0 0.0
    %5043 = vmatprep.subr.mxu0 0.0
    %5044 = vmatpush1.msra.mxu0 0.0
    %5045 = vmatprep.subr.mxu0 0.0
    %5046 = vmatpush1.msra.mxu0 0.0
    %5047 = vmatprep.subr.mxu0 0.0
    %5048 = vmatpush1.msra.mxu0 0.0
    %5049 = vmatprep.subr.mxu0 0.0
    %5050 = vmatpush1.msra.mxu0 0.0
    %5051 = vmatprep.subr.mxu0 0.0
    %5052 = vmatpush1.msra.mxu0 0.0
    %5053 = vmatprep.subr.mxu0 0.0
    %5054 = vmatpush1.msra.mxu0 0.0
    %5055 = vmatprep.subr.mxu0 0.0
    %5056 = vmatpush1.msra.mxu0 0.0
    %5057 = vmatprep.subr.mxu0 0.0
    %5058 = vmatpush1.msra.mxu0 0.0
    %5059 = vmatprep.subr.mxu0 0.0
    %5060 = vmatpush1.msra.mxu0 0.0
    %5061 = vmatprep.subr.mxu0 0.0
    %5062 = vmatpush1.msra.mxu0 0.0
    %5063 = vmatprep.subr.mxu0 0.0
    %5064 = vmatpush1.msra.mxu0 0.0
    %5065 = vmatprep.subr.mxu0 0.0
    %5066 = vmatpush1.msra.mxu0 0.0
    %5067 = vmatprep.subr.mxu0 0.0
    %5068 = vmatpush1.msra.mxu0 0.0
    %5069 = vmatprep.subr.mxu0 0.0
    %5070 = vmatpush1.msra.mxu0 0.0
    %5071 = vmatprep.subr.mxu0 0.0
    %5072 = vmatpush1.msra.mxu0 0.0
    %5073 = vmatprep.subr.mxu0 0.0
    %5074 = vmatpush1.msra.mxu0 0.0
    %5075 = vmatprep.mubr.f32.mxu0 0.0
    %v5076 = vand.u32 %v1023, 4294901760
    %5077 = vmatmul.mubr.f32.gmra.mrb[0].mxu0 %v5076
    %v5078 = vpop.f32.mrb[0].mxu0
    %v5079 = vadd.f32 %v4958, %v5078
    %v5080 = vpop.f32.mrb[0].mxu0
    %5081 = vmatprep.mubr.f32.mxu0 0.0
    %v5082 = vand.u32 %v1026, 4294901760
    %5083 = vmatmul.mubr.f32.gmra.mrb[0].mxu0 %v5082
    %v5084 = vpop.f32.mrb[0].mxu0
    %v5085 = vadd.f32 %v4964, %v5084
    %v5086 = vpop.f32.mrb[0].mxu0
    %5087 = vmatprep.mubr.f32.mxu0 0.0
    %v5088 = vand.u32 %v1029, 4294901760
    %5089 = vmatmul.mubr.f32.gmra.mrb[0].mxu0 %v5088
    %v5090 = vpop.f32.mrb[0].mxu0
    %v5091 = vadd.f32 %v4970, %v5090
    %v5092 = vpop.f32.mrb[0].mxu0
    %5093 = vmatprep.mubr.f32.mxu0 0.0
    %v5094 = vand.u32 %v1032, 4294901760
    %5095 = vmatmul.mubr.f32.gmra.mrb[0].mxu0 %v5094
    %v5096 = vpop.f32.mrb[0].mxu0
    %v5097 = vadd.f32 %v4976, %v5096
    %v5098 = vpop.f32.mrb[0].mxu0
    %5099 = vmatprep.mubr.f32.mxu0 0.0
    %v5100 = vand.u32 %v1035, 4294901760
    %5101 = vmatmul.mubr.f32.gmra.mrb[0].mxu0 %v5100
    %v5102 = vpop.f32.mrb[0].mxu0
    %v5103 = vadd.f32 %v4982, %v5102
    %v5104 = vpop.f32.mrb[0].mxu0
    %5105 = vmatprep.mubr.f32.mxu0 0.0
    %v5106 = vand.u32 %v1038, 4294901760
    %5107 = vmatmul.mubr.f32.gmra.mrb[0].mxu0 %v5106
    %v5108 = vpop.f32.mrb[0].mxu0
    %v5109 = vadd.f32 %v4988, %v5108
    %v5110 = vpop.f32.mrb[0].mxu0
    %5111 = vmatprep.mubr.f32.mxu0 0.0
    %v5112 = vand.u32 %v1041, 4294901760
    %5113 = vmatmul.mubr.f32.gmra.mrb[0].mxu0 %v5112
    %v5114 = vpop.f32.mrb[0].mxu0
    %v5115 = vadd.f32 %v4994, %v5114
    %v5116 = vpop.f32.mrb[0].mxu0
    %5117 = vmatprep.mubr.f32.mxu0 0.0
    %v5118 = vand.u32 %v1044, 4294901760
    %5119 = vmatmul.mubr.f32.gmra.mrb[0].mxu0 %v5118
    %v5120 = vpop.f32.mrb[0].mxu0
    %v5121 = vadd.f32 %v5000, %v5120
    %v5122 = vpop.f32.mrb[0].mxu0
    %5123 = vdwg.mxu0
    %v5124 = vmul.f32 %v3518, %v5079
    %v5125 = vmul.f32 %v3519, %v5085
    %v5126 = vmul.f32 %v3520, %v5091
    %v5127 = vmul.f32 %v3521, %v5097
    %v5128 = vmul.f32 %v3522, %v5103
    %v5129 = vmul.f32 %v3523, %v5109
    %v5130 = vmul.f32 %v3524, %v5115
    %v5131 = vmul.f32 %v3525, %v5121
    %v5132 = vmul.f32 %v3510, %v4233
    %v5133 = vmul.f32 %v3511, %v4239
    %v5134 = vmul.f32 %v3512, %v4245
    %v5135 = vmul.f32 %v3513, %v4251
    %v5136 = vmul.f32 %v3514, %v4257
    %v5137 = vmul.f32 %v3515, %v4263
    %v5138 = vmul.f32 %v3516, %v4269
    %v5139 = vmul.f32 %v3517, %v4275
    %5140 = vmatprep.subr.mxu0 0.0
    %v5141 = vand.u32 %v5124, 4294901760
    %5142 = vmatpush1.msra.mxu0 %v5141
    %5143 = vmatprep.subr.mxu0 0.0
    %v5144 = vand.u32 %v5125, 4294901760
    %5145 = vmatpush1.msra.mxu0 %v5144
    %5146 = vmatprep.subr.mxu0 0.0
    %v5147 = vand.u32 %v5126, 4294901760
    %5148 = vmatpush1.msra.mxu0 %v5147
    %5149 = vmatprep.subr.mxu0 0.0
    %v5150 = vand.u32 %v5127, 4294901760
    %5151 = vmatpush1.msra.mxu0 %v5150
    %5152 = vmatprep.subr.mxu0 0.0
    %v5153 = vand.u32 %v5128, 4294901760
    %5154 = vmatpush1.msra.mxu0 %v5153
    %5155 = vmatprep.subr.mxu0 0.0
    %v5156 = vand.u32 %v5129, 4294901760
    %5157 = vmatpush1.msra.mxu0 %v5156
    %5158 = vmatprep.subr.mxu0 0.0
    %v5159 = vand.u32 %v5130, 4294901760
    %5160 = vmatpush1.msra.mxu0 %v5159
    %5161 = vmatprep.subr.mxu0 0.0
    %v5162 = vand.u32 %v5131, 4294901760
    %5163 = vmatpush1.msra.mxu0 %v5162
    %5164 = vmatprep.subr.mxu0 0.0
    %5165 = vmatpush1.msra.mxu0 0.0
    %5166 = vmatprep.subr.mxu0 0.0
    %5167 = vmatpush1.msra.mxu0 0.0
    %5168 = vmatprep.subr.mxu0 0.0
    %5169 = vmatpush1.msra.mxu0 0.0
    %5170 = vmatprep.subr.mxu0 0.0
    %5171 = vmatpush1.msra.mxu0 0.0
    %5172 = vmatprep.subr.mxu0 0.0
    %5173 = vmatpush1.msra.mxu0 0.0
    %5174 = vmatprep.subr.mxu0 0.0
    %5175 = vmatpush1.msra.mxu0 0.0
    %5176 = vmatprep.subr.mxu0 0.0
    %5177 = vmatpush1.msra.mxu0 0.0
    %5178 = vmatprep.subr.mxu0 0.0
    %5179 = vmatpush1.msra.mxu0 0.0
    %5180 = vmatprep.subr.mxu0 0.0
    %5181 = vmatpush1.msra.mxu0 0.0
    %5182 = vmatprep.subr.mxu0 0.0
    %5183 = vmatpush1.msra.mxu0 0.0
    %5184 = vmatprep.subr.mxu0 0.0
    %5185 = vmatpush1.msra.mxu0 0.0
    %5186 = vmatprep.subr.mxu0 0.0
    %5187 = vmatpush1.msra.mxu0 0.0
    %5188 = vmatprep.subr.mxu0 0.0
    %5189 = vmatpush1.msra.mxu0 0.0
    %5190 = vmatprep.subr.mxu0 0.0
    %5191 = vmatpush1.msra.mxu0 0.0
    %5192 = vmatprep.subr.mxu0 0.0
    %5193 = vmatpush1.msra.mxu0 0.0
    %5194 = vmatprep.subr.mxu0 0.0
    %5195 = vmatpush1.msra.mxu0 0.0
    %5196 = vmatprep.subr.mxu0 0.0
    %5197 = vmatpush1.msra.mxu0 0.0
    %5198 = vmatprep.subr.mxu0 0.0
    %5199 = vmatpush1.msra.mxu0 0.0
    %5200 = vmatprep.subr.mxu0 0.0
    %5201 = vmatpush1.msra.mxu0 0.0
    %5202 = vmatprep.subr.mxu0 0.0
    %5203 = vmatpush1.msra.mxu0 0.0
    %5204 = vmatprep.subr.mxu0 0.0
    %5205 = vmatpush1.msra.mxu0 0.0
    %5206 = vmatprep.subr.mxu0 0.0
    %5207 = vmatpush1.msra.mxu0 0.0
    %5208 = vmatprep.subr.mxu0 0.0
    %5209 = vmatpush1.msra.mxu0 0.0
    %5210 = vmatprep.subr.mxu0 0.0
    %5211 = vmatpush1.msra.mxu0 0.0
    %5212 = vmatprep.mubr.f32.mxu0 0.0
    %v5213 = vand.u32 %v2069, 4294901760
    %v5214 = vsub.f32 %v2069, %v5213
    %v5215 = vand.u32 %v5214, 4294901760
    %v5216 = vsub.f32 %v5214, %v5215
    %v5217 = vand.u32 %v5216, 4294901760
    %5218 = vmatmul.mubr.f32.gmra.mrb[0].mxu0 %v5217
    %v5219 = vpop.f32.mrb[0].mxu0
    %v5220 = vadd.f32 0.0, %v5219
    %v5221 = vpop.f32.mrb[0].mxu0
    %5222 = vmatprep.mubr.f32.mxu0 0.0
    %v5223 = vand.u32 %v2072, 4294901760
    %v5224 = vsub.f32 %v2072, %v5223
    %v5225 = vand.u32 %v5224, 4294901760
    %v5226 = vsub.f32 %v5224, %v5225
    %v5227 = vand.u32 %v5226, 4294901760
    %5228 = vmatmul.mubr.f32.gmra.mrb[0].mxu0 %v5227
    %v5229 = vpop.f32.mrb[0].mxu0
    %v5230 = vadd.f32 0.0, %v5229
    %v5231 = vpop.f32.mrb[0].mxu0
    %5232 = vmatprep.mubr.f32.mxu0 0.0
    %v5233 = vand.u32 %v2075, 4294901760
    %v5234 = vsub.f32 %v2075, %v5233
    %v5235 = vand.u32 %v5234, 4294901760
    %v5236 = vsub.f32 %v5234, %v5235
    %v5237 = vand.u32 %v5236, 4294901760
    %5238 = vmatmul.mubr.f32.gmra.mrb[0].mxu0 %v5237
    %v5239 = vpop.f32.mrb[0].mxu0
    %v5240 = vadd.f32 0.0, %v5239
    %v5241 = vpop.f32.mrb[0].mxu0
    %5242 = vmatprep.mubr.f32.mxu0 0.0
    %v5243 = vand.u32 %v2078, 4294901760
    %v5244 = vsub.f32 %v2078, %v5243
    %v5245 = vand.u32 %v5244, 4294901760
    %v5246 = vsub.f32 %v5244, %v5245
    %v5247 = vand.u32 %v5246, 4294901760
    %5248 = vmatmul.mubr.f32.gmra.mrb[0].mxu0 %v5247
    %v5249 = vpop.f32.mrb[0].mxu0
    %v5250 = vadd.f32 0.0, %v5249
    %v5251 = vpop.f32.mrb[0].mxu0
    %5252 = vmatprep.mubr.f32.mxu0 0.0
    %v5253 = vand.u32 %v2081, 4294901760
    %v5254 = vsub.f32 %v2081, %v5253
    %v5255 = vand.u32 %v5254, 4294901760
    %v5256 = vsub.f32 %v5254, %v5255
    %v5257 = vand.u32 %v5256, 4294901760
    %5258 = vmatmul.mubr.f32.gmra.mrb[0].mxu0 %v5257
    %v5259 = vpop.f32.mrb[0].mxu0
    %v5260 = vadd.f32 0.0, %v5259
    %v5261 = vpop.f32.mrb[0].mxu0
    %5262 = vmatprep.mubr.f32.mxu0 0.0
    %v5263 = vand.u32 %v2084, 4294901760
    %v5264 = vsub.f32 %v2084, %v5263
    %v5265 = vand.u32 %v5264, 4294901760
    %v5266 = vsub.f32 %v5264, %v5265
    %v5267 = vand.u32 %v5266, 4294901760
    %5268 = vmatmul.mubr.f32.gmra.mrb[0].mxu0 %v5267
    %v5269 = vpop.f32.mrb[0].mxu0
    %v5270 = vadd.f32 0.0, %v5269
    %v5271 = vpop.f32.mrb[0].mxu0
    %5272 = vmatprep.mubr.f32.mxu0 0.0
    %v5273 = vand.u32 %v2087, 4294901760
    %v5274 = vsub.f32 %v2087, %v5273
    %v5275 = vand.u32 %v5274, 4294901760
    %v5276 = vsub.f32 %v5274, %v5275
    %v5277 = vand.u32 %v5276, 4294901760
    %5278 = vmatmul.mubr.f32.gmra.mrb[0].mxu0 %v5277
    %v5279 = vpop.f32.mrb[0].mxu0
    %v5280 = vadd.f32 0.0, %v5279
    %v5281 = vpop.f32.mrb[0].mxu0
    %5282 = vmatprep.mubr.f32.mxu0 0.0
    %v5283 = vand.u32 %v2090, 4294901760
    %v5284 = vsub.f32 %v2090, %v5283
    %v5285 = vand.u32 %v5284, 4294901760
    %v5286 = vsub.f32 %v5284, %v5285
    %v5287 = vand.u32 %v5286, 4294901760
    %5288 = vmatmul.mubr.f32.gmra.mrb[0].mxu0 %v5287
    %v5289 = vpop.f32.mrb[0].mxu0
    %v5290 = vadd.f32 0.0, %v5289
    %v5291 = vpop.f32.mrb[0].mxu0
    %5292 = vdwg.mxu0
    %5293 = vmatprep.subr.mxu0 0.0
    %v5294 = vand.u32 %v5124, 4294901760
    %v5295 = vsub.f32 %v5124, %v5294
    %v5296 = vand.u32 %v5295, 4294901760
    %v5297 = vsub.f32 %v5295, %v5296
    %v5298 = vand.u32 %v5297, 4294901760
    %5299 = vmatpush1.msra.mxu0 %v5298
    %5300 = vmatprep.subr.mxu0 0.0
    %v5301 = vand.u32 %v5125, 4294901760
    %v5302 = vsub.f32 %v5125, %v5301
    %v5303 = vand.u32 %v5302, 4294901760
    %v5304 = vsub.f32 %v5302, %v5303
    %v5305 = vand.u32 %v5304, 4294901760
    %5306 = vmatpush1.msra.mxu0 %v5305
    %5307 = vmatprep.subr.mxu0 0.0
    %v5308 = vand.u32 %v5126, 4294901760
    %v5309 = vsub.f32 %v5126, %v5308
    %v5310 = vand.u32 %v5309, 4294901760
    %v5311 = vsub.f32 %v5309, %v5310
    %v5312 = vand.u32 %v5311, 4294901760
    %5313 = vmatpush1.msra.mxu0 %v5312
    %5314 = vmatprep.subr.mxu0 0.0
    %v5315 = vand.u32 %v5127, 4294901760
    %v5316 = vsub.f32 %v5127, %v5315
    %v5317 = vand.u32 %v5316, 4294901760
    %v5318 = vsub.f32 %v5316, %v5317
    %v5319 = vand.u32 %v5318, 4294901760
    %5320 = vmatpush1.msra.mxu0 %v5319
    %5321 = vmatprep.subr.mxu0 0.0
    %v5322 = vand.u32 %v5128, 4294901760
    %v5323 = vsub.f32 %v5128, %v5322
    %v5324 = vand.u32 %v5323, 4294901760
    %v5325 = vsub.f32 %v5323, %v5324
    %v5326 = vand.u32 %v5325, 4294901760
    %5327 = vmatpush1.msra.mxu0 %v5326
    %5328 = vmatprep.subr.mxu0 0.0
    %v5329 = vand.u32 %v5129, 4294901760
    %v5330 = vsub.f32 %v5129, %v5329
    %v5331 = vand.u32 %v5330, 4294901760
    %v5332 = vsub.f32 %v5330, %v5331
    %v5333 = vand.u32 %v5332, 4294901760
    %5334 = vmatpush1.msra.mxu0 %v5333
    %5335 = vmatprep.subr.mxu0 0.0
    %v5336 = vand.u32 %v5130, 4294901760
    %v5337 = vsub.f32 %v5130, %v5336
    %v5338 = vand.u32 %v5337, 4294901760
    %v5339 = vsub.f32 %v5337, %v5338
    %v5340 = vand.u32 %v5339, 4294901760
    %5341 = vmatpush1.msra.mxu0 %v5340
    %5342 = vmatprep.subr.mxu0 0.0
    %v5343 = vand.u32 %v5131, 4294901760
    %v5344 = vsub.f32 %v5131, %v5343
    %v5345 = vand.u32 %v5344, 4294901760
    %v5346 = vsub.f32 %v5344, %v5345
    %v5347 = vand.u32 %v5346, 4294901760
    %5348 = vmatpush1.msra.mxu0 %v5347
    %5349 = vmatprep.subr.mxu0 0.0
    %5350 = vmatpush1.msra.mxu0 0.0
    %5351 = vmatprep.subr.mxu0 0.0
    %5352 = vmatpush1.msra.mxu0 0.0
    %5353 = vmatprep.subr.mxu0 0.0
    %5354 = vmatpush1.msra.mxu0 0.0
    %5355 = vmatprep.subr.mxu0 0.0
    %5356 = vmatpush1.msra.mxu0 0.0
    %5357 = vmatprep.subr.mxu0 0.0
    %5358 = vmatpush1.msra.mxu0 0.0
    %5359 = vmatprep.subr.mxu0 0.0
    %5360 = vmatpush1.msra.mxu0 0.0
    %5361 = vmatprep.subr.mxu0 0.0
    %5362 = vmatpush1.msra.mxu0 0.0
    %5363 = vmatprep.subr.mxu0 0.0
    %5364 = vmatpush1.msra.mxu0 0.0
    %5365 = vmatprep.subr.mxu0 0.0
    %5366 = vmatpush1.msra.mxu0 0.0
    %5367 = vmatprep.subr.mxu0 0.0
    %5368 = vmatpush1.msra.mxu0 0.0
    %5369 = vmatprep.subr.mxu0 0.0
    %5370 = vmatpush1.msra.mxu0 0.0
    %5371 = vmatprep.subr.mxu0 0.0
    %5372 = vmatpush1.msra.mxu0 0.0
    %5373 = vmatprep.subr.mxu0 0.0
    %5374 = vmatpush1.msra.mxu0 0.0
    %5375 = vmatprep.subr.mxu0 0.0
    %5376 = vmatpush1.msra.mxu0 0.0
    %5377 = vmatprep.subr.mxu0 0.0
    %5378 = vmatpush1.msra.mxu0 0.0
    %5379 = vmatprep.subr.mxu0 0.0
    %5380 = vmatpush1.msra.mxu0 0.0
    %5381 = vmatprep.subr.mxu0 0.0
    %5382 = vmatpush1.msra.mxu0 0.0
    %5383 = vmatprep.subr.mxu0 0.0
    %5384 = vmatpush1.msra.mxu0 0.0
    %5385 = vmatprep.subr.mxu0 0.0
    %5386 = vmatpush1.msra.mxu0 0.0
    %5387 = vmatprep.subr.mxu0 0.0
    %5388 = vmatpush1.msra.mxu0 0.0
    %5389 = vmatprep.subr.mxu0 0.0
    %5390 = vmatpush1.msra.mxu0 0.0
    %5391 = vmatprep.subr.mxu0 0.0
    %5392 = vmatpush1.msra.mxu0 0.0
    %5393 = vmatprep.subr.mxu0 0.0
    %5394 = vmatpush1.msra.mxu0 0.0
    %5395 = vmatprep.subr.mxu0 0.0
    %5396 = vmatpush1.msra.mxu0 0.0
    %5397 = vmatprep.mubr.f32.mxu0 0.0
    %v5398 = vand.u32 %v2069, 4294901760
    %5399 = vmatmul.mubr.f32.gmra.mrb[0].mxu0 %v5398
    %v5400 = vpop.f32.mrb[0].mxu0
    %v5401 = vadd.f32 %v5220, %v5400
    %v5402 = vpop.f32.mrb[0].mxu0
    %5403 = vmatprep.mubr.f32.mxu0 0.0
    %v5404 = vand.u32 %v2072, 4294901760
    %5405 = vmatmul.mubr.f32.gmra.mrb[0].mxu0 %v5404
    %v5406 = vpop.f32.mrb[0].mxu0
    %v5407 = vadd.f32 %v5230, %v5406
    %v5408 = vpop.f32.mrb[0].mxu0
    %5409 = vmatprep.mubr.f32.mxu0 0.0
    %v5410 = vand.u32 %v2075, 4294901760
    %5411 = vmatmul.mubr.f32.gmra.mrb[0].mxu0 %v5410
    %v5412 = vpop.f32.mrb[0].mxu0
    %v5413 = vadd.f32 %v5240, %v5412
    %v5414 = vpop.f32.mrb[0].mxu0
    %5415 = vmatprep.mubr.f32.mxu0 0.0
    %v5416 = vand.u32 %v2078, 4294901760
    %5417 = vmatmul.mubr.f32.gmra.mrb[0].mxu0 %v5416
    %v5418 = vpop.f32.mrb[0].mxu0
    %v5419 = vadd.f32 %v5250, %v5418
    %v5420 = vpop.f32.mrb[0].mxu0
    %5421 = vmatprep.mubr.f32.mxu0 0.0
    %v5422 = vand.u32 %v2081, 4294901760
    %5423 = vmatmul.mubr.f32.gmra.mrb[0].mxu0 %v5422
    %v5424 = vpop.f32.mrb[0].mxu0
    %v5425 = vadd.f32 %v5260, %v5424
    %v5426 = vpop.f32.mrb[0].mxu0
    %5427 = vmatprep.mubr.f32.mxu0 0.0
    %v5428 = vand.u32 %v2084, 4294901760
    %5429 = vmatmul.mubr.f32.gmra.mrb[0].mxu0 %v5428
    %v5430 = vpop.f32.mrb[0].mxu0
    %v5431 = vadd.f32 %v5270, %v5430
    %v5432 = vpop.f32.mrb[0].mxu0
    %5433 = vmatprep.mubr.f32.mxu0 0.0
    %v5434 = vand.u32 %v2087, 4294901760
    %5435 = vmatmul.mubr.f32.gmra.mrb[0].mxu0 %v5434
    %v5436 = vpop.f32.mrb[0].mxu0
    %v5437 = vadd.f32 %v5280, %v5436
    %v5438 = vpop.f32.mrb[0].mxu0
    %5439 = vmatprep.mubr.f32.mxu0 0.0
    %v5440 = vand.u32 %v2090, 4294901760
    %5441 = vmatmul.mubr.f32.gmra.mrb[0].mxu0 %v5440
    %v5442 = vpop.f32.mrb[0].mxu0
    %v5443 = vadd.f32 %v5290, %v5442
    %v5444 = vpop.f32.mrb[0].mxu0
    %5445 = vdwg.mxu0
    %5446 = vmatprep.subr.mxu0 0.0
    %v5447 = vand.u32 %v5124, 4294901760
    %v5448 = vsub.f32 %v5124, %v5447
    %5449 = vmatpush1.msra.mxu0 %v5448
    %5450 = vmatprep.subr.mxu0 0.0
    %v5451 = vand.u32 %v5125, 4294901760
    %v5452 = vsub.f32 %v5125, %v5451
    %5453 = vmatpush1.msra.mxu0 %v5452
    %5454 = vmatprep.subr.mxu0 0.0
    %v5455 = vand.u32 %v5126, 4294901760
    %v5456 = vsub.f32 %v5126, %v5455
    %5457 = vmatpush1.msra.mxu0 %v5456
    %5458 = vmatprep.subr.mxu0 0.0
    %v5459 = vand.u32 %v5127, 4294901760
    %v5460 = vsub.f32 %v5127, %v5459
    %5461 = vmatpush1.msra.mxu0 %v5460
    %5462 = vmatprep.subr.mxu0 0.0
    %v5463 = vand.u32 %v5128, 4294901760
    %v5464 = vsub.f32 %v5128, %v5463
    %5465 = vmatpush1.msra.mxu0 %v5464
    %5466 = vmatprep.subr.mxu0 0.0
    %v5467 = vand.u32 %v5129, 4294901760
    %v5468 = vsub.f32 %v5129, %v5467
    %5469 = vmatpush1.msra.mxu0 %v5468
    %5470 = vmatprep.subr.mxu0 0.0
    %v5471 = vand.u32 %v5130, 4294901760
    %v5472 = vsub.f32 %v5130, %v5471
    %5473 = vmatpush1.msra.mxu0 %v5472
    %5474 = vmatprep.subr.mxu0 0.0
    %v5475 = vand.u32 %v5131, 4294901760
    %v5476 = vsub.f32 %v5131, %v5475
    %5477 = vmatpush1.msra.mxu0 %v5476
    %5478 = vmatprep.subr.mxu0 0.0
    %5479 = vmatpush1.msra.mxu0 0.0
    %5480 = vmatprep.subr.mxu0 0.0
    %5481 = vmatpush1.msra.mxu0 0.0
    %5482 = vmatprep.subr.mxu0 0.0
    %5483 = vmatpush1.msra.mxu0 0.0
    %5484 = vmatprep.subr.mxu0 0.0
    %5485 = vmatpush1.msra.mxu0 0.0
    %5486 = vmatprep.subr.mxu0 0.0
    %5487 = vmatpush1.msra.mxu0 0.0
    %5488 = vmatprep.subr.mxu0 0.0
    %5489 = vmatpush1.msra.mxu0 0.0
    %5490 = vmatprep.subr.mxu0 0.0
    %5491 = vmatpush1.msra.mxu0 0.0
    %5492 = vmatprep.subr.mxu0 0.0
    %5493 = vmatpush1.msra.mxu0 0.0
    %5494 = vmatprep.subr.mxu0 0.0
    %5495 = vmatpush1.msra.mxu0 0.0
    %5496 = vmatprep.subr.mxu0 0.0
    %5497 = vmatpush1.msra.mxu0 0.0
    %5498 = vmatprep.subr.mxu0 0.0
    %5499 = vmatpush1.msra.mxu0 0.0
    %5500 = vmatprep.subr.mxu0 0.0
    %5501 = vmatpush1.msra.mxu0 0.0
    %5502 = vmatprep.subr.mxu0 0.0
    %5503 = vmatpush1.msra.mxu0 0.0
    %5504 = vmatprep.subr.mxu0 0.0
    %5505 = vmatpush1.msra.mxu0 0.0
    %5506 = vmatprep.subr.mxu0 0.0
    %5507 = vmatpush1.msra.mxu0 0.0
    %5508 = vmatprep.subr.mxu0 0.0
    %5509 = vmatpush1.msra.mxu0 0.0
    %5510 = vmatprep.subr.mxu0 0.0
    %5511 = vmatpush1.msra.mxu0 0.0
    %5512 = vmatprep.subr.mxu0 0.0
    %5513 = vmatpush1.msra.mxu0 0.0
    %5514 = vmatprep.subr.mxu0 0.0
    %5515 = vmatpush1.msra.mxu0 0.0
    %5516 = vmatprep.subr.mxu0 0.0
    %5517 = vmatpush1.msra.mxu0 0.0
    %5518 = vmatprep.subr.mxu0 0.0
    %5519 = vmatpush1.msra.mxu0 0.0
    %5520 = vmatprep.subr.mxu0 0.0
    %5521 = vmatpush1.msra.mxu0 0.0
    %5522 = vmatprep.subr.mxu0 0.0
    %5523 = vmatpush1.msra.mxu0 0.0
    %5524 = vmatprep.subr.mxu0 0.0
    %5525 = vmatpush1.msra.mxu0 0.0
    %5526 = vmatprep.mubr.f32.mxu0 0.0
    %v5527 = vand.u32 %v2069, 4294901760
    %v5528 = vsub.f32 %v2069, %v5527
    %5529 = vmatmul.mubr.f32.gmra.mrb[0].mxu0 %v5528
    %v5530 = vpop.f32.mrb[0].mxu0
    %v5531 = vadd.f32 %v5401, %v5530
    %v5532 = vpop.f32.mrb[0].mxu0
    %5533 = vmatprep.mubr.f32.mxu0 0.0
    %v5534 = vand.u32 %v2072, 4294901760
    %v5535 = vsub.f32 %v2072, %v5534
    %5536 = vmatmul.mubr.f32.gmra.mrb[0].mxu0 %v5535
    %v5537 = vpop.f32.mrb[0].mxu0
    %v5538 = vadd.f32 %v5407, %v5537
    %v5539 = vpop.f32.mrb[0].mxu0
    %5540 = vmatprep.mubr.f32.mxu0 0.0
    %v5541 = vand.u32 %v2075, 4294901760
    %v5542 = vsub.f32 %v2075, %v5541
    %5543 = vmatmul.mubr.f32.gmra.mrb[0].mxu0 %v5542
    %v5544 = vpop.f32.mrb[0].mxu0
    %v5545 = vadd.f32 %v5413, %v5544
    %v5546 = vpop.f32.mrb[0].mxu0
    %5547 = vmatprep.mubr.f32.mxu0 0.0
    %v5548 = vand.u32 %v2078, 4294901760
    %v5549 = vsub.f32 %v2078, %v5548
    %5550 = vmatmul.mubr.f32.gmra.mrb[0].mxu0 %v5549
    %v5551 = vpop.f32.mrb[0].mxu0
    %v5552 = vadd.f32 %v5419, %v5551
    %v5553 = vpop.f32.mrb[0].mxu0
    %5554 = vmatprep.mubr.f32.mxu0 0.0
    %v5555 = vand.u32 %v2081, 4294901760
    %v5556 = vsub.f32 %v2081, %v5555
    %5557 = vmatmul.mubr.f32.gmra.mrb[0].mxu0 %v5556
    %v5558 = vpop.f32.mrb[0].mxu0
    %v5559 = vadd.f32 %v5425, %v5558
    %v5560 = vpop.f32.mrb[0].mxu0
    %5561 = vmatprep.mubr.f32.mxu0 0.0
    %v5562 = vand.u32 %v2084, 4294901760
    %v5563 = vsub.f32 %v2084, %v5562
    %5564 = vmatmul.mubr.f32.gmra.mrb[0].mxu0 %v5563
    %v5565 = vpop.f32.mrb[0].mxu0
    %v5566 = vadd.f32 %v5431, %v5565
    %v5567 = vpop.f32.mrb[0].mxu0
    %5568 = vmatprep.mubr.f32.mxu0 0.0
    %v5569 = vand.u32 %v2087, 4294901760
    %v5570 = vsub.f32 %v2087, %v5569
    %5571 = vmatmul.mubr.f32.gmra.mrb[0].mxu0 %v5570
    %v5572 = vpop.f32.mrb[0].mxu0
    %v5573 = vadd.f32 %v5437, %v5572
    %v5574 = vpop.f32.mrb[0].mxu0
    %5575 = vmatprep.mubr.f32.mxu0 0.0
    %v5576 = vand.u32 %v2090, 4294901760
    %v5577 = vsub.f32 %v2090, %v5576
    %5578 = vmatmul.mubr.f32.gmra.mrb[0].mxu0 %v5577
    %v5579 = vpop.f32.mrb[0].mxu0
    %v5580 = vadd.f32 %v5443, %v5579
    %v5581 = vpop.f32.mrb[0].mxu0
    %5582 = vdwg.mxu0
    %5583 = vmatprep.subr.mxu0 0.0
    %v5584 = vand.u32 %v5124, 4294901760
    %5585 = vmatpush1.msra.mxu0 %v5584
    %5586 = vmatprep.subr.mxu0 0.0
    %v5587 = vand.u32 %v5125, 4294901760
    %5588 = vmatpush1.msra.mxu0 %v5587
    %5589 = vmatprep.subr.mxu0 0.0
    %v5590 = vand.u32 %v5126, 4294901760
    %5591 = vmatpush1.msra.mxu0 %v5590
    %5592 = vmatprep.subr.mxu0 0.0
    %v5593 = vand.u32 %v5127, 4294901760
    %5594 = vmatpush1.msra.mxu0 %v5593
    %5595 = vmatprep.subr.mxu0 0.0
    %v5596 = vand.u32 %v5128, 4294901760
    %5597 = vmatpush1.msra.mxu0 %v5596
    %5598 = vmatprep.subr.mxu0 0.0
    %v5599 = vand.u32 %v5129, 4294901760
    %5600 = vmatpush1.msra.mxu0 %v5599
    %5601 = vmatprep.subr.mxu0 0.0
    %v5602 = vand.u32 %v5130, 4294901760
    %5603 = vmatpush1.msra.mxu0 %v5602
    %5604 = vmatprep.subr.mxu0 0.0
    %v5605 = vand.u32 %v5131, 4294901760
    %5606 = vmatpush1.msra.mxu0 %v5605
    %5607 = vmatprep.subr.mxu0 0.0
    %5608 = vmatpush1.msra.mxu0 0.0
    %5609 = vmatprep.subr.mxu0 0.0
    %5610 = vmatpush1.msra.mxu0 0.0
    %5611 = vmatprep.subr.mxu0 0.0
    %5612 = vmatpush1.msra.mxu0 0.0
    %5613 = vmatprep.subr.mxu0 0.0
    %5614 = vmatpush1.msra.mxu0 0.0
    %5615 = vmatprep.subr.mxu0 0.0
    %5616 = vmatpush1.msra.mxu0 0.0
    %5617 = vmatprep.subr.mxu0 0.0
    %5618 = vmatpush1.msra.mxu0 0.0
    %5619 = vmatprep.subr.mxu0 0.0
    %5620 = vmatpush1.msra.mxu0 0.0
    %5621 = vmatprep.subr.mxu0 0.0
    %5622 = vmatpush1.msra.mxu0 0.0
    %5623 = vmatprep.subr.mxu0 0.0
    %5624 = vmatpush1.msra.mxu0 0.0
    %5625 = vmatprep.subr.mxu0 0.0
    %5626 = vmatpush1.msra.mxu0 0.0
    %5627 = vmatprep.subr.mxu0 0.0
    %5628 = vmatpush1.msra.mxu0 0.0
    %5629 = vmatprep.subr.mxu0 0.0
    %5630 = vmatpush1.msra.mxu0 0.0
    %5631 = vmatprep.subr.mxu0 0.0
    %5632 = vmatpush1.msra.mxu0 0.0
    %5633 = vmatprep.subr.mxu0 0.0
    %5634 = vmatpush1.msra.mxu0 0.0
    %5635 = vmatprep.subr.mxu0 0.0
    %5636 = vmatpush1.msra.mxu0 0.0
    %5637 = vmatprep.subr.mxu0 0.0
    %5638 = vmatpush1.msra.mxu0 0.0
    %5639 = vmatprep.subr.mxu0 0.0
    %5640 = vmatpush1.msra.mxu0 0.0
    %5641 = vmatprep.subr.mxu0 0.0
    %5642 = vmatpush1.msra.mxu0 0.0
    %5643 = vmatprep.subr.mxu0 0.0
    %5644 = vmatpush1.msra.mxu0 0.0
    %5645 = vmatprep.subr.mxu0 0.0
    %5646 = vmatpush1.msra.mxu0 0.0
    %5647 = vmatprep.subr.mxu0 0.0
    %5648 = vmatpush1.msra.mxu0 0.0
    %5649 = vmatprep.subr.mxu0 0.0
    %5650 = vmatpush1.msra.mxu0 0.0
    %5651 = vmatprep.subr.mxu0 0.0
    %5652 = vmatpush1.msra.mxu0 0.0
    %5653 = vmatprep.subr.mxu0 0.0
    %5654 = vmatpush1.msra.mxu0 0.0
    %5655 = vmatprep.mubr.f32.mxu0 0.0
    %v5656 = vand.u32 %v2069, 4294901760
    %v5657 = vsub.f32 %v2069, %v5656
    %v5658 = vand.u32 %v5657, 4294901760
    %5659 = vmatmul.mubr.f32.gmra.mrb[0].mxu0 %v5658
    %v5660 = vpop.f32.mrb[0].mxu0
    %v5661 = vadd.f32 %v5531, %v5660
    %v5662 = vpop.f32.mrb[0].mxu0
    %5663 = vmatprep.mubr.f32.mxu0 0.0
    %v5664 = vand.u32 %v2072, 4294901760
    %v5665 = vsub.f32 %v2072, %v5664
    %v5666 = vand.u32 %v5665, 4294901760
    %5667 = vmatmul.mubr.f32.gmra.mrb[0].mxu0 %v5666
    %v5668 = vpop.f32.mrb[0].mxu0
    %v5669 = vadd.f32 %v5538, %v5668
    %v5670 = vpop.f32.mrb[0].mxu0
    %5671 = vmatprep.mubr.f32.mxu0 0.0
    %v5672 = vand.u32 %v2075, 4294901760
    %v5673 = vsub.f32 %v2075, %v5672
    %v5674 = vand.u32 %v5673, 4294901760
    %5675 = vmatmul.mubr.f32.gmra.mrb[0].mxu0 %v5674
    %v5676 = vpop.f32.mrb[0].mxu0
    %v5677 = vadd.f32 %v5545, %v5676
    %v5678 = vpop.f32.mrb[0].mxu0
    %5679 = vmatprep.mubr.f32.mxu0 0.0
    %v5680 = vand.u32 %v2078, 4294901760
    %v5681 = vsub.f32 %v2078, %v5680
    %v5682 = vand.u32 %v5681, 4294901760
    %5683 = vmatmul.mubr.f32.gmra.mrb[0].mxu0 %v5682
    %v5684 = vpop.f32.mrb[0].mxu0
    %v5685 = vadd.f32 %v5552, %v5684
    %v5686 = vpop.f32.mrb[0].mxu0
    %5687 = vmatprep.mubr.f32.mxu0 0.0
    %v5688 = vand.u32 %v2081, 4294901760
    %v5689 = vsub.f32 %v2081, %v5688
    %v5690 = vand.u32 %v5689, 4294901760
    %5691 = vmatmul.mubr.f32.gmra.mrb[0].mxu0 %v5690
    %v5692 = vpop.f32.mrb[0].mxu0
    %v5693 = vadd.f32 %v5559, %v5692
    %v5694 = vpop.f32.mrb[0].mxu0
    %5695 = vmatprep.mubr.f32.mxu0 0.0
    %v5696 = vand.u32 %v2084, 4294901760
    %v5697 = vsub.f32 %v2084, %v5696
    %v5698 = vand.u32 %v5697, 4294901760
    %5699 = vmatmul.mubr.f32.gmra.mrb[0].mxu0 %v5698
    %v5700 = vpop.f32.mrb[0].mxu0
    %v5701 = vadd.f32 %v5566, %v5700
    %v5702 = vpop.f32.mrb[0].mxu0
    %5703 = vmatprep.mubr.f32.mxu0 0.0
    %v5704 = vand.u32 %v2087, 4294901760
    %v5705 = vsub.f32 %v2087, %v5704
    %v5706 = vand.u32 %v5705, 4294901760
    %5707 = vmatmul.mubr.f32.gmra.mrb[0].mxu0 %v5706
    %v5708 = vpop.f32.mrb[0].mxu0
    %v5709 = vadd.f32 %v5573, %v5708
    %v5710 = vpop.f32.mrb[0].mxu0
    %5711 = vmatprep.mubr.f32.mxu0 0.0
    %v5712 = vand.u32 %v2090, 4294901760
    %v5713 = vsub.f32 %v2090, %v5712
    %v5714 = vand.u32 %v5713, 4294901760
    %5715 = vmatmul.mubr.f32.gmra.mrb[0].mxu0 %v5714
    %v5716 = vpop.f32.mrb[0].mxu0
    %v5717 = vadd.f32 %v5580, %v5716
    %v5718 = vpop.f32.mrb[0].mxu0
    %5719 = vdwg.mxu0
    %5720 = vmatprep.subr.mxu0 0.0
    %v5721 = vand.u32 %v5124, 4294901760
    %v5722 = vsub.f32 %v5124, %v5721
    %v5723 = vand.u32 %v5722, 4294901760
    %5724 = vmatpush1.msra.mxu0 %v5723
    %5725 = vmatprep.subr.mxu0 0.0
    %v5726 = vand.u32 %v5125, 4294901760
    %v5727 = vsub.f32 %v5125, %v5726
    %v5728 = vand.u32 %v5727, 4294901760
    %5729 = vmatpush1.msra.mxu0 %v5728
    %5730 = vmatprep.subr.mxu0 0.0
    %v5731 = vand.u32 %v5126, 4294901760
    %v5732 = vsub.f32 %v5126, %v5731
    %v5733 = vand.u32 %v5732, 4294901760
    %5734 = vmatpush1.msra.mxu0 %v5733
    %5735 = vmatprep.subr.mxu0 0.0
    %v5736 = vand.u32 %v5127, 4294901760
    %v5737 = vsub.f32 %v5127, %v5736
    %v5738 = vand.u32 %v5737, 4294901760
    %5739 = vmatpush1.msra.mxu0 %v5738
    %5740 = vmatprep.subr.mxu0 0.0
    %v5741 = vand.u32 %v5128, 4294901760
    %v5742 = vsub.f32 %v5128, %v5741
    %v5743 = vand.u32 %v5742, 4294901760
    %5744 = vmatpush1.msra.mxu0 %v5743
    %5745 = vmatprep.subr.mxu0 0.0
    %v5746 = vand.u32 %v5129, 4294901760
    %v5747 = vsub.f32 %v5129, %v5746
    %v5748 = vand.u32 %v5747, 4294901760
    %5749 = vmatpush1.msra.mxu0 %v5748
    %5750 = vmatprep.subr.mxu0 0.0
    %v5751 = vand.u32 %v5130, 4294901760
    %v5752 = vsub.f32 %v5130, %v5751
    %v5753 = vand.u32 %v5752, 4294901760
    %5754 = vmatpush1.msra.mxu0 %v5753
    %5755 = vmatprep.subr.mxu0 0.0
    %v5756 = vand.u32 %v5131, 4294901760
    %v5757 = vsub.f32 %v5131, %v5756
    %v5758 = vand.u32 %v5757, 4294901760
    %5759 = vmatpush1.msra.mxu0 %v5758
    %5760 = vmatprep.subr.mxu0 0.0
    %5761 = vmatpush1.msra.mxu0 0.0
    %5762 = vmatprep.subr.mxu0 0.0
    %5763 = vmatpush1.msra.mxu0 0.0
    %5764 = vmatprep.subr.mxu0 0.0
    %5765 = vmatpush1.msra.mxu0 0.0
    %5766 = vmatprep.subr.mxu0 0.0
    %5767 = vmatpush1.msra.mxu0 0.0
    %5768 = vmatprep.subr.mxu0 0.0
    %5769 = vmatpush1.msra.mxu0 0.0
    %5770 = vmatprep.subr.mxu0 0.0
    %5771 = vmatpush1.msra.mxu0 0.0
    %5772 = vmatprep.subr.mxu0 0.0
    %5773 = vmatpush1.msra.mxu0 0.0
    %5774 = vmatprep.subr.mxu0 0.0
    %5775 = vmatpush1.msra.mxu0 0.0
    %5776 = vmatprep.subr.mxu0 0.0
    %5777 = vmatpush1.msra.mxu0 0.0
    %5778 = vmatprep.subr.mxu0 0.0
    %5779 = vmatpush1.msra.mxu0 0.0
    %5780 = vmatprep.subr.mxu0 0.0
    %5781 = vmatpush1.msra.mxu0 0.0
    %5782 = vmatprep.subr.mxu0 0.0
    %5783 = vmatpush1.msra.mxu0 0.0
    %5784 = vmatprep.subr.mxu0 0.0
    %5785 = vmatpush1.msra.mxu0 0.0
    %5786 = vmatprep.subr.mxu0 0.0
    %5787 = vmatpush1.msra.mxu0 0.0
    %5788 = vmatprep.subr.mxu0 0.0
    %5789 = vmatpush1.msra.mxu0 0.0
    %5790 = vmatprep.subr.mxu0 0.0
    %5791 = vmatpush1.msra.mxu0 0.0
    %5792 = vmatprep.subr.mxu0 0.0
    %5793 = vmatpush1.msra.mxu0 0.0
    %5794 = vmatprep.subr.mxu0 0.0
    %5795 = vmatpush1.msra.mxu0 0.0
    %5796 = vmatprep.subr.mxu0 0.0
    %5797 = vmatpush1.msra.mxu0 0.0
    %5798 = vmatprep.subr.mxu0 0.0
    %5799 = vmatpush1.msra.mxu0 0.0
    %5800 = vmatprep.subr.mxu0 0.0
    %5801 = vmatpush1.msra.mxu0 0.0
    %5802 = vmatprep.subr.mxu0 0.0
    %5803 = vmatpush1.msra.mxu0 0.0
    %5804 = vmatprep.subr.mxu0 0.0
    %5805 = vmatpush1.msra.mxu0 0.0
    %5806 = vmatprep.subr.mxu0 0.0
    %5807 = vmatpush1.msra.mxu0 0.0
    %5808 = vmatprep.mubr.f32.mxu0 0.0
    %v5809 = vand.u32 %v2069, 4294901760
    %5810 = vmatmul.mubr.f32.gmra.mrb[0].mxu0 %v5809
    %v5811 = vpop.f32.mrb[0].mxu0
    %v5812 = vadd.f32 %v5661, %v5811
    %v5813 = vpop.f32.mrb[0].mxu0
    %5814 = vmatprep.mubr.f32.mxu0 0.0
    %v5815 = vand.u32 %v2072, 4294901760
    %5816 = vmatmul.mubr.f32.gmra.mrb[0].mxu0 %v5815
    %v5817 = vpop.f32.mrb[0].mxu0
    %v5818 = vadd.f32 %v5669, %v5817
    %v5819 = vpop.f32.mrb[0].mxu0
    %5820 = vmatprep.mubr.f32.mxu0 0.0
    %v5821 = vand.u32 %v2075, 4294901760
    %5822 = vmatmul.mubr.f32.gmra.mrb[0].mxu0 %v5821
    %v5823 = vpop.f32.mrb[0].mxu0
    %v5824 = vadd.f32 %v5677, %v5823
    %v5825 = vpop.f32.mrb[0].mxu0
    %5826 = vmatprep.mubr.f32.mxu0 0.0
    %v5827 = vand.u32 %v2078, 4294901760
    %5828 = vmatmul.mubr.f32.gmra.mrb[0].mxu0 %v5827
    %v5829 = vpop.f32.mrb[0].mxu0
    %v5830 = vadd.f32 %v5685, %v5829
    %v5831 = vpop.f32.mrb[0].mxu0
    %5832 = vmatprep.mubr.f32.mxu0 0.0
    %v5833 = vand.u32 %v2081, 4294901760
    %5834 = vmatmul.mubr.f32.gmra.mrb[0].mxu0 %v5833
    %v5835 = vpop.f32.mrb[0].mxu0
    %v5836 = vadd.f32 %v5693, %v5835
    %v5837 = vpop.f32.mrb[0].mxu0
    %5838 = vmatprep.mubr.f32.mxu0 0.0
    %v5839 = vand.u32 %v2084, 4294901760
    %5840 = vmatmul.mubr.f32.gmra.mrb[0].mxu0 %v5839
    %v5841 = vpop.f32.mrb[0].mxu0
    %v5842 = vadd.f32 %v5701, %v5841
    %v5843 = vpop.f32.mrb[0].mxu0
    %5844 = vmatprep.mubr.f32.mxu0 0.0
    %v5845 = vand.u32 %v2087, 4294901760
    %5846 = vmatmul.mubr.f32.gmra.mrb[0].mxu0 %v5845
    %v5847 = vpop.f32.mrb[0].mxu0
    %v5848 = vadd.f32 %v5709, %v5847
    %v5849 = vpop.f32.mrb[0].mxu0
    %5850 = vmatprep.mubr.f32.mxu0 0.0
    %v5851 = vand.u32 %v2090, 4294901760
    %5852 = vmatmul.mubr.f32.gmra.mrb[0].mxu0 %v5851
    %v5853 = vpop.f32.mrb[0].mxu0
    %v5854 = vadd.f32 %v5717, %v5853
    %v5855 = vpop.f32.mrb[0].mxu0
    %5856 = vdwg.mxu0
    %5857 = vmatprep.subr.mxu0 0.0
    %v5858 = vand.u32 %v5124, 4294901760
    %5859 = vmatpush1.msra.mxu0 %v5858
    %5860 = vmatprep.subr.mxu0 0.0
    %v5861 = vand.u32 %v5125, 4294901760
    %5862 = vmatpush1.msra.mxu0 %v5861
    %5863 = vmatprep.subr.mxu0 0.0
    %v5864 = vand.u32 %v5126, 4294901760
    %5865 = vmatpush1.msra.mxu0 %v5864
    %5866 = vmatprep.subr.mxu0 0.0
    %v5867 = vand.u32 %v5127, 4294901760
    %5868 = vmatpush1.msra.mxu0 %v5867
    %5869 = vmatprep.subr.mxu0 0.0
    %v5870 = vand.u32 %v5128, 4294901760
    %5871 = vmatpush1.msra.mxu0 %v5870
    %5872 = vmatprep.subr.mxu0 0.0
    %v5873 = vand.u32 %v5129, 4294901760
    %5874 = vmatpush1.msra.mxu0 %v5873
    %5875 = vmatprep.subr.mxu0 0.0
    %v5876 = vand.u32 %v5130, 4294901760
    %5877 = vmatpush1.msra.mxu0 %v5876
    %5878 = vmatprep.subr.mxu0 0.0
    %v5879 = vand.u32 %v5131, 4294901760
    %5880 = vmatpush1.msra.mxu0 %v5879
    %5881 = vmatprep.subr.mxu0 0.0
    %5882 = vmatpush1.msra.mxu0 0.0
    %5883 = vmatprep.subr.mxu0 0.0
    %5884 = vmatpush1.msra.mxu0 0.0
    %5885 = vmatprep.subr.mxu0 0.0
    %5886 = vmatpush1.msra.mxu0 0.0
    %5887 = vmatprep.subr.mxu0 0.0
    %5888 = vmatpush1.msra.mxu0 0.0
    %5889 = vmatprep.subr.mxu0 0.0
    %5890 = vmatpush1.msra.mxu0 0.0
    %5891 = vmatprep.subr.mxu0 0.0
    %5892 = vmatpush1.msra.mxu0 0.0
    %5893 = vmatprep.subr.mxu0 0.0
    %5894 = vmatpush1.msra.mxu0 0.0
    %5895 = vmatprep.subr.mxu0 0.0
    %5896 = vmatpush1.msra.mxu0 0.0
    %5897 = vmatprep.subr.mxu0 0.0
    %5898 = vmatpush1.msra.mxu0 0.0
    %5899 = vmatprep.subr.mxu0 0.0
    %5900 = vmatpush1.msra.mxu0 0.0
    %5901 = vmatprep.subr.mxu0 0.0
    %5902 = vmatpush1.msra.mxu0 0.0
    %5903 = vmatprep.subr.mxu0 0.0
    %5904 = vmatpush1.msra.mxu0 0.0
    %5905 = vmatprep.subr.mxu0 0.0
    %5906 = vmatpush1.msra.mxu0 0.0
    %5907 = vmatprep.subr.mxu0 0.0
    %5908 = vmatpush1.msra.mxu0 0.0
    %5909 = vmatprep.subr.mxu0 0.0
    %5910 = vmatpush1.msra.mxu0 0.0
    %5911 = vmatprep.subr.mxu0 0.0
    %5912 = vmatpush1.msra.mxu0 0.0
    %5913 = vmatprep.subr.mxu0 0.0
    %5914 = vmatpush1.msra.mxu0 0.0
    %5915 = vmatprep.subr.mxu0 0.0
    %5916 = vmatpush1.msra.mxu0 0.0
    %5917 = vmatprep.subr.mxu0 0.0
    %5918 = vmatpush1.msra.mxu0 0.0
    %5919 = vmatprep.subr.mxu0 0.0
    %5920 = vmatpush1.msra.mxu0 0.0
    %5921 = vmatprep.subr.mxu0 0.0
    %5922 = vmatpush1.msra.mxu0 0.0
    %5923 = vmatprep.subr.mxu0 0.0
    %5924 = vmatpush1.msra.mxu0 0.0
    %5925 = vmatprep.subr.mxu0 0.0
    %5926 = vmatpush1.msra.mxu0 0.0
    %5927 = vmatprep.subr.mxu0 0.0
    %5928 = vmatpush1.msra.mxu0 0.0
    %5929 = vmatprep.mubr.f32.mxu0 0.0
    %v5930 = vand.u32 %v2069, 4294901760
    %5931 = vmatmul.mubr.f32.gmra.mrb[0].mxu0 %v5930
    %v5932 = vpop.f32.mrb[0].mxu0
    %v5933 = vadd.f32 %v5812, %v5932
    %v5934 = vpop.f32.mrb[0].mxu0
    %5935 = vmatprep.mubr.f32.mxu0 0.0
    %v5936 = vand.u32 %v2072, 4294901760
    %5937 = vmatmul.mubr.f32.gmra.mrb[0].mxu0 %v5936
    %v5938 = vpop.f32.mrb[0].mxu0
    %v5939 = vadd.f32 %v5818, %v5938
    %v5940 = vpop.f32.mrb[0].mxu0
    %5941 = vmatprep.mubr.f32.mxu0 0.0
    %v5942 = vand.u32 %v2075, 4294901760
    %5943 = vmatmul.mubr.f32.gmra.mrb[0].mxu0 %v5942
    %v5944 = vpop.f32.mrb[0].mxu0
    %v5945 = vadd.f32 %v5824, %v5944
    %v5946 = vpop.f32.mrb[0].mxu0
    %5947 = vmatprep.mubr.f32.mxu0 0.0
    %v5948 = vand.u32 %v2078, 4294901760
    %5949 = vmatmul.mubr.f32.gmra.mrb[0].mxu0 %v5948
    %v5950 = vpop.f32.mrb[0].mxu0
    %v5951 = vadd.f32 %v5830, %v5950
    %v5952 = vpop.f32.mrb[0].mxu0
    %5953 = vmatprep.mubr.f32.mxu0 0.0
    %v5954 = vand.u32 %v2081, 4294901760
    %5955 = vmatmul.mubr.f32.gmra.mrb[0].mxu0 %v5954
    %v5956 = vpop.f32.mrb[0].mxu0
    %v5957 = vadd.f32 %v5836, %v5956
    %v5958 = vpop.f32.mrb[0].mxu0
    %5959 = vmatprep.mubr.f32.mxu0 0.0
    %v5960 = vand.u32 %v2084, 4294901760
    %5961 = vmatmul.mubr.f32.gmra.mrb[0].mxu0 %v5960
    %v5962 = vpop.f32.mrb[0].mxu0
    %v5963 = vadd.f32 %v5842, %v5962
    %v5964 = vpop.f32.mrb[0].mxu0
    %5965 = vmatprep.mubr.f32.mxu0 0.0
    %v5966 = vand.u32 %v2087, 4294901760
    %5967 = vmatmul.mubr.f32.gmra.mrb[0].mxu0 %v5966
    %v5968 = vpop.f32.mrb[0].mxu0
    %v5969 = vadd.f32 %v5848, %v5968
    %v5970 = vpop.f32.mrb[0].mxu0
    %5971 = vmatprep.mubr.f32.mxu0 0.0
    %v5972 = vand.u32 %v2090, 4294901760
    %5973 = vmatmul.mubr.f32.gmra.mrb[0].mxu0 %v5972
    %v5974 = vpop.f32.mrb[0].mxu0
    %v5975 = vadd.f32 %v5854, %v5974
    %v5976 = vpop.f32.mrb[0].mxu0
    %5977 = vdwg.mxu0
    %v5978 = vmul.f32 %v950, %v5933
    %v5979 = vmul.f32 %v952, %v5939
    %v5980 = vmul.f32 %v954, %v5945
    %v5981 = vmul.f32 %v956, %v5951
    %v5982 = vmul.f32 %v958, %v5957
    %v5983 = vmul.f32 %v960, %v5963
    %v5984 = vmul.f32 %v962, %v5969
    %v5985 = vmul.f32 %v964, %v5975
    %v5986 = vadd.f32 %v5132, %v5978
    %v5987 = vadd.f32 %v5133, %v5979
    %v5988 = vadd.f32 %v5134, %v5980
    %v5989 = vadd.f32 %v5135, %v5981
    %v5990 = vadd.f32 %v5136, %v5982
    %v5991 = vadd.f32 %v5137, %v5983
    %v5992 = vadd.f32 %v5138, %v5984
    %v5993 = vadd.f32 %v5139, %v5985
    %5994 = vmatprep.subr.mxu0 0.0
    %v5995 = vand.u32 %v5986, 4294901760
    %5996 = vmatpush1.msra.mxu0 %v5995
    %5997 = vmatprep.subr.mxu0 0.0
    %v5998 = vand.u32 %v5987, 4294901760
    %5999 = vmatpush1.msra.mxu0 %v5998
    %6000 = vmatprep.subr.mxu0 0.0
    %v6001 = vand.u32 %v5988, 4294901760
    %6002 = vmatpush1.msra.mxu0 %v6001
    %6003 = vmatprep.subr.mxu0 0.0
    %v6004 = vand.u32 %v5989, 4294901760
    %6005 = vmatpush1.msra.mxu0 %v6004
    %6006 = vmatprep.subr.mxu0 0.0
    %v6007 = vand.u32 %v5990, 4294901760
    %6008 = vmatpush1.msra.mxu0 %v6007
    %6009 = vmatprep.subr.mxu0 0.0
    %v6010 = vand.u32 %v5991, 4294901760
    %6011 = vmatpush1.msra.mxu0 %v6010
    %6012 = vmatprep.subr.mxu0 0.0
    %v6013 = vand.u32 %v5992, 4294901760
    %6014 = vmatpush1.msra.mxu0 %v6013
    %6015 = vmatprep.subr.mxu0 0.0
    %v6016 = vand.u32 %v5993, 4294901760
    %6017 = vmatpush1.msra.mxu0 %v6016
    %6018 = vmatprep.subr.mxu0 0.0
    %6019 = vmatpush1.msra.mxu0 0.0
    %6020 = vmatprep.subr.mxu0 0.0
    %6021 = vmatpush1.msra.mxu0 0.0
    %6022 = vmatprep.subr.mxu0 0.0
    %6023 = vmatpush1.msra.mxu0 0.0
    %6024 = vmatprep.subr.mxu0 0.0
    %6025 = vmatpush1.msra.mxu0 0.0
    %6026 = vmatprep.subr.mxu0 0.0
    %6027 = vmatpush1.msra.mxu0 0.0
    %6028 = vmatprep.subr.mxu0 0.0
    %6029 = vmatpush1.msra.mxu0 0.0
    %6030 = vmatprep.subr.mxu0 0.0
    %6031 = vmatpush1.msra.mxu0 0.0
    %6032 = vmatprep.subr.mxu0 0.0
    %6033 = vmatpush1.msra.mxu0 0.0
    %6034 = vmatprep.subr.mxu0 0.0
    %6035 = vmatpush1.msra.mxu0 0.0
    %6036 = vmatprep.subr.mxu0 0.0
    %6037 = vmatpush1.msra.mxu0 0.0
    %6038 = vmatprep.subr.mxu0 0.0
    %6039 = vmatpush1.msra.mxu0 0.0
    %6040 = vmatprep.subr.mxu0 0.0
    %6041 = vmatpush1.msra.mxu0 0.0
    %6042 = vmatprep.subr.mxu0 0.0
    %6043 = vmatpush1.msra.mxu0 0.0
    %6044 = vmatprep.subr.mxu0 0.0
    %6045 = vmatpush1.msra.mxu0 0.0
    %6046 = vmatprep.subr.mxu0 0.0
    %6047 = vmatpush1.msra.mxu0 0.0
    %6048 = vmatprep.subr.mxu0 0.0
    %6049 = vmatpush1.msra.mxu0 0.0
    %6050 = vmatprep.subr.mxu0 0.0
    %6051 = vmatpush1.msra.mxu0 0.0
    %6052 = vmatprep.subr.mxu0 0.0
    %6053 = vmatpush1.msra.mxu0 0.0
    %6054 = vmatprep.subr.mxu0 0.0
    %6055 = vmatpush1.msra.mxu0 0.0
    %6056 = vmatprep.subr.mxu0 0.0
    %6057 = vmatpush1.msra.mxu0 0.0
    %6058 = vmatprep.subr.mxu0 0.0
    %6059 = vmatpush1.msra.mxu0 0.0
    %6060 = vmatprep.subr.mxu0 0.0
    %6061 = vmatpush1.msra.mxu0 0.0
    %6062 = vmatprep.subr.mxu0 0.0
    %6063 = vmatpush1.msra.mxu0 0.0
    %6064 = vmatprep.subr.mxu0 0.0
    %6065 = vmatpush1.msra.mxu0 0.0
    %6066 = vmatprep.mubr.f32.mxu0 0.0
    %v6067 = vand.u32 %v2971, 4294901760
    %v6068 = vsub.f32 %v2971, %v6067
    %v6069 = vand.u32 %v6068, 4294901760
    %v6070 = vsub.f32 %v6068, %v6069
    %v6071 = vand.u32 %v6070, 4294901760
    %6072 = vmatmul.mubr.f32.gmra.mrb[0].mxu0 %v6071
    %v6073 = vpop.f32.mrb[0].mxu0
    %v6074 = vadd.f32 0.0, %v6073
    %v6075 = vpop.f32.mrb[0].mxu0
    %6076 = vdwg.mxu0
    %6077 = vmatprep.subr.mxu0 0.0
    %v6078 = vand.u32 %v5986, 4294901760
    %v6079 = vsub.f32 %v5986, %v6078
    %v6080 = vand.u32 %v6079, 4294901760
    %v6081 = vsub.f32 %v6079, %v6080
    %v6082 = vand.u32 %v6081, 4294901760
    %6083 = vmatpush1.msra.mxu0 %v6082
    %6084 = vmatprep.subr.mxu0 0.0
    %v6085 = vand.u32 %v5987, 4294901760
    %v6086 = vsub.f32 %v5987, %v6085
    %v6087 = vand.u32 %v6086, 4294901760
    %v6088 = vsub.f32 %v6086, %v6087
    %v6089 = vand.u32 %v6088, 4294901760
    %6090 = vmatpush1.msra.mxu0 %v6089
    %6091 = vmatprep.subr.mxu0 0.0
    %v6092 = vand.u32 %v5988, 4294901760
    %v6093 = vsub.f32 %v5988, %v6092
    %v6094 = vand.u32 %v6093, 4294901760
    %v6095 = vsub.f32 %v6093, %v6094
    %v6096 = vand.u32 %v6095, 4294901760
    %6097 = vmatpush1.msra.mxu0 %v6096
    %6098 = vmatprep.subr.mxu0 0.0
    %v6099 = vand.u32 %v5989, 4294901760
    %v6100 = vsub.f32 %v5989, %v6099
    %v6101 = vand.u32 %v6100, 4294901760
    %v6102 = vsub.f32 %v6100, %v6101
    %v6103 = vand.u32 %v6102, 4294901760
    %6104 = vmatpush1.msra.mxu0 %v6103
    %6105 = vmatprep.subr.mxu0 0.0
    %v6106 = vand.u32 %v5990, 4294901760
    %v6107 = vsub.f32 %v5990, %v6106
    %v6108 = vand.u32 %v6107, 4294901760
    %v6109 = vsub.f32 %v6107, %v6108
    %v6110 = vand.u32 %v6109, 4294901760
    %6111 = vmatpush1.msra.mxu0 %v6110
    %6112 = vmatprep.subr.mxu0 0.0
    %v6113 = vand.u32 %v5991, 4294901760
    %v6114 = vsub.f32 %v5991, %v6113
    %v6115 = vand.u32 %v6114, 4294901760
    %v6116 = vsub.f32 %v6114, %v6115
    %v6117 = vand.u32 %v6116, 4294901760
    %6118 = vmatpush1.msra.mxu0 %v6117
    %6119 = vmatprep.subr.mxu0 0.0
    %v6120 = vand.u32 %v5992, 4294901760
    %v6121 = vsub.f32 %v5992, %v6120
    %v6122 = vand.u32 %v6121, 4294901760
    %v6123 = vsub.f32 %v6121, %v6122
    %v6124 = vand.u32 %v6123, 4294901760
    %6125 = vmatpush1.msra.mxu0 %v6124
    %6126 = vmatprep.subr.mxu0 0.0
    %v6127 = vand.u32 %v5993, 4294901760
    %v6128 = vsub.f32 %v5993, %v6127
    %v6129 = vand.u32 %v6128, 4294901760
    %v6130 = vsub.f32 %v6128, %v6129
    %v6131 = vand.u32 %v6130, 4294901760
    %6132 = vmatpush1.msra.mxu0 %v6131
    %6133 = vmatprep.subr.mxu0 0.0
    %6134 = vmatpush1.msra.mxu0 0.0
    %6135 = vmatprep.subr.mxu0 0.0
    %6136 = vmatpush1.msra.mxu0 0.0
    %6137 = vmatprep.subr.mxu0 0.0
    %6138 = vmatpush1.msra.mxu0 0.0
    %6139 = vmatprep.subr.mxu0 0.0
    %6140 = vmatpush1.msra.mxu0 0.0
    %6141 = vmatprep.subr.mxu0 0.0
    %6142 = vmatpush1.msra.mxu0 0.0
    %6143 = vmatprep.subr.mxu0 0.0
    %6144 = vmatpush1.msra.mxu0 0.0
    %6145 = vmatprep.subr.mxu0 0.0
    %6146 = vmatpush1.msra.mxu0 0.0
    %6147 = vmatprep.subr.mxu0 0.0
    %6148 = vmatpush1.msra.mxu0 0.0
    %6149 = vmatprep.subr.mxu0 0.0
    %6150 = vmatpush1.msra.mxu0 0.0
    %6151 = vmatprep.subr.mxu0 0.0
    %6152 = vmatpush1.msra.mxu0 0.0
    %6153 = vmatprep.subr.mxu0 0.0
    %6154 = vmatpush1.msra.mxu0 0.0
    %6155 = vmatprep.subr.mxu0 0.0
    %6156 = vmatpush1.msra.mxu0 0.0
    %6157 = vmatprep.subr.mxu0 0.0
    %6158 = vmatpush1.msra.mxu0 0.0
    %6159 = vmatprep.subr.mxu0 0.0
    %6160 = vmatpush1.msra.mxu0 0.0
    %6161 = vmatprep.subr.mxu0 0.0
    %6162 = vmatpush1.msra.mxu0 0.0
    %6163 = vmatprep.subr.mxu0 0.0
    %6164 = vmatpush1.msra.mxu0 0.0
    %6165 = vmatprep.subr.mxu0 0.0
    %6166 = vmatpush1.msra.mxu0 0.0
    %6167 = vmatprep.subr.mxu0 0.0
    %6168 = vmatpush1.msra.mxu0 0.0
    %6169 = vmatprep.subr.mxu0 0.0
    %6170 = vmatpush1.msra.mxu0 0.0
    %6171 = vmatprep.subr.mxu0 0.0
    %6172 = vmatpush1.msra.mxu0 0.0
    %6173 = vmatprep.subr.mxu0 0.0
    %6174 = vmatpush1.msra.mxu0 0.0
    %6175 = vmatprep.subr.mxu0 0.0
    %6176 = vmatpush1.msra.mxu0 0.0
    %6177 = vmatprep.subr.mxu0 0.0
    %6178 = vmatpush1.msra.mxu0 0.0
    %6179 = vmatprep.subr.mxu0 0.0
    %6180 = vmatpush1.msra.mxu0 0.0
    %6181 = vmatprep.mubr.f32.mxu0 0.0
    %v6182 = vand.u32 %v2971, 4294901760
    %6183 = vmatmul.mubr.f32.gmra.mrb[0].mxu0 %v6182
    %v6184 = vpop.f32.mrb[0].mxu0
    %v6185 = vadd.f32 %v6074, %v6184
    %v6186 = vpop.f32.mrb[0].mxu0
    %6187 = vdwg.mxu0
    %6188 = vmatprep.subr.mxu0 0.0
    %v6189 = vand.u32 %v5986, 4294901760
    %v6190 = vsub.f32 %v5986, %v6189
    %6191 = vmatpush1.msra.mxu0 %v6190
    %6192 = vmatprep.subr.mxu0 0.0
    %v6193 = vand.u32 %v5987, 4294901760
    %v6194 = vsub.f32 %v5987, %v6193
    %6195 = vmatpush1.msra.mxu0 %v6194
    %6196 = vmatprep.subr.mxu0 0.0
    %v6197 = vand.u32 %v5988, 4294901760
    %v6198 = vsub.f32 %v5988, %v6197
    %6199 = vmatpush1.msra.mxu0 %v6198
    %6200 = vmatprep.subr.mxu0 0.0
    %v6201 = vand.u32 %v5989, 4294901760
    %v6202 = vsub.f32 %v5989, %v6201
    %6203 = vmatpush1.msra.mxu0 %v6202
    %6204 = vmatprep.subr.mxu0 0.0
    %v6205 = vand.u32 %v5990, 4294901760
    %v6206 = vsub.f32 %v5990, %v6205
    %6207 = vmatpush1.msra.mxu0 %v6206
    %6208 = vmatprep.subr.mxu0 0.0
    %v6209 = vand.u32 %v5991, 4294901760
    %v6210 = vsub.f32 %v5991, %v6209
    %6211 = vmatpush1.msra.mxu0 %v6210
    %6212 = vmatprep.subr.mxu0 0.0
    %v6213 = vand.u32 %v5992, 4294901760
    %v6214 = vsub.f32 %v5992, %v6213
    %6215 = vmatpush1.msra.mxu0 %v6214
    %6216 = vmatprep.subr.mxu0 0.0
    %v6217 = vand.u32 %v5993, 4294901760
    %v6218 = vsub.f32 %v5993, %v6217
    %6219 = vmatpush1.msra.mxu0 %v6218
    %6220 = vmatprep.subr.mxu0 0.0
    %6221 = vmatpush1.msra.mxu0 0.0
    %6222 = vmatprep.subr.mxu0 0.0
    %6223 = vmatpush1.msra.mxu0 0.0
    %6224 = vmatprep.subr.mxu0 0.0
    %6225 = vmatpush1.msra.mxu0 0.0
    %6226 = vmatprep.subr.mxu0 0.0
    %6227 = vmatpush1.msra.mxu0 0.0
    %6228 = vmatprep.subr.mxu0 0.0
    %6229 = vmatpush1.msra.mxu0 0.0
    %6230 = vmatprep.subr.mxu0 0.0
    %6231 = vmatpush1.msra.mxu0 0.0
    %6232 = vmatprep.subr.mxu0 0.0
    %6233 = vmatpush1.msra.mxu0 0.0
    %6234 = vmatprep.subr.mxu0 0.0
    %6235 = vmatpush1.msra.mxu0 0.0
    %6236 = vmatprep.subr.mxu0 0.0
    %6237 = vmatpush1.msra.mxu0 0.0
    %6238 = vmatprep.subr.mxu0 0.0
    %6239 = vmatpush1.msra.mxu0 0.0
    %6240 = vmatprep.subr.mxu0 0.0
    %6241 = vmatpush1.msra.mxu0 0.0
    %6242 = vmatprep.subr.mxu0 0.0
    %6243 = vmatpush1.msra.mxu0 0.0
    %6244 = vmatprep.subr.mxu0 0.0
    %6245 = vmatpush1.msra.mxu0 0.0
    %6246 = vmatprep.subr.mxu0 0.0
    %6247 = vmatpush1.msra.mxu0 0.0
    %6248 = vmatprep.subr.mxu0 0.0
    %6249 = vmatpush1.msra.mxu0 0.0
    %6250 = vmatprep.subr.mxu0 0.0
    %6251 = vmatpush1.msra.mxu0 0.0
    %6252 = vmatprep.subr.mxu0 0.0
    %6253 = vmatpush1.msra.mxu0 0.0
    %6254 = vmatprep.subr.mxu0 0.0
    %6255 = vmatpush1.msra.mxu0 0.0
    %6256 = vmatprep.subr.mxu0 0.0
    %6257 = vmatpush1.msra.mxu0 0.0
    %6258 = vmatprep.subr.mxu0 0.0
    %6259 = vmatpush1.msra.mxu0 0.0
    %6260 = vmatprep.subr.mxu0 0.0
    %6261 = vmatpush1.msra.mxu0 0.0
    %6262 = vmatprep.subr.mxu0 0.0
    %6263 = vmatpush1.msra.mxu0 0.0
    %6264 = vmatprep.subr.mxu0 0.0
    %6265 = vmatpush1.msra.mxu0 0.0
    %6266 = vmatprep.subr.mxu0 0.0
    %6267 = vmatpush1.msra.mxu0 0.0
    %6268 = vmatprep.mubr.f32.mxu0 0.0
    %v6269 = vand.u32 %v2971, 4294901760
    %v6270 = vsub.f32 %v2971, %v6269
    %6271 = vmatmul.mubr.f32.gmra.mrb[0].mxu0 %v6270
    %v6272 = vpop.f32.mrb[0].mxu0
    %v6273 = vadd.f32 %v6185, %v6272
    %v6274 = vpop.f32.mrb[0].mxu0
    %6275 = vdwg.mxu0
    %6276 = vmatprep.subr.mxu0 0.0
    %v6277 = vand.u32 %v5986, 4294901760
    %6278 = vmatpush1.msra.mxu0 %v6277
    %6279 = vmatprep.subr.mxu0 0.0
    %v6280 = vand.u32 %v5987, 4294901760
    %6281 = vmatpush1.msra.mxu0 %v6280
    %6282 = vmatprep.subr.mxu0 0.0
    %v6283 = vand.u32 %v5988, 4294901760
    %6284 = vmatpush1.msra.mxu0 %v6283
    %6285 = vmatprep.subr.mxu0 0.0
    %v6286 = vand.u32 %v5989, 4294901760
    %6287 = vmatpush1.msra.mxu0 %v6286
    %6288 = vmatprep.subr.mxu0 0.0
    %v6289 = vand.u32 %v5990, 4294901760
    %6290 = vmatpush1.msra.mxu0 %v6289
    %6291 = vmatprep.subr.mxu0 0.0
    %v6292 = vand.u32 %v5991, 4294901760
    %6293 = vmatpush1.msra.mxu0 %v6292
    %6294 = vmatprep.subr.mxu0 0.0
    %v6295 = vand.u32 %v5992, 4294901760
    %6296 = vmatpush1.msra.mxu0 %v6295
    %6297 = vmatprep.subr.mxu0 0.0
    %v6298 = vand.u32 %v5993, 4294901760
    %6299 = vmatpush1.msra.mxu0 %v6298
    %6300 = vmatprep.subr.mxu0 0.0
    %6301 = vmatpush1.msra.mxu0 0.0
    %6302 = vmatprep.subr.mxu0 0.0
    %6303 = vmatpush1.msra.mxu0 0.0
    %6304 = vmatprep.subr.mxu0 0.0
    %6305 = vmatpush1.msra.mxu0 0.0
    %6306 = vmatprep.subr.mxu0 0.0
    %6307 = vmatpush1.msra.mxu0 0.0
    %6308 = vmatprep.subr.mxu0 0.0
    %6309 = vmatpush1.msra.mxu0 0.0
    %6310 = vmatprep.subr.mxu0 0.0
    %6311 = vmatpush1.msra.mxu0 0.0
    %6312 = vmatprep.subr.mxu0 0.0
    %6313 = vmatpush1.msra.mxu0 0.0
    %6314 = vmatprep.subr.mxu0 0.0
    %6315 = vmatpush1.msra.mxu0 0.0
    %6316 = vmatprep.subr.mxu0 0.0
    %6317 = vmatpush1.msra.mxu0 0.0
    %6318 = vmatprep.subr.mxu0 0.0
    %6319 = vmatpush1.msra.mxu0 0.0
    %6320 = vmatprep.subr.mxu0 0.0
    %6321 = vmatpush1.msra.mxu0 0.0
    %6322 = vmatprep.subr.mxu0 0.0
    %6323 = vmatpush1.msra.mxu0 0.0
    %6324 = vmatprep.subr.mxu0 0.0
    %6325 = vmatpush1.msra.mxu0 0.0
    %6326 = vmatprep.subr.mxu0 0.0
    %6327 = vmatpush1.msra.mxu0 0.0
    %6328 = vmatprep.subr.mxu0 0.0
    %6329 = vmatpush1.msra.mxu0 0.0
    %6330 = vmatprep.subr.mxu0 0.0
    %6331 = vmatpush1.msra.mxu0 0.0
    %6332 = vmatprep.subr.mxu0 0.0
    %6333 = vmatpush1.msra.mxu0 0.0
    %6334 = vmatprep.subr.mxu0 0.0
    %6335 = vmatpush1.msra.mxu0 0.0
    %6336 = vmatprep.subr.mxu0 0.0
    %6337 = vmatpush1.msra.mxu0 0.0
    %6338 = vmatprep.subr.mxu0 0.0
    %6339 = vmatpush1.msra.mxu0 0.0
    %6340 = vmatprep.subr.mxu0 0.0
    %6341 = vmatpush1.msra.mxu0 0.0
    %6342 = vmatprep.subr.mxu0 0.0
    %6343 = vmatpush1.msra.mxu0 0.0
    %6344 = vmatprep.subr.mxu0 0.0
    %6345 = vmatpush1.msra.mxu0 0.0
    %6346 = vmatprep.subr.mxu0 0.0
    %6347 = vmatpush1.msra.mxu0 0.0
    %6348 = vmatprep.mubr.f32.mxu0 0.0
    %v6349 = vand.u32 %v2971, 4294901760
    %v6350 = vsub.f32 %v2971, %v6349
    %v6351 = vand.u32 %v6350, 4294901760
    %6352 = vmatmul.mubr.f32.gmra.mrb[0].mxu0 %v6351
    %v6353 = vpop.f32.mrb[0].mxu0
    %v6354 = vadd.f32 %v6273, %v6353
    %v6355 = vpop.f32.mrb[0].mxu0
    %6356 = vdwg.mxu0
    %6357 = vmatprep.subr.mxu0 0.0
    %v6358 = vand.u32 %v5986, 4294901760
    %v6359 = vsub.f32 %v5986, %v6358
    %v6360 = vand.u32 %v6359, 4294901760
    %6361 = vmatpush1.msra.mxu0 %v6360
    %6362 = vmatprep.subr.mxu0 0.0
    %v6363 = vand.u32 %v5987, 4294901760
    %v6364 = vsub.f32 %v5987, %v6363
    %v6365 = vand.u32 %v6364, 4294901760
    %6366 = vmatpush1.msra.mxu0 %v6365
    %6367 = vmatprep.subr.mxu0 0.0
    %v6368 = vand.u32 %v5988, 4294901760
    %v6369 = vsub.f32 %v5988, %v6368
    %v6370 = vand.u32 %v6369, 4294901760
    %6371 = vmatpush1.msra.mxu0 %v6370
    %6372 = vmatprep.subr.mxu0 0.0
    %v6373 = vand.u32 %v5989, 4294901760
    %v6374 = vsub.f32 %v5989, %v6373
    %v6375 = vand.u32 %v6374, 4294901760
    %6376 = vmatpush1.msra.mxu0 %v6375
    %6377 = vmatprep.subr.mxu0 0.0
    %v6378 = vand.u32 %v5990, 4294901760
    %v6379 = vsub.f32 %v5990, %v6378
    %v6380 = vand.u32 %v6379, 4294901760
    %6381 = vmatpush1.msra.mxu0 %v6380
    %6382 = vmatprep.subr.mxu0 0.0
    %v6383 = vand.u32 %v5991, 4294901760
    %v6384 = vsub.f32 %v5991, %v6383
    %v6385 = vand.u32 %v6384, 4294901760
    %6386 = vmatpush1.msra.mxu0 %v6385
    %6387 = vmatprep.subr.mxu0 0.0
    %v6388 = vand.u32 %v5992, 4294901760
    %v6389 = vsub.f32 %v5992, %v6388
    %v6390 = vand.u32 %v6389, 4294901760
    %6391 = vmatpush1.msra.mxu0 %v6390
    %6392 = vmatprep.subr.mxu0 0.0
    %v6393 = vand.u32 %v5993, 4294901760
    %v6394 = vsub.f32 %v5993, %v6393
    %v6395 = vand.u32 %v6394, 4294901760
    %6396 = vmatpush1.msra.mxu0 %v6395
    %6397 = vmatprep.subr.mxu0 0.0
    %6398 = vmatpush1.msra.mxu0 0.0
    %6399 = vmatprep.subr.mxu0 0.0
    %6400 = vmatpush1.msra.mxu0 0.0
    %6401 = vmatprep.subr.mxu0 0.0
    %6402 = vmatpush1.msra.mxu0 0.0
    %6403 = vmatprep.subr.mxu0 0.0
    %6404 = vmatpush1.msra.mxu0 0.0
    %6405 = vmatprep.subr.mxu0 0.0
    %6406 = vmatpush1.msra.mxu0 0.0
    %6407 = vmatprep.subr.mxu0 0.0
    %6408 = vmatpush1.msra.mxu0 0.0
    %6409 = vmatprep.subr.mxu0 0.0
    %6410 = vmatpush1.msra.mxu0 0.0
    %6411 = vmatprep.subr.mxu0 0.0
    %6412 = vmatpush1.msra.mxu0 0.0
    %6413 = vmatprep.subr.mxu0 0.0
    %6414 = vmatpush1.msra.mxu0 0.0
    %6415 = vmatprep.subr.mxu0 0.0
    %6416 = vmatpush1.msra.mxu0 0.0
    %6417 = vmatprep.subr.mxu0 0.0
    %6418 = vmatpush1.msra.mxu0 0.0
    %6419 = vmatprep.subr.mxu0 0.0
    %6420 = vmatpush1.msra.mxu0 0.0
    %6421 = vmatprep.subr.mxu0 0.0
    %6422 = vmatpush1.msra.mxu0 0.0
    %6423 = vmatprep.subr.mxu0 0.0
    %6424 = vmatpush1.msra.mxu0 0.0
    %6425 = vmatprep.subr.mxu0 0.0
    %6426 = vmatpush1.msra.mxu0 0.0
    %6427 = vmatprep.subr.mxu0 0.0
    %6428 = vmatpush1.msra.mxu0 0.0
    %6429 = vmatprep.subr.mxu0 0.0
    %6430 = vmatpush1.msra.mxu0 0.0
    %6431 = vmatprep.subr.mxu0 0.0
    %6432 = vmatpush1.msra.mxu0 0.0
    %6433 = vmatprep.subr.mxu0 0.0
    %6434 = vmatpush1.msra.mxu0 0.0
    %6435 = vmatprep.subr.mxu0 0.0
    %6436 = vmatpush1.msra.mxu0 0.0
    %6437 = vmatprep.subr.mxu0 0.0
    %6438 = vmatpush1.msra.mxu0 0.0
    %6439 = vmatprep.subr.mxu0 0.0
    %6440 = vmatpush1.msra.mxu0 0.0
    %6441 = vmatprep.subr.mxu0 0.0
    %6442 = vmatpush1.msra.mxu0 0.0
    %6443 = vmatprep.subr.mxu0 0.0
    %6444 = vmatpush1.msra.mxu0 0.0
    %6445 = vmatprep.mubr.f32.mxu0 0.0
    %v6446 = vand.u32 %v2971, 4294901760
    %6447 = vmatmul.mubr.f32.gmra.mrb[0].mxu0 %v6446
    %v6448 = vpop.f32.mrb[0].mxu0
    %v6449 = vadd.f32 %v6354, %v6448
    %v6450 = vpop.f32.mrb[0].mxu0
    %6451 = vdwg.mxu0
    %6452 = vmatprep.subr.mxu0 0.0
    %v6453 = vand.u32 %v5986, 4294901760
    %6454 = vmatpush1.msra.mxu0 %v6453
    %6455 = vmatprep.subr.mxu0 0.0
    %v6456 = vand.u32 %v5987, 4294901760
    %6457 = vmatpush1.msra.mxu0 %v6456
    %6458 = vmatprep.subr.mxu0 0.0
    %v6459 = vand.u32 %v5988, 4294901760
    %6460 = vmatpush1.msra.mxu0 %v6459
    %6461 = vmatprep.subr.mxu0 0.0
    %v6462 = vand.u32 %v5989, 4294901760
    %6463 = vmatpush1.msra.mxu0 %v6462
    %6464 = vmatprep.subr.mxu0 0.0
    %v6465 = vand.u32 %v5990, 4294901760
    %6466 = vmatpush1.msra.mxu0 %v6465
    %6467 = vmatprep.subr.mxu0 0.0
    %v6468 = vand.u32 %v5991, 4294901760
    %6469 = vmatpush1.msra.mxu0 %v6468
    %6470 = vmatprep.subr.mxu0 0.0
    %v6471 = vand.u32 %v5992, 4294901760
    %6472 = vmatpush1.msra.mxu0 %v6471
    %6473 = vmatprep.subr.mxu0 0.0
    %v6474 = vand.u32 %v5993, 4294901760
    %6475 = vmatpush1.msra.mxu0 %v6474
    %6476 = vmatprep.subr.mxu0 0.0
    %6477 = vmatpush1.msra.mxu0 0.0
    %6478 = vmatprep.subr.mxu0 0.0
    %6479 = vmatpush1.msra.mxu0 0.0
    %6480 = vmatprep.subr.mxu0 0.0
    %6481 = vmatpush1.msra.mxu0 0.0
    %6482 = vmatprep.subr.mxu0 0.0
    %6483 = vmatpush1.msra.mxu0 0.0
    %6484 = vmatprep.subr.mxu0 0.0
    %6485 = vmatpush1.msra.mxu0 0.0
    %6486 = vmatprep.subr.mxu0 0.0
    %6487 = vmatpush1.msra.mxu0 0.0
    %6488 = vmatprep.subr.mxu0 0.0
    %6489 = vmatpush1.msra.mxu0 0.0
    %6490 = vmatprep.subr.mxu0 0.0
    %6491 = vmatpush1.msra.mxu0 0.0
    %6492 = vmatprep.subr.mxu0 0.0
    %6493 = vmatpush1.msra.mxu0 0.0
    %6494 = vmatprep.subr.mxu0 0.0
    %6495 = vmatpush1.msra.mxu0 0.0
    %6496 = vmatprep.subr.mxu0 0.0
    %6497 = vmatpush1.msra.mxu0 0.0
    %6498 = vmatprep.subr.mxu0 0.0
    %6499 = vmatpush1.msra.mxu0 0.0
    %6500 = vmatprep.subr.mxu0 0.0
    %6501 = vmatpush1.msra.mxu0 0.0
    %6502 = vmatprep.subr.mxu0 0.0
    %6503 = vmatpush1.msra.mxu0 0.0
    %6504 = vmatprep.subr.mxu0 0.0
    %6505 = vmatpush1.msra.mxu0 0.0
    %6506 = vmatprep.subr.mxu0 0.0
    %6507 = vmatpush1.msra.mxu0 0.0
    %6508 = vmatprep.subr.mxu0 0.0
    %6509 = vmatpush1.msra.mxu0 0.0
    %6510 = vmatprep.subr.mxu0 0.0
    %6511 = vmatpush1.msra.mxu0 0.0
    %6512 = vmatprep.subr.mxu0 0.0
    %6513 = vmatpush1.msra.mxu0 0.0
    %6514 = vmatprep.subr.mxu0 0.0
    %6515 = vmatpush1.msra.mxu0 0.0
    %6516 = vmatprep.subr.mxu0 0.0
    %6517 = vmatpush1.msra.mxu0 0.0
    %6518 = vmatprep.subr.mxu0 0.0
    %6519 = vmatpush1.msra.mxu0 0.0
    %6520 = vmatprep.subr.mxu0 0.0
    %6521 = vmatpush1.msra.mxu0 0.0
    %6522 = vmatprep.subr.mxu0 0.0
    %6523 = vmatpush1.msra.mxu0 0.0
    %6524 = vmatprep.mubr.f32.mxu0 0.0
    %v6525 = vand.u32 %v2971, 4294901760
    %6526 = vmatmul.mubr.f32.gmra.mrb[0].mxu0 %v6525
    %v6527 = vpop.f32.mrb[0].mxu0
    %v6528 = vadd.f32 %v6449, %v6527
    %v6529 = vpop.f32.mrb[0].mxu0
    %6530 = vdwg.mxu0
    %6531 = vset.pattern.permute.xlu0 4
    %6532 = vperm.xlu0 %6531, %v24
    %v6533 = vpop.permute.xlu0 %6532
    %6535 = vset.pattern.permute.xlu0 4
    %6536 = vperm.xlu0 %6535, %v25
    %v6537 = vpop.permute.xlu0 %6536
    %6539 = vset.pattern.permute.xlu0 4
    %6540 = vperm.xlu0 %6539, %v26
    %v6541 = vpop.permute.xlu0 %6540
    %6543 = vset.pattern.permute.xlu0 4
    %6544 = vperm.xlu0 %6543, %v27
    %v6545 = vpop.permute.xlu0 %6544
    %6547 = vset.pattern.permute.xlu0 4
    %6548 = vperm.xlu0 %6547, %v28
    %v6549 = vpop.permute.xlu0 %6548
    %6551 = vset.pattern.permute.xlu0 4
    %6552 = vperm.xlu0 %6551, %v29
    %v6553 = vpop.permute.xlu0 %6552
    %6555 = vset.pattern.permute.xlu0 4
    %6556 = vperm.xlu0 %6555, %v30
    %v6557 = vpop.permute.xlu0 %6556
    %6559 = vset.pattern.permute.xlu0 4
    %6560 = vperm.xlu0 %6559, %v31
    %v6561 = vpop.permute.xlu0 %6560
    %v6563 = vmul.f32 %v3510, %v6533
    %v6564 = vmul.f32 %v3511, %v6537
    %v6565 = vmul.f32 %v3512, %v6541
    %v6566 = vmul.f32 %v3513, %v6545
    %v6567 = vmul.f32 %v3514, %v6549
    %v6568 = vmul.f32 %v3515, %v6553
    %v6569 = vmul.f32 %v3516, %v6557
    %v6570 = vmul.f32 %v3517, %v6561
    %v6571 = vmul.f32 %v6563, %v6533
    %v6572 = vmul.f32 %v6564, %v6537
    %v6573 = vmul.f32 %v6565, %v6541
    %v6574 = vmul.f32 %v6566, %v6545
    %v6575 = vmul.f32 %v6567, %v6549
    %v6576 = vmul.f32 %v6568, %v6553
    %v6577 = vmul.f32 %v6569, %v6557
    %v6578 = vmul.f32 %v6570, %v6561
    %v6579 = vadd.f32 %v6571, %v6572
    %v6580 = vadd.f32 %v6579, %v6573
    %v6581 = vadd.f32 %v6580, %v6574
    %v6582 = vadd.f32 %v6581, %v6575
    %v6583 = vadd.f32 %v6582, %v6576
    %v6584 = vadd.f32 %v6583, %v6577
    %v6585 = vadd.f32 %v6584, %v6578
    %v6586 = vrot.slane %v6585, 4
    %v6587 = vadd.f32 %v6585, %v6586
    %v6588 = vrot.slane %v6587, 2
    %v6589 = vadd.f32 %v6587, %v6588
    %v6590 = vrot.slane %v6589, 1
    %v6591 = vadd.f32 %v6589, %v6590
    %v6592 = vadd.f32 %v6591, 0.0
    %6593 = vset.pattern.permute.xlu0 5
    %6594 = vperm.xlu0 %6593, %v24
    %v6595 = vpop.permute.xlu0 %6594
    %6597 = vset.pattern.permute.xlu0 5
    %6598 = vperm.xlu0 %6597, %v25
    %v6599 = vpop.permute.xlu0 %6598
    %6601 = vset.pattern.permute.xlu0 5
    %6602 = vperm.xlu0 %6601, %v26
    %v6603 = vpop.permute.xlu0 %6602
    %6605 = vset.pattern.permute.xlu0 5
    %6606 = vperm.xlu0 %6605, %v27
    %v6607 = vpop.permute.xlu0 %6606
    %6609 = vset.pattern.permute.xlu0 5
    %6610 = vperm.xlu0 %6609, %v28
    %v6611 = vpop.permute.xlu0 %6610
    %6613 = vset.pattern.permute.xlu0 5
    %6614 = vperm.xlu0 %6613, %v29
    %v6615 = vpop.permute.xlu0 %6614
    %6617 = vset.pattern.permute.xlu0 5
    %6618 = vperm.xlu0 %6617, %v30
    %v6619 = vpop.permute.xlu0 %6618
    %6621 = vset.pattern.permute.xlu0 5
    %6622 = vperm.xlu0 %6621, %v31
    %v6623 = vpop.permute.xlu0 %6622
    %v6625 = vmul.f32 %v6563, %v6595
    %v6626 = vmul.f32 %v6564, %v6599
    %v6627 = vmul.f32 %v6565, %v6603
    %v6628 = vmul.f32 %v6566, %v6607
    %v6629 = vmul.f32 %v6567, %v6611
    %v6630 = vmul.f32 %v6568, %v6615
    %v6631 = vmul.f32 %v6569, %v6619
    %v6632 = vmul.f32 %v6570, %v6623
    %v6633 = vadd.f32 %v6625, %v6626
    %v6634 = vadd.f32 %v6633, %v6627
    %v6635 = vadd.f32 %v6634, %v6628
    %v6636 = vadd.f32 %v6635, %v6629
    %v6637 = vadd.f32 %v6636, %v6630
    %v6638 = vadd.f32 %v6637, %v6631
    %v6639 = vadd.f32 %v6638, %v6632
    %v6640 = vrot.slane %v6639, 4
    %v6641 = vadd.f32 %v6639, %v6640
    %v6642 = vrot.slane %v6641, 2
    %v6643 = vadd.f32 %v6641, %v6642
    %v6644 = vrot.slane %v6643, 1
    %v6645 = vadd.f32 %v6643, %v6644
    %v6646 = vadd.f32 %v6645, 0.0
    %6647 = vset.pattern.permute.xlu0 6
    %6648 = vperm.xlu0 %6647, %v24
    %v6649 = vpop.permute.xlu0 %6648
    %6651 = vset.pattern.permute.xlu0 6
    %6652 = vperm.xlu0 %6651, %v25
    %v6653 = vpop.permute.xlu0 %6652
    %6655 = vset.pattern.permute.xlu0 6
    %6656 = vperm.xlu0 %6655, %v26
    %v6657 = vpop.permute.xlu0 %6656
    %6659 = vset.pattern.permute.xlu0 6
    %6660 = vperm.xlu0 %6659, %v27
    %v6661 = vpop.permute.xlu0 %6660
    %6663 = vset.pattern.permute.xlu0 6
    %6664 = vperm.xlu0 %6663, %v28
    %v6665 = vpop.permute.xlu0 %6664
    %6667 = vset.pattern.permute.xlu0 6
    %6668 = vperm.xlu0 %6667, %v29
    %v6669 = vpop.permute.xlu0 %6668
    %6671 = vset.pattern.permute.xlu0 6
    %6672 = vperm.xlu0 %6671, %v30
    %v6673 = vpop.permute.xlu0 %6672
    %6675 = vset.pattern.permute.xlu0 6
    %6676 = vperm.xlu0 %6675, %v31
    %v6677 = vpop.permute.xlu0 %6676
    %v6679 = vmul.f32 %v6563, %v6649
    %v6680 = vmul.f32 %v6564, %v6653
    %v6681 = vmul.f32 %v6565, %v6657
    %v6682 = vmul.f32 %v6566, %v6661
    %v6683 = vmul.f32 %v6567, %v6665
    %v6684 = vmul.f32 %v6568, %v6669
    %v6685 = vmul.f32 %v6569, %v6673
    %v6686 = vmul.f32 %v6570, %v6677
    %v6687 = vadd.f32 %v6679, %v6680
    %v6688 = vadd.f32 %v6687, %v6681
    %v6689 = vadd.f32 %v6688, %v6682
    %v6690 = vadd.f32 %v6689, %v6683
    %v6691 = vadd.f32 %v6690, %v6684
    %v6692 = vadd.f32 %v6691, %v6685
    %v6693 = vadd.f32 %v6692, %v6686
    %v6694 = vrot.slane %v6693, 4
    %v6695 = vadd.f32 %v6693, %v6694
    %v6696 = vrot.slane %v6695, 2
    %v6697 = vadd.f32 %v6695, %v6696
    %v6698 = vrot.slane %v6697, 1
    %v6699 = vadd.f32 %v6697, %v6698
    %v6700 = vadd.f32 %v6699, 0.0
    %6701 = vset.pattern.permute.xlu0 7
    %6702 = vperm.xlu0 %6701, %v24
    %v6703 = vpop.permute.xlu0 %6702
    %6705 = vset.pattern.permute.xlu0 7
    %6706 = vperm.xlu0 %6705, %v25
    %v6707 = vpop.permute.xlu0 %6706
    %6709 = vset.pattern.permute.xlu0 7
    %6710 = vperm.xlu0 %6709, %v26
    %v6711 = vpop.permute.xlu0 %6710
    %6713 = vset.pattern.permute.xlu0 7
    %6714 = vperm.xlu0 %6713, %v27
    %v6715 = vpop.permute.xlu0 %6714
    %6717 = vset.pattern.permute.xlu0 7
    %6718 = vperm.xlu0 %6717, %v28
    %v6719 = vpop.permute.xlu0 %6718
    %6721 = vset.pattern.permute.xlu0 7
    %6722 = vperm.xlu0 %6721, %v29
    %v6723 = vpop.permute.xlu0 %6722
    %6725 = vset.pattern.permute.xlu0 7
    %6726 = vperm.xlu0 %6725, %v30
    %v6727 = vpop.permute.xlu0 %6726
    %6729 = vset.pattern.permute.xlu0 7
    %6730 = vperm.xlu0 %6729, %v31
    %v6731 = vpop.permute.xlu0 %6730
    %v6733 = vmul.f32 %v6563, %v6703
    %v6734 = vmul.f32 %v6564, %v6707
    %v6735 = vmul.f32 %v6565, %v6711
    %v6736 = vmul.f32 %v6566, %v6715
    %v6737 = vmul.f32 %v6567, %v6719
    %v6738 = vmul.f32 %v6568, %v6723
    %v6739 = vmul.f32 %v6569, %v6727
    %v6740 = vmul.f32 %v6570, %v6731
    %v6741 = vadd.f32 %v6733, %v6734
    %v6742 = vadd.f32 %v6741, %v6735
    %v6743 = vadd.f32 %v6742, %v6736
    %v6744 = vadd.f32 %v6743, %v6737
    %v6745 = vadd.f32 %v6744, %v6738
    %v6746 = vadd.f32 %v6745, %v6739
    %v6747 = vadd.f32 %v6746, %v6740
    %v6748 = vrot.slane %v6747, 4
    %v6749 = vadd.f32 %v6747, %v6748
    %v6750 = vrot.slane %v6749, 2
    %v6751 = vadd.f32 %v6749, %v6750
    %v6752 = vrot.slane %v6751, 1
    %v6753 = vadd.f32 %v6751, %v6752
    %v6754 = vadd.f32 %v6753, 0.0
    %v6755 = vmul.f32 %v3510, %v6595
    %v6756 = vmul.f32 %v3511, %v6599
    %v6757 = vmul.f32 %v3512, %v6603
    %v6758 = vmul.f32 %v3513, %v6607
    %v6759 = vmul.f32 %v3514, %v6611
    %v6760 = vmul.f32 %v3515, %v6615
    %v6761 = vmul.f32 %v3516, %v6619
    %v6762 = vmul.f32 %v3517, %v6623
    %v6763 = vmul.f32 %v6755, %v6595
    %v6764 = vmul.f32 %v6756, %v6599
    %v6765 = vmul.f32 %v6757, %v6603
    %v6766 = vmul.f32 %v6758, %v6607
    %v6767 = vmul.f32 %v6759, %v6611
    %v6768 = vmul.f32 %v6760, %v6615
    %v6769 = vmul.f32 %v6761, %v6619
    %v6770 = vmul.f32 %v6762, %v6623
    %v6771 = vadd.f32 %v6763, %v6764
    %v6772 = vadd.f32 %v6771, %v6765
    %v6773 = vadd.f32 %v6772, %v6766
    %v6774 = vadd.f32 %v6773, %v6767
    %v6775 = vadd.f32 %v6774, %v6768
    %v6776 = vadd.f32 %v6775, %v6769
    %v6777 = vadd.f32 %v6776, %v6770
    %v6778 = vrot.slane %v6777, 4
    %v6779 = vadd.f32 %v6777, %v6778
    %v6780 = vrot.slane %v6779, 2
    %v6781 = vadd.f32 %v6779, %v6780
    %v6782 = vrot.slane %v6781, 1
    %v6783 = vadd.f32 %v6781, %v6782
    %v6784 = vadd.f32 %v6783, 0.0
    %v6785 = vmul.f32 %v6755, %v6649
    %v6786 = vmul.f32 %v6756, %v6653
    %v6787 = vmul.f32 %v6757, %v6657
    %v6788 = vmul.f32 %v6758, %v6661
    %v6789 = vmul.f32 %v6759, %v6665
    %v6790 = vmul.f32 %v6760, %v6669
    %v6791 = vmul.f32 %v6761, %v6673
    %v6792 = vmul.f32 %v6762, %v6677
    %v6793 = vadd.f32 %v6785, %v6786
    %v6794 = vadd.f32 %v6793, %v6787
    %v6795 = vadd.f32 %v6794, %v6788
    %v6796 = vadd.f32 %v6795, %v6789
    %v6797 = vadd.f32 %v6796, %v6790
    %v6798 = vadd.f32 %v6797, %v6791
    %v6799 = vadd.f32 %v6798, %v6792
    %v6800 = vrot.slane %v6799, 4
    %v6801 = vadd.f32 %v6799, %v6800
    %v6802 = vrot.slane %v6801, 2
    %v6803 = vadd.f32 %v6801, %v6802
    %v6804 = vrot.slane %v6803, 1
    %v6805 = vadd.f32 %v6803, %v6804
    %v6806 = vadd.f32 %v6805, 0.0
    %v6807 = vmul.f32 %v6755, %v6703
    %v6808 = vmul.f32 %v6756, %v6707
    %v6809 = vmul.f32 %v6757, %v6711
    %v6810 = vmul.f32 %v6758, %v6715
    %v6811 = vmul.f32 %v6759, %v6719
    %v6812 = vmul.f32 %v6760, %v6723
    %v6813 = vmul.f32 %v6761, %v6727
    %v6814 = vmul.f32 %v6762, %v6731
    %v6815 = vadd.f32 %v6807, %v6808
    %v6816 = vadd.f32 %v6815, %v6809
    %v6817 = vadd.f32 %v6816, %v6810
    %v6818 = vadd.f32 %v6817, %v6811
    %v6819 = vadd.f32 %v6818, %v6812
    %v6820 = vadd.f32 %v6819, %v6813
    %v6821 = vadd.f32 %v6820, %v6814
    %v6822 = vrot.slane %v6821, 4
    %v6823 = vadd.f32 %v6821, %v6822
    %v6824 = vrot.slane %v6823, 2
    %v6825 = vadd.f32 %v6823, %v6824
    %v6826 = vrot.slane %v6825, 1
    %v6827 = vadd.f32 %v6825, %v6826
    %v6828 = vadd.f32 %v6827, 0.0
    %v6829 = vmul.f32 %v3510, %v6649
    %v6830 = vmul.f32 %v3511, %v6653
    %v6831 = vmul.f32 %v3512, %v6657
    %v6832 = vmul.f32 %v3513, %v6661
    %v6833 = vmul.f32 %v3514, %v6665
    %v6834 = vmul.f32 %v3515, %v6669
    %v6835 = vmul.f32 %v3516, %v6673
    %v6836 = vmul.f32 %v3517, %v6677
    %v6837 = vmul.f32 %v6829, %v6649
    %v6838 = vmul.f32 %v6830, %v6653
    %v6839 = vmul.f32 %v6831, %v6657
    %v6840 = vmul.f32 %v6832, %v6661
    %v6841 = vmul.f32 %v6833, %v6665
    %v6842 = vmul.f32 %v6834, %v6669
    %v6843 = vmul.f32 %v6835, %v6673
    %v6844 = vmul.f32 %v6836, %v6677
    %v6845 = vadd.f32 %v6837, %v6838
    %v6846 = vadd.f32 %v6845, %v6839
    %v6847 = vadd.f32 %v6846, %v6840
    %v6848 = vadd.f32 %v6847, %v6841
    %v6849 = vadd.f32 %v6848, %v6842
    %v6850 = vadd.f32 %v6849, %v6843
    %v6851 = vadd.f32 %v6850, %v6844
    %v6852 = vrot.slane %v6851, 4
    %v6853 = vadd.f32 %v6851, %v6852
    %v6854 = vrot.slane %v6853, 2
    %v6855 = vadd.f32 %v6853, %v6854
    %v6856 = vrot.slane %v6855, 1
    %v6857 = vadd.f32 %v6855, %v6856
    %v6858 = vadd.f32 %v6857, 0.0
    %v6859 = vmul.f32 %v6829, %v6703
    %v6860 = vmul.f32 %v6830, %v6707
    %v6861 = vmul.f32 %v6831, %v6711
    %v6862 = vmul.f32 %v6832, %v6715
    %v6863 = vmul.f32 %v6833, %v6719
    %v6864 = vmul.f32 %v6834, %v6723
    %v6865 = vmul.f32 %v6835, %v6727
    %v6866 = vmul.f32 %v6836, %v6731
    %v6867 = vadd.f32 %v6859, %v6860
    %v6868 = vadd.f32 %v6867, %v6861
    %v6869 = vadd.f32 %v6868, %v6862
    %v6870 = vadd.f32 %v6869, %v6863
    %v6871 = vadd.f32 %v6870, %v6864
    %v6872 = vadd.f32 %v6871, %v6865
    %v6873 = vadd.f32 %v6872, %v6866
    %v6874 = vrot.slane %v6873, 4
    %v6875 = vadd.f32 %v6873, %v6874
    %v6876 = vrot.slane %v6875, 2
    %v6877 = vadd.f32 %v6875, %v6876
    %v6878 = vrot.slane %v6877, 1
    %v6879 = vadd.f32 %v6877, %v6878
    %v6880 = vadd.f32 %v6879, 0.0
    %v6881 = vmul.f32 %v3510, %v6703
    %v6882 = vmul.f32 %v3511, %v6707
    %v6883 = vmul.f32 %v3512, %v6711
    %v6884 = vmul.f32 %v3513, %v6715
    %v6885 = vmul.f32 %v3514, %v6719
    %v6886 = vmul.f32 %v3515, %v6723
    %v6887 = vmul.f32 %v3516, %v6727
    %v6888 = vmul.f32 %v3517, %v6731
    %v6889 = vmul.f32 %v6881, %v6703
    %v6890 = vmul.f32 %v6882, %v6707
    %v6891 = vmul.f32 %v6883, %v6711
    %v6892 = vmul.f32 %v6884, %v6715
    %v6893 = vmul.f32 %v6885, %v6719
    %v6894 = vmul.f32 %v6886, %v6723
    %v6895 = vmul.f32 %v6887, %v6727
    %v6896 = vmul.f32 %v6888, %v6731
    %v6897 = vadd.f32 %v6889, %v6890
    %v6898 = vadd.f32 %v6897, %v6891
    %v6899 = vadd.f32 %v6898, %v6892
    %v6900 = vadd.f32 %v6899, %v6893
    %v6901 = vadd.f32 %v6900, %v6894
    %v6902 = vadd.f32 %v6901, %v6895
    %v6903 = vadd.f32 %v6902, %v6896
    %v6904 = vrot.slane %v6903, 4
    %v6905 = vadd.f32 %v6903, %v6904
    %v6906 = vrot.slane %v6905, 2
    %v6907 = vadd.f32 %v6905, %v6906
    %v6908 = vrot.slane %v6907, 1
    %v6909 = vadd.f32 %v6907, %v6908
    %v6910 = vadd.f32 %v6909, 0.0
    %v6911 = vmul.f32 %v950, %v6533
    %v6912 = vmul.f32 %v952, %v6537
    %v6913 = vmul.f32 %v954, %v6541
    %v6914 = vmul.f32 %v956, %v6545
    %v6915 = vmul.f32 %v958, %v6549
    %v6916 = vmul.f32 %v960, %v6553
    %v6917 = vmul.f32 %v962, %v6557
    %v6918 = vmul.f32 %v964, %v6561
    %v6919 = vmul.f32 %v950, %v6595
    %v6920 = vmul.f32 %v952, %v6599
    %v6921 = vmul.f32 %v954, %v6603
    %v6922 = vmul.f32 %v956, %v6607
    %v6923 = vmul.f32 %v958, %v6611
    %v6924 = vmul.f32 %v960, %v6615
    %v6925 = vmul.f32 %v962, %v6619
    %v6926 = vmul.f32 %v964, %v6623
    %v6927 = vmul.f32 %v950, %v6649
    %v6928 = vmul.f32 %v952, %v6653
    %v6929 = vmul.f32 %v954, %v6657
    %v6930 = vmul.f32 %v956, %v6661
    %v6931 = vmul.f32 %v958, %v6665
    %v6932 = vmul.f32 %v960, %v6669
    %v6933 = vmul.f32 %v962, %v6673
    %v6934 = vmul.f32 %v964, %v6677
    %v6935 = vmul.f32 %v950, %v6703
    %v6936 = vmul.f32 %v952, %v6707
    %v6937 = vmul.f32 %v954, %v6711
    %v6938 = vmul.f32 %v956, %v6715
    %v6939 = vmul.f32 %v958, %v6719
    %v6940 = vmul.f32 %v960, %v6723
    %v6941 = vmul.f32 %v962, %v6727
    %v6942 = vmul.f32 %v964, %v6731
    %v6943 = vand.u32 %v6919, 4294901760
    %6944 = vmatprep.subr.mxu0 %v6943
    %v6945 = vand.u32 %v6911, 4294901760
    %6946 = vmatpush1.msra.mxu0 %v6945
    %v6947 = vand.u32 %v6920, 4294901760
    %6948 = vmatprep.subr.mxu0 %v6947
    %v6949 = vand.u32 %v6912, 4294901760
    %6950 = vmatpush1.msra.mxu0 %v6949
    %v6951 = vand.u32 %v6921, 4294901760
    %6952 = vmatprep.subr.mxu0 %v6951
    %v6953 = vand.u32 %v6913, 4294901760
    %6954 = vmatpush1.msra.mxu0 %v6953
    %v6955 = vand.u32 %v6922, 4294901760
    %6956 = vmatprep.subr.mxu0 %v6955
    %v6957 = vand.u32 %v6914, 4294901760
    %6958 = vmatpush1.msra.mxu0 %v6957
    %v6959 = vand.u32 %v6923, 4294901760
    %6960 = vmatprep.subr.mxu0 %v6959
    %v6961 = vand.u32 %v6915, 4294901760
    %6962 = vmatpush1.msra.mxu0 %v6961
    %v6963 = vand.u32 %v6924, 4294901760
    %6964 = vmatprep.subr.mxu0 %v6963
    %v6965 = vand.u32 %v6916, 4294901760
    %6966 = vmatpush1.msra.mxu0 %v6965
    %v6967 = vand.u32 %v6925, 4294901760
    %6968 = vmatprep.subr.mxu0 %v6967
    %v6969 = vand.u32 %v6917, 4294901760
    %6970 = vmatpush1.msra.mxu0 %v6969
    %v6971 = vand.u32 %v6926, 4294901760
    %6972 = vmatprep.subr.mxu0 %v6971
    %v6973 = vand.u32 %v6918, 4294901760
    %6974 = vmatpush1.msra.mxu0 %v6973
    %6975 = vmatprep.subr.mxu0 0.0
    %6976 = vmatpush1.msra.mxu0 0.0
    %6977 = vmatprep.subr.mxu0 0.0
    %6978 = vmatpush1.msra.mxu0 0.0
    %6979 = vmatprep.subr.mxu0 0.0
    %6980 = vmatpush1.msra.mxu0 0.0
    %6981 = vmatprep.subr.mxu0 0.0
    %6982 = vmatpush1.msra.mxu0 0.0
    %6983 = vmatprep.subr.mxu0 0.0
    %6984 = vmatpush1.msra.mxu0 0.0
    %6985 = vmatprep.subr.mxu0 0.0
    %6986 = vmatpush1.msra.mxu0 0.0
    %6987 = vmatprep.subr.mxu0 0.0
    %6988 = vmatpush1.msra.mxu0 0.0
    %6989 = vmatprep.subr.mxu0 0.0
    %6990 = vmatpush1.msra.mxu0 0.0
    %6991 = vmatprep.subr.mxu0 0.0
    %6992 = vmatpush1.msra.mxu0 0.0
    %6993 = vmatprep.subr.mxu0 0.0
    %6994 = vmatpush1.msra.mxu0 0.0
    %6995 = vmatprep.subr.mxu0 0.0
    %6996 = vmatpush1.msra.mxu0 0.0
    %6997 = vmatprep.subr.mxu0 0.0
    %6998 = vmatpush1.msra.mxu0 0.0
    %6999 = vmatprep.subr.mxu0 0.0
    %7000 = vmatpush1.msra.mxu0 0.0
    %7001 = vmatprep.subr.mxu0 0.0
    %7002 = vmatpush1.msra.mxu0 0.0
    %7003 = vmatprep.subr.mxu0 0.0
    %7004 = vmatpush1.msra.mxu0 0.0
    %7005 = vmatprep.subr.mxu0 0.0
    %7006 = vmatpush1.msra.mxu0 0.0
    %7007 = vmatprep.subr.mxu0 0.0
    %7008 = vmatpush1.msra.mxu0 0.0
    %7009 = vmatprep.subr.mxu0 0.0
    %7010 = vmatpush1.msra.mxu0 0.0
    %7011 = vmatprep.subr.mxu0 0.0
    %7012 = vmatpush1.msra.mxu0 0.0
    %7013 = vmatprep.subr.mxu0 0.0
    %7014 = vmatpush1.msra.mxu0 0.0
    %7015 = vmatprep.subr.mxu0 0.0
    %7016 = vmatpush1.msra.mxu0 0.0
    %7017 = vmatprep.subr.mxu0 0.0
    %7018 = vmatpush1.msra.mxu0 0.0
    %7019 = vmatprep.subr.mxu0 0.0
    %7020 = vmatpush1.msra.mxu0 0.0
    %7021 = vmatprep.subr.mxu0 0.0
    %7022 = vmatpush1.msra.mxu0 0.0
    %7023 = vmatprep.mubr.f32.mxu0 0.0
    %v7024 = vand.u32 %v1023, 4294901760
    %v7025 = vsub.f32 %v1023, %v7024
    %v7026 = vand.u32 %v7025, 4294901760
    %v7027 = vsub.f32 %v7025, %v7026
    %v7028 = vand.u32 %v7027, 4294901760
    %7029 = vmatmul.mubr.f32.gmra.mrb[0].mxu0 %v7028
    %v7030 = vpop.f32.mrb[0].mxu0
    %v7031 = vadd.f32 0.0, %v7030
    %v7032 = vpop.f32.mrb[0].mxu0
    %v7033 = vadd.f32 0.0, %v7032
    %7034 = vmatprep.mubr.f32.mxu0 0.0
    %v7035 = vand.u32 %v1026, 4294901760
    %v7036 = vsub.f32 %v1026, %v7035
    %v7037 = vand.u32 %v7036, 4294901760
    %v7038 = vsub.f32 %v7036, %v7037
    %v7039 = vand.u32 %v7038, 4294901760
    %7040 = vmatmul.mubr.f32.gmra.mrb[0].mxu0 %v7039
    %v7041 = vpop.f32.mrb[0].mxu0
    %v7042 = vadd.f32 0.0, %v7041
    %v7043 = vpop.f32.mrb[0].mxu0
    %v7044 = vadd.f32 0.0, %v7043
    %7045 = vmatprep.mubr.f32.mxu0 0.0
    %v7046 = vand.u32 %v1029, 4294901760
    %v7047 = vsub.f32 %v1029, %v7046
    %v7048 = vand.u32 %v7047, 4294901760
    %v7049 = vsub.f32 %v7047, %v7048
    %v7050 = vand.u32 %v7049, 4294901760
    %7051 = vmatmul.mubr.f32.gmra.mrb[0].mxu0 %v7050
    %v7052 = vpop.f32.mrb[0].mxu0
    %v7053 = vadd.f32 0.0, %v7052
    %v7054 = vpop.f32.mrb[0].mxu0
    %v7055 = vadd.f32 0.0, %v7054
    %7056 = vmatprep.mubr.f32.mxu0 0.0
    %v7057 = vand.u32 %v1032, 4294901760
    %v7058 = vsub.f32 %v1032, %v7057
    %v7059 = vand.u32 %v7058, 4294901760
    %v7060 = vsub.f32 %v7058, %v7059
    %v7061 = vand.u32 %v7060, 4294901760
    %7062 = vmatmul.mubr.f32.gmra.mrb[0].mxu0 %v7061
    %v7063 = vpop.f32.mrb[0].mxu0
    %v7064 = vadd.f32 0.0, %v7063
    %v7065 = vpop.f32.mrb[0].mxu0
    %v7066 = vadd.f32 0.0, %v7065
    %7067 = vmatprep.mubr.f32.mxu0 0.0
    %v7068 = vand.u32 %v1035, 4294901760
    %v7069 = vsub.f32 %v1035, %v7068
    %v7070 = vand.u32 %v7069, 4294901760
    %v7071 = vsub.f32 %v7069, %v7070
    %v7072 = vand.u32 %v7071, 4294901760
    %7073 = vmatmul.mubr.f32.gmra.mrb[0].mxu0 %v7072
    %v7074 = vpop.f32.mrb[0].mxu0
    %v7075 = vadd.f32 0.0, %v7074
    %v7076 = vpop.f32.mrb[0].mxu0
    %v7077 = vadd.f32 0.0, %v7076
    %7078 = vmatprep.mubr.f32.mxu0 0.0
    %v7079 = vand.u32 %v1038, 4294901760
    %v7080 = vsub.f32 %v1038, %v7079
    %v7081 = vand.u32 %v7080, 4294901760
    %v7082 = vsub.f32 %v7080, %v7081
    %v7083 = vand.u32 %v7082, 4294901760
    %7084 = vmatmul.mubr.f32.gmra.mrb[0].mxu0 %v7083
    %v7085 = vpop.f32.mrb[0].mxu0
    %v7086 = vadd.f32 0.0, %v7085
    %v7087 = vpop.f32.mrb[0].mxu0
    %v7088 = vadd.f32 0.0, %v7087
    %7089 = vmatprep.mubr.f32.mxu0 0.0
    %v7090 = vand.u32 %v1041, 4294901760
    %v7091 = vsub.f32 %v1041, %v7090
    %v7092 = vand.u32 %v7091, 4294901760
    %v7093 = vsub.f32 %v7091, %v7092
    %v7094 = vand.u32 %v7093, 4294901760
    %7095 = vmatmul.mubr.f32.gmra.mrb[0].mxu0 %v7094
    %v7096 = vpop.f32.mrb[0].mxu0
    %v7097 = vadd.f32 0.0, %v7096
    %v7098 = vpop.f32.mrb[0].mxu0
    %v7099 = vadd.f32 0.0, %v7098
    %7100 = vmatprep.mubr.f32.mxu0 0.0
    %v7101 = vand.u32 %v1044, 4294901760
    %v7102 = vsub.f32 %v1044, %v7101
    %v7103 = vand.u32 %v7102, 4294901760
    %v7104 = vsub.f32 %v7102, %v7103
    %v7105 = vand.u32 %v7104, 4294901760
    %7106 = vmatmul.mubr.f32.gmra.mrb[0].mxu0 %v7105
    %v7107 = vpop.f32.mrb[0].mxu0
    %v7108 = vadd.f32 0.0, %v7107
    %v7109 = vpop.f32.mrb[0].mxu0
    %v7110 = vadd.f32 0.0, %v7109
    %7111 = vdwg.mxu0
    %v7112 = vand.u32 %v6919, 4294901760
    %v7113 = vsub.f32 %v6919, %v7112
    %v7114 = vand.u32 %v7113, 4294901760
    %v7115 = vsub.f32 %v7113, %v7114
    %v7116 = vand.u32 %v7115, 4294901760
    %7117 = vmatprep.subr.mxu0 %v7116
    %v7118 = vand.u32 %v6911, 4294901760
    %v7119 = vsub.f32 %v6911, %v7118
    %v7120 = vand.u32 %v7119, 4294901760
    %v7121 = vsub.f32 %v7119, %v7120
    %v7122 = vand.u32 %v7121, 4294901760
    %7123 = vmatpush1.msra.mxu0 %v7122
    %v7124 = vand.u32 %v6920, 4294901760
    %v7125 = vsub.f32 %v6920, %v7124
    %v7126 = vand.u32 %v7125, 4294901760
    %v7127 = vsub.f32 %v7125, %v7126
    %v7128 = vand.u32 %v7127, 4294901760
    %7129 = vmatprep.subr.mxu0 %v7128
    %v7130 = vand.u32 %v6912, 4294901760
    %v7131 = vsub.f32 %v6912, %v7130
    %v7132 = vand.u32 %v7131, 4294901760
    %v7133 = vsub.f32 %v7131, %v7132
    %v7134 = vand.u32 %v7133, 4294901760
    %7135 = vmatpush1.msra.mxu0 %v7134
    %v7136 = vand.u32 %v6921, 4294901760
    %v7137 = vsub.f32 %v6921, %v7136
    %v7138 = vand.u32 %v7137, 4294901760
    %v7139 = vsub.f32 %v7137, %v7138
    %v7140 = vand.u32 %v7139, 4294901760
    %7141 = vmatprep.subr.mxu0 %v7140
    %v7142 = vand.u32 %v6913, 4294901760
    %v7143 = vsub.f32 %v6913, %v7142
    %v7144 = vand.u32 %v7143, 4294901760
    %v7145 = vsub.f32 %v7143, %v7144
    %v7146 = vand.u32 %v7145, 4294901760
    %7147 = vmatpush1.msra.mxu0 %v7146
    %v7148 = vand.u32 %v6922, 4294901760
    %v7149 = vsub.f32 %v6922, %v7148
    %v7150 = vand.u32 %v7149, 4294901760
    %v7151 = vsub.f32 %v7149, %v7150
    %v7152 = vand.u32 %v7151, 4294901760
    %7153 = vmatprep.subr.mxu0 %v7152
    %v7154 = vand.u32 %v6914, 4294901760
    %v7155 = vsub.f32 %v6914, %v7154
    %v7156 = vand.u32 %v7155, 4294901760
    %v7157 = vsub.f32 %v7155, %v7156
    %v7158 = vand.u32 %v7157, 4294901760
    %7159 = vmatpush1.msra.mxu0 %v7158
    %v7160 = vand.u32 %v6923, 4294901760
    %v7161 = vsub.f32 %v6923, %v7160
    %v7162 = vand.u32 %v7161, 4294901760
    %v7163 = vsub.f32 %v7161, %v7162
    %v7164 = vand.u32 %v7163, 4294901760
    %7165 = vmatprep.subr.mxu0 %v7164
    %v7166 = vand.u32 %v6915, 4294901760
    %v7167 = vsub.f32 %v6915, %v7166
    %v7168 = vand.u32 %v7167, 4294901760
    %v7169 = vsub.f32 %v7167, %v7168
    %v7170 = vand.u32 %v7169, 4294901760
    %7171 = vmatpush1.msra.mxu0 %v7170
    %v7172 = vand.u32 %v6924, 4294901760
    %v7173 = vsub.f32 %v6924, %v7172
    %v7174 = vand.u32 %v7173, 4294901760
    %v7175 = vsub.f32 %v7173, %v7174
    %v7176 = vand.u32 %v7175, 4294901760
    %7177 = vmatprep.subr.mxu0 %v7176
    %v7178 = vand.u32 %v6916, 4294901760
    %v7179 = vsub.f32 %v6916, %v7178
    %v7180 = vand.u32 %v7179, 4294901760
    %v7181 = vsub.f32 %v7179, %v7180
    %v7182 = vand.u32 %v7181, 4294901760
    %7183 = vmatpush1.msra.mxu0 %v7182
    %v7184 = vand.u32 %v6925, 4294901760
    %v7185 = vsub.f32 %v6925, %v7184
    %v7186 = vand.u32 %v7185, 4294901760
    %v7187 = vsub.f32 %v7185, %v7186
    %v7188 = vand.u32 %v7187, 4294901760
    %7189 = vmatprep.subr.mxu0 %v7188
    %v7190 = vand.u32 %v6917, 4294901760
    %v7191 = vsub.f32 %v6917, %v7190
    %v7192 = vand.u32 %v7191, 4294901760
    %v7193 = vsub.f32 %v7191, %v7192
    %v7194 = vand.u32 %v7193, 4294901760
    %7195 = vmatpush1.msra.mxu0 %v7194
    %v7196 = vand.u32 %v6926, 4294901760
    %v7197 = vsub.f32 %v6926, %v7196
    %v7198 = vand.u32 %v7197, 4294901760
    %v7199 = vsub.f32 %v7197, %v7198
    %v7200 = vand.u32 %v7199, 4294901760
    %7201 = vmatprep.subr.mxu0 %v7200
    %v7202 = vand.u32 %v6918, 4294901760
    %v7203 = vsub.f32 %v6918, %v7202
    %v7204 = vand.u32 %v7203, 4294901760
    %v7205 = vsub.f32 %v7203, %v7204
    %v7206 = vand.u32 %v7205, 4294901760
    %7207 = vmatpush1.msra.mxu0 %v7206
    %7208 = vmatprep.subr.mxu0 0.0
    %7209 = vmatpush1.msra.mxu0 0.0
    %7210 = vmatprep.subr.mxu0 0.0
    %7211 = vmatpush1.msra.mxu0 0.0
    %7212 = vmatprep.subr.mxu0 0.0
    %7213 = vmatpush1.msra.mxu0 0.0
    %7214 = vmatprep.subr.mxu0 0.0
    %7215 = vmatpush1.msra.mxu0 0.0
    %7216 = vmatprep.subr.mxu0 0.0
    %7217 = vmatpush1.msra.mxu0 0.0
    %7218 = vmatprep.subr.mxu0 0.0
    %7219 = vmatpush1.msra.mxu0 0.0
    %7220 = vmatprep.subr.mxu0 0.0
    %7221 = vmatpush1.msra.mxu0 0.0
    %7222 = vmatprep.subr.mxu0 0.0
    %7223 = vmatpush1.msra.mxu0 0.0
    %7224 = vmatprep.subr.mxu0 0.0
    %7225 = vmatpush1.msra.mxu0 0.0
    %7226 = vmatprep.subr.mxu0 0.0
    %7227 = vmatpush1.msra.mxu0 0.0
    %7228 = vmatprep.subr.mxu0 0.0
    %7229 = vmatpush1.msra.mxu0 0.0
    %7230 = vmatprep.subr.mxu0 0.0
    %7231 = vmatpush1.msra.mxu0 0.0
    %7232 = vmatprep.subr.mxu0 0.0
    %7233 = vmatpush1.msra.mxu0 0.0
    %7234 = vmatprep.subr.mxu0 0.0
    %7235 = vmatpush1.msra.mxu0 0.0
    %7236 = vmatprep.subr.mxu0 0.0
    %7237 = vmatpush1.msra.mxu0 0.0
    %7238 = vmatprep.subr.mxu0 0.0
    %7239 = vmatpush1.msra.mxu0 0.0
    %7240 = vmatprep.subr.mxu0 0.0
    %7241 = vmatpush1.msra.mxu0 0.0
    %7242 = vmatprep.subr.mxu0 0.0
    %7243 = vmatpush1.msra.mxu0 0.0
    %7244 = vmatprep.subr.mxu0 0.0
    %7245 = vmatpush1.msra.mxu0 0.0
    %7246 = vmatprep.subr.mxu0 0.0
    %7247 = vmatpush1.msra.mxu0 0.0
    %7248 = vmatprep.subr.mxu0 0.0
    %7249 = vmatpush1.msra.mxu0 0.0
    %7250 = vmatprep.subr.mxu0 0.0
    %7251 = vmatpush1.msra.mxu0 0.0
    %7252 = vmatprep.subr.mxu0 0.0
    %7253 = vmatpush1.msra.mxu0 0.0
    %7254 = vmatprep.subr.mxu0 0.0
    %7255 = vmatpush1.msra.mxu0 0.0
    %7256 = vmatprep.mubr.f32.mxu0 0.0
    %v7257 = vand.u32 %v1023, 4294901760
    %7258 = vmatmul.mubr.f32.gmra.mrb[0].mxu0 %v7257
    %v7259 = vpop.f32.mrb[0].mxu0
    %v7260 = vadd.f32 %v7031, %v7259
    %v7261 = vpop.f32.mrb[0].mxu0
    %v7262 = vadd.f32 %v7033, %v7261
    %7263 = vmatprep.mubr.f32.mxu0 0.0
    %v7264 = vand.u32 %v1026, 4294901760
    %7265 = vmatmul.mubr.f32.gmra.mrb[0].mxu0 %v7264
    %v7266 = vpop.f32.mrb[0].mxu0
    %v7267 = vadd.f32 %v7042, %v7266
    %v7268 = vpop.f32.mrb[0].mxu0
    %v7269 = vadd.f32 %v7044, %v7268
    %7270 = vmatprep.mubr.f32.mxu0 0.0
    %v7271 = vand.u32 %v1029, 4294901760
    %7272 = vmatmul.mubr.f32.gmra.mrb[0].mxu0 %v7271
    %v7273 = vpop.f32.mrb[0].mxu0
    %v7274 = vadd.f32 %v7053, %v7273
    %v7275 = vpop.f32.mrb[0].mxu0
    %v7276 = vadd.f32 %v7055, %v7275
    %7277 = vmatprep.mubr.f32.mxu0 0.0
    %v7278 = vand.u32 %v1032, 4294901760
    %7279 = vmatmul.mubr.f32.gmra.mrb[0].mxu0 %v7278
    %v7280 = vpop.f32.mrb[0].mxu0
    %v7281 = vadd.f32 %v7064, %v7280
    %v7282 = vpop.f32.mrb[0].mxu0
    %v7283 = vadd.f32 %v7066, %v7282
    %7284 = vmatprep.mubr.f32.mxu0 0.0
    %v7285 = vand.u32 %v1035, 4294901760
    %7286 = vmatmul.mubr.f32.gmra.mrb[0].mxu0 %v7285
    %v7287 = vpop.f32.mrb[0].mxu0
    %v7288 = vadd.f32 %v7075, %v7287
    %v7289 = vpop.f32.mrb[0].mxu0
    %v7290 = vadd.f32 %v7077, %v7289
    %7291 = vmatprep.mubr.f32.mxu0 0.0
    %v7292 = vand.u32 %v1038, 4294901760
    %7293 = vmatmul.mubr.f32.gmra.mrb[0].mxu0 %v7292
    %v7294 = vpop.f32.mrb[0].mxu0
    %v7295 = vadd.f32 %v7086, %v7294
    %v7296 = vpop.f32.mrb[0].mxu0
    %v7297 = vadd.f32 %v7088, %v7296
    %7298 = vmatprep.mubr.f32.mxu0 0.0
    %v7299 = vand.u32 %v1041, 4294901760
    %7300 = vmatmul.mubr.f32.gmra.mrb[0].mxu0 %v7299
    %v7301 = vpop.f32.mrb[0].mxu0
    %v7302 = vadd.f32 %v7097, %v7301
    %v7303 = vpop.f32.mrb[0].mxu0
    %v7304 = vadd.f32 %v7099, %v7303
    %7305 = vmatprep.mubr.f32.mxu0 0.0
    %v7306 = vand.u32 %v1044, 4294901760
    %7307 = vmatmul.mubr.f32.gmra.mrb[0].mxu0 %v7306
    %v7308 = vpop.f32.mrb[0].mxu0
    %v7309 = vadd.f32 %v7108, %v7308
    %v7310 = vpop.f32.mrb[0].mxu0
    %v7311 = vadd.f32 %v7110, %v7310
    %7312 = vdwg.mxu0
    %v7313 = vand.u32 %v6919, 4294901760
    %v7314 = vsub.f32 %v6919, %v7313
    %7315 = vmatprep.subr.mxu0 %v7314
    %v7316 = vand.u32 %v6911, 4294901760
    %v7317 = vsub.f32 %v6911, %v7316
    %7318 = vmatpush1.msra.mxu0 %v7317
    %v7319 = vand.u32 %v6920, 4294901760
    %v7320 = vsub.f32 %v6920, %v7319
    %7321 = vmatprep.subr.mxu0 %v7320
    %v7322 = vand.u32 %v6912, 4294901760
    %v7323 = vsub.f32 %v6912, %v7322
    %7324 = vmatpush1.msra.mxu0 %v7323
    %v7325 = vand.u32 %v6921, 4294901760
    %v7326 = vsub.f32 %v6921, %v7325
    %7327 = vmatprep.subr.mxu0 %v7326
    %v7328 = vand.u32 %v6913, 4294901760
    %v7329 = vsub.f32 %v6913, %v7328
    %7330 = vmatpush1.msra.mxu0 %v7329
    %v7331 = vand.u32 %v6922, 4294901760
    %v7332 = vsub.f32 %v6922, %v7331
    %7333 = vmatprep.subr.mxu0 %v7332
    %v7334 = vand.u32 %v6914, 4294901760
    %v7335 = vsub.f32 %v6914, %v7334
    %7336 = vmatpush1.msra.mxu0 %v7335
    %v7337 = vand.u32 %v6923, 4294901760
    %v7338 = vsub.f32 %v6923, %v7337
    %7339 = vmatprep.subr.mxu0 %v7338
    %v7340 = vand.u32 %v6915, 4294901760
    %v7341 = vsub.f32 %v6915, %v7340
    %7342 = vmatpush1.msra.mxu0 %v7341
    %v7343 = vand.u32 %v6924, 4294901760
    %v7344 = vsub.f32 %v6924, %v7343
    %7345 = vmatprep.subr.mxu0 %v7344
    %v7346 = vand.u32 %v6916, 4294901760
    %v7347 = vsub.f32 %v6916, %v7346
    %7348 = vmatpush1.msra.mxu0 %v7347
    %v7349 = vand.u32 %v6925, 4294901760
    %v7350 = vsub.f32 %v6925, %v7349
    %7351 = vmatprep.subr.mxu0 %v7350
    %v7352 = vand.u32 %v6917, 4294901760
    %v7353 = vsub.f32 %v6917, %v7352
    %7354 = vmatpush1.msra.mxu0 %v7353
    %v7355 = vand.u32 %v6926, 4294901760
    %v7356 = vsub.f32 %v6926, %v7355
    %7357 = vmatprep.subr.mxu0 %v7356
    %v7358 = vand.u32 %v6918, 4294901760
    %v7359 = vsub.f32 %v6918, %v7358
    %7360 = vmatpush1.msra.mxu0 %v7359
    %7361 = vmatprep.subr.mxu0 0.0
    %7362 = vmatpush1.msra.mxu0 0.0
    %7363 = vmatprep.subr.mxu0 0.0
    %7364 = vmatpush1.msra.mxu0 0.0
    %7365 = vmatprep.subr.mxu0 0.0
    %7366 = vmatpush1.msra.mxu0 0.0
    %7367 = vmatprep.subr.mxu0 0.0
    %7368 = vmatpush1.msra.mxu0 0.0
    %7369 = vmatprep.subr.mxu0 0.0
    %7370 = vmatpush1.msra.mxu0 0.0
    %7371 = vmatprep.subr.mxu0 0.0
    %7372 = vmatpush1.msra.mxu0 0.0
    %7373 = vmatprep.subr.mxu0 0.0
    %7374 = vmatpush1.msra.mxu0 0.0
    %7375 = vmatprep.subr.mxu0 0.0
    %7376 = vmatpush1.msra.mxu0 0.0
    %7377 = vmatprep.subr.mxu0 0.0
    %7378 = vmatpush1.msra.mxu0 0.0
    %7379 = vmatprep.subr.mxu0 0.0
    %7380 = vmatpush1.msra.mxu0 0.0
    %7381 = vmatprep.subr.mxu0 0.0
    %7382 = vmatpush1.msra.mxu0 0.0
    %7383 = vmatprep.subr.mxu0 0.0
    %7384 = vmatpush1.msra.mxu0 0.0
    %7385 = vmatprep.subr.mxu0 0.0
    %7386 = vmatpush1.msra.mxu0 0.0
    %7387 = vmatprep.subr.mxu0 0.0
    %7388 = vmatpush1.msra.mxu0 0.0
    %7389 = vmatprep.subr.mxu0 0.0
    %7390 = vmatpush1.msra.mxu0 0.0
    %7391 = vmatprep.subr.mxu0 0.0
    %7392 = vmatpush1.msra.mxu0 0.0
    %7393 = vmatprep.subr.mxu0 0.0
    %7394 = vmatpush1.msra.mxu0 0.0
    %7395 = vmatprep.subr.mxu0 0.0
    %7396 = vmatpush1.msra.mxu0 0.0
    %7397 = vmatprep.subr.mxu0 0.0
    %7398 = vmatpush1.msra.mxu0 0.0
    %7399 = vmatprep.subr.mxu0 0.0
    %7400 = vmatpush1.msra.mxu0 0.0
    %7401 = vmatprep.subr.mxu0 0.0
    %7402 = vmatpush1.msra.mxu0 0.0
    %7403 = vmatprep.subr.mxu0 0.0
    %7404 = vmatpush1.msra.mxu0 0.0
    %7405 = vmatprep.subr.mxu0 0.0
    %7406 = vmatpush1.msra.mxu0 0.0
    %7407 = vmatprep.subr.mxu0 0.0
    %7408 = vmatpush1.msra.mxu0 0.0
    %7409 = vmatprep.mubr.f32.mxu0 0.0
    %v7410 = vand.u32 %v1023, 4294901760
    %v7411 = vsub.f32 %v1023, %v7410
    %7412 = vmatmul.mubr.f32.gmra.mrb[0].mxu0 %v7411
    %v7413 = vpop.f32.mrb[0].mxu0
    %v7414 = vadd.f32 %v7260, %v7413
    %v7415 = vpop.f32.mrb[0].mxu0
    %v7416 = vadd.f32 %v7262, %v7415
    %7417 = vmatprep.mubr.f32.mxu0 0.0
    %v7418 = vand.u32 %v1026, 4294901760
    %v7419 = vsub.f32 %v1026, %v7418
    %7420 = vmatmul.mubr.f32.gmra.mrb[0].mxu0 %v7419
    %v7421 = vpop.f32.mrb[0].mxu0
    %v7422 = vadd.f32 %v7267, %v7421
    %v7423 = vpop.f32.mrb[0].mxu0
    %v7424 = vadd.f32 %v7269, %v7423
    %7425 = vmatprep.mubr.f32.mxu0 0.0
    %v7426 = vand.u32 %v1029, 4294901760
    %v7427 = vsub.f32 %v1029, %v7426
    %7428 = vmatmul.mubr.f32.gmra.mrb[0].mxu0 %v7427
    %v7429 = vpop.f32.mrb[0].mxu0
    %v7430 = vadd.f32 %v7274, %v7429
    %v7431 = vpop.f32.mrb[0].mxu0
    %v7432 = vadd.f32 %v7276, %v7431
    %7433 = vmatprep.mubr.f32.mxu0 0.0
    %v7434 = vand.u32 %v1032, 4294901760
    %v7435 = vsub.f32 %v1032, %v7434
    %7436 = vmatmul.mubr.f32.gmra.mrb[0].mxu0 %v7435
    %v7437 = vpop.f32.mrb[0].mxu0
    %v7438 = vadd.f32 %v7281, %v7437
    %v7439 = vpop.f32.mrb[0].mxu0
    %v7440 = vadd.f32 %v7283, %v7439
    %7441 = vmatprep.mubr.f32.mxu0 0.0
    %v7442 = vand.u32 %v1035, 4294901760
    %v7443 = vsub.f32 %v1035, %v7442
    %7444 = vmatmul.mubr.f32.gmra.mrb[0].mxu0 %v7443
    %v7445 = vpop.f32.mrb[0].mxu0
    %v7446 = vadd.f32 %v7288, %v7445
    %v7447 = vpop.f32.mrb[0].mxu0
    %v7448 = vadd.f32 %v7290, %v7447
    %7449 = vmatprep.mubr.f32.mxu0 0.0
    %v7450 = vand.u32 %v1038, 4294901760
    %v7451 = vsub.f32 %v1038, %v7450
    %7452 = vmatmul.mubr.f32.gmra.mrb[0].mxu0 %v7451
    %v7453 = vpop.f32.mrb[0].mxu0
    %v7454 = vadd.f32 %v7295, %v7453
    %v7455 = vpop.f32.mrb[0].mxu0
    %v7456 = vadd.f32 %v7297, %v7455
    %7457 = vmatprep.mubr.f32.mxu0 0.0
    %v7458 = vand.u32 %v1041, 4294901760
    %v7459 = vsub.f32 %v1041, %v7458
    %7460 = vmatmul.mubr.f32.gmra.mrb[0].mxu0 %v7459
    %v7461 = vpop.f32.mrb[0].mxu0
    %v7462 = vadd.f32 %v7302, %v7461
    %v7463 = vpop.f32.mrb[0].mxu0
    %v7464 = vadd.f32 %v7304, %v7463
    %7465 = vmatprep.mubr.f32.mxu0 0.0
    %v7466 = vand.u32 %v1044, 4294901760
    %v7467 = vsub.f32 %v1044, %v7466
    %7468 = vmatmul.mubr.f32.gmra.mrb[0].mxu0 %v7467
    %v7469 = vpop.f32.mrb[0].mxu0
    %v7470 = vadd.f32 %v7309, %v7469
    %v7471 = vpop.f32.mrb[0].mxu0
    %v7472 = vadd.f32 %v7311, %v7471
    %7473 = vdwg.mxu0
    %v7474 = vand.u32 %v6919, 4294901760
    %7475 = vmatprep.subr.mxu0 %v7474
    %v7476 = vand.u32 %v6911, 4294901760
    %7477 = vmatpush1.msra.mxu0 %v7476
    %v7478 = vand.u32 %v6920, 4294901760
    %7479 = vmatprep.subr.mxu0 %v7478
    %v7480 = vand.u32 %v6912, 4294901760
    %7481 = vmatpush1.msra.mxu0 %v7480
    %v7482 = vand.u32 %v6921, 4294901760
    %7483 = vmatprep.subr.mxu0 %v7482
    %v7484 = vand.u32 %v6913, 4294901760
    %7485 = vmatpush1.msra.mxu0 %v7484
    %v7486 = vand.u32 %v6922, 4294901760
    %7487 = vmatprep.subr.mxu0 %v7486
    %v7488 = vand.u32 %v6914, 4294901760
    %7489 = vmatpush1.msra.mxu0 %v7488
    %v7490 = vand.u32 %v6923, 4294901760
    %7491 = vmatprep.subr.mxu0 %v7490
    %v7492 = vand.u32 %v6915, 4294901760
    %7493 = vmatpush1.msra.mxu0 %v7492
    %v7494 = vand.u32 %v6924, 4294901760
    %7495 = vmatprep.subr.mxu0 %v7494
    %v7496 = vand.u32 %v6916, 4294901760
    %7497 = vmatpush1.msra.mxu0 %v7496
    %v7498 = vand.u32 %v6925, 4294901760
    %7499 = vmatprep.subr.mxu0 %v7498
    %v7500 = vand.u32 %v6917, 4294901760
    %7501 = vmatpush1.msra.mxu0 %v7500
    %v7502 = vand.u32 %v6926, 4294901760
    %7503 = vmatprep.subr.mxu0 %v7502
    %v7504 = vand.u32 %v6918, 4294901760
    %7505 = vmatpush1.msra.mxu0 %v7504
    %7506 = vmatprep.subr.mxu0 0.0
    %7507 = vmatpush1.msra.mxu0 0.0
    %7508 = vmatprep.subr.mxu0 0.0
    %7509 = vmatpush1.msra.mxu0 0.0
    %7510 = vmatprep.subr.mxu0 0.0
    %7511 = vmatpush1.msra.mxu0 0.0
    %7512 = vmatprep.subr.mxu0 0.0
    %7513 = vmatpush1.msra.mxu0 0.0
    %7514 = vmatprep.subr.mxu0 0.0
    %7515 = vmatpush1.msra.mxu0 0.0
    %7516 = vmatprep.subr.mxu0 0.0
    %7517 = vmatpush1.msra.mxu0 0.0
    %7518 = vmatprep.subr.mxu0 0.0
    %7519 = vmatpush1.msra.mxu0 0.0
    %7520 = vmatprep.subr.mxu0 0.0
    %7521 = vmatpush1.msra.mxu0 0.0
    %7522 = vmatprep.subr.mxu0 0.0
    %7523 = vmatpush1.msra.mxu0 0.0
    %7524 = vmatprep.subr.mxu0 0.0
    %7525 = vmatpush1.msra.mxu0 0.0
    %7526 = vmatprep.subr.mxu0 0.0
    %7527 = vmatpush1.msra.mxu0 0.0
    %7528 = vmatprep.subr.mxu0 0.0
    %7529 = vmatpush1.msra.mxu0 0.0
    %7530 = vmatprep.subr.mxu0 0.0
    %7531 = vmatpush1.msra.mxu0 0.0
    %7532 = vmatprep.subr.mxu0 0.0
    %7533 = vmatpush1.msra.mxu0 0.0
    %7534 = vmatprep.subr.mxu0 0.0
    %7535 = vmatpush1.msra.mxu0 0.0
    %7536 = vmatprep.subr.mxu0 0.0
    %7537 = vmatpush1.msra.mxu0 0.0
    %7538 = vmatprep.subr.mxu0 0.0
    %7539 = vmatpush1.msra.mxu0 0.0
    %7540 = vmatprep.subr.mxu0 0.0
    %7541 = vmatpush1.msra.mxu0 0.0
    %7542 = vmatprep.subr.mxu0 0.0
    %7543 = vmatpush1.msra.mxu0 0.0
    %7544 = vmatprep.subr.mxu0 0.0
    %7545 = vmatpush1.msra.mxu0 0.0
    %7546 = vmatprep.subr.mxu0 0.0
    %7547 = vmatpush1.msra.mxu0 0.0
    %7548 = vmatprep.subr.mxu0 0.0
    %7549 = vmatpush1.msra.mxu0 0.0
    %7550 = vmatprep.subr.mxu0 0.0
    %7551 = vmatpush1.msra.mxu0 0.0
    %7552 = vmatprep.subr.mxu0 0.0
    %7553 = vmatpush1.msra.mxu0 0.0
    %7554 = vmatprep.mubr.f32.mxu0 0.0
    %v7555 = vand.u32 %v1023, 4294901760
    %v7556 = vsub.f32 %v1023, %v7555
    %v7557 = vand.u32 %v7556, 4294901760
    %7558 = vmatmul.mubr.f32.gmra.mrb[0].mxu0 %v7557
    %v7559 = vpop.f32.mrb[0].mxu0
    %v7560 = vadd.f32 %v7414, %v7559
    %v7561 = vpop.f32.mrb[0].mxu0
    %v7562 = vadd.f32 %v7416, %v7561
    %7563 = vmatprep.mubr.f32.mxu0 0.0
    %v7564 = vand.u32 %v1026, 4294901760
    %v7565 = vsub.f32 %v1026, %v7564
    %v7566 = vand.u32 %v7565, 4294901760
    %7567 = vmatmul.mubr.f32.gmra.mrb[0].mxu0 %v7566
    %v7568 = vpop.f32.mrb[0].mxu0
    %v7569 = vadd.f32 %v7422, %v7568
    %v7570 = vpop.f32.mrb[0].mxu0
    %v7571 = vadd.f32 %v7424, %v7570
    %7572 = vmatprep.mubr.f32.mxu0 0.0
    %v7573 = vand.u32 %v1029, 4294901760
    %v7574 = vsub.f32 %v1029, %v7573
    %v7575 = vand.u32 %v7574, 4294901760
    %7576 = vmatmul.mubr.f32.gmra.mrb[0].mxu0 %v7575
    %v7577 = vpop.f32.mrb[0].mxu0
    %v7578 = vadd.f32 %v7430, %v7577
    %v7579 = vpop.f32.mrb[0].mxu0
    %v7580 = vadd.f32 %v7432, %v7579
    %7581 = vmatprep.mubr.f32.mxu0 0.0
    %v7582 = vand.u32 %v1032, 4294901760
    %v7583 = vsub.f32 %v1032, %v7582
    %v7584 = vand.u32 %v7583, 4294901760
    %7585 = vmatmul.mubr.f32.gmra.mrb[0].mxu0 %v7584
    %v7586 = vpop.f32.mrb[0].mxu0
    %v7587 = vadd.f32 %v7438, %v7586
    %v7588 = vpop.f32.mrb[0].mxu0
    %v7589 = vadd.f32 %v7440, %v7588
    %7590 = vmatprep.mubr.f32.mxu0 0.0
    %v7591 = vand.u32 %v1035, 4294901760
    %v7592 = vsub.f32 %v1035, %v7591
    %v7593 = vand.u32 %v7592, 4294901760
    %7594 = vmatmul.mubr.f32.gmra.mrb[0].mxu0 %v7593
    %v7595 = vpop.f32.mrb[0].mxu0
    %v7596 = vadd.f32 %v7446, %v7595
    %v7597 = vpop.f32.mrb[0].mxu0
    %v7598 = vadd.f32 %v7448, %v7597
    %7599 = vmatprep.mubr.f32.mxu0 0.0
    %v7600 = vand.u32 %v1038, 4294901760
    %v7601 = vsub.f32 %v1038, %v7600
    %v7602 = vand.u32 %v7601, 4294901760
    %7603 = vmatmul.mubr.f32.gmra.mrb[0].mxu0 %v7602
    %v7604 = vpop.f32.mrb[0].mxu0
    %v7605 = vadd.f32 %v7454, %v7604
    %v7606 = vpop.f32.mrb[0].mxu0
    %v7607 = vadd.f32 %v7456, %v7606
    %7608 = vmatprep.mubr.f32.mxu0 0.0
    %v7609 = vand.u32 %v1041, 4294901760
    %v7610 = vsub.f32 %v1041, %v7609
    %v7611 = vand.u32 %v7610, 4294901760
    %7612 = vmatmul.mubr.f32.gmra.mrb[0].mxu0 %v7611
    %v7613 = vpop.f32.mrb[0].mxu0
    %v7614 = vadd.f32 %v7462, %v7613
    %v7615 = vpop.f32.mrb[0].mxu0
    %v7616 = vadd.f32 %v7464, %v7615
    %7617 = vmatprep.mubr.f32.mxu0 0.0
    %v7618 = vand.u32 %v1044, 4294901760
    %v7619 = vsub.f32 %v1044, %v7618
    %v7620 = vand.u32 %v7619, 4294901760
    %7621 = vmatmul.mubr.f32.gmra.mrb[0].mxu0 %v7620
    %v7622 = vpop.f32.mrb[0].mxu0
    %v7623 = vadd.f32 %v7470, %v7622
    %v7624 = vpop.f32.mrb[0].mxu0
    %v7625 = vadd.f32 %v7472, %v7624
    %7626 = vdwg.mxu0
    %v7627 = vand.u32 %v6919, 4294901760
    %v7628 = vsub.f32 %v6919, %v7627
    %v7629 = vand.u32 %v7628, 4294901760
    %7630 = vmatprep.subr.mxu0 %v7629
    %v7631 = vand.u32 %v6911, 4294901760
    %v7632 = vsub.f32 %v6911, %v7631
    %v7633 = vand.u32 %v7632, 4294901760
    %7634 = vmatpush1.msra.mxu0 %v7633
    %v7635 = vand.u32 %v6920, 4294901760
    %v7636 = vsub.f32 %v6920, %v7635
    %v7637 = vand.u32 %v7636, 4294901760
    %7638 = vmatprep.subr.mxu0 %v7637
    %v7639 = vand.u32 %v6912, 4294901760
    %v7640 = vsub.f32 %v6912, %v7639
    %v7641 = vand.u32 %v7640, 4294901760
    %7642 = vmatpush1.msra.mxu0 %v7641
    %v7643 = vand.u32 %v6921, 4294901760
    %v7644 = vsub.f32 %v6921, %v7643
    %v7645 = vand.u32 %v7644, 4294901760
    %7646 = vmatprep.subr.mxu0 %v7645
    %v7647 = vand.u32 %v6913, 4294901760
    %v7648 = vsub.f32 %v6913, %v7647
    %v7649 = vand.u32 %v7648, 4294901760
    %7650 = vmatpush1.msra.mxu0 %v7649
    %v7651 = vand.u32 %v6922, 4294901760
    %v7652 = vsub.f32 %v6922, %v7651
    %v7653 = vand.u32 %v7652, 4294901760
    %7654 = vmatprep.subr.mxu0 %v7653
    %v7655 = vand.u32 %v6914, 4294901760
    %v7656 = vsub.f32 %v6914, %v7655
    %v7657 = vand.u32 %v7656, 4294901760
    %7658 = vmatpush1.msra.mxu0 %v7657
    %v7659 = vand.u32 %v6923, 4294901760
    %v7660 = vsub.f32 %v6923, %v7659
    %v7661 = vand.u32 %v7660, 4294901760
    %7662 = vmatprep.subr.mxu0 %v7661
    %v7663 = vand.u32 %v6915, 4294901760
    %v7664 = vsub.f32 %v6915, %v7663
    %v7665 = vand.u32 %v7664, 4294901760
    %7666 = vmatpush1.msra.mxu0 %v7665
    %v7667 = vand.u32 %v6924, 4294901760
    %v7668 = vsub.f32 %v6924, %v7667
    %v7669 = vand.u32 %v7668, 4294901760
    %7670 = vmatprep.subr.mxu0 %v7669
    %v7671 = vand.u32 %v6916, 4294901760
    %v7672 = vsub.f32 %v6916, %v7671
    %v7673 = vand.u32 %v7672, 4294901760
    %7674 = vmatpush1.msra.mxu0 %v7673
    %v7675 = vand.u32 %v6925, 4294901760
    %v7676 = vsub.f32 %v6925, %v7675
    %v7677 = vand.u32 %v7676, 4294901760
    %7678 = vmatprep.subr.mxu0 %v7677
    %v7679 = vand.u32 %v6917, 4294901760
    %v7680 = vsub.f32 %v6917, %v7679
    %v7681 = vand.u32 %v7680, 4294901760
    %7682 = vmatpush1.msra.mxu0 %v7681
    %v7683 = vand.u32 %v6926, 4294901760
    %v7684 = vsub.f32 %v6926, %v7683
    %v7685 = vand.u32 %v7684, 4294901760
    %7686 = vmatprep.subr.mxu0 %v7685
    %v7687 = vand.u32 %v6918, 4294901760
    %v7688 = vsub.f32 %v6918, %v7687
    %v7689 = vand.u32 %v7688, 4294901760
    %7690 = vmatpush1.msra.mxu0 %v7689
    %7691 = vmatprep.subr.mxu0 0.0
    %7692 = vmatpush1.msra.mxu0 0.0
    %7693 = vmatprep.subr.mxu0 0.0
    %7694 = vmatpush1.msra.mxu0 0.0
    %7695 = vmatprep.subr.mxu0 0.0
    %7696 = vmatpush1.msra.mxu0 0.0
    %7697 = vmatprep.subr.mxu0 0.0
    %7698 = vmatpush1.msra.mxu0 0.0
    %7699 = vmatprep.subr.mxu0 0.0
    %7700 = vmatpush1.msra.mxu0 0.0
    %7701 = vmatprep.subr.mxu0 0.0
    %7702 = vmatpush1.msra.mxu0 0.0
    %7703 = vmatprep.subr.mxu0 0.0
    %7704 = vmatpush1.msra.mxu0 0.0
    %7705 = vmatprep.subr.mxu0 0.0
    %7706 = vmatpush1.msra.mxu0 0.0
    %7707 = vmatprep.subr.mxu0 0.0
    %7708 = vmatpush1.msra.mxu0 0.0
    %7709 = vmatprep.subr.mxu0 0.0
    %7710 = vmatpush1.msra.mxu0 0.0
    %7711 = vmatprep.subr.mxu0 0.0
    %7712 = vmatpush1.msra.mxu0 0.0
    %7713 = vmatprep.subr.mxu0 0.0
    %7714 = vmatpush1.msra.mxu0 0.0
    %7715 = vmatprep.subr.mxu0 0.0
    %7716 = vmatpush1.msra.mxu0 0.0
    %7717 = vmatprep.subr.mxu0 0.0
    %7718 = vmatpush1.msra.mxu0 0.0
    %7719 = vmatprep.subr.mxu0 0.0
    %7720 = vmatpush1.msra.mxu0 0.0
    %7721 = vmatprep.subr.mxu0 0.0
    %7722 = vmatpush1.msra.mxu0 0.0
    %7723 = vmatprep.subr.mxu0 0.0
    %7724 = vmatpush1.msra.mxu0 0.0
    %7725 = vmatprep.subr.mxu0 0.0
    %7726 = vmatpush1.msra.mxu0 0.0
    %7727 = vmatprep.subr.mxu0 0.0
    %7728 = vmatpush1.msra.mxu0 0.0
    %7729 = vmatprep.subr.mxu0 0.0
    %7730 = vmatpush1.msra.mxu0 0.0
    %7731 = vmatprep.subr.mxu0 0.0
    %7732 = vmatpush1.msra.mxu0 0.0
    %7733 = vmatprep.subr.mxu0 0.0
    %7734 = vmatpush1.msra.mxu0 0.0
    %7735 = vmatprep.subr.mxu0 0.0
    %7736 = vmatpush1.msra.mxu0 0.0
    %7737 = vmatprep.subr.mxu0 0.0
    %7738 = vmatpush1.msra.mxu0 0.0
    %7739 = vmatprep.mubr.f32.mxu0 0.0
    %v7740 = vand.u32 %v1023, 4294901760
    %7741 = vmatmul.mubr.f32.gmra.mrb[0].mxu0 %v7740
    %v7742 = vpop.f32.mrb[0].mxu0
    %v7743 = vadd.f32 %v7560, %v7742
    %v7744 = vpop.f32.mrb[0].mxu0
    %v7745 = vadd.f32 %v7562, %v7744
    %7746 = vmatprep.mubr.f32.mxu0 0.0
    %v7747 = vand.u32 %v1026, 4294901760
    %7748 = vmatmul.mubr.f32.gmra.mrb[0].mxu0 %v7747
    %v7749 = vpop.f32.mrb[0].mxu0
    %v7750 = vadd.f32 %v7569, %v7749
    %v7751 = vpop.f32.mrb[0].mxu0
    %v7752 = vadd.f32 %v7571, %v7751
    %7753 = vmatprep.mubr.f32.mxu0 0.0
    %v7754 = vand.u32 %v1029, 4294901760
    %7755 = vmatmul.mubr.f32.gmra.mrb[0].mxu0 %v7754
    %v7756 = vpop.f32.mrb[0].mxu0
    %v7757 = vadd.f32 %v7578, %v7756
    %v7758 = vpop.f32.mrb[0].mxu0
    %v7759 = vadd.f32 %v7580, %v7758
    %7760 = vmatprep.mubr.f32.mxu0 0.0
    %v7761 = vand.u32 %v1032, 4294901760
    %7762 = vmatmul.mubr.f32.gmra.mrb[0].mxu0 %v7761
    %v7763 = vpop.f32.mrb[0].mxu0
    %v7764 = vadd.f32 %v7587, %v7763
    %v7765 = vpop.f32.mrb[0].mxu0
    %v7766 = vadd.f32 %v7589, %v7765
    %7767 = vmatprep.mubr.f32.mxu0 0.0
    %v7768 = vand.u32 %v1035, 4294901760
    %7769 = vmatmul.mubr.f32.gmra.mrb[0].mxu0 %v7768
    %v7770 = vpop.f32.mrb[0].mxu0
    %v7771 = vadd.f32 %v7596, %v7770
    %v7772 = vpop.f32.mrb[0].mxu0
    %v7773 = vadd.f32 %v7598, %v7772
    %7774 = vmatprep.mubr.f32.mxu0 0.0
    %v7775 = vand.u32 %v1038, 4294901760
    %7776 = vmatmul.mubr.f32.gmra.mrb[0].mxu0 %v7775
    %v7777 = vpop.f32.mrb[0].mxu0
    %v7778 = vadd.f32 %v7605, %v7777
    %v7779 = vpop.f32.mrb[0].mxu0
    %v7780 = vadd.f32 %v7607, %v7779
    %7781 = vmatprep.mubr.f32.mxu0 0.0
    %v7782 = vand.u32 %v1041, 4294901760
    %7783 = vmatmul.mubr.f32.gmra.mrb[0].mxu0 %v7782
    %v7784 = vpop.f32.mrb[0].mxu0
    %v7785 = vadd.f32 %v7614, %v7784
    %v7786 = vpop.f32.mrb[0].mxu0
    %v7787 = vadd.f32 %v7616, %v7786
    %7788 = vmatprep.mubr.f32.mxu0 0.0
    %v7789 = vand.u32 %v1044, 4294901760
    %7790 = vmatmul.mubr.f32.gmra.mrb[0].mxu0 %v7789
    %v7791 = vpop.f32.mrb[0].mxu0
    %v7792 = vadd.f32 %v7623, %v7791
    %v7793 = vpop.f32.mrb[0].mxu0
    %v7794 = vadd.f32 %v7625, %v7793
    %7795 = vdwg.mxu0
    %v7796 = vand.u32 %v6919, 4294901760
    %7797 = vmatprep.subr.mxu0 %v7796
    %v7798 = vand.u32 %v6911, 4294901760
    %7799 = vmatpush1.msra.mxu0 %v7798
    %v7800 = vand.u32 %v6920, 4294901760
    %7801 = vmatprep.subr.mxu0 %v7800
    %v7802 = vand.u32 %v6912, 4294901760
    %7803 = vmatpush1.msra.mxu0 %v7802
    %v7804 = vand.u32 %v6921, 4294901760
    %7805 = vmatprep.subr.mxu0 %v7804
    %v7806 = vand.u32 %v6913, 4294901760
    %7807 = vmatpush1.msra.mxu0 %v7806
    %v7808 = vand.u32 %v6922, 4294901760
    %7809 = vmatprep.subr.mxu0 %v7808
    %v7810 = vand.u32 %v6914, 4294901760
    %7811 = vmatpush1.msra.mxu0 %v7810
    %v7812 = vand.u32 %v6923, 4294901760
    %7813 = vmatprep.subr.mxu0 %v7812
    %v7814 = vand.u32 %v6915, 4294901760
    %7815 = vmatpush1.msra.mxu0 %v7814
    %v7816 = vand.u32 %v6924, 4294901760
    %7817 = vmatprep.subr.mxu0 %v7816
    %v7818 = vand.u32 %v6916, 4294901760
    %7819 = vmatpush1.msra.mxu0 %v7818
    %v7820 = vand.u32 %v6925, 4294901760
    %7821 = vmatprep.subr.mxu0 %v7820
    %v7822 = vand.u32 %v6917, 4294901760
    %7823 = vmatpush1.msra.mxu0 %v7822
    %v7824 = vand.u32 %v6926, 4294901760
    %7825 = vmatprep.subr.mxu0 %v7824
    %v7826 = vand.u32 %v6918, 4294901760
    %7827 = vmatpush1.msra.mxu0 %v7826
    %7828 = vmatprep.subr.mxu0 0.0
    %7829 = vmatpush1.msra.mxu0 0.0
    %7830 = vmatprep.subr.mxu0 0.0
    %7831 = vmatpush1.msra.mxu0 0.0
    %7832 = vmatprep.subr.mxu0 0.0
    %7833 = vmatpush1.msra.mxu0 0.0
    %7834 = vmatprep.subr.mxu0 0.0
    %7835 = vmatpush1.msra.mxu0 0.0
    %7836 = vmatprep.subr.mxu0 0.0
    %7837 = vmatpush1.msra.mxu0 0.0
    %7838 = vmatprep.subr.mxu0 0.0
    %7839 = vmatpush1.msra.mxu0 0.0
    %7840 = vmatprep.subr.mxu0 0.0
    %7841 = vmatpush1.msra.mxu0 0.0
    %7842 = vmatprep.subr.mxu0 0.0
    %7843 = vmatpush1.msra.mxu0 0.0
    %7844 = vmatprep.subr.mxu0 0.0
    %7845 = vmatpush1.msra.mxu0 0.0
    %7846 = vmatprep.subr.mxu0 0.0
    %7847 = vmatpush1.msra.mxu0 0.0
    %7848 = vmatprep.subr.mxu0 0.0
    %7849 = vmatpush1.msra.mxu0 0.0
    %7850 = vmatprep.subr.mxu0 0.0
    %7851 = vmatpush1.msra.mxu0 0.0
    %7852 = vmatprep.subr.mxu0 0.0
    %7853 = vmatpush1.msra.mxu0 0.0
    %7854 = vmatprep.subr.mxu0 0.0
    %7855 = vmatpush1.msra.mxu0 0.0
    %7856 = vmatprep.subr.mxu0 0.0
    %7857 = vmatpush1.msra.mxu0 0.0
    %7858 = vmatprep.subr.mxu0 0.0
    %7859 = vmatpush1.msra.mxu0 0.0
    %7860 = vmatprep.subr.mxu0 0.0
    %7861 = vmatpush1.msra.mxu0 0.0
    %7862 = vmatprep.subr.mxu0 0.0
    %7863 = vmatpush1.msra.mxu0 0.0
    %7864 = vmatprep.subr.mxu0 0.0
    %7865 = vmatpush1.msra.mxu0 0.0
    %7866 = vmatprep.subr.mxu0 0.0
    %7867 = vmatpush1.msra.mxu0 0.0
    %7868 = vmatprep.subr.mxu0 0.0
    %7869 = vmatpush1.msra.mxu0 0.0
    %7870 = vmatprep.subr.mxu0 0.0
    %7871 = vmatpush1.msra.mxu0 0.0
    %7872 = vmatprep.subr.mxu0 0.0
    %7873 = vmatpush1.msra.mxu0 0.0
    %7874 = vmatprep.subr.mxu0 0.0
    %7875 = vmatpush1.msra.mxu0 0.0
    %7876 = vmatprep.mubr.f32.mxu0 0.0
    %v7877 = vand.u32 %v1023, 4294901760
    %7878 = vmatmul.mubr.f32.gmra.mrb[0].mxu0 %v7877
    %v7879 = vpop.f32.mrb[0].mxu0
    %v7880 = vadd.f32 %v7743, %v7879
    %v7881 = vpop.f32.mrb[0].mxu0
    %v7882 = vadd.f32 %v7745, %v7881
    %7883 = vmatprep.mubr.f32.mxu0 0.0
    %v7884 = vand.u32 %v1026, 4294901760
    %7885 = vmatmul.mubr.f32.gmra.mrb[0].mxu0 %v7884
    %v7886 = vpop.f32.mrb[0].mxu0
    %v7887 = vadd.f32 %v7750, %v7886
    %v7888 = vpop.f32.mrb[0].mxu0
    %v7889 = vadd.f32 %v7752, %v7888
    %7890 = vmatprep.mubr.f32.mxu0 0.0
    %v7891 = vand.u32 %v1029, 4294901760
    %7892 = vmatmul.mubr.f32.gmra.mrb[0].mxu0 %v7891
    %v7893 = vpop.f32.mrb[0].mxu0
    %v7894 = vadd.f32 %v7757, %v7893
    %v7895 = vpop.f32.mrb[0].mxu0
    %v7896 = vadd.f32 %v7759, %v7895
    %7897 = vmatprep.mubr.f32.mxu0 0.0
    %v7898 = vand.u32 %v1032, 4294901760
    %7899 = vmatmul.mubr.f32.gmra.mrb[0].mxu0 %v7898
    %v7900 = vpop.f32.mrb[0].mxu0
    %v7901 = vadd.f32 %v7764, %v7900
    %v7902 = vpop.f32.mrb[0].mxu0
    %v7903 = vadd.f32 %v7766, %v7902
    %7904 = vmatprep.mubr.f32.mxu0 0.0
    %v7905 = vand.u32 %v1035, 4294901760
    %7906 = vmatmul.mubr.f32.gmra.mrb[0].mxu0 %v7905
    %v7907 = vpop.f32.mrb[0].mxu0
    %v7908 = vadd.f32 %v7771, %v7907
    %v7909 = vpop.f32.mrb[0].mxu0
    %v7910 = vadd.f32 %v7773, %v7909
    %7911 = vmatprep.mubr.f32.mxu0 0.0
    %v7912 = vand.u32 %v1038, 4294901760
    %7913 = vmatmul.mubr.f32.gmra.mrb[0].mxu0 %v7912
    %v7914 = vpop.f32.mrb[0].mxu0
    %v7915 = vadd.f32 %v7778, %v7914
    %v7916 = vpop.f32.mrb[0].mxu0
    %v7917 = vadd.f32 %v7780, %v7916
    %7918 = vmatprep.mubr.f32.mxu0 0.0
    %v7919 = vand.u32 %v1041, 4294901760
    %7920 = vmatmul.mubr.f32.gmra.mrb[0].mxu0 %v7919
    %v7921 = vpop.f32.mrb[0].mxu0
    %v7922 = vadd.f32 %v7785, %v7921
    %v7923 = vpop.f32.mrb[0].mxu0
    %v7924 = vadd.f32 %v7787, %v7923
    %7925 = vmatprep.mubr.f32.mxu0 0.0
    %v7926 = vand.u32 %v1044, 4294901760
    %7927 = vmatmul.mubr.f32.gmra.mrb[0].mxu0 %v7926
    %v7928 = vpop.f32.mrb[0].mxu0
    %v7929 = vadd.f32 %v7792, %v7928
    %v7930 = vpop.f32.mrb[0].mxu0
    %v7931 = vadd.f32 %v7794, %v7930
    %7932 = vdwg.mxu0
    %v7933 = vand.u32 %v6935, 4294901760
    %7934 = vmatprep.subr.mxu0 %v7933
    %v7935 = vand.u32 %v6927, 4294901760
    %7936 = vmatpush1.msra.mxu0 %v7935
    %v7937 = vand.u32 %v6936, 4294901760
    %7938 = vmatprep.subr.mxu0 %v7937
    %v7939 = vand.u32 %v6928, 4294901760
    %7940 = vmatpush1.msra.mxu0 %v7939
    %v7941 = vand.u32 %v6937, 4294901760
    %7942 = vmatprep.subr.mxu0 %v7941
    %v7943 = vand.u32 %v6929, 4294901760
    %7944 = vmatpush1.msra.mxu0 %v7943
    %v7945 = vand.u32 %v6938, 4294901760
    %7946 = vmatprep.subr.mxu0 %v7945
    %v7947 = vand.u32 %v6930, 4294901760
    %7948 = vmatpush1.msra.mxu0 %v7947
    %v7949 = vand.u32 %v6939, 4294901760
    %7950 = vmatprep.subr.mxu0 %v7949
    %v7951 = vand.u32 %v6931, 4294901760
    %7952 = vmatpush1.msra.mxu0 %v7951
    %v7953 = vand.u32 %v6940, 4294901760
    %7954 = vmatprep.subr.mxu0 %v7953
    %v7955 = vand.u32 %v6932, 4294901760
    %7956 = vmatpush1.msra.mxu0 %v7955
    %v7957 = vand.u32 %v6941, 4294901760
    %7958 = vmatprep.subr.mxu0 %v7957
    %v7959 = vand.u32 %v6933, 4294901760
    %7960 = vmatpush1.msra.mxu0 %v7959
    %v7961 = vand.u32 %v6942, 4294901760
    %7962 = vmatprep.subr.mxu0 %v7961
    %v7963 = vand.u32 %v6934, 4294901760
    %7964 = vmatpush1.msra.mxu0 %v7963
    %7965 = vmatprep.subr.mxu0 0.0
    %7966 = vmatpush1.msra.mxu0 0.0
    %7967 = vmatprep.subr.mxu0 0.0
    %7968 = vmatpush1.msra.mxu0 0.0
    %7969 = vmatprep.subr.mxu0 0.0
    %7970 = vmatpush1.msra.mxu0 0.0
    %7971 = vmatprep.subr.mxu0 0.0
    %7972 = vmatpush1.msra.mxu0 0.0
    %7973 = vmatprep.subr.mxu0 0.0
    %7974 = vmatpush1.msra.mxu0 0.0
    %7975 = vmatprep.subr.mxu0 0.0
    %7976 = vmatpush1.msra.mxu0 0.0
    %7977 = vmatprep.subr.mxu0 0.0
    %7978 = vmatpush1.msra.mxu0 0.0
    %7979 = vmatprep.subr.mxu0 0.0
    %7980 = vmatpush1.msra.mxu0 0.0
    %7981 = vmatprep.subr.mxu0 0.0
    %7982 = vmatpush1.msra.mxu0 0.0
    %7983 = vmatprep.subr.mxu0 0.0
    %7984 = vmatpush1.msra.mxu0 0.0
    %7985 = vmatprep.subr.mxu0 0.0
    %7986 = vmatpush1.msra.mxu0 0.0
    %7987 = vmatprep.subr.mxu0 0.0
    %7988 = vmatpush1.msra.mxu0 0.0
    %7989 = vmatprep.subr.mxu0 0.0
    %7990 = vmatpush1.msra.mxu0 0.0
    %7991 = vmatprep.subr.mxu0 0.0
    %7992 = vmatpush1.msra.mxu0 0.0
    %7993 = vmatprep.subr.mxu0 0.0
    %7994 = vmatpush1.msra.mxu0 0.0
    %7995 = vmatprep.subr.mxu0 0.0
    %7996 = vmatpush1.msra.mxu0 0.0
    %7997 = vmatprep.subr.mxu0 0.0
    %7998 = vmatpush1.msra.mxu0 0.0
    %7999 = vmatprep.subr.mxu0 0.0
    %8000 = vmatpush1.msra.mxu0 0.0
    %8001 = vmatprep.subr.mxu0 0.0
    %8002 = vmatpush1.msra.mxu0 0.0
    %8003 = vmatprep.subr.mxu0 0.0
    %8004 = vmatpush1.msra.mxu0 0.0
    %8005 = vmatprep.subr.mxu0 0.0
    %8006 = vmatpush1.msra.mxu0 0.0
    %8007 = vmatprep.subr.mxu0 0.0
    %8008 = vmatpush1.msra.mxu0 0.0
    %8009 = vmatprep.subr.mxu0 0.0
    %8010 = vmatpush1.msra.mxu0 0.0
    %8011 = vmatprep.subr.mxu0 0.0
    %8012 = vmatpush1.msra.mxu0 0.0
    %8013 = vmatprep.mubr.f32.mxu0 0.0
    %v8014 = vand.u32 %v1023, 4294901760
    %v8015 = vsub.f32 %v1023, %v8014
    %v8016 = vand.u32 %v8015, 4294901760
    %v8017 = vsub.f32 %v8015, %v8016
    %v8018 = vand.u32 %v8017, 4294901760
    %8019 = vmatmul.mubr.f32.gmra.mrb[0].mxu0 %v8018
    %v8020 = vpop.f32.mrb[0].mxu0
    %v8021 = vadd.f32 0.0, %v8020
    %v8022 = vpop.f32.mrb[0].mxu0
    %v8023 = vadd.f32 0.0, %v8022
    %8024 = vmatprep.mubr.f32.mxu0 0.0
    %v8025 = vand.u32 %v1026, 4294901760
    %v8026 = vsub.f32 %v1026, %v8025
    %v8027 = vand.u32 %v8026, 4294901760
    %v8028 = vsub.f32 %v8026, %v8027
    %v8029 = vand.u32 %v8028, 4294901760
    %8030 = vmatmul.mubr.f32.gmra.mrb[0].mxu0 %v8029
    %v8031 = vpop.f32.mrb[0].mxu0
    %v8032 = vadd.f32 0.0, %v8031
    %v8033 = vpop.f32.mrb[0].mxu0
    %v8034 = vadd.f32 0.0, %v8033
    %8035 = vmatprep.mubr.f32.mxu0 0.0
    %v8036 = vand.u32 %v1029, 4294901760
    %v8037 = vsub.f32 %v1029, %v8036
    %v8038 = vand.u32 %v8037, 4294901760
    %v8039 = vsub.f32 %v8037, %v8038
    %v8040 = vand.u32 %v8039, 4294901760
    %8041 = vmatmul.mubr.f32.gmra.mrb[0].mxu0 %v8040
    %v8042 = vpop.f32.mrb[0].mxu0
    %v8043 = vadd.f32 0.0, %v8042
    %v8044 = vpop.f32.mrb[0].mxu0
    %v8045 = vadd.f32 0.0, %v8044
    %8046 = vmatprep.mubr.f32.mxu0 0.0
    %v8047 = vand.u32 %v1032, 4294901760
    %v8048 = vsub.f32 %v1032, %v8047
    %v8049 = vand.u32 %v8048, 4294901760
    %v8050 = vsub.f32 %v8048, %v8049
    %v8051 = vand.u32 %v8050, 4294901760
    %8052 = vmatmul.mubr.f32.gmra.mrb[0].mxu0 %v8051
    %v8053 = vpop.f32.mrb[0].mxu0
    %v8054 = vadd.f32 0.0, %v8053
    %v8055 = vpop.f32.mrb[0].mxu0
    %v8056 = vadd.f32 0.0, %v8055
    %8057 = vmatprep.mubr.f32.mxu0 0.0
    %v8058 = vand.u32 %v1035, 4294901760
    %v8059 = vsub.f32 %v1035, %v8058
    %v8060 = vand.u32 %v8059, 4294901760
    %v8061 = vsub.f32 %v8059, %v8060
    %v8062 = vand.u32 %v8061, 4294901760
    %8063 = vmatmul.mubr.f32.gmra.mrb[0].mxu0 %v8062
    %v8064 = vpop.f32.mrb[0].mxu0
    %v8065 = vadd.f32 0.0, %v8064
    %v8066 = vpop.f32.mrb[0].mxu0
    %v8067 = vadd.f32 0.0, %v8066
    %8068 = vmatprep.mubr.f32.mxu0 0.0
    %v8069 = vand.u32 %v1038, 4294901760
    %v8070 = vsub.f32 %v1038, %v8069
    %v8071 = vand.u32 %v8070, 4294901760
    %v8072 = vsub.f32 %v8070, %v8071
    %v8073 = vand.u32 %v8072, 4294901760
    %8074 = vmatmul.mubr.f32.gmra.mrb[0].mxu0 %v8073
    %v8075 = vpop.f32.mrb[0].mxu0
    %v8076 = vadd.f32 0.0, %v8075
    %v8077 = vpop.f32.mrb[0].mxu0
    %v8078 = vadd.f32 0.0, %v8077
    %8079 = vmatprep.mubr.f32.mxu0 0.0
    %v8080 = vand.u32 %v1041, 4294901760
    %v8081 = vsub.f32 %v1041, %v8080
    %v8082 = vand.u32 %v8081, 4294901760
    %v8083 = vsub.f32 %v8081, %v8082
    %v8084 = vand.u32 %v8083, 4294901760
    %8085 = vmatmul.mubr.f32.gmra.mrb[0].mxu0 %v8084
    %v8086 = vpop.f32.mrb[0].mxu0
    %v8087 = vadd.f32 0.0, %v8086
    %v8088 = vpop.f32.mrb[0].mxu0
    %v8089 = vadd.f32 0.0, %v8088
    %8090 = vmatprep.mubr.f32.mxu0 0.0
    %v8091 = vand.u32 %v1044, 4294901760
    %v8092 = vsub.f32 %v1044, %v8091
    %v8093 = vand.u32 %v8092, 4294901760
    %v8094 = vsub.f32 %v8092, %v8093
    %v8095 = vand.u32 %v8094, 4294901760
    %8096 = vmatmul.mubr.f32.gmra.mrb[0].mxu0 %v8095
    %v8097 = vpop.f32.mrb[0].mxu0
    %v8098 = vadd.f32 0.0, %v8097
    %v8099 = vpop.f32.mrb[0].mxu0
    %v8100 = vadd.f32 0.0, %v8099
    %8101 = vdwg.mxu0
    %v8102 = vand.u32 %v6935, 4294901760
    %v8103 = vsub.f32 %v6935, %v8102
    %v8104 = vand.u32 %v8103, 4294901760
    %v8105 = vsub.f32 %v8103, %v8104
    %v8106 = vand.u32 %v8105, 4294901760
    %8107 = vmatprep.subr.mxu0 %v8106
    %v8108 = vand.u32 %v6927, 4294901760
    %v8109 = vsub.f32 %v6927, %v8108
    %v8110 = vand.u32 %v8109, 4294901760
    %v8111 = vsub.f32 %v8109, %v8110
    %v8112 = vand.u32 %v8111, 4294901760
    %8113 = vmatpush1.msra.mxu0 %v8112
    %v8114 = vand.u32 %v6936, 4294901760
    %v8115 = vsub.f32 %v6936, %v8114
    %v8116 = vand.u32 %v8115, 4294901760
    %v8117 = vsub.f32 %v8115, %v8116
    %v8118 = vand.u32 %v8117, 4294901760
    %8119 = vmatprep.subr.mxu0 %v8118
    %v8120 = vand.u32 %v6928, 4294901760
    %v8121 = vsub.f32 %v6928, %v8120
    %v8122 = vand.u32 %v8121, 4294901760
    %v8123 = vsub.f32 %v8121, %v8122
    %v8124 = vand.u32 %v8123, 4294901760
    %8125 = vmatpush1.msra.mxu0 %v8124
    %v8126 = vand.u32 %v6937, 4294901760
    %v8127 = vsub.f32 %v6937, %v8126
    %v8128 = vand.u32 %v8127, 4294901760
    %v8129 = vsub.f32 %v8127, %v8128
    %v8130 = vand.u32 %v8129, 4294901760
    %8131 = vmatprep.subr.mxu0 %v8130
    %v8132 = vand.u32 %v6929, 4294901760
    %v8133 = vsub.f32 %v6929, %v8132
    %v8134 = vand.u32 %v8133, 4294901760
    %v8135 = vsub.f32 %v8133, %v8134
    %v8136 = vand.u32 %v8135, 4294901760
    %8137 = vmatpush1.msra.mxu0 %v8136
    %v8138 = vand.u32 %v6938, 4294901760
    %v8139 = vsub.f32 %v6938, %v8138
    %v8140 = vand.u32 %v8139, 4294901760
    %v8141 = vsub.f32 %v8139, %v8140
    %v8142 = vand.u32 %v8141, 4294901760
    %8143 = vmatprep.subr.mxu0 %v8142
    %v8144 = vand.u32 %v6930, 4294901760
    %v8145 = vsub.f32 %v6930, %v8144
    %v8146 = vand.u32 %v8145, 4294901760
    %v8147 = vsub.f32 %v8145, %v8146
    %v8148 = vand.u32 %v8147, 4294901760
    %8149 = vmatpush1.msra.mxu0 %v8148
    %v8150 = vand.u32 %v6939, 4294901760
    %v8151 = vsub.f32 %v6939, %v8150
    %v8152 = vand.u32 %v8151, 4294901760
    %v8153 = vsub.f32 %v8151, %v8152
    %v8154 = vand.u32 %v8153, 4294901760
    %8155 = vmatprep.subr.mxu0 %v8154
    %v8156 = vand.u32 %v6931, 4294901760
    %v8157 = vsub.f32 %v6931, %v8156
    %v8158 = vand.u32 %v8157, 4294901760
    %v8159 = vsub.f32 %v8157, %v8158
    %v8160 = vand.u32 %v8159, 4294901760
    %8161 = vmatpush1.msra.mxu0 %v8160
    %v8162 = vand.u32 %v6940, 4294901760
    %v8163 = vsub.f32 %v6940, %v8162
    %v8164 = vand.u32 %v8163, 4294901760
    %v8165 = vsub.f32 %v8163, %v8164
    %v8166 = vand.u32 %v8165, 4294901760
    %8167 = vmatprep.subr.mxu0 %v8166
    %v8168 = vand.u32 %v6932, 4294901760
    %v8169 = vsub.f32 %v6932, %v8168
    %v8170 = vand.u32 %v8169, 4294901760
    %v8171 = vsub.f32 %v8169, %v8170
    %v8172 = vand.u32 %v8171, 4294901760
    %8173 = vmatpush1.msra.mxu0 %v8172
    %v8174 = vand.u32 %v6941, 4294901760
    %v8175 = vsub.f32 %v6941, %v8174
    %v8176 = vand.u32 %v8175, 4294901760
    %v8177 = vsub.f32 %v8175, %v8176
    %v8178 = vand.u32 %v8177, 4294901760
    %8179 = vmatprep.subr.mxu0 %v8178
    %v8180 = vand.u32 %v6933, 4294901760
    %v8181 = vsub.f32 %v6933, %v8180
    %v8182 = vand.u32 %v8181, 4294901760
    %v8183 = vsub.f32 %v8181, %v8182
    %v8184 = vand.u32 %v8183, 4294901760
    %8185 = vmatpush1.msra.mxu0 %v8184
    %v8186 = vand.u32 %v6942, 4294901760
    %v8187 = vsub.f32 %v6942, %v8186
    %v8188 = vand.u32 %v8187, 4294901760
    %v8189 = vsub.f32 %v8187, %v8188
    %v8190 = vand.u32 %v8189, 4294901760
    %8191 = vmatprep.subr.mxu0 %v8190
    %v8192 = vand.u32 %v6934, 4294901760
    %v8193 = vsub.f32 %v6934, %v8192
    %v8194 = vand.u32 %v8193, 4294901760
    %v8195 = vsub.f32 %v8193, %v8194
    %v8196 = vand.u32 %v8195, 4294901760
    %8197 = vmatpush1.msra.mxu0 %v8196
    %8198 = vmatprep.subr.mxu0 0.0
    %8199 = vmatpush1.msra.mxu0 0.0
    %8200 = vmatprep.subr.mxu0 0.0
    %8201 = vmatpush1.msra.mxu0 0.0
    %8202 = vmatprep.subr.mxu0 0.0
    %8203 = vmatpush1.msra.mxu0 0.0
    %8204 = vmatprep.subr.mxu0 0.0
    %8205 = vmatpush1.msra.mxu0 0.0
    %8206 = vmatprep.subr.mxu0 0.0
    %8207 = vmatpush1.msra.mxu0 0.0
    %8208 = vmatprep.subr.mxu0 0.0
    %8209 = vmatpush1.msra.mxu0 0.0
    %8210 = vmatprep.subr.mxu0 0.0
    %8211 = vmatpush1.msra.mxu0 0.0
    %8212 = vmatprep.subr.mxu0 0.0
    %8213 = vmatpush1.msra.mxu0 0.0
    %8214 = vmatprep.subr.mxu0 0.0
    %8215 = vmatpush1.msra.mxu0 0.0
    %8216 = vmatprep.subr.mxu0 0.0
    %8217 = vmatpush1.msra.mxu0 0.0
    %8218 = vmatprep.subr.mxu0 0.0
    %8219 = vmatpush1.msra.mxu0 0.0
    %8220 = vmatprep.subr.mxu0 0.0
    %8221 = vmatpush1.msra.mxu0 0.0
    %8222 = vmatprep.subr.mxu0 0.0
    %8223 = vmatpush1.msra.mxu0 0.0
    %8224 = vmatprep.subr.mxu0 0.0
    %8225 = vmatpush1.msra.mxu0 0.0
    %8226 = vmatprep.subr.mxu0 0.0
    %8227 = vmatpush1.msra.mxu0 0.0
    %8228 = vmatprep.subr.mxu0 0.0
    %8229 = vmatpush1.msra.mxu0 0.0
    %8230 = vmatprep.subr.mxu0 0.0
    %8231 = vmatpush1.msra.mxu0 0.0
    %8232 = vmatprep.subr.mxu0 0.0
    %8233 = vmatpush1.msra.mxu0 0.0
    %8234 = vmatprep.subr.mxu0 0.0
    %8235 = vmatpush1.msra.mxu0 0.0
    %8236 = vmatprep.subr.mxu0 0.0
    %8237 = vmatpush1.msra.mxu0 0.0
    %8238 = vmatprep.subr.mxu0 0.0
    %8239 = vmatpush1.msra.mxu0 0.0
    %8240 = vmatprep.subr.mxu0 0.0
    %8241 = vmatpush1.msra.mxu0 0.0
    %8242 = vmatprep.subr.mxu0 0.0
    %8243 = vmatpush1.msra.mxu0 0.0
    %8244 = vmatprep.subr.mxu0 0.0
    %8245 = vmatpush1.msra.mxu0 0.0
    %8246 = vmatprep.mubr.f32.mxu0 0.0
    %v8247 = vand.u32 %v1023, 4294901760
    %8248 = vmatmul.mubr.f32.gmra.mrb[0].mxu0 %v8247
    %v8249 = vpop.f32.mrb[0].mxu0
    %v8250 = vadd.f32 %v8021, %v8249
    %v8251 = vpop.f32.mrb[0].mxu0
    %v8252 = vadd.f32 %v8023, %v8251
    %8253 = vmatprep.mubr.f32.mxu0 0.0
    %v8254 = vand.u32 %v1026, 4294901760
    %8255 = vmatmul.mubr.f32.gmra.mrb[0].mxu0 %v8254
    %v8256 = vpop.f32.mrb[0].mxu0
    %v8257 = vadd.f32 %v8032, %v8256
    %v8258 = vpop.f32.mrb[0].mxu0
    %v8259 = vadd.f32 %v8034, %v8258
    %8260 = vmatprep.mubr.f32.mxu0 0.0
    %v8261 = vand.u32 %v1029, 4294901760
    %8262 = vmatmul.mubr.f32.gmra.mrb[0].mxu0 %v8261
    %v8263 = vpop.f32.mrb[0].mxu0
    %v8264 = vadd.f32 %v8043, %v8263
    %v8265 = vpop.f32.mrb[0].mxu0
    %v8266 = vadd.f32 %v8045, %v8265
    %8267 = vmatprep.mubr.f32.mxu0 0.0
    %v8268 = vand.u32 %v1032, 4294901760
    %8269 = vmatmul.mubr.f32.gmra.mrb[0].mxu0 %v8268
    %v8270 = vpop.f32.mrb[0].mxu0
    %v8271 = vadd.f32 %v8054, %v8270
    %v8272 = vpop.f32.mrb[0].mxu0
    %v8273 = vadd.f32 %v8056, %v8272
    %8274 = vmatprep.mubr.f32.mxu0 0.0
    %v8275 = vand.u32 %v1035, 4294901760
    %8276 = vmatmul.mubr.f32.gmra.mrb[0].mxu0 %v8275
    %v8277 = vpop.f32.mrb[0].mxu0
    %v8278 = vadd.f32 %v8065, %v8277
    %v8279 = vpop.f32.mrb[0].mxu0
    %v8280 = vadd.f32 %v8067, %v8279
    %8281 = vmatprep.mubr.f32.mxu0 0.0
    %v8282 = vand.u32 %v1038, 4294901760
    %8283 = vmatmul.mubr.f32.gmra.mrb[0].mxu0 %v8282
    %v8284 = vpop.f32.mrb[0].mxu0
    %v8285 = vadd.f32 %v8076, %v8284
    %v8286 = vpop.f32.mrb[0].mxu0
    %v8287 = vadd.f32 %v8078, %v8286
    %8288 = vmatprep.mubr.f32.mxu0 0.0
    %v8289 = vand.u32 %v1041, 4294901760
    %8290 = vmatmul.mubr.f32.gmra.mrb[0].mxu0 %v8289
    %v8291 = vpop.f32.mrb[0].mxu0
    %v8292 = vadd.f32 %v8087, %v8291
    %v8293 = vpop.f32.mrb[0].mxu0
    %v8294 = vadd.f32 %v8089, %v8293
    %8295 = vmatprep.mubr.f32.mxu0 0.0
    %v8296 = vand.u32 %v1044, 4294901760
    %8297 = vmatmul.mubr.f32.gmra.mrb[0].mxu0 %v8296
    %v8298 = vpop.f32.mrb[0].mxu0
    %v8299 = vadd.f32 %v8098, %v8298
    %v8300 = vpop.f32.mrb[0].mxu0
    %v8301 = vadd.f32 %v8100, %v8300
    %8302 = vdwg.mxu0
    %v8303 = vand.u32 %v6935, 4294901760
    %v8304 = vsub.f32 %v6935, %v8303
    %8305 = vmatprep.subr.mxu0 %v8304
    %v8306 = vand.u32 %v6927, 4294901760
    %v8307 = vsub.f32 %v6927, %v8306
    %8308 = vmatpush1.msra.mxu0 %v8307
    %v8309 = vand.u32 %v6936, 4294901760
    %v8310 = vsub.f32 %v6936, %v8309
    %8311 = vmatprep.subr.mxu0 %v8310
    %v8312 = vand.u32 %v6928, 4294901760
    %v8313 = vsub.f32 %v6928, %v8312
    %8314 = vmatpush1.msra.mxu0 %v8313
    %v8315 = vand.u32 %v6937, 4294901760
    %v8316 = vsub.f32 %v6937, %v8315
    %8317 = vmatprep.subr.mxu0 %v8316
    %v8318 = vand.u32 %v6929, 4294901760
    %v8319 = vsub.f32 %v6929, %v8318
    %8320 = vmatpush1.msra.mxu0 %v8319
    %v8321 = vand.u32 %v6938, 4294901760
    %v8322 = vsub.f32 %v6938, %v8321
    %8323 = vmatprep.subr.mxu0 %v8322
    %v8324 = vand.u32 %v6930, 4294901760
    %v8325 = vsub.f32 %v6930, %v8324
    %8326 = vmatpush1.msra.mxu0 %v8325
    %v8327 = vand.u32 %v6939, 4294901760
    %v8328 = vsub.f32 %v6939, %v8327
    %8329 = vmatprep.subr.mxu0 %v8328
    %v8330 = vand.u32 %v6931, 4294901760
    %v8331 = vsub.f32 %v6931, %v8330
    %8332 = vmatpush1.msra.mxu0 %v8331
    %v8333 = vand.u32 %v6940, 4294901760
    %v8334 = vsub.f32 %v6940, %v8333
    %8335 = vmatprep.subr.mxu0 %v8334
    %v8336 = vand.u32 %v6932, 4294901760
    %v8337 = vsub.f32 %v6932, %v8336
    %8338 = vmatpush1.msra.mxu0 %v8337
    %v8339 = vand.u32 %v6941, 4294901760
    %v8340 = vsub.f32 %v6941, %v8339
    %8341 = vmatprep.subr.mxu0 %v8340
    %v8342 = vand.u32 %v6933, 4294901760
    %v8343 = vsub.f32 %v6933, %v8342
    %8344 = vmatpush1.msra.mxu0 %v8343
    %v8345 = vand.u32 %v6942, 4294901760
    %v8346 = vsub.f32 %v6942, %v8345
    %8347 = vmatprep.subr.mxu0 %v8346
    %v8348 = vand.u32 %v6934, 4294901760
    %v8349 = vsub.f32 %v6934, %v8348
    %8350 = vmatpush1.msra.mxu0 %v8349
    %8351 = vmatprep.subr.mxu0 0.0
    %8352 = vmatpush1.msra.mxu0 0.0
    %8353 = vmatprep.subr.mxu0 0.0
    %8354 = vmatpush1.msra.mxu0 0.0
    %8355 = vmatprep.subr.mxu0 0.0
    %8356 = vmatpush1.msra.mxu0 0.0
    %8357 = vmatprep.subr.mxu0 0.0
    %8358 = vmatpush1.msra.mxu0 0.0
    %8359 = vmatprep.subr.mxu0 0.0
    %8360 = vmatpush1.msra.mxu0 0.0
    %8361 = vmatprep.subr.mxu0 0.0
    %8362 = vmatpush1.msra.mxu0 0.0
    %8363 = vmatprep.subr.mxu0 0.0
    %8364 = vmatpush1.msra.mxu0 0.0
    %8365 = vmatprep.subr.mxu0 0.0
    %8366 = vmatpush1.msra.mxu0 0.0
    %8367 = vmatprep.subr.mxu0 0.0
    %8368 = vmatpush1.msra.mxu0 0.0
    %8369 = vmatprep.subr.mxu0 0.0
    %8370 = vmatpush1.msra.mxu0 0.0
    %8371 = vmatprep.subr.mxu0 0.0
    %8372 = vmatpush1.msra.mxu0 0.0
    %8373 = vmatprep.subr.mxu0 0.0
    %8374 = vmatpush1.msra.mxu0 0.0
    %8375 = vmatprep.subr.mxu0 0.0
    %8376 = vmatpush1.msra.mxu0 0.0
    %8377 = vmatprep.subr.mxu0 0.0
    %8378 = vmatpush1.msra.mxu0 0.0
    %8379 = vmatprep.subr.mxu0 0.0
    %8380 = vmatpush1.msra.mxu0 0.0
    %8381 = vmatprep.subr.mxu0 0.0
    %8382 = vmatpush1.msra.mxu0 0.0
    %8383 = vmatprep.subr.mxu0 0.0
    %8384 = vmatpush1.msra.mxu0 0.0
    %8385 = vmatprep.subr.mxu0 0.0
    %8386 = vmatpush1.msra.mxu0 0.0
    %8387 = vmatprep.subr.mxu0 0.0
    %8388 = vmatpush1.msra.mxu0 0.0
    %8389 = vmatprep.subr.mxu0 0.0
    %8390 = vmatpush1.msra.mxu0 0.0
    %8391 = vmatprep.subr.mxu0 0.0
    %8392 = vmatpush1.msra.mxu0 0.0
    %8393 = vmatprep.subr.mxu0 0.0
    %8394 = vmatpush1.msra.mxu0 0.0
    %8395 = vmatprep.subr.mxu0 0.0
    %8396 = vmatpush1.msra.mxu0 0.0
    %8397 = vmatprep.subr.mxu0 0.0
    %8398 = vmatpush1.msra.mxu0 0.0
    %8399 = vmatprep.mubr.f32.mxu0 0.0
    %v8400 = vand.u32 %v1023, 4294901760
    %v8401 = vsub.f32 %v1023, %v8400
    %8402 = vmatmul.mubr.f32.gmra.mrb[0].mxu0 %v8401
    %v8403 = vpop.f32.mrb[0].mxu0
    %v8404 = vadd.f32 %v8250, %v8403
    %v8405 = vpop.f32.mrb[0].mxu0
    %v8406 = vadd.f32 %v8252, %v8405
    %8407 = vmatprep.mubr.f32.mxu0 0.0
    %v8408 = vand.u32 %v1026, 4294901760
    %v8409 = vsub.f32 %v1026, %v8408
    %8410 = vmatmul.mubr.f32.gmra.mrb[0].mxu0 %v8409
    %v8411 = vpop.f32.mrb[0].mxu0
    %v8412 = vadd.f32 %v8257, %v8411
    %v8413 = vpop.f32.mrb[0].mxu0
    %v8414 = vadd.f32 %v8259, %v8413
    %8415 = vmatprep.mubr.f32.mxu0 0.0
    %v8416 = vand.u32 %v1029, 4294901760
    %v8417 = vsub.f32 %v1029, %v8416
    %8418 = vmatmul.mubr.f32.gmra.mrb[0].mxu0 %v8417
    %v8419 = vpop.f32.mrb[0].mxu0
    %v8420 = vadd.f32 %v8264, %v8419
    %v8421 = vpop.f32.mrb[0].mxu0
    %v8422 = vadd.f32 %v8266, %v8421
    %8423 = vmatprep.mubr.f32.mxu0 0.0
    %v8424 = vand.u32 %v1032, 4294901760
    %v8425 = vsub.f32 %v1032, %v8424
    %8426 = vmatmul.mubr.f32.gmra.mrb[0].mxu0 %v8425
    %v8427 = vpop.f32.mrb[0].mxu0
    %v8428 = vadd.f32 %v8271, %v8427
    %v8429 = vpop.f32.mrb[0].mxu0
    %v8430 = vadd.f32 %v8273, %v8429
    %8431 = vmatprep.mubr.f32.mxu0 0.0
    %v8432 = vand.u32 %v1035, 4294901760
    %v8433 = vsub.f32 %v1035, %v8432
    %8434 = vmatmul.mubr.f32.gmra.mrb[0].mxu0 %v8433
    %v8435 = vpop.f32.mrb[0].mxu0
    %v8436 = vadd.f32 %v8278, %v8435
    %v8437 = vpop.f32.mrb[0].mxu0
    %v8438 = vadd.f32 %v8280, %v8437
    %8439 = vmatprep.mubr.f32.mxu0 0.0
    %v8440 = vand.u32 %v1038, 4294901760
    %v8441 = vsub.f32 %v1038, %v8440
    %8442 = vmatmul.mubr.f32.gmra.mrb[0].mxu0 %v8441
    %v8443 = vpop.f32.mrb[0].mxu0
    %v8444 = vadd.f32 %v8285, %v8443
    %v8445 = vpop.f32.mrb[0].mxu0
    %v8446 = vadd.f32 %v8287, %v8445
    %8447 = vmatprep.mubr.f32.mxu0 0.0
    %v8448 = vand.u32 %v1041, 4294901760
    %v8449 = vsub.f32 %v1041, %v8448
    %8450 = vmatmul.mubr.f32.gmra.mrb[0].mxu0 %v8449
    %v8451 = vpop.f32.mrb[0].mxu0
    %v8452 = vadd.f32 %v8292, %v8451
    %v8453 = vpop.f32.mrb[0].mxu0
    %v8454 = vadd.f32 %v8294, %v8453
    %8455 = vmatprep.mubr.f32.mxu0 0.0
    %v8456 = vand.u32 %v1044, 4294901760
    %v8457 = vsub.f32 %v1044, %v8456
    %8458 = vmatmul.mubr.f32.gmra.mrb[0].mxu0 %v8457
    %v8459 = vpop.f32.mrb[0].mxu0
    %v8460 = vadd.f32 %v8299, %v8459
    %v8461 = vpop.f32.mrb[0].mxu0
    %v8462 = vadd.f32 %v8301, %v8461
    %8463 = vdwg.mxu0
    %v8464 = vand.u32 %v6935, 4294901760
    %8465 = vmatprep.subr.mxu0 %v8464
    %v8466 = vand.u32 %v6927, 4294901760
    %8467 = vmatpush1.msra.mxu0 %v8466
    %v8468 = vand.u32 %v6936, 4294901760
    %8469 = vmatprep.subr.mxu0 %v8468
    %v8470 = vand.u32 %v6928, 4294901760
    %8471 = vmatpush1.msra.mxu0 %v8470
    %v8472 = vand.u32 %v6937, 4294901760
    %8473 = vmatprep.subr.mxu0 %v8472
    %v8474 = vand.u32 %v6929, 4294901760
    %8475 = vmatpush1.msra.mxu0 %v8474
    %v8476 = vand.u32 %v6938, 4294901760
    %8477 = vmatprep.subr.mxu0 %v8476
    %v8478 = vand.u32 %v6930, 4294901760
    %8479 = vmatpush1.msra.mxu0 %v8478
    %v8480 = vand.u32 %v6939, 4294901760
    %8481 = vmatprep.subr.mxu0 %v8480
    %v8482 = vand.u32 %v6931, 4294901760
    %8483 = vmatpush1.msra.mxu0 %v8482
    %v8484 = vand.u32 %v6940, 4294901760
    %8485 = vmatprep.subr.mxu0 %v8484
    %v8486 = vand.u32 %v6932, 4294901760
    %8487 = vmatpush1.msra.mxu0 %v8486
    %v8488 = vand.u32 %v6941, 4294901760
    %8489 = vmatprep.subr.mxu0 %v8488
    %v8490 = vand.u32 %v6933, 4294901760
    %8491 = vmatpush1.msra.mxu0 %v8490
    %v8492 = vand.u32 %v6942, 4294901760
    %8493 = vmatprep.subr.mxu0 %v8492
    %v8494 = vand.u32 %v6934, 4294901760
    %8495 = vmatpush1.msra.mxu0 %v8494
    %8496 = vmatprep.subr.mxu0 0.0
    %8497 = vmatpush1.msra.mxu0 0.0
    %8498 = vmatprep.subr.mxu0 0.0
    %8499 = vmatpush1.msra.mxu0 0.0
    %8500 = vmatprep.subr.mxu0 0.0
    %8501 = vmatpush1.msra.mxu0 0.0
    %8502 = vmatprep.subr.mxu0 0.0
    %8503 = vmatpush1.msra.mxu0 0.0
    %8504 = vmatprep.subr.mxu0 0.0
    %8505 = vmatpush1.msra.mxu0 0.0
    %8506 = vmatprep.subr.mxu0 0.0
    %8507 = vmatpush1.msra.mxu0 0.0
    %8508 = vmatprep.subr.mxu0 0.0
    %8509 = vmatpush1.msra.mxu0 0.0
    %8510 = vmatprep.subr.mxu0 0.0
    %8511 = vmatpush1.msra.mxu0 0.0
    %8512 = vmatprep.subr.mxu0 0.0
    %8513 = vmatpush1.msra.mxu0 0.0
    %8514 = vmatprep.subr.mxu0 0.0
    %8515 = vmatpush1.msra.mxu0 0.0
    %8516 = vmatprep.subr.mxu0 0.0
    %8517 = vmatpush1.msra.mxu0 0.0
    %8518 = vmatprep.subr.mxu0 0.0
    %8519 = vmatpush1.msra.mxu0 0.0
    %8520 = vmatprep.subr.mxu0 0.0
    %8521 = vmatpush1.msra.mxu0 0.0
    %8522 = vmatprep.subr.mxu0 0.0
    %8523 = vmatpush1.msra.mxu0 0.0
    %8524 = vmatprep.subr.mxu0 0.0
    %8525 = vmatpush1.msra.mxu0 0.0
    %8526 = vmatprep.subr.mxu0 0.0
    %8527 = vmatpush1.msra.mxu0 0.0
    %8528 = vmatprep.subr.mxu0 0.0
    %8529 = vmatpush1.msra.mxu0 0.0
    %8530 = vmatprep.subr.mxu0 0.0
    %8531 = vmatpush1.msra.mxu0 0.0
    %8532 = vmatprep.subr.mxu0 0.0
    %8533 = vmatpush1.msra.mxu0 0.0
    %8534 = vmatprep.subr.mxu0 0.0
    %8535 = vmatpush1.msra.mxu0 0.0
    %8536 = vmatprep.subr.mxu0 0.0
    %8537 = vmatpush1.msra.mxu0 0.0
    %8538 = vmatprep.subr.mxu0 0.0
    %8539 = vmatpush1.msra.mxu0 0.0
    %8540 = vmatprep.subr.mxu0 0.0
    %8541 = vmatpush1.msra.mxu0 0.0
    %8542 = vmatprep.subr.mxu0 0.0
    %8543 = vmatpush1.msra.mxu0 0.0
    %8544 = vmatprep.mubr.f32.mxu0 0.0
    %v8545 = vand.u32 %v1023, 4294901760
    %v8546 = vsub.f32 %v1023, %v8545
    %v8547 = vand.u32 %v8546, 4294901760
    %8548 = vmatmul.mubr.f32.gmra.mrb[0].mxu0 %v8547
    %v8549 = vpop.f32.mrb[0].mxu0
    %v8550 = vadd.f32 %v8404, %v8549
    %v8551 = vpop.f32.mrb[0].mxu0
    %v8552 = vadd.f32 %v8406, %v8551
    %8553 = vmatprep.mubr.f32.mxu0 0.0
    %v8554 = vand.u32 %v1026, 4294901760
    %v8555 = vsub.f32 %v1026, %v8554
    %v8556 = vand.u32 %v8555, 4294901760
    %8557 = vmatmul.mubr.f32.gmra.mrb[0].mxu0 %v8556
    %v8558 = vpop.f32.mrb[0].mxu0
    %v8559 = vadd.f32 %v8412, %v8558
    %v8560 = vpop.f32.mrb[0].mxu0
    %v8561 = vadd.f32 %v8414, %v8560
    %8562 = vmatprep.mubr.f32.mxu0 0.0
    %v8563 = vand.u32 %v1029, 4294901760
    %v8564 = vsub.f32 %v1029, %v8563
    %v8565 = vand.u32 %v8564, 4294901760
    %8566 = vmatmul.mubr.f32.gmra.mrb[0].mxu0 %v8565
    %v8567 = vpop.f32.mrb[0].mxu0
    %v8568 = vadd.f32 %v8420, %v8567
    %v8569 = vpop.f32.mrb[0].mxu0
    %v8570 = vadd.f32 %v8422, %v8569
    %8571 = vmatprep.mubr.f32.mxu0 0.0
    %v8572 = vand.u32 %v1032, 4294901760
    %v8573 = vsub.f32 %v1032, %v8572
    %v8574 = vand.u32 %v8573, 4294901760
    %8575 = vmatmul.mubr.f32.gmra.mrb[0].mxu0 %v8574
    %v8576 = vpop.f32.mrb[0].mxu0
    %v8577 = vadd.f32 %v8428, %v8576
    %v8578 = vpop.f32.mrb[0].mxu0
    %v8579 = vadd.f32 %v8430, %v8578
    %8580 = vmatprep.mubr.f32.mxu0 0.0
    %v8581 = vand.u32 %v1035, 4294901760
    %v8582 = vsub.f32 %v1035, %v8581
    %v8583 = vand.u32 %v8582, 4294901760
    %8584 = vmatmul.mubr.f32.gmra.mrb[0].mxu0 %v8583
    %v8585 = vpop.f32.mrb[0].mxu0
    %v8586 = vadd.f32 %v8436, %v8585
    %v8587 = vpop.f32.mrb[0].mxu0
    %v8588 = vadd.f32 %v8438, %v8587
    %8589 = vmatprep.mubr.f32.mxu0 0.0
    %v8590 = vand.u32 %v1038, 4294901760
    %v8591 = vsub.f32 %v1038, %v8590
    %v8592 = vand.u32 %v8591, 4294901760
    %8593 = vmatmul.mubr.f32.gmra.mrb[0].mxu0 %v8592
    %v8594 = vpop.f32.mrb[0].mxu0
    %v8595 = vadd.f32 %v8444, %v8594
    %v8596 = vpop.f32.mrb[0].mxu0
    %v8597 = vadd.f32 %v8446, %v8596
    %8598 = vmatprep.mubr.f32.mxu0 0.0
    %v8599 = vand.u32 %v1041, 4294901760
    %v8600 = vsub.f32 %v1041, %v8599
    %v8601 = vand.u32 %v8600, 4294901760
    %8602 = vmatmul.mubr.f32.gmra.mrb[0].mxu0 %v8601
    %v8603 = vpop.f32.mrb[0].mxu0
    %v8604 = vadd.f32 %v8452, %v8603
    %v8605 = vpop.f32.mrb[0].mxu0
    %v8606 = vadd.f32 %v8454, %v8605
    %8607 = vmatprep.mubr.f32.mxu0 0.0
    %v8608 = vand.u32 %v1044, 4294901760
    %v8609 = vsub.f32 %v1044, %v8608
    %v8610 = vand.u32 %v8609, 4294901760
    %8611 = vmatmul.mubr.f32.gmra.mrb[0].mxu0 %v8610
    %v8612 = vpop.f32.mrb[0].mxu0
    %v8613 = vadd.f32 %v8460, %v8612
    %v8614 = vpop.f32.mrb[0].mxu0
    %v8615 = vadd.f32 %v8462, %v8614
    %8616 = vdwg.mxu0
    %v8617 = vand.u32 %v6935, 4294901760
    %v8618 = vsub.f32 %v6935, %v8617
    %v8619 = vand.u32 %v8618, 4294901760
    %8620 = vmatprep.subr.mxu0 %v8619
    %v8621 = vand.u32 %v6927, 4294901760
    %v8622 = vsub.f32 %v6927, %v8621
    %v8623 = vand.u32 %v8622, 4294901760
    %8624 = vmatpush1.msra.mxu0 %v8623
    %v8625 = vand.u32 %v6936, 4294901760
    %v8626 = vsub.f32 %v6936, %v8625
    %v8627 = vand.u32 %v8626, 4294901760
    %8628 = vmatprep.subr.mxu0 %v8627
    %v8629 = vand.u32 %v6928, 4294901760
    %v8630 = vsub.f32 %v6928, %v8629
    %v8631 = vand.u32 %v8630, 4294901760
    %8632 = vmatpush1.msra.mxu0 %v8631
    %v8633 = vand.u32 %v6937, 4294901760
    %v8634 = vsub.f32 %v6937, %v8633
    %v8635 = vand.u32 %v8634, 4294901760
    %8636 = vmatprep.subr.mxu0 %v8635
    %v8637 = vand.u32 %v6929, 4294901760
    %v8638 = vsub.f32 %v6929, %v8637
    %v8639 = vand.u32 %v8638, 4294901760
    %8640 = vmatpush1.msra.mxu0 %v8639
    %v8641 = vand.u32 %v6938, 4294901760
    %v8642 = vsub.f32 %v6938, %v8641
    %v8643 = vand.u32 %v8642, 4294901760
    %8644 = vmatprep.subr.mxu0 %v8643
    %v8645 = vand.u32 %v6930, 4294901760
    %v8646 = vsub.f32 %v6930, %v8645
    %v8647 = vand.u32 %v8646, 4294901760
    %8648 = vmatpush1.msra.mxu0 %v8647
    %v8649 = vand.u32 %v6939, 4294901760
    %v8650 = vsub.f32 %v6939, %v8649
    %v8651 = vand.u32 %v8650, 4294901760
    %8652 = vmatprep.subr.mxu0 %v8651
    %v8653 = vand.u32 %v6931, 4294901760
    %v8654 = vsub.f32 %v6931, %v8653
    %v8655 = vand.u32 %v8654, 4294901760
    %8656 = vmatpush1.msra.mxu0 %v8655
    %v8657 = vand.u32 %v6940, 4294901760
    %v8658 = vsub.f32 %v6940, %v8657
    %v8659 = vand.u32 %v8658, 4294901760
    %8660 = vmatprep.subr.mxu0 %v8659
    %v8661 = vand.u32 %v6932, 4294901760
    %v8662 = vsub.f32 %v6932, %v8661
    %v8663 = vand.u32 %v8662, 4294901760
    %8664 = vmatpush1.msra.mxu0 %v8663
    %v8665 = vand.u32 %v6941, 4294901760
    %v8666 = vsub.f32 %v6941, %v8665
    %v8667 = vand.u32 %v8666, 4294901760
    %8668 = vmatprep.subr.mxu0 %v8667
    %v8669 = vand.u32 %v6933, 4294901760
    %v8670 = vsub.f32 %v6933, %v8669
    %v8671 = vand.u32 %v8670, 4294901760
    %8672 = vmatpush1.msra.mxu0 %v8671
    %v8673 = vand.u32 %v6942, 4294901760
    %v8674 = vsub.f32 %v6942, %v8673
    %v8675 = vand.u32 %v8674, 4294901760
    %8676 = vmatprep.subr.mxu0 %v8675
    %v8677 = vand.u32 %v6934, 4294901760
    %v8678 = vsub.f32 %v6934, %v8677
    %v8679 = vand.u32 %v8678, 4294901760
    %8680 = vmatpush1.msra.mxu0 %v8679
    %8681 = vmatprep.subr.mxu0 0.0
    %8682 = vmatpush1.msra.mxu0 0.0
    %8683 = vmatprep.subr.mxu0 0.0
    %8684 = vmatpush1.msra.mxu0 0.0
    %8685 = vmatprep.subr.mxu0 0.0
    %8686 = vmatpush1.msra.mxu0 0.0
    %8687 = vmatprep.subr.mxu0 0.0
    %8688 = vmatpush1.msra.mxu0 0.0
    %8689 = vmatprep.subr.mxu0 0.0
    %8690 = vmatpush1.msra.mxu0 0.0
    %8691 = vmatprep.subr.mxu0 0.0
    %8692 = vmatpush1.msra.mxu0 0.0
    %8693 = vmatprep.subr.mxu0 0.0
    %8694 = vmatpush1.msra.mxu0 0.0
    %8695 = vmatprep.subr.mxu0 0.0
    %8696 = vmatpush1.msra.mxu0 0.0
    %8697 = vmatprep.subr.mxu0 0.0
    %8698 = vmatpush1.msra.mxu0 0.0
    %8699 = vmatprep.subr.mxu0 0.0
    %8700 = vmatpush1.msra.mxu0 0.0
    %8701 = vmatprep.subr.mxu0 0.0
    %8702 = vmatpush1.msra.mxu0 0.0
    %8703 = vmatprep.subr.mxu0 0.0
    %8704 = vmatpush1.msra.mxu0 0.0
    %8705 = vmatprep.subr.mxu0 0.0
    %8706 = vmatpush1.msra.mxu0 0.0
    %8707 = vmatprep.subr.mxu0 0.0
    %8708 = vmatpush1.msra.mxu0 0.0
    %8709 = vmatprep.subr.mxu0 0.0
    %8710 = vmatpush1.msra.mxu0 0.0
    %8711 = vmatprep.subr.mxu0 0.0
    %8712 = vmatpush1.msra.mxu0 0.0
    %8713 = vmatprep.subr.mxu0 0.0
    %8714 = vmatpush1.msra.mxu0 0.0
    %8715 = vmatprep.subr.mxu0 0.0
    %8716 = vmatpush1.msra.mxu0 0.0
    %8717 = vmatprep.subr.mxu0 0.0
    %8718 = vmatpush1.msra.mxu0 0.0
    %8719 = vmatprep.subr.mxu0 0.0
    %8720 = vmatpush1.msra.mxu0 0.0
    %8721 = vmatprep.subr.mxu0 0.0
    %8722 = vmatpush1.msra.mxu0 0.0
    %8723 = vmatprep.subr.mxu0 0.0
    %8724 = vmatpush1.msra.mxu0 0.0
    %8725 = vmatprep.subr.mxu0 0.0
    %8726 = vmatpush1.msra.mxu0 0.0
    %8727 = vmatprep.subr.mxu0 0.0
    %8728 = vmatpush1.msra.mxu0 0.0
    %8729 = vmatprep.mubr.f32.mxu0 0.0
    %v8730 = vand.u32 %v1023, 4294901760
    %8731 = vmatmul.mubr.f32.gmra.mrb[0].mxu0 %v8730
    %v8732 = vpop.f32.mrb[0].mxu0
    %v8733 = vadd.f32 %v8550, %v8732
    %v8734 = vpop.f32.mrb[0].mxu0
    %v8735 = vadd.f32 %v8552, %v8734
    %8736 = vmatprep.mubr.f32.mxu0 0.0
    %v8737 = vand.u32 %v1026, 4294901760
    %8738 = vmatmul.mubr.f32.gmra.mrb[0].mxu0 %v8737
    %v8739 = vpop.f32.mrb[0].mxu0
    %v8740 = vadd.f32 %v8559, %v8739
    %v8741 = vpop.f32.mrb[0].mxu0
    %v8742 = vadd.f32 %v8561, %v8741
    %8743 = vmatprep.mubr.f32.mxu0 0.0
    %v8744 = vand.u32 %v1029, 4294901760
    %8745 = vmatmul.mubr.f32.gmra.mrb[0].mxu0 %v8744
    %v8746 = vpop.f32.mrb[0].mxu0
    %v8747 = vadd.f32 %v8568, %v8746
    %v8748 = vpop.f32.mrb[0].mxu0
    %v8749 = vadd.f32 %v8570, %v8748
    %8750 = vmatprep.mubr.f32.mxu0 0.0
    %v8751 = vand.u32 %v1032, 4294901760
    %8752 = vmatmul.mubr.f32.gmra.mrb[0].mxu0 %v8751
    %v8753 = vpop.f32.mrb[0].mxu0
    %v8754 = vadd.f32 %v8577, %v8753
    %v8755 = vpop.f32.mrb[0].mxu0
    %v8756 = vadd.f32 %v8579, %v8755
    %8757 = vmatprep.mubr.f32.mxu0 0.0
    %v8758 = vand.u32 %v1035, 4294901760
    %8759 = vmatmul.mubr.f32.gmra.mrb[0].mxu0 %v8758
    %v8760 = vpop.f32.mrb[0].mxu0
    %v8761 = vadd.f32 %v8586, %v8760
    %v8762 = vpop.f32.mrb[0].mxu0
    %v8763 = vadd.f32 %v8588, %v8762
    %8764 = vmatprep.mubr.f32.mxu0 0.0
    %v8765 = vand.u32 %v1038, 4294901760
    %8766 = vmatmul.mubr.f32.gmra.mrb[0].mxu0 %v8765
    %v8767 = vpop.f32.mrb[0].mxu0
    %v8768 = vadd.f32 %v8595, %v8767
    %v8769 = vpop.f32.mrb[0].mxu0
    %v8770 = vadd.f32 %v8597, %v8769
    %8771 = vmatprep.mubr.f32.mxu0 0.0
    %v8772 = vand.u32 %v1041, 4294901760
    %8773 = vmatmul.mubr.f32.gmra.mrb[0].mxu0 %v8772
    %v8774 = vpop.f32.mrb[0].mxu0
    %v8775 = vadd.f32 %v8604, %v8774
    %v8776 = vpop.f32.mrb[0].mxu0
    %v8777 = vadd.f32 %v8606, %v8776
    %8778 = vmatprep.mubr.f32.mxu0 0.0
    %v8779 = vand.u32 %v1044, 4294901760
    %8780 = vmatmul.mubr.f32.gmra.mrb[0].mxu0 %v8779
    %v8781 = vpop.f32.mrb[0].mxu0
    %v8782 = vadd.f32 %v8613, %v8781
    %v8783 = vpop.f32.mrb[0].mxu0
    %v8784 = vadd.f32 %v8615, %v8783
    %8785 = vdwg.mxu0
    %v8786 = vand.u32 %v6935, 4294901760
    %8787 = vmatprep.subr.mxu0 %v8786
    %v8788 = vand.u32 %v6927, 4294901760
    %8789 = vmatpush1.msra.mxu0 %v8788
    %v8790 = vand.u32 %v6936, 4294901760
    %8791 = vmatprep.subr.mxu0 %v8790
    %v8792 = vand.u32 %v6928, 4294901760
    %8793 = vmatpush1.msra.mxu0 %v8792
    %v8794 = vand.u32 %v6937, 4294901760
    %8795 = vmatprep.subr.mxu0 %v8794
    %v8796 = vand.u32 %v6929, 4294901760
    %8797 = vmatpush1.msra.mxu0 %v8796
    %v8798 = vand.u32 %v6938, 4294901760
    %8799 = vmatprep.subr.mxu0 %v8798
    %v8800 = vand.u32 %v6930, 4294901760
    %8801 = vmatpush1.msra.mxu0 %v8800
    %v8802 = vand.u32 %v6939, 4294901760
    %8803 = vmatprep.subr.mxu0 %v8802
    %v8804 = vand.u32 %v6931, 4294901760
    %8805 = vmatpush1.msra.mxu0 %v8804
    %v8806 = vand.u32 %v6940, 4294901760
    %8807 = vmatprep.subr.mxu0 %v8806
    %v8808 = vand.u32 %v6932, 4294901760
    %8809 = vmatpush1.msra.mxu0 %v8808
    %v8810 = vand.u32 %v6941, 4294901760
    %8811 = vmatprep.subr.mxu0 %v8810
    %v8812 = vand.u32 %v6933, 4294901760
    %8813 = vmatpush1.msra.mxu0 %v8812
    %v8814 = vand.u32 %v6942, 4294901760
    %8815 = vmatprep.subr.mxu0 %v8814
    %v8816 = vand.u32 %v6934, 4294901760
    %8817 = vmatpush1.msra.mxu0 %v8816
    %8818 = vmatprep.subr.mxu0 0.0
    %8819 = vmatpush1.msra.mxu0 0.0
    %8820 = vmatprep.subr.mxu0 0.0
    %8821 = vmatpush1.msra.mxu0 0.0
    %8822 = vmatprep.subr.mxu0 0.0
    %8823 = vmatpush1.msra.mxu0 0.0
    %8824 = vmatprep.subr.mxu0 0.0
    %8825 = vmatpush1.msra.mxu0 0.0
    %8826 = vmatprep.subr.mxu0 0.0
    %8827 = vmatpush1.msra.mxu0 0.0
    %8828 = vmatprep.subr.mxu0 0.0
    %8829 = vmatpush1.msra.mxu0 0.0
    %8830 = vmatprep.subr.mxu0 0.0
    %8831 = vmatpush1.msra.mxu0 0.0
    %8832 = vmatprep.subr.mxu0 0.0
    %8833 = vmatpush1.msra.mxu0 0.0
    %8834 = vmatprep.subr.mxu0 0.0
    %8835 = vmatpush1.msra.mxu0 0.0
    %8836 = vmatprep.subr.mxu0 0.0
    %8837 = vmatpush1.msra.mxu0 0.0
    %8838 = vmatprep.subr.mxu0 0.0
    %8839 = vmatpush1.msra.mxu0 0.0
    %8840 = vmatprep.subr.mxu0 0.0
    %8841 = vmatpush1.msra.mxu0 0.0
    %8842 = vmatprep.subr.mxu0 0.0
    %8843 = vmatpush1.msra.mxu0 0.0
    %8844 = vmatprep.subr.mxu0 0.0
    %8845 = vmatpush1.msra.mxu0 0.0
    %8846 = vmatprep.subr.mxu0 0.0
    %8847 = vmatpush1.msra.mxu0 0.0
    %8848 = vmatprep.subr.mxu0 0.0
    %8849 = vmatpush1.msra.mxu0 0.0
    %8850 = vmatprep.subr.mxu0 0.0
    %8851 = vmatpush1.msra.mxu0 0.0
    %8852 = vmatprep.subr.mxu0 0.0
    %8853 = vmatpush1.msra.mxu0 0.0
    %8854 = vmatprep.subr.mxu0 0.0
    %8855 = vmatpush1.msra.mxu0 0.0
    %8856 = vmatprep.subr.mxu0 0.0
    %8857 = vmatpush1.msra.mxu0 0.0
    %8858 = vmatprep.subr.mxu0 0.0
    %8859 = vmatpush1.msra.mxu0 0.0
    %8860 = vmatprep.subr.mxu0 0.0
    %8861 = vmatpush1.msra.mxu0 0.0
    %8862 = vmatprep.subr.mxu0 0.0
    %8863 = vmatpush1.msra.mxu0 0.0
    %8864 = vmatprep.subr.mxu0 0.0
    %8865 = vmatpush1.msra.mxu0 0.0
    %8866 = vmatprep.mubr.f32.mxu0 0.0
    %v8867 = vand.u32 %v1023, 4294901760
    %8868 = vmatmul.mubr.f32.gmra.mrb[0].mxu0 %v8867
    %v8869 = vpop.f32.mrb[0].mxu0
    %v8870 = vadd.f32 %v8733, %v8869
    %v8871 = vpop.f32.mrb[0].mxu0
    %v8872 = vadd.f32 %v8735, %v8871
    %8873 = vmatprep.mubr.f32.mxu0 0.0
    %v8874 = vand.u32 %v1026, 4294901760
    %8875 = vmatmul.mubr.f32.gmra.mrb[0].mxu0 %v8874
    %v8876 = vpop.f32.mrb[0].mxu0
    %v8877 = vadd.f32 %v8740, %v8876
    %v8878 = vpop.f32.mrb[0].mxu0
    %v8879 = vadd.f32 %v8742, %v8878
    %8880 = vmatprep.mubr.f32.mxu0 0.0
    %v8881 = vand.u32 %v1029, 4294901760
    %8882 = vmatmul.mubr.f32.gmra.mrb[0].mxu0 %v8881
    %v8883 = vpop.f32.mrb[0].mxu0
    %v8884 = vadd.f32 %v8747, %v8883
    %v8885 = vpop.f32.mrb[0].mxu0
    %v8886 = vadd.f32 %v8749, %v8885
    %8887 = vmatprep.mubr.f32.mxu0 0.0
    %v8888 = vand.u32 %v1032, 4294901760
    %8889 = vmatmul.mubr.f32.gmra.mrb[0].mxu0 %v8888
    %v8890 = vpop.f32.mrb[0].mxu0
    %v8891 = vadd.f32 %v8754, %v8890
    %v8892 = vpop.f32.mrb[0].mxu0
    %v8893 = vadd.f32 %v8756, %v8892
    %8894 = vmatprep.mubr.f32.mxu0 0.0
    %v8895 = vand.u32 %v1035, 4294901760
    %8896 = vmatmul.mubr.f32.gmra.mrb[0].mxu0 %v8895
    %v8897 = vpop.f32.mrb[0].mxu0
    %v8898 = vadd.f32 %v8761, %v8897
    %v8899 = vpop.f32.mrb[0].mxu0
    %v8900 = vadd.f32 %v8763, %v8899
    %8901 = vmatprep.mubr.f32.mxu0 0.0
    %v8902 = vand.u32 %v1038, 4294901760
    %8903 = vmatmul.mubr.f32.gmra.mrb[0].mxu0 %v8902
    %v8904 = vpop.f32.mrb[0].mxu0
    %v8905 = vadd.f32 %v8768, %v8904
    %v8906 = vpop.f32.mrb[0].mxu0
    %v8907 = vadd.f32 %v8770, %v8906
    %8908 = vmatprep.mubr.f32.mxu0 0.0
    %v8909 = vand.u32 %v1041, 4294901760
    %8910 = vmatmul.mubr.f32.gmra.mrb[0].mxu0 %v8909
    %v8911 = vpop.f32.mrb[0].mxu0
    %v8912 = vadd.f32 %v8775, %v8911
    %v8913 = vpop.f32.mrb[0].mxu0
    %v8914 = vadd.f32 %v8777, %v8913
    %8915 = vmatprep.mubr.f32.mxu0 0.0
    %v8916 = vand.u32 %v1044, 4294901760
    %8917 = vmatmul.mubr.f32.gmra.mrb[0].mxu0 %v8916
    %v8918 = vpop.f32.mrb[0].mxu0
    %v8919 = vadd.f32 %v8782, %v8918
    %v8920 = vpop.f32.mrb[0].mxu0
    %v8921 = vadd.f32 %v8784, %v8920
    %8922 = vdwg.mxu0
    %v8923 = vmul.f32 %v3518, %v7880
    %v8924 = vmul.f32 %v3519, %v7887
    %v8925 = vmul.f32 %v3520, %v7894
    %v8926 = vmul.f32 %v3521, %v7901
    %v8927 = vmul.f32 %v3522, %v7908
    %v8928 = vmul.f32 %v3523, %v7915
    %v8929 = vmul.f32 %v3524, %v7922
    %v8930 = vmul.f32 %v3525, %v7929
    %v8931 = vmul.f32 %v8923, %v7880
    %v8932 = vmul.f32 %v8924, %v7887
    %v8933 = vmul.f32 %v8925, %v7894
    %v8934 = vmul.f32 %v8926, %v7901
    %v8935 = vmul.f32 %v8927, %v7908
    %v8936 = vmul.f32 %v8928, %v7915
    %v8937 = vmul.f32 %v8929, %v7922
    %v8938 = vmul.f32 %v8930, %v7929
    %v8939 = vadd.f32 %v8931, %v8932
    %v8940 = vadd.f32 %v8939, %v8933
    %v8941 = vadd.f32 %v8940, %v8934
    %v8942 = vadd.f32 %v8941, %v8935
    %v8943 = vadd.f32 %v8942, %v8936
    %v8944 = vadd.f32 %v8943, %v8937
    %v8945 = vadd.f32 %v8944, %v8938
    %v8946 = vrot.slane %v8945, 4
    %v8947 = vadd.f32 %v8945, %v8946
    %v8948 = vrot.slane %v8947, 2
    %v8949 = vadd.f32 %v8947, %v8948
    %v8950 = vrot.slane %v8949, 1
    %v8951 = vadd.f32 %v8949, %v8950
    %v8952 = vadd.f32 %v6592, %v8951
    %v8953 = vmul.f32 %v8923, %v7882
    %v8954 = vmul.f32 %v8924, %v7889
    %v8955 = vmul.f32 %v8925, %v7896
    %v8956 = vmul.f32 %v8926, %v7903
    %v8957 = vmul.f32 %v8927, %v7910
    %v8958 = vmul.f32 %v8928, %v7917
    %v8959 = vmul.f32 %v8929, %v7924
    %v8960 = vmul.f32 %v8930, %v7931
    %v8961 = vadd.f32 %v8953, %v8954
    %v8962 = vadd.f32 %v8961, %v8955
    %v8963 = vadd.f32 %v8962, %v8956
    %v8964 = vadd.f32 %v8963, %v8957
    %v8965 = vadd.f32 %v8964, %v8958
    %v8966 = vadd.f32 %v8965, %v8959
    %v8967 = vadd.f32 %v8966, %v8960
    %v8968 = vrot.slane %v8967, 4
    %v8969 = vadd.f32 %v8967, %v8968
    %v8970 = vrot.slane %v8969, 2
    %v8971 = vadd.f32 %v8969, %v8970
    %v8972 = vrot.slane %v8971, 1
    %v8973 = vadd.f32 %v8971, %v8972
    %v8974 = vadd.f32 %v6646, %v8973
    %v8975 = vmul.f32 %v8923, %v8870
    %v8976 = vmul.f32 %v8924, %v8877
    %v8977 = vmul.f32 %v8925, %v8884
    %v8978 = vmul.f32 %v8926, %v8891
    %v8979 = vmul.f32 %v8927, %v8898
    %v8980 = vmul.f32 %v8928, %v8905
    %v8981 = vmul.f32 %v8929, %v8912
    %v8982 = vmul.f32 %v8930, %v8919
    %v8983 = vadd.f32 %v8975, %v8976
    %v8984 = vadd.f32 %v8983, %v8977
    %v8985 = vadd.f32 %v8984, %v8978
    %v8986 = vadd.f32 %v8985, %v8979
    %v8987 = vadd.f32 %v8986, %v8980
    %v8988 = vadd.f32 %v8987, %v8981
    %v8989 = vadd.f32 %v8988, %v8982
    %v8990 = vrot.slane %v8989, 4
    %v8991 = vadd.f32 %v8989, %v8990
    %v8992 = vrot.slane %v8991, 2
    %v8993 = vadd.f32 %v8991, %v8992
    %v8994 = vrot.slane %v8993, 1
    %v8995 = vadd.f32 %v8993, %v8994
    %v8996 = vadd.f32 %v6700, %v8995
    %v8997 = vmul.f32 %v8923, %v8872
    %v8998 = vmul.f32 %v8924, %v8879
    %v8999 = vmul.f32 %v8925, %v8886
    %v9000 = vmul.f32 %v8926, %v8893
    %v9001 = vmul.f32 %v8927, %v8900
    %v9002 = vmul.f32 %v8928, %v8907
    %v9003 = vmul.f32 %v8929, %v8914
    %v9004 = vmul.f32 %v8930, %v8921
    %v9005 = vadd.f32 %v8997, %v8998
    %v9006 = vadd.f32 %v9005, %v8999
    %v9007 = vadd.f32 %v9006, %v9000
    %v9008 = vadd.f32 %v9007, %v9001
    %v9009 = vadd.f32 %v9008, %v9002
    %v9010 = vadd.f32 %v9009, %v9003
    %v9011 = vadd.f32 %v9010, %v9004
    %v9012 = vrot.slane %v9011, 4
    %v9013 = vadd.f32 %v9011, %v9012
    %v9014 = vrot.slane %v9013, 2
    %v9015 = vadd.f32 %v9013, %v9014
    %v9016 = vrot.slane %v9015, 1
    %v9017 = vadd.f32 %v9015, %v9016
    %v9018 = vadd.f32 %v6754, %v9017
    %v9019 = vmul.f32 %v3518, %v7882
    %v9020 = vmul.f32 %v3519, %v7889
    %v9021 = vmul.f32 %v3520, %v7896
    %v9022 = vmul.f32 %v3521, %v7903
    %v9023 = vmul.f32 %v3522, %v7910
    %v9024 = vmul.f32 %v3523, %v7917
    %v9025 = vmul.f32 %v3524, %v7924
    %v9026 = vmul.f32 %v3525, %v7931
    %v9027 = vmul.f32 %v9019, %v7882
    %v9028 = vmul.f32 %v9020, %v7889
    %v9029 = vmul.f32 %v9021, %v7896
    %v9030 = vmul.f32 %v9022, %v7903
    %v9031 = vmul.f32 %v9023, %v7910
    %v9032 = vmul.f32 %v9024, %v7917
    %v9033 = vmul.f32 %v9025, %v7924
    %v9034 = vmul.f32 %v9026, %v7931
    %v9035 = vadd.f32 %v9027, %v9028
    %v9036 = vadd.f32 %v9035, %v9029
    %v9037 = vadd.f32 %v9036, %v9030
    %v9038 = vadd.f32 %v9037, %v9031
    %v9039 = vadd.f32 %v9038, %v9032
    %v9040 = vadd.f32 %v9039, %v9033
    %v9041 = vadd.f32 %v9040, %v9034
    %v9042 = vrot.slane %v9041, 4
    %v9043 = vadd.f32 %v9041, %v9042
    %v9044 = vrot.slane %v9043, 2
    %v9045 = vadd.f32 %v9043, %v9044
    %v9046 = vrot.slane %v9045, 1
    %v9047 = vadd.f32 %v9045, %v9046
    %v9048 = vadd.f32 %v6784, %v9047
    %v9049 = vmul.f32 %v9019, %v8870
    %v9050 = vmul.f32 %v9020, %v8877
    %v9051 = vmul.f32 %v9021, %v8884
    %v9052 = vmul.f32 %v9022, %v8891
    %v9053 = vmul.f32 %v9023, %v8898
    %v9054 = vmul.f32 %v9024, %v8905
    %v9055 = vmul.f32 %v9025, %v8912
    %v9056 = vmul.f32 %v9026, %v8919
    %v9057 = vadd.f32 %v9049, %v9050
    %v9058 = vadd.f32 %v9057, %v9051
    %v9059 = vadd.f32 %v9058, %v9052
    %v9060 = vadd.f32 %v9059, %v9053
    %v9061 = vadd.f32 %v9060, %v9054
    %v9062 = vadd.f32 %v9061, %v9055
    %v9063 = vadd.f32 %v9062, %v9056
    %v9064 = vrot.slane %v9063, 4
    %v9065 = vadd.f32 %v9063, %v9064
    %v9066 = vrot.slane %v9065, 2
    %v9067 = vadd.f32 %v9065, %v9066
    %v9068 = vrot.slane %v9067, 1
    %v9069 = vadd.f32 %v9067, %v9068
    %v9070 = vadd.f32 %v6806, %v9069
    %v9071 = vmul.f32 %v9019, %v8872
    %v9072 = vmul.f32 %v9020, %v8879
    %v9073 = vmul.f32 %v9021, %v8886
    %v9074 = vmul.f32 %v9022, %v8893
    %v9075 = vmul.f32 %v9023, %v8900
    %v9076 = vmul.f32 %v9024, %v8907
    %v9077 = vmul.f32 %v9025, %v8914
    %v9078 = vmul.f32 %v9026, %v8921
    %v9079 = vadd.f32 %v9071, %v9072
    %v9080 = vadd.f32 %v9079, %v9073
    %v9081 = vadd.f32 %v9080, %v9074
    %v9082 = vadd.f32 %v9081, %v9075
    %v9083 = vadd.f32 %v9082, %v9076
    %v9084 = vadd.f32 %v9083, %v9077
    %v9085 = vadd.f32 %v9084, %v9078
    %v9086 = vrot.slane %v9085, 4
    %v9087 = vadd.f32 %v9085, %v9086
    %v9088 = vrot.slane %v9087, 2
    %v9089 = vadd.f32 %v9087, %v9088
    %v9090 = vrot.slane %v9089, 1
    %v9091 = vadd.f32 %v9089, %v9090
    %v9092 = vadd.f32 %v6828, %v9091
    %v9093 = vmul.f32 %v3518, %v8870
    %v9094 = vmul.f32 %v3519, %v8877
    %v9095 = vmul.f32 %v3520, %v8884
    %v9096 = vmul.f32 %v3521, %v8891
    %v9097 = vmul.f32 %v3522, %v8898
    %v9098 = vmul.f32 %v3523, %v8905
    %v9099 = vmul.f32 %v3524, %v8912
    %v9100 = vmul.f32 %v3525, %v8919
    %v9101 = vmul.f32 %v9093, %v8870
    %v9102 = vmul.f32 %v9094, %v8877
    %v9103 = vmul.f32 %v9095, %v8884
    %v9104 = vmul.f32 %v9096, %v8891
    %v9105 = vmul.f32 %v9097, %v8898
    %v9106 = vmul.f32 %v9098, %v8905
    %v9107 = vmul.f32 %v9099, %v8912
    %v9108 = vmul.f32 %v9100, %v8919
    %v9109 = vadd.f32 %v9101, %v9102
    %v9110 = vadd.f32 %v9109, %v9103
    %v9111 = vadd.f32 %v9110, %v9104
    %v9112 = vadd.f32 %v9111, %v9105
    %v9113 = vadd.f32 %v9112, %v9106
    %v9114 = vadd.f32 %v9113, %v9107
    %v9115 = vadd.f32 %v9114, %v9108
    %v9116 = vrot.slane %v9115, 4
    %v9117 = vadd.f32 %v9115, %v9116
    %v9118 = vrot.slane %v9117, 2
    %v9119 = vadd.f32 %v9117, %v9118
    %v9120 = vrot.slane %v9119, 1
    %v9121 = vadd.f32 %v9119, %v9120
    %v9122 = vadd.f32 %v6858, %v9121
    %v9123 = vmul.f32 %v9093, %v8872
    %v9124 = vmul.f32 %v9094, %v8879
    %v9125 = vmul.f32 %v9095, %v8886
    %v9126 = vmul.f32 %v9096, %v8893
    %v9127 = vmul.f32 %v9097, %v8900
    %v9128 = vmul.f32 %v9098, %v8907
    %v9129 = vmul.f32 %v9099, %v8914
    %v9130 = vmul.f32 %v9100, %v8921
    %v9131 = vadd.f32 %v9123, %v9124
    %v9132 = vadd.f32 %v9131, %v9125
    %v9133 = vadd.f32 %v9132, %v9126
    %v9134 = vadd.f32 %v9133, %v9127
    %v9135 = vadd.f32 %v9134, %v9128
    %v9136 = vadd.f32 %v9135, %v9129
    %v9137 = vadd.f32 %v9136, %v9130
    %v9138 = vrot.slane %v9137, 4
    %v9139 = vadd.f32 %v9137, %v9138
    %v9140 = vrot.slane %v9139, 2
    %v9141 = vadd.f32 %v9139, %v9140
    %v9142 = vrot.slane %v9141, 1
    %v9143 = vadd.f32 %v9141, %v9142
    %v9144 = vadd.f32 %v6880, %v9143
    %v9145 = vmul.f32 %v3518, %v8872
    %v9146 = vmul.f32 %v3519, %v8879
    %v9147 = vmul.f32 %v3520, %v8886
    %v9148 = vmul.f32 %v3521, %v8893
    %v9149 = vmul.f32 %v3522, %v8900
    %v9150 = vmul.f32 %v3523, %v8907
    %v9151 = vmul.f32 %v3524, %v8914
    %v9152 = vmul.f32 %v3525, %v8921
    %v9153 = vmul.f32 %v9145, %v8872
    %v9154 = vmul.f32 %v9146, %v8879
    %v9155 = vmul.f32 %v9147, %v8886
    %v9156 = vmul.f32 %v9148, %v8893
    %v9157 = vmul.f32 %v9149, %v8900
    %v9158 = vmul.f32 %v9150, %v8907
    %v9159 = vmul.f32 %v9151, %v8914
    %v9160 = vmul.f32 %v9152, %v8921
    %v9161 = vadd.f32 %v9153, %v9154
    %v9162 = vadd.f32 %v9161, %v9155
    %v9163 = vadd.f32 %v9162, %v9156
    %v9164 = vadd.f32 %v9163, %v9157
    %v9165 = vadd.f32 %v9164, %v9158
    %v9166 = vadd.f32 %v9165, %v9159
    %v9167 = vadd.f32 %v9166, %v9160
    %v9168 = vrot.slane %v9167, 4
    %v9169 = vadd.f32 %v9167, %v9168
    %v9170 = vrot.slane %v9169, 2
    %v9171 = vadd.f32 %v9169, %v9170
    %v9172 = vrot.slane %v9171, 1
    %v9173 = vadd.f32 %v9171, %v9172
    %v9174 = vadd.f32 %v6910, %v9173
    %v9175 = vadd.f32 %v8952, 0.2
    %v9177 = vrot.slane %v6528, 4
    %v9179 = vsub.f32 %v3507, %v9177
    %v9180 = vadd.f32 %v9048, 0.2
    %v9181 = vadd.f32 %v9122, 0.2
    %v9182 = vadd.f32 %v9174, 0.2
    %v9183 = vand.u32 2147483647, %v8974
    %v9184 = vand.u32 2147483647, %v9175
    %vm9185 = vcmp.gt.f32.partialorder %v9183, %v9184
    %v9186 = vsel %vm9185, %v8974, %v9175
    %v9187 = vsel %vm9185, %v9175, %v8974
    %v9188 = vsel %vm9185, %v9180, %v8974
    %v9189 = vsel %vm9185, %v8974, %v9180
    %v9190 = vsel %vm9185, %v9070, %v8996
    %v9191 = vsel %vm9185, %v8996, %v9070
    %v9192 = vsel %vm9185, %v9092, %v9018
    %v9193 = vsel %vm9185, %v9018, %v9092
    %v9195 = vrot.slane %v9179, 7
    %v9197 = vsel %vm9185, %v9179, %v9195
    %v9198 = vrot.slane %v9179, 1
    %v9200 = vsel %vm9185, %v9179, %v9198
    %v9201 = vand.u32 2147483647, %v8996
    %v9202 = vand.u32 2147483647, %v9186
    %vm9203 = vcmp.gt.f32.partialorder %v9201, %v9202
    %v9204 = vsel %vm9203, %v8996, %v9186
    %v9205 = vsel %vm9203, %v9186, %v8996
    %v9206 = vsel %vm9203, %v9070, %v9188
    %v9207 = vsel %vm9203, %v9188, %v9070
    %v9208 = vsel %vm9203, %v9181, %v9190
    %v9209 = vsel %vm9203, %v9190, %v9181
    %v9210 = vsel %vm9203, %v9144, %v9192
    %v9211 = vsel %vm9203, %v9192, %v9144
    %v9213 = vrot.slane %v9197, 7
    %v9215 = vsel %vm9203, %v9179, %v9213
    %v9216 = vsel %vm9203, %v9197, %v9198
    %v9217 = vand.u32 2147483647, %v9018
    %v9218 = vand.u32 2147483647, %v9204
    %vm9219 = vcmp.gt.f32.partialorder %v9217, %v9218
    %v9220 = vsel %vm9219, %v9018, %v9204
    %v9221 = vsel %vm9219, %v9204, %v9018
    %v9222 = vsel %vm9219, %v9092, %v9206
    %v9223 = vsel %vm9219, %v9206, %v9092
    %v9224 = vsel %vm9219, %v9144, %v9208
    %v9225 = vsel %vm9219, %v9208, %v9144
    %v9226 = vsel %vm9219, %v9182, %v9210
    %v9227 = vsel %vm9219, %v9210, %v9182
    %v9229 = vrot.slane %v9215, 7
    %v9231 = vsel %vm9219, %v9179, %v9229
    %v9232 = vsel %vm9219, %v9215, %v9198
    %v9233 = vrcp.pop %v9220
    %v9234 = vmul.f32 1.0, %v9233
    %v9235 = vmul.f32 %v9187, %v9234
    %v9236 = vmul.f32 %v9235, %v9222
    %v9237 = vsub.f32 %v9189, %v9236
    %v9238 = vmul.f32 %v9235, %v9224
    %v9239 = vsub.f32 %v9191, %v9238
    %v9240 = vmul.f32 %v9235, %v9226
    %v9241 = vsub.f32 %v9193, %v9240
    %v9242 = vmul.f32 %v9235, %v9231
    %v9244 = vrot.slane %v9242, 3
    %v9246 = vsub.f32 %v9200, %v9244
    %v9247 = vmul.f32 %v9205, %v9234
    %v9248 = vmul.f32 %v9247, %v9222
    %v9249 = vsub.f32 %v9207, %v9248
    %v9250 = vmul.f32 %v9247, %v9224
    %v9251 = vsub.f32 %v9209, %v9250
    %v9252 = vmul.f32 %v9247, %v9226
    %v9253 = vsub.f32 %v9211, %v9252
    %v9254 = vmul.f32 %v9247, %v9231
    %v9256 = vrot.slane %v9254, 2
    %v9258 = vsub.f32 %v9216, %v9256
    %v9259 = vmul.f32 %v9221, %v9234
    %v9260 = vmul.f32 %v9259, %v9222
    %v9261 = vsub.f32 %v9223, %v9260
    %v9262 = vmul.f32 %v9259, %v9224
    %v9263 = vsub.f32 %v9225, %v9262
    %v9264 = vmul.f32 %v9259, %v9226
    %v9265 = vsub.f32 %v9227, %v9264
    %v9266 = vmul.f32 %v9259, %v9231
    %v9268 = vrot.slane %v9266, 1
    %v9270 = vsub.f32 %v9232, %v9268
    %v9271 = vand.u32 2147483647, %v9249
    %v9272 = vand.u32 2147483647, %v9237
    %vm9273 = vcmp.gt.f32.partialorder %v9271, %v9272
    %v9274 = vsel %vm9273, %v9249, %v9237
    %v9275 = vsel %vm9273, %v9237, %v9249
    %v9276 = vsel %vm9273, %v9251, %v9239
    %v9277 = vsel %vm9273, %v9239, %v9251
    %v9278 = vsel %vm9273, %v9253, %v9241
    %v9279 = vsel %vm9273, %v9241, %v9253
    %v9281 = vrot.slane %v9246, 7
    %v9283 = vsel %vm9273, %v9258, %v9281
    %v9285 = vrot.slane %v9258, 1
    %v9287 = vsel %vm9273, %v9246, %v9285
    %v9288 = vand.u32 2147483647, %v9261
    %v9289 = vand.u32 2147483647, %v9274
    %vm9290 = vcmp.gt.f32.partialorder %v9288, %v9289
    %v9291 = vsel %vm9290, %v9261, %v9274
    %v9292 = vsel %vm9290, %v9274, %v9261
    %v9293 = vsel %vm9290, %v9263, %v9276
    %v9294 = vsel %vm9290, %v9276, %v9263
    %v9295 = vsel %vm9290, %v9265, %v9278
    %v9296 = vsel %vm9290, %v9278, %v9265
    %v9298 = vrot.slane %v9283, 7
    %v9300 = vsel %vm9290, %v9270, %v9298
    %v9302 = vrot.slane %v9270, 1
    %v9304 = vsel %vm9290, %v9283, %v9302
    %v9305 = vrcp.pop %v9291
    %v9306 = vmul.f32 1.0, %v9305
    %v9307 = vmul.f32 %v9275, %v9306
    %v9308 = vmul.f32 %v9307, %v9293
    %v9309 = vsub.f32 %v9277, %v9308
    %v9310 = vmul.f32 %v9307, %v9295
    %v9311 = vsub.f32 %v9279, %v9310
    %v9312 = vmul.f32 %v9307, %v9300
    %v9314 = vrot.slane %v9312, 2
    %v9316 = vsub.f32 %v9287, %v9314
    %v9317 = vmul.f32 %v9292, %v9306
    %v9318 = vmul.f32 %v9317, %v9293
    %v9319 = vsub.f32 %v9294, %v9318
    %v9320 = vmul.f32 %v9317, %v9295
    %v9321 = vsub.f32 %v9296, %v9320
    %v9322 = vmul.f32 %v9317, %v9300
    %v9324 = vrot.slane %v9322, 1
    %v9326 = vsub.f32 %v9304, %v9324
    %v9327 = vand.u32 2147483647, %v9319
    %v9328 = vand.u32 2147483647, %v9309
    %vm9329 = vcmp.gt.f32.partialorder %v9327, %v9328
    %v9330 = vsel %vm9329, %v9319, %v9309
    %v9331 = vsel %vm9329, %v9309, %v9319
    %v9332 = vsel %vm9329, %v9321, %v9311
    %v9333 = vsel %vm9329, %v9311, %v9321
    %v9335 = vrot.slane %v9316, 7
    %v9337 = vsel %vm9329, %v9326, %v9335
    %v9339 = vrot.slane %v9326, 1
    %v9341 = vsel %vm9329, %v9316, %v9339
    %v9342 = vrcp.pop %v9330
    %v9343 = vmul.f32 1.0, %v9342
    %v9344 = vmul.f32 %v9331, %v9343
    %v9345 = vmul.f32 %v9344, %v9332
    %v9346 = vsub.f32 %v9333, %v9345
    %v9347 = vmul.f32 %v9344, %v9337
    %v9349 = vrot.slane %v9347, 1
    %v9351 = vsub.f32 %v9341, %v9349
    %v9352 = vrcp.pop %v9346
    %v9353 = vmul.f32 %v9351, %v9352
    %v9354 = vmul.f32 %v9332, %v9353
    %v9356 = vrot.slane %v9354, 7
    %v9358 = vsub.f32 %v9337, %v9356
    %v9359 = vmul.f32 %v9358, %v9342
    %v9360 = vmul.f32 %v9293, %v9359
    %v9362 = vrot.slane %v9360, 7
    %v9364 = vsub.f32 %v9300, %v9362
    %v9365 = vmul.f32 %v9295, %v9353
    %v9367 = vrot.slane %v9365, 6
    %v9369 = vsub.f32 %v9364, %v9367
    %v9370 = vmul.f32 %v9369, %v9305
    %v9371 = vmul.f32 %v9222, %v9370
    %v9373 = vrot.slane %v9371, 7
    %v9375 = vsub.f32 %v9231, %v9373
    %v9376 = vmul.f32 %v9224, %v9359
    %v9378 = vrot.slane %v9376, 6
    %v9380 = vsub.f32 %v9375, %v9378
    %v9381 = vmul.f32 %v9226, %v9353
    %v9383 = vrot.slane %v9381, 5
    %v9385 = vsub.f32 %v9380, %v9383
    %v9386 = vmul.f32 %v9385, %v9233
    %v9388 = vrot.slane %v9386, 3
    %v9391 = vrot.slane %v9370, 1
    %v9394 = vrot.slane %v9359, 7
    %v9397 = vrot.slane %v9353, 5
    %vm9399 = vcmask 1040384
    %v9400 = vsel %vm9399, %v9388, %v9391
    %vm9401 = vcmask 1041408
    %v9402 = vsel %vm9401, %v9400, %v9394
    %vm9403 = vcmask 1042432
    %v9404 = vsel %vm9403, %v9402, %v9397
    %v9406 = vrot.slane %v9404, 4
    %v9408 = vsel %vm3529, %v3527, %v9406
    %9409 = vst [vmem:[#allocation2] sm:$0xff] %v9408
    // Predicated region
    $region26: #{tpu_custom_call.1} parent=1 // pred_check
      _
    $region27: #{tpu_custom_call.1} parent=1 // pred_check_branch
      %9411 = sbr.rel (0) target = $region29
    $region28: #{tpu_custom_call.1} parent=1 // pred_region
      %s9413 = ssub.s32 128, 128
      %9414 = vsyncadd [#allocation3], %s9413
      %s9416 = sshll.u32 [#allocation2], 4
      %s9417 = int_to_ptr.vmem [resolvable:$true] %s9416
      %9419 = dma.vmem_to_hbm [thread:$0]  %s9417, 128, %s6, [#allocation3]
    $region29: #{tpu_custom_call.1} parent=1 // pred_fallthru
      _
    // Predicated region
    $region30: #{tpu_custom_call.1} parent=1 // pred_check
      _
    $region31: #{tpu_custom_call.1} parent=1 // pred_check_branch
      %9421 = sbr.rel (0) target = $region33
    $region32: #{tpu_custom_call.1} parent=1 // pred_region
      %9422 = dma.done [#allocation3], 128
    $region33: #{tpu_custom_call.1} parent=1 // pred_fallthru
      _
    %9423 = vsyncpa [#allocation3], 1

</llo_original>
